<compile_context>
chip_gen: v6e
topology: v6e:2x2x1
jax: 0.10.0
libtpu: 0.0.40
codegen_flags: <defaults>
</compile_context>

<pallas_src>
import jax
import jax.numpy as jnp
from jax.experimental import pallas as pl
from jax.experimental.pallas import tpu as pltpu


# ---------------------------------------------------------------------------
# Kernel 1: fused conv1 + ReLU + maxpool1 + conv2 + ReLU + maxpool2
# Processes b_blk images per grid step; activations never leave VMEM.
# ---------------------------------------------------------------------------
def _feature_kernel(p_ref, w1_ref, b1_ref, w2_ref, b2_ref, o_ref,
                    s1_ref, pad2_ref, c_ref, s2_ref):
    B = o_ref.shape[0]                                   # images per grid step

    # conv1 (3x3, pad=1, 1->32): one im2col matmul over the whole block.
    # p_ref rows = 784*b + 28*h + w, taps t = 3*dh + dw.
    a1 = jnp.dot(p_ref[...], w1_ref[...], preferred_element_type=jnp.float32)
    s1_ref[...] = jnp.maximum(a1 + b1_ref[...], 0.0)     # (B*784, 32) f32

    # Zero halo of the pitch-16 padded conv2 input (fresh every step: safe under
    # megacore "parallel" splitting; interior rows are overwritten below).
    pad2_ref[...] = jnp.zeros(pad2_ref.shape, pad2_ref.dtype)

    # maxpool1 2x2/2 per image: w-max via two stride-2 reads, h-max via a +14 shift.
    # Pooled value (a, w2) lands at pad2 row 16*a + 32 + w2 (sublane-aligned stores).
    for b in range(B):
        base = 784 * b
        wm = jnp.maximum(s1_ref[pl.ds(base, 392, stride=2), :],
                         s1_ref[pl.ds(base + 1, 392, stride=2), :])   # rows 14*h + w2
        hm = jnp.maximum(wm[0:378, :], wm[14:392, :])                 # rows 28*a + w2 valid
        for a in range(14):
            pad2_ref[b, 16 * a + 32:16 * a + 46, :] = (
                hm[28 * a:28 * a + 14, :].astype(jnp.bfloat16))

    # conv2 (3x3, pad=1, 32->64): build the K=288 im2col buffer (9 shifted reads of
    # the padded grid, concatenated along lanes), then ONE bf16 MXU matmul (f32 acc).
    # Output row i = 224*b + 16*h2 + w2; tap (dh, dw) reads pad2 row i + 16*dh + dw + 15.
    for b in range(B):
        for t in range(9):
            start = 16 * (t // 3) + (t % 3) + 15
            c_ref[224 * b:224 * b + 224, 32 * t:32 * t + 32] = (
                pad2_ref[b, start:start + 224, :])
    a2 = jnp.dot(c_ref[...], w2_ref[...], preferred_element_type=jnp.float32)
    s2_ref[...] = jnp.maximum(a2 + b2_ref[...], 0.0)      # (B*224, 64) f32

    # maxpool2 2x2/2 per image (same two-stride-2-reads + aligned +8 shift scheme),
    # then write bf16 features in (h, w, c) order: o rows = 7*h4 + w4.
    for b in range(B):
        base = 224 * b
        wm2 = jnp.maximum(s2_ref[pl.ds(base, 111, stride=2), :],
                          s2_ref[pl.ds(base + 1, 111, stride=2), :])  # rows 8*h2 + w4
        hm2 = jnp.maximum(wm2[0:103, :], wm2[8:111, :])               # rows 16*h4 + w4 valid
        for h in range(7):
            o_ref[b, 7 * h:7 * h + 7, :] = (
                hm2[16 * h:16 * h + 7, :].astype(jnp.bfloat16))


# ---------------------------------------------------------------------------
# Kernel 2: fused fc1 + ReLU + fc2 (bf16 MXU matmuls, f32 accumulation),
# tiled over the batch with resident weights.
# ---------------------------------------------------------------------------
def _head_kernel(x_ref, w1_ref, b1_ref, w2_ref, b2_ref, o_ref):
    h = jnp.dot(x_ref[...], w1_ref[...], preferred_element_type=jnp.float32)
    h = jnp.maximum(h + b1_ref[...], 0.0)
    o = jnp.dot(h.astype(jnp.bfloat16), w2_ref[...],
                preferred_element_type=jnp.float32)
    o_ref[...] = o + b2_ref[...]


# ---------------------------------------------------------------------------
# Wrappers
# ---------------------------------------------------------------------------
def _make_stem_patches(x):
    """bf16 im2col for the 3x3 / pad=1 stem conv (Cin=1).

    The raw image is ~3 KB, so this one-off 9-tap gather stays in the XLA wrapper
    (emitted in bf16 to halve the DMA); everything downstream is fused in-kernel.
    """
    n = x.shape[0]
    img = x.reshape(n, 28, 28)
    xpad = jnp.pad(img, ((0, 0), (1, 1), (1, 1)))
    taps = [xpad[:, dh:dh + 28, dw:dw + 28].reshape(n, 784)
            for dh in range(3) for dw in range(3)]            # t = 3*dh + dw
    return jnp.stack(taps, axis=-1).astype(jnp.bfloat16).reshape(n * 784, 9)


def _pick_feature_block(n):
    for c in (8, 4, 2, 1):
        if n % c == 0:
            return c
    return 1


def _pick_head_tile(n):
    for c in (512, 256, 128, 64, 32, 16, 8):
        if n % c == 0:
            return c
    return n      # full-batch block (always legal: equals the array dim)


def cnn_forward(x, params):
    """Forward pass of CNNModel.  x: (N, 1, 28, 28) float32 (NCHW)."""
    n, c, h, w = x.shape
    assert (c, h, w) == (1, 28, 28), "CNNModel's fc1 = 64*7*7 implies 1x28x28 inputs"

    b_blk = _pick_feature_block(n)
    patches = _make_stem_patches(x)                       # (N*784, 9) bf16

    feat = pl.pallas_call(
        _feature_kernel,
        out_shape=jax.ShapeDtypeStruct((n, 49, 64), jnp.bfloat16),
        grid=(n // b_blk,),
        in_specs=[
            pl.BlockSpec((b_blk * 784, 9), lambda i: (i, 0)),
            pl.BlockSpec((9, 32), lambda i: (0, 0)),
            pl.BlockSpec((1, 32), lambda i: (0, 0)),
            pl.BlockSpec((288, 64), lambda i: (0, 0)),
            pl.BlockSpec((1, 64), lambda i: (0, 0)),
        ],
        out_specs=pl.BlockSpec((b_blk, 49, 64), lambda i: (i, 0, 0)),
        scratch_shapes=[
            pltpu.VMEM((b_blk * 784, 32), jnp.float32),   # conv1+ReLU activations
            pltpu.VMEM((b_blk, 288, 32), jnp.bfloat16),   # zero-padded pool1 map (pitch 16)
            pltpu.VMEM((b_blk * 224, 288), jnp.bfloat16),  # conv2 K=288 im2col buffer
            pltpu.VMEM((b_blk * 224, 64), jnp.float32),   # conv2+ReLU activations
        ],
        compiler_params=pltpu.CompilerParams(
            dimension_semantics=("parallel",)),
    )(patches, params['w1'], params['b1'], params['w2'], params['b2'])

    feat = feat.reshape(n, 49 * 64)                       # (h, w, c) flatten, bf16, free

    bt = _pick_head_tile(n)
    logits = pl.pallas_call(
        _head_kernel,
        out_shape=jax.ShapeDtypeStruct((n, 10), jnp.float32),
        grid=(n // bt,),
        in_specs=[
            pl.BlockSpec((bt, 3136), lambda i: (i, 0)),
            pl.BlockSpec((3136, 128), lambda i: (0, 0)),
            pl.BlockSpec((1, 128), lambda i: (0, 0)),
            pl.BlockSpec((128, 10), lambda i: (0, 0)),
            pl.BlockSpec((1, 10), lambda i: (0, 0)),
        ],
        out_specs=pl.BlockSpec((bt, 10), lambda i: (i, 0)),
        compiler_params=pltpu.CompilerParams(
            dimension_semantics=("parallel",)),
    )(feat, params['w_fc1'], params['b_fc1'], params['w_fc2'], params['b_fc2'])
    return logits


# ---------------------------------------------------------------------------
# Deterministic synthetic parameters (layouts match the kernels)
# ---------------------------------------------------------------------------
def init_params(key):
    k = jax.random.split(key, 8)
    # conv1 weight in im2col layout (t = 3*dh + dw, cout), bf16 for the MXU.
    w1 = (jax.random.normal(k[0], (9, 32), jnp.float32)
          * (2.0 / 9) ** 0.5).astype(jnp.bfloat16)
    b1 = 0.01 * jax.random.normal(k[1], (1, 32), jnp.float32)
    # conv2 weight flattened as (32*t + cin, cout) = (96*dh + 32*dw + cin, cout), bf16.
    w2 = (jax.random.normal(k[2], (288, 64), jnp.float32)
          * (2.0 / 288) ** 0.5).astype(jnp.bfloat16)
    b2 = 0.01 * jax.random.normal(k[3], (1, 64), jnp.float32)
    # fc1 rows ordered (h, w, c) to match the kernel's flatten order.
    w_fc1 = (jax.random.normal(k[4], (3136, 128), jnp.float32)
             * (2.0 / 3136) ** 0.5).astype(jnp.bfloat16)
    b_fc1 = 0.01 * jax.random.normal(k[5], (1, 128), jnp.float32)
    w_fc2 = (jax.random.normal(k[6], (128, 10), jnp.float32)
             * (2.0 / 128) ** 0.5).astype(jnp.bfloat16)
    b_fc2 = 0.01 * jax.random.normal(k[7], (1, 10), jnp.float32)
    return dict(w1=w1, b1=b1, w2=w2, b2=b2,
                w_fc1=w_fc1, b_fc1=b_fc1, w_fc2=w_fc2, b_fc2=b_fc2)


# ---------------------------------------------------------------------------
# Pure-JAX reference (f32) used to sanity-check the fused kernels
# ---------------------------------------------------------------------------
def _reference_forward(x, params):
    n = x.shape[0]
    w1 = params['w1'].astype(jnp.float32).reshape(3, 3, 1, 32)    # HWIO
    w2 = params['w2'].astype(jnp.float32).reshape(3, 3, 32, 64)   # HWIO
    a = x.reshape(n, 28, 28, 1)
    a = jax.lax.conv_general_dilated(a, w1, (1, 1), 'SAME',
                                     dimension_numbers=('NHWC', 'HWIO', 'NHWC'))
    a = jax.nn.relu(a + params['b1'].reshape(1, 1, 1, 32))
    a = jax.lax.reduce_window(a, -jnp.inf, jax.lax.max,
                              (1, 2, 2, 1), (1, 2, 2, 1), 'VALID')
    a = jax.lax.conv_general_dilated(a, w2, (1, 1), 'SAME',
                                     dimension_numbers=('NHWC', 'HWIO', 'NHWC'))
    a = jax.nn.relu(a + params['b2'].reshape(1, 1, 1, 64))
    a = jax.lax.reduce_window(a, -jnp.inf, jax.lax.max,
                              (1, 2, 2, 1), (1, 2, 2, 1), 'VALID')
    feat = a.reshape(n, 7 * 7 * 64)                               # (h, w, c) order
    h1 = jax.nn.relu(feat @ params['w_fc1'].astype(jnp.float32) + params['b_fc1'])
    return h1 @ params['w_fc2'].astype(jnp.float32) + params['b_fc2']


if __name__ == "__main__":
    key = jax.random.PRNGKey(0)
    pkey, xkey = jax.random.split(key)
    params = init_params(pkey)
    # fc1 = Linear(64*7*7, 128) after two 2x2 pools  =>  28x28 single-channel input.
    x = jax.random.normal(xkey, (2, 1, 28, 28), jnp.float32)

    logits = jax.block_until_ready(jax.jit(cnn_forward)(x, params))
    assert logits.shape == (2, 10), logits.shape
    assert bool(jnp.all(jnp.isfinite(logits)))

    # Sanity check against a plain-XLA f32 reference (loose tolerance covers the
    # intentional bf16 rounding of patches, pooled maps, features and weights).
    ref = _reference_forward(x, params)
    err = float(jnp.max(jnp.abs(logits - ref)))
    assert bool(jnp.allclose(logits, ref, rtol=6e-2, atol=3e-1)), err

    print("KERNEL_OK")
</pallas_src>

<mosaic_0001>
module attributes {stable_mosaic.version = 11 : i64} {
  func.func @_head_kernel(%arg0: i32, %arg1: memref<2x3136xbf16, #tpu.memory_space<vmem>>, %arg2: memref<3136x128xbf16, #tpu.memory_space<vmem>>, %arg3: memref<1x128xf32, #tpu.memory_space<vmem>>, %arg4: memref<128x10xbf16, #tpu.memory_space<vmem>>, %arg5: memref<1x10xf32, #tpu.memory_space<vmem>>, %arg6: memref<2x10xf32, #tpu.memory_space<vmem>>) attributes {dimension_semantics = [#tpu.dimension_semantics<parallel>], iteration_bounds = array<i64: 1>, scalar_prefetch = 0 : i64, scratch_operands = 0 : i64, tpu.core_type = #tpu.core_type<tc>, window_params = [{transform_indices = @transform_0, window_bounds = array<i64: 2, 3136>}, {pipeline_mode = #tpu.pipeline_mode<synchronous>, transform_indices = @transform_1, window_bounds = array<i64: 3136, 128>}, {pipeline_mode = #tpu.pipeline_mode<synchronous>, transform_indices = @transform_2, window_bounds = array<i64: 1, 128>}, {pipeline_mode = #tpu.pipeline_mode<synchronous>, transform_indices = @transform_3, window_bounds = array<i64: 128, 10>}, {pipeline_mode = #tpu.pipeline_mode<synchronous>, transform_indices = @transform_4, window_bounds = array<i64: 1, 10>}, {transform_indices = @transform_5, window_bounds = array<i64: 2, 10>}]} {
    %c0 = arith.constant 0 : index
    %c0_0 = arith.constant 0 : index
    %0 = vector.load %arg1[%c0, %c0_0] : memref<2x3136xbf16, #tpu.memory_space<vmem>>, vector<2x3136xbf16>
    %c0_1 = arith.constant 0 : index
    %c0_2 = arith.constant 0 : index
    %1 = vector.load %arg2[%c0_1, %c0_2] : memref<3136x128xbf16, #tpu.memory_space<vmem>>, vector<3136x128xbf16>
    %cst = arith.constant dense<0.000000e+00> : vector<2x128xf32>
    %2 = tpu.matmul %0, %1, %cst {dimension_numbers = #tpu.dot_dimension_numbers<[1], [0], [0], [1], [0, 0, 1, 1], [], []>} : vector<2x3136xbf16>, vector<3136x128xbf16>, vector<2x128xf32> -> vector<2x128xf32>
    %c0_3 = arith.constant 0 : index
    %c0_4 = arith.constant 0 : index
    %3 = vector.load %arg3[%c0_3, %c0_4] : memref<1x128xf32, #tpu.memory_space<vmem>>, vector<1x128xf32>
    %4 = vector.broadcast %3 : vector<1x128xf32> to vector<2x128xf32>
    %5 = arith.addf %2, %4 : vector<2x128xf32>
    %cst_5 = arith.constant 0.000000e+00 : f32
    %6 = vector.broadcast %cst_5 : f32 to vector<2x128xf32>
    %7 = arith.maximumf %5, %6 : vector<2x128xf32>
    %8 = arith.truncf %7 : vector<2x128xf32> to vector<2x128xbf16>
    %c0_6 = arith.constant 0 : index
    %c0_7 = arith.constant 0 : index
    %9 = vector.load %arg4[%c0_6, %c0_7] : memref<128x10xbf16, #tpu.memory_space<vmem>>, vector<128x10xbf16>
    %cst_8 = arith.constant dense<0.000000e+00> : vector<2x10xf32>
    %10 = tpu.matmul %8, %9, %cst_8 {dimension_numbers = #tpu.dot_dimension_numbers<[1], [0], [0], [1], [0, 0, 1, 1], [], []>} : vector<2x128xbf16>, vector<128x10xbf16>, vector<2x10xf32> -> vector<2x10xf32>
    %c0_9 = arith.constant 0 : index
    %c0_10 = arith.constant 0 : index
    %11 = vector.load %arg5[%c0_9, %c0_10] : memref<1x10xf32, #tpu.memory_space<vmem>>, vector<1x10xf32>
    %12 = vector.broadcast %11 : vector<1x10xf32> to vector<2x10xf32>
    %13 = arith.addf %10, %12 : vector<2x10xf32>
    %c0_11 = arith.constant 0 : index
    %c0_12 = arith.constant 0 : index
    %14 = vector.load %arg6[%c0_11, %c0_12] : memref<2x10xf32, #tpu.memory_space<vmem>>, vector<2x10xf32>
    tpu.vector_store %arg6[%c0_11, %c0_12], %13 {strides = array<i32>} : memref<2x10xf32, #tpu.memory_space<vmem>>, vector<2x10xf32>,
    return
  }
  func.func @transform_0(%arg0: i32) -> (i32, i32) {
    %c0_i32 = arith.constant 0 : i32
    %c0_i32_0 = arith.constant 0 : i32
    return %arg0, %c0_i32 : i32, i32
  }
  func.func @transform_1(%arg0: i32) -> (i32, i32) {
    %c0_i32 = arith.constant 0 : i32
    %c0_i32_0 = arith.constant 0 : i32
    %c0_i32_1 = arith.constant 0 : i32
    return %c0_i32, %c0_i32_0 : i32, i32
  }
  func.func @transform_2(%arg0: i32) -> (i32, i32) {
    %c0_i32 = arith.constant 0 : i32
    %c0_i32_0 = arith.constant 0 : i32
    %c0_i32_1 = arith.constant 0 : i32
    return %c0_i32, %c0_i32_0 : i32, i32
  }
  func.func @transform_3(%arg0: i32) -> (i32, i32) {
    %c0_i32 = arith.constant 0 : i32
    %c0_i32_0 = arith.constant 0 : i32
    %c0_i32_1 = arith.constant 0 : i32
    return %c0_i32, %c0_i32_0 : i32, i32
  }
  func.func @transform_4(%arg0: i32) -> (i32, i32) {
    %c0_i32 = arith.constant 0 : i32
    %c0_i32_0 = arith.constant 0 : i32
    %c0_i32_1 = arith.constant 0 : i32
    return %c0_i32, %c0_i32_0 : i32, i32
  }
  func.func @transform_5(%arg0: i32) -> (i32, i32) {
    %c0_i32 = arith.constant 0 : i32
    %c0_i32_0 = arith.constant 0 : i32
    return %arg0, %c0_i32 : i32, i32
  }
}

module attributes {stable_mosaic.version = 11 : i64} {
  func.func @_feature_kernel(%arg0: i32, %arg1: memref<1568x9xbf16, #tpu.memory_space<vmem>>, %arg2: memref<9x32xbf16, #tpu.memory_space<vmem>>, %arg3: memref<1x32xf32, #tpu.memory_space<vmem>>, %arg4: memref<288x64xbf16, #tpu.memory_space<vmem>>, %arg5: memref<1x64xf32, #tpu.memory_space<vmem>>, %arg6: memref<2x49x64xbf16, #tpu.memory_space<vmem>>, %arg7: memref<1568x32xf32, #tpu.memory_space<vmem>>, %arg8: memref<2x288x32xbf16, #tpu.memory_space<vmem>>, %arg9: memref<448x288xbf16, #tpu.memory_space<vmem>>, %arg10: memref<448x64xf32, #tpu.memory_space<vmem>>) attributes {dimension_semantics = [#tpu.dimension_semantics<parallel>], iteration_bounds = array<i64: 1>, scalar_prefetch = 0 : i64, scratch_operands = 4 : i64, tpu.core_type = #tpu.core_type<tc>, window_params = [{transform_indices = @transform_0, window_bounds = array<i64: 1568, 9>}, {pipeline_mode = #tpu.pipeline_mode<synchronous>, transform_indices = @transform_1, window_bounds = array<i64: 9, 32>}, {pipeline_mode = #tpu.pipeline_mode<synchronous>, transform_indices = @transform_2, window_bounds = array<i64: 1, 32>}, {pipeline_mode = #tpu.pipeline_mode<synchronous>, transform_indices = @transform_3, window_bounds = array<i64: 288, 64>}, {pipeline_mode = #tpu.pipeline_mode<synchronous>, transform_indices = @transform_4, window_bounds = array<i64: 1, 64>}, {transform_indices = @transform_5, window_bounds = array<i64: 2, 49, 64>}]} {
    %c0 = arith.constant 0 : index
    %c0_0 = arith.constant 0 : index
    %0 = vector.load %arg1[%c0, %c0_0] : memref<1568x9xbf16, #tpu.memory_space<vmem>>, vector<1568x9xbf16>
    %c0_1 = arith.constant 0 : index
    %c0_2 = arith.constant 0 : index
    %1 = vector.load %arg2[%c0_1, %c0_2] : memref<9x32xbf16, #tpu.memory_space<vmem>>, vector<9x32xbf16>
    %cst = arith.constant dense<0.000000e+00> : vector<1568x32xf32>
    %2 = tpu.matmul %0, %1, %cst {dimension_numbers = #tpu.dot_dimension_numbers<[1], [0], [0], [1], [0, 0, 1, 1], [], []>} : vector<1568x9xbf16>, vector<9x32xbf16>, vector<1568x32xf32> -> vector<1568x32xf32>
    %c0_3 = arith.constant 0 : index
    %c0_4 = arith.constant 0 : index
    %3 = vector.load %arg3[%c0_3, %c0_4] : memref<1x32xf32, #tpu.memory_space<vmem>>, vector<1x32xf32>
    %4 = vector.broadcast %3 : vector<1x32xf32> to vector<1568x32xf32>
    %5 = arith.addf %2, %4 : vector<1568x32xf32>
    %cst_5 = arith.constant 0.000000e+00 : f32
    %6 = vector.broadcast %cst_5 : f32 to vector<1568x32xf32>
    %7 = arith.maximumf %5, %6 : vector<1568x32xf32>
    %c0_6 = arith.constant 0 : index
    %c0_7 = arith.constant 0 : index
    %8 = vector.load %arg7[%c0_6, %c0_7] : memref<1568x32xf32, #tpu.memory_space<vmem>>, vector<1568x32xf32>
    tpu.vector_store %arg7[%c0_6, %c0_7], %7 {strides = array<i32>} : memref<1568x32xf32, #tpu.memory_space<vmem>>, vector<1568x32xf32>,
    %cst_8 = arith.constant 0.000000e+00 : bf16
    %9 = vector.broadcast %cst_8 : bf16 to vector<2x288x32xbf16>
    %c0_9 = arith.constant 0 : index
    %c0_10 = arith.constant 0 : index
    %c0_11 = arith.constant 0 : index
    %10 = vector.load %arg8[%c0_9, %c0_10, %c0_11] : memref<2x288x32xbf16, #tpu.memory_space<vmem>>, vector<2x288x32xbf16>
    tpu.vector_store %arg8[%c0_9, %c0_10, %c0_11], %9 {strides = array<i32>} : memref<2x288x32xbf16, #tpu.memory_space<vmem>>, vector<2x288x32xbf16>,
    %c0_12 = arith.constant 0 : index
    %c0_13 = arith.constant 0 : index
    %11 = tpu.strided_load %arg7[%c0_12, %c0_13] {strides = array<i32: 2, 1>} : memref<1568x32xf32, #tpu.memory_space<vmem>>, vector<392x32xf32>
    %c1 = arith.constant 1 : index
    %c0_14 = arith.constant 0 : index
    %12 = tpu.strided_load %arg7[%c1, %c0_14] {strides = array<i32: 2, 1>} : memref<1568x32xf32, #tpu.memory_space<vmem>>, vector<392x32xf32>
    %13 = arith.maximumf %11, %12 : vector<392x32xf32>
    %14 = vector.extract_strided_slice %13 {offsets = [0, 0], sizes = [378, 32], strides = [1, 1]} : vector<392x32xf32> to vector<378x32xf32>
    %15 = vector.extract_strided_slice %13 {offsets = [14, 0], sizes = [378, 32], strides = [1, 1]} : vector<392x32xf32> to vector<378x32xf32>
    %16 = arith.maximumf %14, %15 : vector<378x32xf32>
    %17 = vector.extract_strided_slice %16 {offsets = [0, 0], sizes = [14, 32], strides = [1, 1]} : vector<378x32xf32> to vector<14x32xf32>
    %18 = arith.truncf %17 : vector<14x32xf32> to vector<14x32xbf16>
    %c0_15 = arith.constant 0 : index
    %c32 = arith.constant 32 : index
    %c0_16 = arith.constant 0 : index
    %19 = vector.load %arg8[%c0_15, %c32, %c0_16] : memref<2x288x32xbf16, #tpu.memory_space<vmem>>, vector<1x14x32xbf16>
    %20 = vector.shape_cast %19 : vector<1x14x32xbf16> to vector<14x32xbf16>
    %21 = vector.shape_cast %18 : vector<14x32xbf16> to vector<1x14x32xbf16>
    tpu.vector_store %arg8[%c0_15, %c32, %c0_16], %21 {strides = array<i32>} : memref<2x288x32xbf16, #tpu.memory_space<vmem>>, vector<1x14x32xbf16>,
    %22 = vector.extract_strided_slice %16 {offsets = [28, 0], sizes = [14, 32], strides = [1, 1]} : vector<378x32xf32> to vector<14x32xf32>
    %23 = arith.truncf %22 : vector<14x32xf32> to vector<14x32xbf16>
    %c0_17 = arith.constant 0 : index
    %c48 = arith.constant 48 : index
    %c0_18 = arith.constant 0 : index
    %24 = vector.load %arg8[%c0_17, %c48, %c0_18] : memref<2x288x32xbf16, #tpu.memory_space<vmem>>, vector<1x14x32xbf16>
    %25 = vector.shape_cast %24 : vector<1x14x32xbf16> to vector<14x32xbf16>
    %26 = vector.shape_cast %23 : vector<14x32xbf16> to vector<1x14x32xbf16>
    tpu.vector_store %arg8[%c0_17, %c48, %c0_18], %26 {strides = array<i32>} : memref<2x288x32xbf16, #tpu.memory_space<vmem>>, vector<1x14x32xbf16>,
    %27 = vector.extract_strided_slice %16 {offsets = [56, 0], sizes = [14, 32], strides = [1, 1]} : vector<378x32xf32> to vector<14x32xf32>
    %28 = arith.truncf %27 : vector<14x32xf32> to vector<14x32xbf16>
    %c0_19 = arith.constant 0 : index
    %c64 = arith.constant 64 : index
    %c0_20 = arith.constant 0 : index
    %29 = vector.load %arg8[%c0_19, %c64, %c0_20] : memref<2x288x32xbf16, #tpu.memory_space<vmem>>, vector<1x14x32xbf16>
    %30 = vector.shape_cast %29 : vector<1x14x32xbf16> to vector<14x32xbf16>
    %31 = vector.shape_cast %28 : vector<14x32xbf16> to vector<1x14x32xbf16>
    tpu.vector_store %arg8[%c0_19, %c64, %c0_20], %31 {strides = array<i32>} : memref<2x288x32xbf16, #tpu.memory_space<vmem>>, vector<1x14x32xbf16>,
    %32 = vector.extract_strided_slice %16 {offsets = [84, 0], sizes = [14, 32], strides = [1, 1]} : vector<378x32xf32> to vector<14x32xf32>
    %33 = arith.truncf %32 : vector<14x32xf32> to vector<14x32xbf16>
    %c0_21 = arith.constant 0 : index
    %c80 = arith.constant 80 : index
    %c0_22 = arith.constant 0 : index
    %34 = vector.load %arg8[%c0_21, %c80, %c0_22] : memref<2x288x32xbf16, #tpu.memory_space<vmem>>, vector<1x14x32xbf16>
    %35 = vector.shape_cast %34 : vector<1x14x32xbf16> to vector<14x32xbf16>
    %36 = vector.shape_cast %33 : vector<14x32xbf16> to vector<1x14x32xbf16>
    tpu.vector_store %arg8[%c0_21, %c80, %c0_22], %36 {strides = array<i32>} : memref<2x288x32xbf16, #tpu.memory_space<vmem>>, vector<1x14x32xbf16>,
    %37 = vector.extract_strided_slice %16 {offsets = [112, 0], sizes = [14, 32], strides = [1, 1]} : vector<378x32xf32> to vector<14x32xf32>
    %38 = arith.truncf %37 : vector<14x32xf32> to vector<14x32xbf16>
    %c0_23 = arith.constant 0 : index
    %c96 = arith.constant 96 : index
    %c0_24 = arith.constant 0 : index
    %39 = vector.load %arg8[%c0_23, %c96, %c0_24] : memref<2x288x32xbf16, #tpu.memory_space<vmem>>, vector<1x14x32xbf16>
    %40 = vector.shape_cast %39 : vector<1x14x32xbf16> to vector<14x32xbf16>
    %41 = vector.shape_cast %38 : vector<14x32xbf16> to vector<1x14x32xbf16>
    tpu.vector_store %arg8[%c0_23, %c96, %c0_24], %41 {strides = array<i32>} : memref<2x288x32xbf16, #tpu.memory_space<vmem>>, vector<1x14x32xbf16>,
    %42 = vector.extract_strided_slice %16 {offsets = [140, 0], sizes = [14, 32], strides = [1, 1]} : vector<378x32xf32> to vector<14x32xf32>
    %43 = arith.truncf %42 : vector<14x32xf32> to vector<14x32xbf16>
    %c0_25 = arith.constant 0 : index
    %c112 = arith.constant 112 : index
    %c0_26 = arith.constant 0 : index
    %44 = vector.load %arg8[%c0_25, %c112, %c0_26] : memref<2x288x32xbf16, #tpu.memory_space<vmem>>, vector<1x14x32xbf16>
    %45 = vector.shape_cast %44 : vector<1x14x32xbf16> to vector<14x32xbf16>
    %46 = vector.shape_cast %43 : vector<14x32xbf16> to vector<1x14x32xbf16>
    tpu.vector_store %arg8[%c0_25, %c112, %c0_26], %46 {strides = array<i32>} : memref<2x288x32xbf16, #tpu.memory_space<vmem>>, vector<1x14x32xbf16>,
    %47 = vector.extract_strided_slice %16 {offsets = [168, 0], sizes = [14, 32], strides = [1, 1]} : vector<378x32xf32> to vector<14x32xf32>
    %48 = arith.truncf %47 : vector<14x32xf32> to vector<14x32xbf16>
    %c0_27 = arith.constant 0 : index
    %c128 = arith.constant 128 : index
    %c0_28 = arith.constant 0 : index
    %49 = vector.load %arg8[%c0_27, %c128, %c0_28] : memref<2x288x32xbf16, #tpu.memory_space<vmem>>, vector<1x14x32xbf16>
    %50 = vector.shape_cast %49 : vector<1x14x32xbf16> to vector<14x32xbf16>
    %51 = vector.shape_cast %48 : vector<14x32xbf16> to vector<1x14x32xbf16>
    tpu.vector_store %arg8[%c0_27, %c128, %c0_28], %51 {strides = array<i32>} : memref<2x288x32xbf16, #tpu.memory_space<vmem>>, vector<1x14x32xbf16>,
    %52 = vector.extract_strided_slice %16 {offsets = [196, 0], sizes = [14, 32], strides = [1, 1]} : vector<378x32xf32> to vector<14x32xf32>
    %53 = arith.truncf %52 : vector<14x32xf32> to vector<14x32xbf16>
    %c0_29 = arith.constant 0 : index
    %c144 = arith.constant 144 : index
    %c0_30 = arith.constant 0 : index
    %54 = vector.load %arg8[%c0_29, %c144, %c0_30] : memref<2x288x32xbf16, #tpu.memory_space<vmem>>, vector<1x14x32xbf16>
    %55 = vector.shape_cast %54 : vector<1x14x32xbf16> to vector<14x32xbf16>
    %56 = vector.shape_cast %53 : vector<14x32xbf16> to vector<1x14x32xbf16>
    tpu.vector_store %arg8[%c0_29, %c144, %c0_30], %56 {strides = array<i32>} : memref<2x288x32xbf16, #tpu.memory_space<vmem>>, vector<1x14x32xbf16>,
    %57 = vector.extract_strided_slice %16 {offsets = [224, 0], sizes = [14, 32], strides = [1, 1]} : vector<378x32xf32> to vector<14x32xf32>
    %58 = arith.truncf %57 : vector<14x32xf32> to vector<14x32xbf16>
    %c0_31 = arith.constant 0 : index
    %c160 = arith.constant 160 : index
    %c0_32 = arith.constant 0 : index
    %59 = vector.load %arg8[%c0_31, %c160, %c0_32] : memref<2x288x32xbf16, #tpu.memory_space<vmem>>, vector<1x14x32xbf16>
    %60 = vector.shape_cast %59 : vector<1x14x32xbf16> to vector<14x32xbf16>
    %61 = vector.shape_cast %58 : vector<14x32xbf16> to vector<1x14x32xbf16>
    tpu.vector_store %arg8[%c0_31, %c160, %c0_32], %61 {strides = array<i32>} : memref<2x288x32xbf16, #tpu.memory_space<vmem>>, vector<1x14x32xbf16>,
    %62 = vector.extract_strided_slice %16 {offsets = [252, 0], sizes = [14, 32], strides = [1, 1]} : vector<378x32xf32> to vector<14x32xf32>
    %63 = arith.truncf %62 : vector<14x32xf32> to vector<14x32xbf16>
    %c0_33 = arith.constant 0 : index
    %c176 = arith.constant 176 : index
    %c0_34 = arith.constant 0 : index
    %64 = vector.load %arg8[%c0_33, %c176, %c0_34] : memref<2x288x32xbf16, #tpu.memory_space<vmem>>, vector<1x14x32xbf16>
    %65 = vector.shape_cast %64 : vector<1x14x32xbf16> to vector<14x32xbf16>
    %66 = vector.shape_cast %63 : vector<14x32xbf16> to vector<1x14x32xbf16>
    tpu.vector_store %arg8[%c0_33, %c176, %c0_34], %66 {strides = array<i32>} : memref<2x288x32xbf16, #tpu.memory_space<vmem>>, vector<1x14x32xbf16>,
    %67 = vector.extract_strided_slice %16 {offsets = [280, 0], sizes = [14, 32], strides = [1, 1]} : vector<378x32xf32> to vector<14x32xf32>
    %68 = arith.truncf %67 : vector<14x32xf32> to vector<14x32xbf16>
    %c0_35 = arith.constant 0 : index
    %c192 = arith.constant 192 : index
    %c0_36 = arith.constant 0 : index
    %69 = vector.load %arg8[%c0_35, %c192, %c0_36] : memref<2x288x32xbf16, #tpu.memory_space<vmem>>, vector<1x14x32xbf16>
    %70 = vector.shape_cast %69 : vector<1x14x32xbf16> to vector<14x32xbf16>
    %71 = vector.shape_cast %68 : vector<14x32xbf16> to vector<1x14x32xbf16>
    tpu.vector_store %arg8[%c0_35, %c192, %c0_36], %71 {strides = array<i32>} : memref<2x288x32xbf16, #tpu.memory_space<vmem>>, vector<1x14x32xbf16>,
    %72 = vector.extract_strided_slice %16 {offsets = [308, 0], sizes = [14, 32], strides = [1, 1]} : vector<378x32xf32> to vector<14x32xf32>
    %73 = arith.truncf %72 : vector<14x32xf32> to vector<14x32xbf16>
    %c0_37 = arith.constant 0 : index
    %c208 = arith.constant 208 : index
    %c0_38 = arith.constant 0 : index
    %74 = vector.load %arg8[%c0_37, %c208, %c0_38] : memref<2x288x32xbf16, #tpu.memory_space<vmem>>, vector<1x14x32xbf16>
    %75 = vector.shape_cast %74 : vector<1x14x32xbf16> to vector<14x32xbf16>
    %76 = vector.shape_cast %73 : vector<14x32xbf16> to vector<1x14x32xbf16>
    tpu.vector_store %arg8[%c0_37, %c208, %c0_38], %76 {strides = array<i32>} : memref<2x288x32xbf16, #tpu.memory_space<vmem>>, vector<1x14x32xbf16>,
    %77 = vector.extract_strided_slice %16 {offsets = [336, 0], sizes = [14, 32], strides = [1, 1]} : vector<378x32xf32> to vector<14x32xf32>
    %78 = arith.truncf %77 : vector<14x32xf32> to vector<14x32xbf16>
    %c0_39 = arith.constant 0 : index
    %c224 = arith.constant 224 : index
    %c0_40 = arith.constant 0 : index
    %79 = vector.load %arg8[%c0_39, %c224, %c0_40] : memref<2x288x32xbf16, #tpu.memory_space<vmem>>, vector<1x14x32xbf16>
    %80 = vector.shape_cast %79 : vector<1x14x32xbf16> to vector<14x32xbf16>
    %81 = vector.shape_cast %78 : vector<14x32xbf16> to vector<1x14x32xbf16>
    tpu.vector_store %arg8[%c0_39, %c224, %c0_40], %81 {strides = array<i32>} : memref<2x288x32xbf16, #tpu.memory_space<vmem>>, vector<1x14x32xbf16>,
    %82 = vector.extract_strided_slice %16 {offsets = [364, 0], sizes = [14, 32], strides = [1, 1]} : vector<378x32xf32> to vector<14x32xf32>
    %83 = arith.truncf %82 : vector<14x32xf32> to vector<14x32xbf16>
    %c0_41 = arith.constant 0 : index
    %c240 = arith.constant 240 : index
    %c0_42 = arith.constant 0 : index
    %84 = vector.load %arg8[%c0_41, %c240, %c0_42] : memref<2x288x32xbf16, #tpu.memory_space<vmem>>, vector<1x14x32xbf16>
    %85 = vector.shape_cast %84 : vector<1x14x32xbf16> to vector<14x32xbf16>
    %86 = vector.shape_cast %83 : vector<14x32xbf16> to vector<1x14x32xbf16>
    tpu.vector_store %arg8[%c0_41, %c240, %c0_42], %86 {strides = array<i32>} : memref<2x288x32xbf16, #tpu.memory_space<vmem>>, vector<1x14x32xbf16>,
    %c784 = arith.constant 784 : index
    %c0_43 = arith.constant 0 : index
    %87 = tpu.strided_load %arg7[%c784, %c0_43] {strides = array<i32: 2, 1>} : memref<1568x32xf32, #tpu.memory_space<vmem>>, vector<392x32xf32>
    %c785 = arith.constant 785 : index
    %c0_44 = arith.constant 0 : index
    %88 = tpu.strided_load %arg7[%c785, %c0_44] {strides = array<i32: 2, 1>} : memref<1568x32xf32, #tpu.memory_space<vmem>>, vector<392x32xf32>
    %89 = arith.maximumf %87, %88 : vector<392x32xf32>
    %90 = vector.extract_strided_slice %89 {offsets = [0, 0], sizes = [378, 32], strides = [1, 1]} : vector<392x32xf32> to vector<378x32xf32>
    %91 = vector.extract_strided_slice %89 {offsets = [14, 0], sizes = [378, 32], strides = [1, 1]} : vector<392x32xf32> to vector<378x32xf32>
    %92 = arith.maximumf %90, %91 : vector<378x32xf32>
    %93 = vector.extract_strided_slice %92 {offsets = [0, 0], sizes = [14, 32], strides = [1, 1]} : vector<378x32xf32> to vector<14x32xf32>
    %94 = arith.truncf %93 : vector<14x32xf32> to vector<14x32xbf16>
    %c1_45 = arith.constant 1 : index
    %c32_46 = arith.constant 32 : index
    %c0_47 = arith.constant 0 : index
    %95 = vector.load %arg8[%c1_45, %c32_46, %c0_47] : memref<2x288x32xbf16, #tpu.memory_space<vmem>>, vector<1x14x32xbf16>
    %96 = vector.shape_cast %95 : vector<1x14x32xbf16> to vector<14x32xbf16>
    %97 = vector.shape_cast %94 : vector<14x32xbf16> to vector<1x14x32xbf16>
    tpu.vector_store %arg8[%c1_45, %c32_46, %c0_47], %97 {strides = array<i32>} : memref<2x288x32xbf16, #tpu.memory_space<vmem>>, vector<1x14x32xbf16>,
    %98 = vector.extract_strided_slice %92 {offsets = [28, 0], sizes = [14, 32], strides = [1, 1]} : vector<378x32xf32> to vector<14x32xf32>
    %99 = arith.truncf %98 : vector<14x32xf32> to vector<14x32xbf16>
    %c1_48 = arith.constant 1 : index
    %c48_49 = arith.constant 48 : index
    %c0_50 = arith.constant 0 : index
    %100 = vector.load %arg8[%c1_48, %c48_49, %c0_50] : memref<2x288x32xbf16, #tpu.memory_space<vmem>>, vector<1x14x32xbf16>
    %101 = vector.shape_cast %100 : vector<1x14x32xbf16> to vector<14x32xbf16>
    %102 = vector.shape_cast %99 : vector<14x32xbf16> to vector<1x14x32xbf16>
    tpu.vector_store %arg8[%c1_48, %c48_49, %c0_50], %102 {strides = array<i32>} : memref<2x288x32xbf16, #tpu.memory_space<vmem>>, vector<1x14x32xbf16>,
    %103 = vector.extract_strided_slice %92 {offsets = [56, 0], sizes = [14, 32], strides = [1, 1]} : vector<378x32xf32> to vector<14x32xf32>
    %104 = arith.truncf %103 : vector<14x32xf32> to vector<14x32xbf16>
    %c1_51 = arith.constant 1 : index
    %c64_52 = arith.constant 64 : index
    %c0_53 = arith.constant 0 : index
    %105 = vector.load %arg8[%c1_51, %c64_52, %c0_53] : memref<2x288x32xbf16, #tpu.memory_space<vmem>>, vector<1x14x32xbf16>
    %106 = vector.shape_cast %105 : vector<1x14x32xbf16> to vector<14x32xbf16>
    %107 = vector.shape_cast %104 : vector<14x32xbf16> to vector<1x14x32xbf16>
    tpu.vector_store %arg8[%c1_51, %c64_52, %c0_53], %107 {strides = array<i32>} : memref<2x288x32xbf16, #tpu.memory_space<vmem>>, vector<1x14x32xbf16>,
    %108 = vector.extract_strided_slice %92 {offsets = [84, 0], sizes = [14, 32], strides = [1, 1]} : vector<378x32xf32> to vector<14x32xf32>
    %109 = arith.truncf %108 : vector<14x32xf32> to vector<14x32xbf16>
    %c1_54 = arith.constant 1 : index
    %c80_55 = arith.constant 80 : index
    %c0_56 = arith.constant 0 : index
    %110 = vector.load %arg8[%c1_54, %c80_55, %c0_56] : memref<2x288x32xbf16, #tpu.memory_space<vmem>>, vector<1x14x32xbf16>
    %111 = vector.shape_cast %110 : vector<1x14x32xbf16> to vector<14x32xbf16>
    %112 = vector.shape_cast %109 : vector<14x32xbf16> to vector<1x14x32xbf16>
    tpu.vector_store %arg8[%c1_54, %c80_55, %c0_56], %112 {strides = array<i32>} : memref<2x288x32xbf16, #tpu.memory_space<vmem>>, vector<1x14x32xbf16>,
    %113 = vector.extract_strided_slice %92 {offsets = [112, 0], sizes = [14, 32], strides = [1, 1]} : vector<378x32xf32> to vector<14x32xf32>
    %114 = arith.truncf %113 : vector<14x32xf32> to vector<14x32xbf16>
    %c1_57 = arith.constant 1 : index
    %c96_58 = arith.constant 96 : index
    %c0_59 = arith.constant 0 : index
    %115 = vector.load %arg8[%c1_57, %c96_58, %c0_59] : memref<2x288x32xbf16, #tpu.memory_space<vmem>>, vector<1x14x32xbf16>
    %116 = vector.shape_cast %115 : vector<1x14x32xbf16> to vector<14x32xbf16>
    %117 = vector.shape_cast %114 : vector<14x32xbf16> to vector<1x14x32xbf16>
    tpu.vector_store %arg8[%c1_57, %c96_58, %c0_59], %117 {strides = array<i32>} : memref<2x288x32xbf16, #tpu.memory_space<vmem>>, vector<1x14x32xbf16>,
    %118 = vector.extract_strided_slice %92 {offsets = [140, 0], sizes = [14, 32], strides = [1, 1]} : vector<378x32xf32> to vector<14x32xf32>
    %119 = arith.truncf %118 : vector<14x32xf32> to vector<14x32xbf16>
    %c1_60 = arith.constant 1 : index
    %c112_61 = arith.constant 112 : index
    %c0_62 = arith.constant 0 : index
    %120 = vector.load %arg8[%c1_60, %c112_61, %c0_62] : memref<2x288x32xbf16, #tpu.memory_space<vmem>>, vector<1x14x32xbf16>
    %121 = vector.shape_cast %120 : vector<1x14x32xbf16> to vector<14x32xbf16>
    %122 = vector.shape_cast %119 : vector<14x32xbf16> to vector<1x14x32xbf16>
    tpu.vector_store %arg8[%c1_60, %c112_61, %c0_62], %122 {strides = array<i32>} : memref<2x288x32xbf16, #tpu.memory_space<vmem>>, vector<1x14x32xbf16>,
    %123 = vector.extract_strided_slice %92 {offsets = [168, 0], sizes = [14, 32], strides = [1, 1]} : vector<378x32xf32> to vector<14x32xf32>
    %124 = arith.truncf %123 : vector<14x32xf32> to vector<14x32xbf16>
    %c1_63 = arith.constant 1 : index
    %c128_64 = arith.constant 128 : index
    %c0_65 = arith.constant 0 : index
    %125 = vector.load %arg8[%c1_63, %c128_64, %c0_65] : memref<2x288x32xbf16, #tpu.memory_space<vmem>>, vector<1x14x32xbf16>
    %126 = vector.shape_cast %125 : vector<1x14x32xbf16> to vector<14x32xbf16>
    %127 = vector.shape_cast %124 : vector<14x32xbf16> to vector<1x14x32xbf16>
    tpu.vector_store %arg8[%c1_63, %c128_64, %c0_65], %127 {strides = array<i32>} : memref<2x288x32xbf16, #tpu.memory_space<vmem>>, vector<1x14x32xbf16>,
    %128 = vector.extract_strided_slice %92 {offsets = [196, 0], sizes = [14, 32], strides = [1, 1]} : vector<378x32xf32> to vector<14x32xf32>
    %129 = arith.truncf %128 : vector<14x32xf32> to vector<14x32xbf16>
    %c1_66 = arith.constant 1 : index
    %c144_67 = arith.constant 144 : index
    %c0_68 = arith.constant 0 : index
    %130 = vector.load %arg8[%c1_66, %c144_67, %c0_68] : memref<2x288x32xbf16, #tpu.memory_space<vmem>>, vector<1x14x32xbf16>
    %131 = vector.shape_cast %130 : vector<1x14x32xbf16> to vector<14x32xbf16>
    %132 = vector.shape_cast %129 : vector<14x32xbf16> to vector<1x14x32xbf16>
    tpu.vector_store %arg8[%c1_66, %c144_67, %c0_68], %132 {strides = array<i32>} : memref<2x288x32xbf16, #tpu.memory_space<vmem>>, vector<1x14x32xbf16>,
    %133 = vector.extract_strided_slice %92 {offsets = [224, 0], sizes = [14, 32], strides = [1, 1]} : vector<378x32xf32> to vector<14x32xf32>
    %134 = arith.truncf %133 : vector<14x32xf32> to vector<14x32xbf16>
    %c1_69 = arith.constant 1 : index
    %c160_70 = arith.constant 160 : index
    %c0_71 = arith.constant 0 : index
    %135 = vector.load %arg8[%c1_69, %c160_70, %c0_71] : memref<2x288x32xbf16, #tpu.memory_space<vmem>>, vector<1x14x32xbf16>
    %136 = vector.shape_cast %135 : vector<1x14x32xbf16> to vector<14x32xbf16>
    %137 = vector.shape_cast %134 : vector<14x32xbf16> to vector<1x14x32xbf16>
    tpu.vector_store %arg8[%c1_69, %c160_70, %c0_71], %137 {strides = array<i32>} : memref<2x288x32xbf16, #tpu.memory_space<vmem>>, vector<1x14x32xbf16>,
    %138 = vector.extract_strided_slice %92 {offsets = [252, 0], sizes = [14, 32], strides = [1, 1]} : vector<378x32xf32> to vector<14x32xf32>
    %139 = arith.truncf %138 : vector<14x32xf32> to vector<14x32xbf16>
    %c1_72 = arith.constant 1 : index
    %c176_73 = arith.constant 176 : index
    %c0_74 = arith.constant 0 : index
    %140 = vector.load %arg8[%c1_72, %c176_73, %c0_74] : memref<2x288x32xbf16, #tpu.memory_space<vmem>>, vector<1x14x32xbf16>
    %141 = vector.shape_cast %140 : vector<1x14x32xbf16> to vector<14x32xbf16>
    %142 = vector.shape_cast %139 : vector<14x32xbf16> to vector<1x14x32xbf16>
    tpu.vector_store %arg8[%c1_72, %c176_73, %c0_74], %142 {strides = array<i32>} : memref<2x288x32xbf16, #tpu.memory_space<vmem>>, vector<1x14x32xbf16>,
    %143 = vector.extract_strided_slice %92 {offsets = [280, 0], sizes = [14, 32], strides = [1, 1]} : vector<378x32xf32> to vector<14x32xf32>
    %144 = arith.truncf %143 : vector<14x32xf32> to vector<14x32xbf16>
    %c1_75 = arith.constant 1 : index
    %c192_76 = arith.constant 192 : index
    %c0_77 = arith.constant 0 : index
    %145 = vector.load %arg8[%c1_75, %c192_76, %c0_77] : memref<2x288x32xbf16, #tpu.memory_space<vmem>>, vector<1x14x32xbf16>
    %146 = vector.shape_cast %145 : vector<1x14x32xbf16> to vector<14x32xbf16>
    %147 = vector.shape_cast %144 : vector<14x32xbf16> to vector<1x14x32xbf16>
    tpu.vector_store %arg8[%c1_75, %c192_76, %c0_77], %147 {strides = array<i32>} : memref<2x288x32xbf16, #tpu.memory_space<vmem>>, vector<1x14x32xbf16>,
    %148 = vector.extract_strided_slice %92 {offsets = [308, 0], sizes = [14, 32], strides = [1, 1]} : vector<378x32xf32> to vector<14x32xf32>
    %149 = arith.truncf %148 : vector<14x32xf32> to vector<14x32xbf16>
    %c1_78 = arith.constant 1 : index
    %c208_79 = arith.constant 208 : index
    %c0_80 = arith.constant 0 : index
    %150 = vector.load %arg8[%c1_78, %c208_79, %c0_80] : memref<2x288x32xbf16, #tpu.memory_space<vmem>>, vector<1x14x32xbf16>
    %151 = vector.shape_cast %150 : vector<1x14x32xbf16> to vector<14x32xbf16>
    %152 = vector.shape_cast %149 : vector<14x32xbf16> to vector<1x14x32xbf16>
    tpu.vector_store %arg8[%c1_78, %c208_79, %c0_80], %152 {strides = array<i32>} : memref<2x288x32xbf16, #tpu.memory_space<vmem>>, vector<1x14x32xbf16>,
    %153 = vector.extract_strided_slice %92 {offsets = [336, 0], sizes = [14, 32], strides = [1, 1]} : vector<378x32xf32> to vector<14x32xf32>
    %154 = arith.truncf %153 : vector<14x32xf32> to vector<14x32xbf16>
    %c1_81 = arith.constant 1 : index
    %c224_82 = arith.constant 224 : index
    %c0_83 = arith.constant 0 : index
    %155 = vector.load %arg8[%c1_81, %c224_82, %c0_83] : memref<2x288x32xbf16, #tpu.memory_space<vmem>>, vector<1x14x32xbf16>
    %156 = vector.shape_cast %155 : vector<1x14x32xbf16> to vector<14x32xbf16>
    %157 = vector.shape_cast %154 : vector<14x32xbf16> to vector<1x14x32xbf16>
    tpu.vector_store %arg8[%c1_81, %c224_82, %c0_83], %157 {strides = array<i32>} : memref<2x288x32xbf16, #tpu.memory_space<vmem>>, vector<1x14x32xbf16>,
    %158 = vector.extract_strided_slice %92 {offsets = [364, 0], sizes = [14, 32], strides = [1, 1]} : vector<378x32xf32> to vector<14x32xf32>
    %159 = arith.truncf %158 : vector<14x32xf32> to vector<14x32xbf16>
    %c1_84 = arith.constant 1 : index
    %c240_85 = arith.constant 240 : index
    %c0_86 = arith.constant 0 : index
    %160 = vector.load %arg8[%c1_84, %c240_85, %c0_86] : memref<2x288x32xbf16, #tpu.memory_space<vmem>>, vector<1x14x32xbf16>
    %161 = vector.shape_cast %160 : vector<1x14x32xbf16> to vector<14x32xbf16>
    %162 = vector.shape_cast %159 : vector<14x32xbf16> to vector<1x14x32xbf16>
    tpu.vector_store %arg8[%c1_84, %c240_85, %c0_86], %162 {strides = array<i32>} : memref<2x288x32xbf16, #tpu.memory_space<vmem>>, vector<1x14x32xbf16>,
    %c0_87 = arith.constant 0 : index
    %c15 = arith.constant 15 : index
    %c0_88 = arith.constant 0 : index
    %163 = vector.load %arg8[%c0_87, %c15, %c0_88] : memref<2x288x32xbf16, #tpu.memory_space<vmem>>, vector<1x224x32xbf16>
    %164 = vector.shape_cast %163 : vector<1x224x32xbf16> to vector<224x32xbf16>
    %c0_89 = arith.constant 0 : index
    %c0_90 = arith.constant 0 : index
    %165 = vector.load %arg9[%c0_89, %c0_90] : memref<448x288xbf16, #tpu.memory_space<vmem>>, vector<224x32xbf16>
    tpu.vector_store %arg9[%c0_89, %c0_90], %164 {strides = array<i32>} : memref<448x288xbf16, #tpu.memory_space<vmem>>, vector<224x32xbf16>,
    %c0_91 = arith.constant 0 : index
    %c16 = arith.constant 16 : index
    %c0_92 = arith.constant 0 : index
    %166 = vector.load %arg8[%c0_91, %c16, %c0_92] : memref<2x288x32xbf16, #tpu.memory_space<vmem>>, vector<1x224x32xbf16>
    %167 = vector.shape_cast %166 : vector<1x224x32xbf16> to vector<224x32xbf16>
    %c0_93 = arith.constant 0 : index
    %c32_94 = arith.constant 32 : index
    %168 = vector.load %arg9[%c0_93, %c32_94] : memref<448x288xbf16, #tpu.memory_space<vmem>>, vector<224x32xbf16>
    tpu.vector_store %arg9[%c0_93, %c32_94], %167 {strides = array<i32>} : memref<448x288xbf16, #tpu.memory_space<vmem>>, vector<224x32xbf16>,
    %c0_95 = arith.constant 0 : index
    %c17 = arith.constant 17 : index
    %c0_96 = arith.constant 0 : index
    %169 = vector.load %arg8[%c0_95, %c17, %c0_96] : memref<2x288x32xbf16, #tpu.memory_space<vmem>>, vector<1x224x32xbf16>
    %170 = vector.shape_cast %169 : vector<1x224x32xbf16> to vector<224x32xbf16>
    %c0_97 = arith.constant 0 : index
    %c64_98 = arith.constant 64 : index
    %171 = vector.load %arg9[%c0_97, %c64_98] : memref<448x288xbf16, #tpu.memory_space<vmem>>, vector<224x32xbf16>
    tpu.vector_store %arg9[%c0_97, %c64_98], %170 {strides = array<i32>} : memref<448x288xbf16, #tpu.memory_space<vmem>>, vector<224x32xbf16>,
    %c0_99 = arith.constant 0 : index
    %c31 = arith.constant 31 : index
    %c0_100 = arith.constant 0 : index
    %172 = vector.load %arg8[%c0_99, %c31, %c0_100] : memref<2x288x32xbf16, #tpu.memory_space<vmem>>, vector<1x224x32xbf16>
    %173 = vector.shape_cast %172 : vector<1x224x32xbf16> to vector<224x32xbf16>
    %c0_101 = arith.constant 0 : index
    %c96_102 = arith.constant 96 : index
    %174 = vector.load %arg9[%c0_101, %c96_102] : memref<448x288xbf16, #tpu.memory_space<vmem>>, vector<224x32xbf16>
    tpu.vector_store %arg9[%c0_101, %c96_102], %173 {strides = array<i32>} : memref<448x288xbf16, #tpu.memory_space<vmem>>, vector<224x32xbf16>,
    %c0_103 = arith.constant 0 : index
    %c32_104 = arith.constant 32 : index
    %c0_105 = arith.constant 0 : index
    %175 = vector.load %arg8[%c0_103, %c32_104, %c0_105] : memref<2x288x32xbf16, #tpu.memory_space<vmem>>, vector<1x224x32xbf16>
    %176 = vector.shape_cast %175 : vector<1x224x32xbf16> to vector<224x32xbf16>
    %c0_106 = arith.constant 0 : index
    %c128_107 = arith.constant 128 : index
    %177 = vector.load %arg9[%c0_106, %c128_107] : memref<448x288xbf16, #tpu.memory_space<vmem>>, vector<224x32xbf16>
    tpu.vector_store %arg9[%c0_106, %c128_107], %176 {strides = array<i32>} : memref<448x288xbf16, #tpu.memory_space<vmem>>, vector<224x32xbf16>,
    %c0_108 = arith.constant 0 : index
    %c33 = arith.constant 33 : index
    %c0_109 = arith.constant 0 : index
    %178 = vector.load %arg8[%c0_108, %c33, %c0_109] : memref<2x288x32xbf16, #tpu.memory_space<vmem>>, vector<1x224x32xbf16>
    %179 = vector.shape_cast %178 : vector<1x224x32xbf16> to vector<224x32xbf16>
    %c0_110 = arith.constant 0 : index
    %c160_111 = arith.constant 160 : index
    %180 = vector.load %arg9[%c0_110, %c160_111] : memref<448x288xbf16, #tpu.memory_space<vmem>>, vector<224x32xbf16>
    tpu.vector_store %arg9[%c0_110, %c160_111], %179 {strides = array<i32>} : memref<448x288xbf16, #tpu.memory_space<vmem>>, vector<224x32xbf16>,
    %c0_112 = arith.constant 0 : index
    %c47 = arith.constant 47 : index
    %c0_113 = arith.constant 0 : index
    %181 = vector.load %arg8[%c0_112, %c47, %c0_113] : memref<2x288x32xbf16, #tpu.memory_space<vmem>>, vector<1x224x32xbf16>
    %182 = vector.shape_cast %181 : vector<1x224x32xbf16> to vector<224x32xbf16>
    %c0_114 = arith.constant 0 : index
    %c192_115 = arith.constant 192 : index
    %183 = vector.load %arg9[%c0_114, %c192_115] : memref<448x288xbf16, #tpu.memory_space<vmem>>, vector<224x32xbf16>
    tpu.vector_store %arg9[%c0_114, %c192_115], %182 {strides = array<i32>} : memref<448x288xbf16, #tpu.memory_space<vmem>>, vector<224x32xbf16>,
    %c0_116 = arith.constant 0 : index
    %c48_117 = arith.constant 48 : index
    %c0_118 = arith.constant 0 : index
    %184 = vector.load %arg8[%c0_116, %c48_117, %c0_118] : memref<2x288x32xbf16, #tpu.memory_space<vmem>>, vector<1x224x32xbf16>
    %185 = vector.shape_cast %184 : vector<1x224x32xbf16> to vector<224x32xbf16>
    %c0_119 = arith.constant 0 : index
    %c224_120 = arith.constant 224 : index
    %186 = vector.load %arg9[%c0_119, %c224_120] : memref<448x288xbf16, #tpu.memory_space<vmem>>, vector<224x32xbf16>
    tpu.vector_store %arg9[%c0_119, %c224_120], %185 {strides = array<i32>} : memref<448x288xbf16, #tpu.memory_space<vmem>>, vector<224x32xbf16>,
    %c0_121 = arith.constant 0 : index
    %c49 = arith.constant 49 : index
    %c0_122 = arith.constant 0 : index
    %187 = vector.load %arg8[%c0_121, %c49, %c0_122] : memref<2x288x32xbf16, #tpu.memory_space<vmem>>, vector<1x224x32xbf16>
    %188 = vector.shape_cast %187 : vector<1x224x32xbf16> to vector<224x32xbf16>
    %c0_123 = arith.constant 0 : index
    %c256 = arith.constant 256 : index
    %189 = vector.load %arg9[%c0_123, %c256] : memref<448x288xbf16, #tpu.memory_space<vmem>>, vector<224x32xbf16>
    tpu.vector_store %arg9[%c0_123, %c256], %188 {strides = array<i32>} : memref<448x288xbf16, #tpu.memory_space<vmem>>, vector<224x32xbf16>,
    %c1_124 = arith.constant 1 : index
    %c15_125 = arith.constant 15 : index
    %c0_126 = arith.constant 0 : index
    %190 = vector.load %arg8[%c1_124, %c15_125, %c0_126] : memref<2x288x32xbf16, #tpu.memory_space<vmem>>, vector<1x224x32xbf16>
    %191 = vector.shape_cast %190 : vector<1x224x32xbf16> to vector<224x32xbf16>
    %c224_127 = arith.constant 224 : index
    %c0_128 = arith.constant 0 : index
    %192 = vector.load %arg9[%c224_127, %c0_128] : memref<448x288xbf16, #tpu.memory_space<vmem>>, vector<224x32xbf16>
    tpu.vector_store %arg9[%c224_127, %c0_128], %191 {strides = array<i32>} : memref<448x288xbf16, #tpu.memory_space<vmem>>, vector<224x32xbf16>,
    %c1_129 = arith.constant 1 : index
    %c16_130 = arith.constant 16 : index
    %c0_131 = arith.constant 0 : index
    %193 = vector.load %arg8[%c1_129, %c16_130, %c0_131] : memref<2x288x32xbf16, #tpu.memory_space<vmem>>, vector<1x224x32xbf16>
    %194 = vector.shape_cast %193 : vector<1x224x32xbf16> to vector<224x32xbf16>
    %c224_132 = arith.constant 224 : index
    %c32_133 = arith.constant 32 : index
    %195 = vector.load %arg9[%c224_132, %c32_133] : memref<448x288xbf16, #tpu.memory_space<vmem>>, vector<224x32xbf16>
    tpu.vector_store %arg9[%c224_132, %c32_133], %194 {strides = array<i32>} : memref<448x288xbf16, #tpu.memory_space<vmem>>, vector<224x32xbf16>,
    %c1_134 = arith.constant 1 : index
    %c17_135 = arith.constant 17 : index
    %c0_136 = arith.constant 0 : index
    %196 = vector.load %arg8[%c1_134, %c17_135, %c0_136] : memref<2x288x32xbf16, #tpu.memory_space<vmem>>, vector<1x224x32xbf16>
    %197 = vector.shape_cast %196 : vector<1x224x32xbf16> to vector<224x32xbf16>
    %c224_137 = arith.constant 224 : index
    %c64_138 = arith.constant 64 : index
    %198 = vector.load %arg9[%c224_137, %c64_138] : memref<448x288xbf16, #tpu.memory_space<vmem>>, vector<224x32xbf16>
    tpu.vector_store %arg9[%c224_137, %c64_138], %197 {strides = array<i32>} : memref<448x288xbf16, #tpu.memory_space<vmem>>, vector<224x32xbf16>,
    %c1_139 = arith.constant 1 : index
    %c31_140 = arith.constant 31 : index
    %c0_141 = arith.constant 0 : index
    %199 = vector.load %arg8[%c1_139, %c31_140, %c0_141] : memref<2x288x32xbf16, #tpu.memory_space<vmem>>, vector<1x224x32xbf16>
    %200 = vector.shape_cast %199 : vector<1x224x32xbf16> to vector<224x32xbf16>
    %c224_142 = arith.constant 224 : index
    %c96_143 = arith.constant 96 : index
    %201 = vector.load %arg9[%c224_142, %c96_143] : memref<448x288xbf16, #tpu.memory_space<vmem>>, vector<224x32xbf16>
    tpu.vector_store %arg9[%c224_142, %c96_143], %200 {strides = array<i32>} : memref<448x288xbf16, #tpu.memory_space<vmem>>, vector<224x32xbf16>,
    %c1_144 = arith.constant 1 : index
    %c32_145 = arith.constant 32 : index
    %c0_146 = arith.constant 0 : index
    %202 = vector.load %arg8[%c1_144, %c32_145, %c0_146] : memref<2x288x32xbf16, #tpu.memory_space<vmem>>, vector<1x224x32xbf16>
    %203 = vector.shape_cast %202 : vector<1x224x32xbf16> to vector<224x32xbf16>
    %c224_147 = arith.constant 224 : index
    %c128_148 = arith.constant 128 : index
    %204 = vector.load %arg9[%c224_147, %c128_148] : memref<448x288xbf16, #tpu.memory_space<vmem>>, vector<224x32xbf16>
    tpu.vector_store %arg9[%c224_147, %c128_148], %203 {strides = array<i32>} : memref<448x288xbf16, #tpu.memory_space<vmem>>, vector<224x32xbf16>,
    %c1_149 = arith.constant 1 : index
    %c33_150 = arith.constant 33 : index
    %c0_151 = arith.constant 0 : index
    %205 = vector.load %arg8[%c1_149, %c33_150, %c0_151] : memref<2x288x32xbf16, #tpu.memory_space<vmem>>, vector<1x224x32xbf16>
    %206 = vector.shape_cast %205 : vector<1x224x32xbf16> to vector<224x32xbf16>
    %c224_152 = arith.constant 224 : index
    %c160_153 = arith.constant 160 : index
    %207 = vector.load %arg9[%c224_152, %c160_153] : memref<448x288xbf16, #tpu.memory_space<vmem>>, vector<224x32xbf16>
    tpu.vector_store %arg9[%c224_152, %c160_153], %206 {strides = array<i32>} : memref<448x288xbf16, #tpu.memory_space<vmem>>, vector<224x32xbf16>,
    %c1_154 = arith.constant 1 : index
    %c47_155 = arith.constant 47 : index
    %c0_156 = arith.constant 0 : index
    %208 = vector.load %arg8[%c1_154, %c47_155, %c0_156] : memref<2x288x32xbf16, #tpu.memory_space<vmem>>, vector<1x224x32xbf16>
    %209 = vector.shape_cast %208 : vector<1x224x32xbf16> to vector<224x32xbf16>
    %c224_157 = arith.constant 224 : index
    %c192_158 = arith.constant 192 : index
    %210 = vector.load %arg9[%c224_157, %c192_158] : memref<448x288xbf16, #tpu.memory_space<vmem>>, vector<224x32xbf16>
    tpu.vector_store %arg9[%c224_157, %c192_158], %209 {strides = array<i32>} : memref<448x288xbf16, #tpu.memory_space<vmem>>, vector<224x32xbf16>,
    %c1_159 = arith.constant 1 : index
    %c48_160 = arith.constant 48 : index
    %c0_161 = arith.constant 0 : index
    %211 = vector.load %arg8[%c1_159, %c48_160, %c0_161] : memref<2x288x32xbf16, #tpu.memory_space<vmem>>, vector<1x224x32xbf16>
    %212 = vector.shape_cast %211 : vector<1x224x32xbf16> to vector<224x32xbf16>
    %c224_162 = arith.constant 224 : index
    %c224_163 = arith.constant 224 : index
    %213 = vector.load %arg9[%c224_162, %c224_163] : memref<448x288xbf16, #tpu.memory_space<vmem>>, vector<224x32xbf16>
    tpu.vector_store %arg9[%c224_162, %c224_163], %212 {strides = array<i32>} : memref<448x288xbf16, #tpu.memory_space<vmem>>, vector<224x32xbf16>,
    %c1_164 = arith.constant 1 : index
    %c49_165 = arith.constant 49 : index
    %c0_166 = arith.constant 0 : index
    %214 = vector.load %arg8[%c1_164, %c49_165, %c0_166] : memref<2x288x32xbf16, #tpu.memory_space<vmem>>, vector<1x224x32xbf16>
    %215 = vector.shape_cast %214 : vector<1x224x32xbf16> to vector<224x32xbf16>
    %c224_167 = arith.constant 224 : index
    %c256_168 = arith.constant 256 : index
    %216 = vector.load %arg9[%c224_167, %c256_168] : memref<448x288xbf16, #tpu.memory_space<vmem>>, vector<224x32xbf16>
    tpu.vector_store %arg9[%c224_167, %c256_168], %215 {strides = array<i32>} : memref<448x288xbf16, #tpu.memory_space<vmem>>, vector<224x32xbf16>,
    %c0_169 = arith.constant 0 : index
    %c0_170 = arith.constant 0 : index
    %217 = vector.load %arg9[%c0_169, %c0_170] : memref<448x288xbf16, #tpu.memory_space<vmem>>, vector<448x288xbf16>
    %c0_171 = arith.constant 0 : index
    %c0_172 = arith.constant 0 : index
    %218 = vector.load %arg4[%c0_171, %c0_172] : memref<288x64xbf16, #tpu.memory_space<vmem>>, vector<288x64xbf16>
    %cst_173 = arith.constant dense<0.000000e+00> : vector<448x64xf32>
    %219 = tpu.matmul %217, %218, %cst_173 {dimension_numbers = #tpu.dot_dimension_numbers<[1], [0], [0], [1], [0, 0, 1, 1], [], []>} : vector<448x288xbf16>, vector<288x64xbf16>, vector<448x64xf32> -> vector<448x64xf32>
    %c0_174 = arith.constant 0 : index
    %c0_175 = arith.constant 0 : index
    %220 = vector.load %arg5[%c0_174, %c0_175] : memref<1x64xf32, #tpu.memory_space<vmem>>, vector<1x64xf32>
    %221 = vector.broadcast %220 : vector<1x64xf32> to vector<448x64xf32>
    %222 = arith.addf %219, %221 : vector<448x64xf32>
    %cst_176 = arith.constant 0.000000e+00 : f32
    %223 = vector.broadcast %cst_176 : f32 to vector<448x64xf32>
    %224 = arith.maximumf %222, %223 : vector<448x64xf32>
    %c0_177 = arith.constant 0 : index
    %c0_178 = arith.constant 0 : index
    %225 = vector.load %arg10[%c0_177, %c0_178] : memref<448x64xf32, #tpu.memory_space<vmem>>, vector<448x64xf32>
    tpu.vector_store %arg10[%c0_177, %c0_178], %224 {strides = array<i32>} : memref<448x64xf32, #tpu.memory_space<vmem>>, vector<448x64xf32>,
    %c0_179 = arith.constant 0 : index
    %c0_180 = arith.constant 0 : index
    %226 = tpu.strided_load %arg10[%c0_179, %c0_180] {strides = array<i32: 2, 1>} : memref<448x64xf32, #tpu.memory_space<vmem>>, vector<111x64xf32>
    %c1_181 = arith.constant 1 : index
    %c0_182 = arith.constant 0 : index
    %227 = tpu.strided_load %arg10[%c1_181, %c0_182] {strides = array<i32: 2, 1>} : memref<448x64xf32, #tpu.memory_space<vmem>>, vector<111x64xf32>
    %228 = arith.maximumf %226, %227 : vector<111x64xf32>
    %229 = vector.extract_strided_slice %228 {offsets = [0, 0], sizes = [103, 64], strides = [1, 1]} : vector<111x64xf32> to vector<103x64xf32>
    %230 = vector.extract_strided_slice %228 {offsets = [8, 0], sizes = [103, 64], strides = [1, 1]} : vector<111x64xf32> to vector<103x64xf32>
    %231 = arith.maximumf %229, %230 : vector<103x64xf32>
    %232 = vector.extract_strided_slice %231 {offsets = [0, 0], sizes = [7, 64], strides = [1, 1]} : vector<103x64xf32> to vector<7x64xf32>
    %233 = arith.truncf %232 : vector<7x64xf32> to vector<7x64xbf16>
    %c0_183 = arith.constant 0 : index
    %c0_184 = arith.constant 0 : index
    %c0_185 = arith.constant 0 : index
    %234 = vector.load %arg6[%c0_183, %c0_184, %c0_185] : memref<2x49x64xbf16, #tpu.memory_space<vmem>>, vector<1x7x64xbf16>
    %235 = vector.shape_cast %234 : vector<1x7x64xbf16> to vector<7x64xbf16>
    %236 = vector.shape_cast %233 : vector<7x64xbf16> to vector<1x7x64xbf16>
    tpu.vector_store %arg6[%c0_183, %c0_184, %c0_185], %236 {strides = array<i32>} : memref<2x49x64xbf16, #tpu.memory_space<vmem>>, vector<1x7x64xbf16>,
    %237 = vector.extract_strided_slice %231 {offsets = [16, 0], sizes = [7, 64], strides = [1, 1]} : vector<103x64xf32> to vector<7x64xf32>
    %238 = arith.truncf %237 : vector<7x64xf32> to vector<7x64xbf16>
    %c0_186 = arith.constant 0 : index
    %c7 = arith.constant 7 : index
    %c0_187 = arith.constant 0 : index
    %239 = vector.load %arg6[%c0_186, %c7, %c0_187] : memref<2x49x64xbf16, #tpu.memory_space<vmem>>, vector<1x7x64xbf16>
    %240 = vector.shape_cast %239 : vector<1x7x64xbf16> to vector<7x64xbf16>
    %241 = vector.shape_cast %238 : vector<7x64xbf16> to vector<1x7x64xbf16>
    tpu.vector_store %arg6[%c0_186, %c7, %c0_187], %241 {strides = array<i32>} : memref<2x49x64xbf16, #tpu.memory_space<vmem>>, vector<1x7x64xbf16>,
    %242 = vector.extract_strided_slice %231 {offsets = [32, 0], sizes = [7, 64], strides = [1, 1]} : vector<103x64xf32> to vector<7x64xf32>
    %243 = arith.truncf %242 : vector<7x64xf32> to vector<7x64xbf16>
    %c0_188 = arith.constant 0 : index
    %c14 = arith.constant 14 : index
    %c0_189 = arith.constant 0 : index
    %244 = vector.load %arg6[%c0_188, %c14, %c0_189] : memref<2x49x64xbf16, #tpu.memory_space<vmem>>, vector<1x7x64xbf16>
    %245 = vector.shape_cast %244 : vector<1x7x64xbf16> to vector<7x64xbf16>
    %246 = vector.shape_cast %243 : vector<7x64xbf16> to vector<1x7x64xbf16>
    tpu.vector_store %arg6[%c0_188, %c14, %c0_189], %246 {strides = array<i32>} : memref<2x49x64xbf16, #tpu.memory_space<vmem>>, vector<1x7x64xbf16>,
    %247 = vector.extract_strided_slice %231 {offsets = [48, 0], sizes = [7, 64], strides = [1, 1]} : vector<103x64xf32> to vector<7x64xf32>
    %248 = arith.truncf %247 : vector<7x64xf32> to vector<7x64xbf16>
    %c0_190 = arith.constant 0 : index
    %c21 = arith.constant 21 : index
    %c0_191 = arith.constant 0 : index
    %249 = vector.load %arg6[%c0_190, %c21, %c0_191] : memref<2x49x64xbf16, #tpu.memory_space<vmem>>, vector<1x7x64xbf16>
    %250 = vector.shape_cast %249 : vector<1x7x64xbf16> to vector<7x64xbf16>
    %251 = vector.shape_cast %248 : vector<7x64xbf16> to vector<1x7x64xbf16>
    tpu.vector_store %arg6[%c0_190, %c21, %c0_191], %251 {strides = array<i32>} : memref<2x49x64xbf16, #tpu.memory_space<vmem>>, vector<1x7x64xbf16>,
    %252 = vector.extract_strided_slice %231 {offsets = [64, 0], sizes = [7, 64], strides = [1, 1]} : vector<103x64xf32> to vector<7x64xf32>
    %253 = arith.truncf %252 : vector<7x64xf32> to vector<7x64xbf16>
    %c0_192 = arith.constant 0 : index
    %c28 = arith.constant 28 : index
    %c0_193 = arith.constant 0 : index
    %254 = vector.load %arg6[%c0_192, %c28, %c0_193] : memref<2x49x64xbf16, #tpu.memory_space<vmem>>, vector<1x7x64xbf16>
    %255 = vector.shape_cast %254 : vector<1x7x64xbf16> to vector<7x64xbf16>
    %256 = vector.shape_cast %253 : vector<7x64xbf16> to vector<1x7x64xbf16>
    tpu.vector_store %arg6[%c0_192, %c28, %c0_193], %256 {strides = array<i32>} : memref<2x49x64xbf16, #tpu.memory_space<vmem>>, vector<1x7x64xbf16>,
    %257 = vector.extract_strided_slice %231 {offsets = [80, 0], sizes = [7, 64], strides = [1, 1]} : vector<103x64xf32> to vector<7x64xf32>
    %258 = arith.truncf %257 : vector<7x64xf32> to vector<7x64xbf16>
    %c0_194 = arith.constant 0 : index
    %c35 = arith.constant 35 : index
    %c0_195 = arith.constant 0 : index
    %259 = vector.load %arg6[%c0_194, %c35, %c0_195] : memref<2x49x64xbf16, #tpu.memory_space<vmem>>, vector<1x7x64xbf16>
    %260 = vector.shape_cast %259 : vector<1x7x64xbf16> to vector<7x64xbf16>
    %261 = vector.shape_cast %258 : vector<7x64xbf16> to vector<1x7x64xbf16>
    tpu.vector_store %arg6[%c0_194, %c35, %c0_195], %261 {strides = array<i32>} : memref<2x49x64xbf16, #tpu.memory_space<vmem>>, vector<1x7x64xbf16>,
    %262 = vector.extract_strided_slice %231 {offsets = [96, 0], sizes = [7, 64], strides = [1, 1]} : vector<103x64xf32> to vector<7x64xf32>
    %263 = arith.truncf %262 : vector<7x64xf32> to vector<7x64xbf16>
    %c0_196 = arith.constant 0 : index
    %c42 = arith.constant 42 : index
    %c0_197 = arith.constant 0 : index
    %264 = vector.load %arg6[%c0_196, %c42, %c0_197] : memref<2x49x64xbf16, #tpu.memory_space<vmem>>, vector<1x7x64xbf16>
    %265 = vector.shape_cast %264 : vector<1x7x64xbf16> to vector<7x64xbf16>
    %266 = vector.shape_cast %263 : vector<7x64xbf16> to vector<1x7x64xbf16>
    tpu.vector_store %arg6[%c0_196, %c42, %c0_197], %266 {strides = array<i32>} : memref<2x49x64xbf16, #tpu.memory_space<vmem>>, vector<1x7x64xbf16>,
    %c224_198 = arith.constant 224 : index
    %c0_199 = arith.constant 0 : index
    %267 = tpu.strided_load %arg10[%c224_198, %c0_199] {strides = array<i32: 2, 1>} : memref<448x64xf32, #tpu.memory_space<vmem>>, vector<111x64xf32>
    %c225 = arith.constant 225 : index
    %c0_200 = arith.constant 0 : index
    %268 = tpu.strided_load %arg10[%c225, %c0_200] {strides = array<i32: 2, 1>} : memref<448x64xf32, #tpu.memory_space<vmem>>, vector<111x64xf32>
    %269 = arith.maximumf %267, %268 : vector<111x64xf32>
    %270 = vector.extract_strided_slice %269 {offsets = [0, 0], sizes = [103, 64], strides = [1, 1]} : vector<111x64xf32> to vector<103x64xf32>
    %271 = vector.extract_strided_slice %269 {offsets = [8, 0], sizes = [103, 64], strides = [1, 1]} : vector<111x64xf32> to vector<103x64xf32>
    %272 = arith.maximumf %270, %271 : vector<103x64xf32>
    %273 = vector.extract_strided_slice %272 {offsets = [0, 0], sizes = [7, 64], strides = [1, 1]} : vector<103x64xf32> to vector<7x64xf32>
    %274 = arith.truncf %273 : vector<7x64xf32> to vector<7x64xbf16>
    %c1_201 = arith.constant 1 : index
    %c0_202 = arith.constant 0 : index
    %c0_203 = arith.constant 0 : index
    %275 = vector.load %arg6[%c1_201, %c0_202, %c0_203] : memref<2x49x64xbf16, #tpu.memory_space<vmem>>, vector<1x7x64xbf16>
    %276 = vector.shape_cast %275 : vector<1x7x64xbf16> to vector<7x64xbf16>
    %277 = vector.shape_cast %274 : vector<7x64xbf16> to vector<1x7x64xbf16>
    tpu.vector_store %arg6[%c1_201, %c0_202, %c0_203], %277 {strides = array<i32>} : memref<2x49x64xbf16, #tpu.memory_space<vmem>>, vector<1x7x64xbf16>,
    %278 = vector.extract_strided_slice %272 {offsets = [16, 0], sizes = [7, 64], strides = [1, 1]} : vector<103x64xf32> to vector<7x64xf32>
    %279 = arith.truncf %278 : vector<7x64xf32> to vector<7x64xbf16>
    %c1_204 = arith.constant 1 : index
    %c7_205 = arith.constant 7 : index
    %c0_206 = arith.constant 0 : index
    %280 = vector.load %arg6[%c1_204, %c7_205, %c0_206] : memref<2x49x64xbf16, #tpu.memory_space<vmem>>, vector<1x7x64xbf16>
    %281 = vector.shape_cast %280 : vector<1x7x64xbf16> to vector<7x64xbf16>
    %282 = vector.shape_cast %279 : vector<7x64xbf16> to vector<1x7x64xbf16>
    tpu.vector_store %arg6[%c1_204, %c7_205, %c0_206], %282 {strides = array<i32>} : memref<2x49x64xbf16, #tpu.memory_space<vmem>>, vector<1x7x64xbf16>,
    %283 = vector.extract_strided_slice %272 {offsets = [32, 0], sizes = [7, 64], strides = [1, 1]} : vector<103x64xf32> to vector<7x64xf32>
    %284 = arith.truncf %283 : vector<7x64xf32> to vector<7x64xbf16>
    %c1_207 = arith.constant 1 : index
    %c14_208 = arith.constant 14 : index
    %c0_209 = arith.constant 0 : index
    %285 = vector.load %arg6[%c1_207, %c14_208, %c0_209] : memref<2x49x64xbf16, #tpu.memory_space<vmem>>, vector<1x7x64xbf16>
    %286 = vector.shape_cast %285 : vector<1x7x64xbf16> to vector<7x64xbf16>
    %287 = vector.shape_cast %284 : vector<7x64xbf16> to vector<1x7x64xbf16>
    tpu.vector_store %arg6[%c1_207, %c14_208, %c0_209], %287 {strides = array<i32>} : memref<2x49x64xbf16, #tpu.memory_space<vmem>>, vector<1x7x64xbf16>,
    %288 = vector.extract_strided_slice %272 {offsets = [48, 0], sizes = [7, 64], strides = [1, 1]} : vector<103x64xf32> to vector<7x64xf32>
    %289 = arith.truncf %288 : vector<7x64xf32> to vector<7x64xbf16>
    %c1_210 = arith.constant 1 : index
    %c21_211 = arith.constant 21 : index
    %c0_212 = arith.constant 0 : index
    %290 = vector.load %arg6[%c1_210, %c21_211, %c0_212] : memref<2x49x64xbf16, #tpu.memory_space<vmem>>, vector<1x7x64xbf16>
    %291 = vector.shape_cast %290 : vector<1x7x64xbf16> to vector<7x64xbf16>
    %292 = vector.shape_cast %289 : vector<7x64xbf16> to vector<1x7x64xbf16>
    tpu.vector_store %arg6[%c1_210, %c21_211, %c0_212], %292 {strides = array<i32>} : memref<2x49x64xbf16, #tpu.memory_space<vmem>>, vector<1x7x64xbf16>,
    %293 = vector.extract_strided_slice %272 {offsets = [64, 0], sizes = [7, 64], strides = [1, 1]} : vector<103x64xf32> to vector<7x64xf32>
    %294 = arith.truncf %293 : vector<7x64xf32> to vector<7x64xbf16>
    %c1_213 = arith.constant 1 : index
    %c28_214 = arith.constant 28 : index
    %c0_215 = arith.constant 0 : index
    %295 = vector.load %arg6[%c1_213, %c28_214, %c0_215] : memref<2x49x64xbf16, #tpu.memory_space<vmem>>, vector<1x7x64xbf16>
    %296 = vector.shape_cast %295 : vector<1x7x64xbf16> to vector<7x64xbf16>
    %297 = vector.shape_cast %294 : vector<7x64xbf16> to vector<1x7x64xbf16>
    tpu.vector_store %arg6[%c1_213, %c28_214, %c0_215], %297 {strides = array<i32>} : memref<2x49x64xbf16, #tpu.memory_space<vmem>>, vector<1x7x64xbf16>,
    %298 = vector.extract_strided_slice %272 {offsets = [80, 0], sizes = [7, 64], strides = [1, 1]} : vector<103x64xf32> to vector<7x64xf32>
    %299 = arith.truncf %298 : vector<7x64xf32> to vector<7x64xbf16>
    %c1_216 = arith.constant 1 : index
    %c35_217 = arith.constant 35 : index
    %c0_218 = arith.constant 0 : index
    %300 = vector.load %arg6[%c1_216, %c35_217, %c0_218] : memref<2x49x64xbf16, #tpu.memory_space<vmem>>, vector<1x7x64xbf16>
    %301 = vector.shape_cast %300 : vector<1x7x64xbf16> to vector<7x64xbf16>
    %302 = vector.shape_cast %299 : vector<7x64xbf16> to vector<1x7x64xbf16>
    tpu.vector_store %arg6[%c1_216, %c35_217, %c0_218], %302 {strides = array<i32>} : memref<2x49x64xbf16, #tpu.memory_space<vmem>>, vector<1x7x64xbf16>,
    %303 = vector.extract_strided_slice %272 {offsets = [96, 0], sizes = [7, 64], strides = [1, 1]} : vector<103x64xf32> to vector<7x64xf32>
    %304 = arith.truncf %303 : vector<7x64xf32> to vector<7x64xbf16>
    %c1_219 = arith.constant 1 : index
    %c42_220 = arith.constant 42 : index
    %c0_221 = arith.constant 0 : index
    %305 = vector.load %arg6[%c1_219, %c42_220, %c0_221] : memref<2x49x64xbf16, #tpu.memory_space<vmem>>, vector<1x7x64xbf16>
    %306 = vector.shape_cast %305 : vector<1x7x64xbf16> to vector<7x64xbf16>
    %307 = vector.shape_cast %304 : vector<7x64xbf16> to vector<1x7x64xbf16>
    tpu.vector_store %arg6[%c1_219, %c42_220, %c0_221], %307 {strides = array<i32>} : memref<2x49x64xbf16, #tpu.memory_space<vmem>>, vector<1x7x64xbf16>,
    return
  }
  func.func @transform_0(%arg0: i32) -> (i32, i32) {
    %c0_i32 = arith.constant 0 : i32
    %c0_i32_0 = arith.constant 0 : i32
    return %arg0, %c0_i32 : i32, i32
  }
  func.func @transform_1(%arg0: i32) -> (i32, i32) {
    %c0_i32 = arith.constant 0 : i32
    %c0_i32_0 = arith.constant 0 : i32
    %c0_i32_1 = arith.constant 0 : i32
    return %c0_i32, %c0_i32_0 : i32, i32
  }
  func.func @transform_2(%arg0: i32) -> (i32, i32) {
    %c0_i32 = arith.constant 0 : i32
    %c0_i32_0 = arith.constant 0 : i32
    %c0_i32_1 = arith.constant 0 : i32
    return %c0_i32, %c0_i32_0 : i32, i32
  }
  func.func @transform_3(%arg0: i32) -> (i32, i32) {
    %c0_i32 = arith.constant 0 : i32
    %c0_i32_0 = arith.constant 0 : i32
    %c0_i32_1 = arith.constant 0 : i32
    return %c0_i32, %c0_i32_0 : i32, i32
  }
  func.func @transform_4(%arg0: i32) -> (i32, i32) {
    %c0_i32 = arith.constant 0 : i32
    %c0_i32_0 = arith.constant 0 : i32
    %c0_i32_1 = arith.constant 0 : i32
    return %c0_i32, %c0_i32_0 : i32, i32
  }
  func.func @transform_5(%arg0: i32) -> (i32, i32, i32) {
    %c0_i32 = arith.constant 0 : i32
    %c0_i32_0 = arith.constant 0 : i32
    %c0_i32_1 = arith.constant 0 : i32
    return %arg0, %c0_i32, %c0_i32_0 : i32, i32, i32
  }
}

</mosaic_0001>

<llo_original>
// kernel: cnn_forward.3
$region0: #{cnn_forward.3}
  #allocation0 [shape = 'u32[]', space=smem, size = 0x4, offset = 0x4, fixed_abs, tag = 'smem constant byte address 0x4 - core index']
  #allocation1 [shape = 'u32[144,128]{1,0:T(1,128)}', space=vmem, size = 0x12000, scoped, tag = 'internal scratch']
  %s0 = inlined_call_operand.vmem [shape: bf16[2,3136], index: 0, kind: input, shape index: {}]
  %s1 = inlined_call_operand.vmem [shape: bf16[3136,128], index: 1, kind: input, shape index: {}]
  %s2 = inlined_call_operand.vmem [shape: f32[1,128], index: 2, kind: input, shape index: {}]
  %s3 = inlined_call_operand.vmem [shape: bf16[128,10], index: 3, kind: input, shape index: {}]
  %s4 = inlined_call_operand.vmem [shape: f32[1,10], index: 4, kind: input, shape index: {}]
  %s5 = inlined_call_operand.hbm [shape: f32[2,10], index: 5, kind: output, shape index: {}]
  %s6 = sld [smem:[#allocation0]]
  $region30: #{cnn_forward.3} parent=0
    _
  %s8 = ssub.s32 1, %s6
  %s9 = scalar_select 0, %s8, %s6
  $region1: #{cnn_forward.3} parent=0
    #allocation2 [shape = 'u8[1024]{0}', space=vmem, size = 0x400, scoped, tag = 'output window, operand 0, single buffered']
    #allocation3 [shape = 's32[1]{0}', space=sflag, size = 0x4, scoped, tag = 'scoped memory for cnn_forward.3']
    %10 = vsyncpa [#allocation3], 0
    // Predicated region
    $region2: #{cnn_forward.3} parent=1 // pred_check
      _
    $region3: #{cnn_forward.3} parent=1 // pred_check_branch
      %12 = sbr.rel (0) target = $region5
    $region4: #{cnn_forward.3} parent=1 // pred_region
      _
    $region5: #{cnn_forward.3} parent=1 // pred_fallthru
      _
    // Predicated region
    $region6: #{cnn_forward.3} parent=1 // pred_check
      _
    $region7: #{cnn_forward.3} parent=1 // pred_check_branch
      %14 = sbr.rel (0) target = $region9
    $region8: #{cnn_forward.3} parent=1 // pred_region
      _
    $region9: #{cnn_forward.3} parent=1 // pred_fallthru
      _
    // Predicated region
    $region10: #{cnn_forward.3} parent=1 // pred_check
      _
    $region11: #{cnn_forward.3} parent=1 // pred_check_branch
      %16 = sbr.rel (0) target = $region13
    $region12: #{cnn_forward.3} parent=1 // pred_region
      _
    $region13: #{cnn_forward.3} parent=1 // pred_fallthru
      _
    // Predicated region
    $region14: #{cnn_forward.3} parent=1 // pred_check
      _
    $region15: #{cnn_forward.3} parent=1 // pred_check_branch
      %18 = sbr.rel (0) target = $region17
    $region16: #{cnn_forward.3} parent=1 // pred_region
      _
    $region17: #{cnn_forward.3} parent=1 // pred_fallthru
      _
    // Predicated region
    $region18: #{cnn_forward.3} parent=1 // pred_check
      _
    $region19: #{cnn_forward.3} parent=1 // pred_check_branch
      %20 = sbr.rel (0) target = $region21
    $region20: #{cnn_forward.3} parent=1 // pred_region
      _
    $region21: #{cnn_forward.3} parent=1 // pred_fallthru
      _
    %v22 = vld [vmem:[%s0] sm:$0xff]
    %v23 = vld [vmem:[%s0 + $0x8] sm:$0xff]
    %v24 = vld [vmem:[%s0 + $0x10] sm:$0xff]
    %v25 = vld [vmem:[%s0 + $0x18] sm:$0x1]
    %v26 = vld [vmem:[%s1] sm:$0xf]
    %v27 = vld [vmem:[%s1 + $0x4] sm:$0xf]
    %v28 = vld [vmem:[%s1 + $0x8] sm:$0xf]
    %v29 = vld [vmem:[%s1 + $0xc] sm:$0xf]
    %v30 = vld [vmem:[%s1 + $0x10] sm:$0xf]
    %v31 = vld [vmem:[%s1 + $0x14] sm:$0xf]
    %v32 = vld [vmem:[%s1 + $0x18] sm:$0xf]
    %v33 = vld [vmem:[%s1 + $0x1c] sm:$0xf]
    %v34 = vld [vmem:[%s1 + $0x20] sm:$0xf]
    %v35 = vld [vmem:[%s1 + $0x24] sm:$0xf]
    %v36 = vld [vmem:[%s1 + $0x28] sm:$0xf]
    %v37 = vld [vmem:[%s1 + $0x2c] sm:$0xf]
    %v38 = vld [vmem:[%s1 + $0x30] sm:$0xf]
    %v39 = vld [vmem:[%s1 + $0x34] sm:$0xf]
    %v40 = vld [vmem:[%s1 + $0x38] sm:$0xf]
    %v41 = vld [vmem:[%s1 + $0x3c] sm:$0xf]
    %v42 = vld [vmem:[%s1 + $0x40] sm:$0xf]
    %v43 = vld [vmem:[%s1 + $0x44] sm:$0xf]
    %v44 = vld [vmem:[%s1 + $0x48] sm:$0xf]
    %v45 = vld [vmem:[%s1 + $0x4c] sm:$0xf]
    %v46 = vld [vmem:[%s1 + $0x50] sm:$0xf]
    %v47 = vld [vmem:[%s1 + $0x54] sm:$0xf]
    %v48 = vld [vmem:[%s1 + $0x58] sm:$0xf]
    %v49 = vld [vmem:[%s1 + $0x5c] sm:$0xf]
    %v50 = vld [vmem:[%s1 + $0x60] sm:$0xf]
    %v51 = vld [vmem:[%s1 + $0x64] sm:$0xf]
    %v52 = vld [vmem:[%s1 + $0x68] sm:$0xf]
    %v53 = vld [vmem:[%s1 + $0x6c] sm:$0xf]
    %v54 = vld [vmem:[%s1 + $0x70] sm:$0xf]
    %v55 = vld [vmem:[%s1 + $0x74] sm:$0xf]
    %v56 = vld [vmem:[%s1 + $0x78] sm:$0xf]
    %v57 = vld [vmem:[%s1 + $0x7c] sm:$0xf]
    %v58 = vld [vmem:[%s1 + $0x80] sm:$0xf]
    %v59 = vld [vmem:[%s1 + $0x84] sm:$0xf]
    %v60 = vld [vmem:[%s1 + $0x88] sm:$0xf]
    %v61 = vld [vmem:[%s1 + $0x8c] sm:$0xf]
    %v62 = vld [vmem:[%s1 + $0x90] sm:$0xf]
    %v63 = vld [vmem:[%s1 + $0x94] sm:$0xf]
    %v64 = vld [vmem:[%s1 + $0x98] sm:$0xf]
    %v65 = vld [vmem:[%s1 + $0x9c] sm:$0xf]
    %v66 = vld [vmem:[%s1 + $0xa0] sm:$0xf]
    %v67 = vld [vmem:[%s1 + $0xa4] sm:$0xf]
    %v68 = vld [vmem:[%s1 + $0xa8] sm:$0xf]
    %v69 = vld [vmem:[%s1 + $0xac] sm:$0xf]
    %v70 = vld [vmem:[%s1 + $0xb0] sm:$0xf]
    %v71 = vld [vmem:[%s1 + $0xb4] sm:$0xf]
    %v72 = vld [vmem:[%s1 + $0xb8] sm:$0xf]
    %v73 = vld [vmem:[%s1 + $0xbc] sm:$0xf]
    %v74 = vld [vmem:[%s1 + $0xc0] sm:$0xf]
    %v75 = vld [vmem:[%s1 + $0xc4] sm:$0xf]
    %v76 = vld [vmem:[%s1 + $0xc8] sm:$0xf]
    %v77 = vld [vmem:[%s1 + $0xcc] sm:$0xf]
    %v78 = vld [vmem:[%s1 + $0xd0] sm:$0xf]
    %v79 = vld [vmem:[%s1 + $0xd4] sm:$0xf]
    %v80 = vld [vmem:[%s1 + $0xd8] sm:$0xf]
    %v81 = vld [vmem:[%s1 + $0xdc] sm:$0xf]
    %v82 = vld [vmem:[%s1 + $0xe0] sm:$0xf]
    %v83 = vld [vmem:[%s1 + $0xe4] sm:$0xf]
    %v84 = vld [vmem:[%s1 + $0xe8] sm:$0xf]
    %v85 = vld [vmem:[%s1 + $0xec] sm:$0xf]
    %v86 = vld [vmem:[%s1 + $0xf0] sm:$0xf]
    %v87 = vld [vmem:[%s1 + $0xf4] sm:$0xf]
    %v88 = vld [vmem:[%s1 + $0xf8] sm:$0xf]
    %v89 = vld [vmem:[%s1 + $0xfc] sm:$0xf]
    %v90 = vld [vmem:[%s1 + $0x100] sm:$0xf]
    %v91 = vld [vmem:[%s1 + $0x104] sm:$0xf]
    %v92 = vld [vmem:[%s1 + $0x108] sm:$0xf]
    %v93 = vld [vmem:[%s1 + $0x10c] sm:$0xf]
    %v94 = vld [vmem:[%s1 + $0x110] sm:$0xf]
    %v95 = vld [vmem:[%s1 + $0x114] sm:$0xf]
    %v96 = vld [vmem:[%s1 + $0x118] sm:$0xf]
    %v97 = vld [vmem:[%s1 + $0x11c] sm:$0xf]
    %v98 = vld [vmem:[%s1 + $0x120] sm:$0xf]
    %v99 = vld [vmem:[%s1 + $0x124] sm:$0xf]
    %v100 = vld [vmem:[%s1 + $0x128] sm:$0xf]
    %v101 = vld [vmem:[%s1 + $0x12c] sm:$0xf]
    %v102 = vld [vmem:[%s1 + $0x130] sm:$0xf]
    %v103 = vld [vmem:[%s1 + $0x134] sm:$0xf]
    %v104 = vld [vmem:[%s1 + $0x138] sm:$0xf]
    %v105 = vld [vmem:[%s1 + $0x13c] sm:$0xf]
    %v106 = vld [vmem:[%s1 + $0x140] sm:$0xf]
    %v107 = vld [vmem:[%s1 + $0x144] sm:$0xf]
    %v108 = vld [vmem:[%s1 + $0x148] sm:$0xf]
    %v109 = vld [vmem:[%s1 + $0x14c] sm:$0xf]
    %v110 = vld [vmem:[%s1 + $0x150] sm:$0xf]
    %v111 = vld [vmem:[%s1 + $0x154] sm:$0xf]
    %v112 = vld [vmem:[%s1 + $0x158] sm:$0xf]
    %v113 = vld [vmem:[%s1 + $0x15c] sm:$0xf]
    %v114 = vld [vmem:[%s1 + $0x160] sm:$0xf]
    %v115 = vld [vmem:[%s1 + $0x164] sm:$0xf]
    %v116 = vld [vmem:[%s1 + $0x168] sm:$0xf]
    %v117 = vld [vmem:[%s1 + $0x16c] sm:$0xf]
    %v118 = vld [vmem:[%s1 + $0x170] sm:$0xf]
    %v119 = vld [vmem:[%s1 + $0x174] sm:$0xf]
    %v120 = vld [vmem:[%s1 + $0x178] sm:$0xf]
    %v121 = vld [vmem:[%s1 + $0x17c] sm:$0xf]
    %v122 = vld [vmem:[%s1 + $0x180] sm:$0xf]
    %v123 = vld [vmem:[%s1 + $0x184] sm:$0xf]
    %v124 = vld [vmem:[%s1 + $0x188] sm:$0xf]
    %v125 = vld [vmem:[%s1 + $0x18c] sm:$0xf]
    %v126 = vld [vmem:[%s1 + $0x190] sm:$0xf]
    %v127 = vld [vmem:[%s1 + $0x194] sm:$0xf]
    %v128 = vld [vmem:[%s1 + $0x198] sm:$0xf]
    %v129 = vld [vmem:[%s1 + $0x19c] sm:$0xf]
    %v130 = vld [vmem:[%s1 + $0x1a0] sm:$0xf]
    %v131 = vld [vmem:[%s1 + $0x1a4] sm:$0xf]
    %v132 = vld [vmem:[%s1 + $0x1a8] sm:$0xf]
    %v133 = vld [vmem:[%s1 + $0x1ac] sm:$0xf]
    %v134 = vld [vmem:[%s1 + $0x1b0] sm:$0xf]
    %v135 = vld [vmem:[%s1 + $0x1b4] sm:$0xf]
    %v136 = vld [vmem:[%s1 + $0x1b8] sm:$0xf]
    %v137 = vld [vmem:[%s1 + $0x1bc] sm:$0xf]
    %v138 = vld [vmem:[%s1 + $0x1c0] sm:$0xf]
    %v139 = vld [vmem:[%s1 + $0x1c4] sm:$0xf]
    %v140 = vld [vmem:[%s1 + $0x1c8] sm:$0xf]
    %v141 = vld [vmem:[%s1 + $0x1cc] sm:$0xf]
    %v142 = vld [vmem:[%s1 + $0x1d0] sm:$0xf]
    %v143 = vld [vmem:[%s1 + $0x1d4] sm:$0xf]
    %v144 = vld [vmem:[%s1 + $0x1d8] sm:$0xf]
    %v145 = vld [vmem:[%s1 + $0x1dc] sm:$0xf]
    %v146 = vld [vmem:[%s1 + $0x1e0] sm:$0xf]
    %v147 = vld [vmem:[%s1 + $0x1e4] sm:$0xf]
    %v148 = vld [vmem:[%s1 + $0x1e8] sm:$0xf]
    %v149 = vld [vmem:[%s1 + $0x1ec] sm:$0xf]
    %v150 = vld [vmem:[%s1 + $0x1f0] sm:$0xf]
    %v151 = vld [vmem:[%s1 + $0x1f4] sm:$0xf]
    %v152 = vld [vmem:[%s1 + $0x1f8] sm:$0xf]
    %v153 = vld [vmem:[%s1 + $0x1fc] sm:$0xf]
    %v154 = vld [vmem:[%s1 + $0x200] sm:$0xf]
    %v155 = vld [vmem:[%s1 + $0x204] sm:$0xf]
    %v156 = vld [vmem:[%s1 + $0x208] sm:$0xf]
    %v157 = vld [vmem:[%s1 + $0x20c] sm:$0xf]
    %v158 = vld [vmem:[%s1 + $0x210] sm:$0xf]
    %v159 = vld [vmem:[%s1 + $0x214] sm:$0xf]
    %v160 = vld [vmem:[%s1 + $0x218] sm:$0xf]
    %v161 = vld [vmem:[%s1 + $0x21c] sm:$0xf]
    %v162 = vld [vmem:[%s1 + $0x220] sm:$0xf]
    %v163 = vld [vmem:[%s1 + $0x224] sm:$0xf]
    %v164 = vld [vmem:[%s1 + $0x228] sm:$0xf]
    %v165 = vld [vmem:[%s1 + $0x22c] sm:$0xf]
    %v166 = vld [vmem:[%s1 + $0x230] sm:$0xf]
    %v167 = vld [vmem:[%s1 + $0x234] sm:$0xf]
    %v168 = vld [vmem:[%s1 + $0x238] sm:$0xf]
    %v169 = vld [vmem:[%s1 + $0x23c] sm:$0xf]
    %v170 = vld [vmem:[%s1 + $0x240] sm:$0xf]
    %v171 = vld [vmem:[%s1 + $0x244] sm:$0xf]
    %v172 = vld [vmem:[%s1 + $0x248] sm:$0xf]
    %v173 = vld [vmem:[%s1 + $0x24c] sm:$0xf]
    %v174 = vld [vmem:[%s1 + $0x250] sm:$0xf]
    %v175 = vld [vmem:[%s1 + $0x254] sm:$0xf]
    %v176 = vld [vmem:[%s1 + $0x258] sm:$0xf]
    %v177 = vld [vmem:[%s1 + $0x25c] sm:$0xf]
    %v178 = vld [vmem:[%s1 + $0x260] sm:$0xf]
    %v179 = vld [vmem:[%s1 + $0x264] sm:$0xf]
    %v180 = vld [vmem:[%s1 + $0x268] sm:$0xf]
    %v181 = vld [vmem:[%s1 + $0x26c] sm:$0xf]
    %v182 = vld [vmem:[%s1 + $0x270] sm:$0xf]
    %v183 = vld [vmem:[%s1 + $0x274] sm:$0xf]
    %v184 = vld [vmem:[%s1 + $0x278] sm:$0xf]
    %v185 = vld [vmem:[%s1 + $0x27c] sm:$0xf]
    %v186 = vld [vmem:[%s1 + $0x280] sm:$0xf]
    %v187 = vld [vmem:[%s1 + $0x284] sm:$0xf]
    %v188 = vld [vmem:[%s1 + $0x288] sm:$0xf]
    %v189 = vld [vmem:[%s1 + $0x28c] sm:$0xf]
    %v190 = vld [vmem:[%s1 + $0x290] sm:$0xf]
    %v191 = vld [vmem:[%s1 + $0x294] sm:$0xf]
    %v192 = vld [vmem:[%s1 + $0x298] sm:$0xf]
    %v193 = vld [vmem:[%s1 + $0x29c] sm:$0xf]
    %v194 = vld [vmem:[%s1 + $0x2a0] sm:$0xf]
    %v195 = vld [vmem:[%s1 + $0x2a4] sm:$0xf]
    %v196 = vld [vmem:[%s1 + $0x2a8] sm:$0xf]
    %v197 = vld [vmem:[%s1 + $0x2ac] sm:$0xf]
    %v198 = vld [vmem:[%s1 + $0x2b0] sm:$0xf]
    %v199 = vld [vmem:[%s1 + $0x2b4] sm:$0xf]
    %v200 = vld [vmem:[%s1 + $0x2b8] sm:$0xf]
    %v201 = vld [vmem:[%s1 + $0x2bc] sm:$0xf]
    %v202 = vld [vmem:[%s1 + $0x2c0] sm:$0xf]
    %v203 = vld [vmem:[%s1 + $0x2c4] sm:$0xf]
    %v204 = vld [vmem:[%s1 + $0x2c8] sm:$0xf]
    %v205 = vld [vmem:[%s1 + $0x2cc] sm:$0xf]
    %v206 = vld [vmem:[%s1 + $0x2d0] sm:$0xf]
    %v207 = vld [vmem:[%s1 + $0x2d4] sm:$0xf]
    %v208 = vld [vmem:[%s1 + $0x2d8] sm:$0xf]
    %v209 = vld [vmem:[%s1 + $0x2dc] sm:$0xf]
    %v210 = vld [vmem:[%s1 + $0x2e0] sm:$0xf]
    %v211 = vld [vmem:[%s1 + $0x2e4] sm:$0xf]
    %v212 = vld [vmem:[%s1 + $0x2e8] sm:$0xf]
    %v213 = vld [vmem:[%s1 + $0x2ec] sm:$0xf]
    %v214 = vld [vmem:[%s1 + $0x2f0] sm:$0xf]
    %v215 = vld [vmem:[%s1 + $0x2f4] sm:$0xf]
    %v216 = vld [vmem:[%s1 + $0x2f8] sm:$0xf]
    %v217 = vld [vmem:[%s1 + $0x2fc] sm:$0xf]
    %v218 = vld [vmem:[%s1 + $0x300] sm:$0xf]
    %v219 = vld [vmem:[%s1 + $0x304] sm:$0xf]
    %v220 = vld [vmem:[%s1 + $0x308] sm:$0xf]
    %v221 = vld [vmem:[%s1 + $0x30c] sm:$0xf]
    %v222 = vld [vmem:[%s1 + $0x310] sm:$0xf]
    %v223 = vld [vmem:[%s1 + $0x314] sm:$0xf]
    %v224 = vld [vmem:[%s1 + $0x318] sm:$0xf]
    %v225 = vld [vmem:[%s1 + $0x31c] sm:$0xf]
    %v226 = vld [vmem:[%s1 + $0x320] sm:$0xf]
    %v227 = vld [vmem:[%s1 + $0x324] sm:$0xf]
    %v228 = vld [vmem:[%s1 + $0x328] sm:$0xf]
    %v229 = vld [vmem:[%s1 + $0x32c] sm:$0xf]
    %v230 = vld [vmem:[%s1 + $0x330] sm:$0xf]
    %v231 = vld [vmem:[%s1 + $0x334] sm:$0xf]
    %v232 = vld [vmem:[%s1 + $0x338] sm:$0xf]
    %v233 = vld [vmem:[%s1 + $0x33c] sm:$0xf]
    %v234 = vld [vmem:[%s1 + $0x340] sm:$0xf]
    %v235 = vld [vmem:[%s1 + $0x344] sm:$0xf]
    %v236 = vld [vmem:[%s1 + $0x348] sm:$0xf]
    %v237 = vld [vmem:[%s1 + $0x34c] sm:$0xf]
    %v238 = vld [vmem:[%s1 + $0x350] sm:$0xf]
    %v239 = vld [vmem:[%s1 + $0x354] sm:$0xf]
    %v240 = vld [vmem:[%s1 + $0x358] sm:$0xf]
    %v241 = vld [vmem:[%s1 + $0x35c] sm:$0xf]
    %v242 = vld [vmem:[%s1 + $0x360] sm:$0xf]
    %v243 = vld [vmem:[%s1 + $0x364] sm:$0xf]
    %v244 = vld [vmem:[%s1 + $0x368] sm:$0xf]
    %v245 = vld [vmem:[%s1 + $0x36c] sm:$0xf]
    %v246 = vld [vmem:[%s1 + $0x370] sm:$0xf]
    %v247 = vld [vmem:[%s1 + $0x374] sm:$0xf]
    %v248 = vld [vmem:[%s1 + $0x378] sm:$0xf]
    %v249 = vld [vmem:[%s1 + $0x37c] sm:$0xf]
    %v250 = vld [vmem:[%s1 + $0x380] sm:$0xf]
    %v251 = vld [vmem:[%s1 + $0x384] sm:$0xf]
    %v252 = vld [vmem:[%s1 + $0x388] sm:$0xf]
    %v253 = vld [vmem:[%s1 + $0x38c] sm:$0xf]
    %v254 = vld [vmem:[%s1 + $0x390] sm:$0xf]
    %v255 = vld [vmem:[%s1 + $0x394] sm:$0xf]
    %v256 = vld [vmem:[%s1 + $0x398] sm:$0xf]
    %v257 = vld [vmem:[%s1 + $0x39c] sm:$0xf]
    %v258 = vld [vmem:[%s1 + $0x3a0] sm:$0xf]
    %v259 = vld [vmem:[%s1 + $0x3a4] sm:$0xf]
    %v260 = vld [vmem:[%s1 + $0x3a8] sm:$0xf]
    %v261 = vld [vmem:[%s1 + $0x3ac] sm:$0xf]
    %v262 = vld [vmem:[%s1 + $0x3b0] sm:$0xf]
    %v263 = vld [vmem:[%s1 + $0x3b4] sm:$0xf]
    %v264 = vld [vmem:[%s1 + $0x3b8] sm:$0xf]
    %v265 = vld [vmem:[%s1 + $0x3bc] sm:$0xf]
    %v266 = vld [vmem:[%s1 + $0x3c0] sm:$0xf]
    %v267 = vld [vmem:[%s1 + $0x3c4] sm:$0xf]
    %v268 = vld [vmem:[%s1 + $0x3c8] sm:$0xf]
    %v269 = vld [vmem:[%s1 + $0x3cc] sm:$0xf]
    %v270 = vld [vmem:[%s1 + $0x3d0] sm:$0xf]
    %v271 = vld [vmem:[%s1 + $0x3d4] sm:$0xf]
    %v272 = vld [vmem:[%s1 + $0x3d8] sm:$0xf]
    %v273 = vld [vmem:[%s1 + $0x3dc] sm:$0xf]
    %v274 = vld [vmem:[%s1 + $0x3e0] sm:$0xf]
    %v275 = vld [vmem:[%s1 + $0x3e4] sm:$0xf]
    %v276 = vld [vmem:[%s1 + $0x3e8] sm:$0xf]
    %v277 = vld [vmem:[%s1 + $0x3ec] sm:$0xf]
    %v278 = vld [vmem:[%s1 + $0x3f0] sm:$0xf]
    %v279 = vld [vmem:[%s1 + $0x3f4] sm:$0xf]
    %v280 = vld [vmem:[%s1 + $0x3f8] sm:$0xf]
    %v281 = vld [vmem:[%s1 + $0x3fc] sm:$0xf]
    %v282 = vld [vmem:[%s1 + $0x400] sm:$0xf]
    %v283 = vld [vmem:[%s1 + $0x404] sm:$0xf]
    %v284 = vld [vmem:[%s1 + $0x408] sm:$0xf]
    %v285 = vld [vmem:[%s1 + $0x40c] sm:$0xf]
    %v286 = vld [vmem:[%s1 + $0x410] sm:$0xf]
    %v287 = vld [vmem:[%s1 + $0x414] sm:$0xf]
    %v288 = vld [vmem:[%s1 + $0x418] sm:$0xf]
    %v289 = vld [vmem:[%s1 + $0x41c] sm:$0xf]
    %v290 = vld [vmem:[%s1 + $0x420] sm:$0xf]
    %v291 = vld [vmem:[%s1 + $0x424] sm:$0xf]
    %v292 = vld [vmem:[%s1 + $0x428] sm:$0xf]
    %v293 = vld [vmem:[%s1 + $0x42c] sm:$0xf]
    %v294 = vld [vmem:[%s1 + $0x430] sm:$0xf]
    %v295 = vld [vmem:[%s1 + $0x434] sm:$0xf]
    %v296 = vld [vmem:[%s1 + $0x438] sm:$0xf]
    %v297 = vld [vmem:[%s1 + $0x43c] sm:$0xf]
    %v298 = vld [vmem:[%s1 + $0x440] sm:$0xf]
    %v299 = vld [vmem:[%s1 + $0x444] sm:$0xf]
    %v300 = vld [vmem:[%s1 + $0x448] sm:$0xf]
    %v301 = vld [vmem:[%s1 + $0x44c] sm:$0xf]
    %v302 = vld [vmem:[%s1 + $0x450] sm:$0xf]
    %v303 = vld [vmem:[%s1 + $0x454] sm:$0xf]
    %v304 = vld [vmem:[%s1 + $0x458] sm:$0xf]
    %v305 = vld [vmem:[%s1 + $0x45c] sm:$0xf]
    %v306 = vld [vmem:[%s1 + $0x460] sm:$0xf]
    %v307 = vld [vmem:[%s1 + $0x464] sm:$0xf]
    %v308 = vld [vmem:[%s1 + $0x468] sm:$0xf]
    %v309 = vld [vmem:[%s1 + $0x46c] sm:$0xf]
    %v310 = vld [vmem:[%s1 + $0x470] sm:$0xf]
    %v311 = vld [vmem:[%s1 + $0x474] sm:$0xf]
    %v312 = vld [vmem:[%s1 + $0x478] sm:$0xf]
    %v313 = vld [vmem:[%s1 + $0x47c] sm:$0xf]
    %v314 = vld [vmem:[%s1 + $0x480] sm:$0xf]
    %v315 = vld [vmem:[%s1 + $0x484] sm:$0xf]
    %v316 = vld [vmem:[%s1 + $0x488] sm:$0xf]
    %v317 = vld [vmem:[%s1 + $0x48c] sm:$0xf]
    %v318 = vld [vmem:[%s1 + $0x490] sm:$0xf]
    %v319 = vld [vmem:[%s1 + $0x494] sm:$0xf]
    %v320 = vld [vmem:[%s1 + $0x498] sm:$0xf]
    %v321 = vld [vmem:[%s1 + $0x49c] sm:$0xf]
    %v322 = vld [vmem:[%s1 + $0x4a0] sm:$0xf]
    %v323 = vld [vmem:[%s1 + $0x4a4] sm:$0xf]
    %v324 = vld [vmem:[%s1 + $0x4a8] sm:$0xf]
    %v325 = vld [vmem:[%s1 + $0x4ac] sm:$0xf]
    %v326 = vld [vmem:[%s1 + $0x4b0] sm:$0xf]
    %v327 = vld [vmem:[%s1 + $0x4b4] sm:$0xf]
    %v328 = vld [vmem:[%s1 + $0x4b8] sm:$0xf]
    %v329 = vld [vmem:[%s1 + $0x4bc] sm:$0xf]
    %v330 = vld [vmem:[%s1 + $0x4c0] sm:$0xf]
    %v331 = vld [vmem:[%s1 + $0x4c4] sm:$0xf]
    %v332 = vld [vmem:[%s1 + $0x4c8] sm:$0xf]
    %v333 = vld [vmem:[%s1 + $0x4cc] sm:$0xf]
    %v334 = vld [vmem:[%s1 + $0x4d0] sm:$0xf]
    %v335 = vld [vmem:[%s1 + $0x4d4] sm:$0xf]
    %v336 = vld [vmem:[%s1 + $0x4d8] sm:$0xf]
    %v337 = vld [vmem:[%s1 + $0x4dc] sm:$0xf]
    %v338 = vld [vmem:[%s1 + $0x4e0] sm:$0xf]
    %v339 = vld [vmem:[%s1 + $0x4e4] sm:$0xf]
    %v340 = vld [vmem:[%s1 + $0x4e8] sm:$0xf]
    %v341 = vld [vmem:[%s1 + $0x4ec] sm:$0xf]
    %v342 = vld [vmem:[%s1 + $0x4f0] sm:$0xf]
    %v343 = vld [vmem:[%s1 + $0x4f4] sm:$0xf]
    %v344 = vld [vmem:[%s1 + $0x4f8] sm:$0xf]
    %v345 = vld [vmem:[%s1 + $0x4fc] sm:$0xf]
    %v346 = vld [vmem:[%s1 + $0x500] sm:$0xf]
    %v347 = vld [vmem:[%s1 + $0x504] sm:$0xf]
    %v348 = vld [vmem:[%s1 + $0x508] sm:$0xf]
    %v349 = vld [vmem:[%s1 + $0x50c] sm:$0xf]
    %v350 = vld [vmem:[%s1 + $0x510] sm:$0xf]
    %v351 = vld [vmem:[%s1 + $0x514] sm:$0xf]
    %v352 = vld [vmem:[%s1 + $0x518] sm:$0xf]
    %v353 = vld [vmem:[%s1 + $0x51c] sm:$0xf]
    %v354 = vld [vmem:[%s1 + $0x520] sm:$0xf]
    %v355 = vld [vmem:[%s1 + $0x524] sm:$0xf]
    %v356 = vld [vmem:[%s1 + $0x528] sm:$0xf]
    %v357 = vld [vmem:[%s1 + $0x52c] sm:$0xf]
    %v358 = vld [vmem:[%s1 + $0x530] sm:$0xf]
    %v359 = vld [vmem:[%s1 + $0x534] sm:$0xf]
    %v360 = vld [vmem:[%s1 + $0x538] sm:$0xf]
    %v361 = vld [vmem:[%s1 + $0x53c] sm:$0xf]
    %v362 = vld [vmem:[%s1 + $0x540] sm:$0xf]
    %v363 = vld [vmem:[%s1 + $0x544] sm:$0xf]
    %v364 = vld [vmem:[%s1 + $0x548] sm:$0xf]
    %v365 = vld [vmem:[%s1 + $0x54c] sm:$0xf]
    %v366 = vld [vmem:[%s1 + $0x550] sm:$0xf]
    %v367 = vld [vmem:[%s1 + $0x554] sm:$0xf]
    %v368 = vld [vmem:[%s1 + $0x558] sm:$0xf]
    %v369 = vld [vmem:[%s1 + $0x55c] sm:$0xf]
    %v370 = vld [vmem:[%s1 + $0x560] sm:$0xf]
    %v371 = vld [vmem:[%s1 + $0x564] sm:$0xf]
    %v372 = vld [vmem:[%s1 + $0x568] sm:$0xf]
    %v373 = vld [vmem:[%s1 + $0x56c] sm:$0xf]
    %v374 = vld [vmem:[%s1 + $0x570] sm:$0xf]
    %v375 = vld [vmem:[%s1 + $0x574] sm:$0xf]
    %v376 = vld [vmem:[%s1 + $0x578] sm:$0xf]
    %v377 = vld [vmem:[%s1 + $0x57c] sm:$0xf]
    %v378 = vld [vmem:[%s1 + $0x580] sm:$0xf]
    %v379 = vld [vmem:[%s1 + $0x584] sm:$0xf]
    %v380 = vld [vmem:[%s1 + $0x588] sm:$0xf]
    %v381 = vld [vmem:[%s1 + $0x58c] sm:$0xf]
    %v382 = vld [vmem:[%s1 + $0x590] sm:$0xf]
    %v383 = vld [vmem:[%s1 + $0x594] sm:$0xf]
    %v384 = vld [vmem:[%s1 + $0x598] sm:$0xf]
    %v385 = vld [vmem:[%s1 + $0x59c] sm:$0xf]
    %v386 = vld [vmem:[%s1 + $0x5a0] sm:$0xf]
    %v387 = vld [vmem:[%s1 + $0x5a4] sm:$0xf]
    %v388 = vld [vmem:[%s1 + $0x5a8] sm:$0xf]
    %v389 = vld [vmem:[%s1 + $0x5ac] sm:$0xf]
    %v390 = vld [vmem:[%s1 + $0x5b0] sm:$0xf]
    %v391 = vld [vmem:[%s1 + $0x5b4] sm:$0xf]
    %v392 = vld [vmem:[%s1 + $0x5b8] sm:$0xf]
    %v393 = vld [vmem:[%s1 + $0x5bc] sm:$0xf]
    %v394 = vld [vmem:[%s1 + $0x5c0] sm:$0xf]
    %v395 = vld [vmem:[%s1 + $0x5c4] sm:$0xf]
    %v396 = vld [vmem:[%s1 + $0x5c8] sm:$0xf]
    %v397 = vld [vmem:[%s1 + $0x5cc] sm:$0xf]
    %v398 = vld [vmem:[%s1 + $0x5d0] sm:$0xf]
    %v399 = vld [vmem:[%s1 + $0x5d4] sm:$0xf]
    %v400 = vld [vmem:[%s1 + $0x5d8] sm:$0xf]
    %v401 = vld [vmem:[%s1 + $0x5dc] sm:$0xf]
    %v402 = vld [vmem:[%s1 + $0x5e0] sm:$0xf]
    %v403 = vld [vmem:[%s1 + $0x5e4] sm:$0xf]
    %v404 = vld [vmem:[%s1 + $0x5e8] sm:$0xf]
    %v405 = vld [vmem:[%s1 + $0x5ec] sm:$0xf]
    %v406 = vld [vmem:[%s1 + $0x5f0] sm:$0xf]
    %v407 = vld [vmem:[%s1 + $0x5f4] sm:$0xf]
    %v408 = vld [vmem:[%s1 + $0x5f8] sm:$0xf]
    %v409 = vld [vmem:[%s1 + $0x5fc] sm:$0xf]
    %v410 = vld [vmem:[%s1 + $0x600] sm:$0xf]
    %v411 = vld [vmem:[%s1 + $0x604] sm:$0xf]
    %v412 = vld [vmem:[%s1 + $0x608] sm:$0xf]
    %v413 = vld [vmem:[%s1 + $0x60c] sm:$0xf]
    %v414 = vld [vmem:[%s1 + $0x610] sm:$0xf]
    %v415 = vld [vmem:[%s1 + $0x614] sm:$0xf]
    %v416 = vld [vmem:[%s1 + $0x618] sm:$0xf]
    %v417 = vld [vmem:[%s1 + $0x61c] sm:$0xf]
    %v418 = vld [vmem:[%s2] sm:$0x1]
    %v420 = vlaneseq
    %v421 = vshrl.u32 %v420, 7
    %v422 = vsub.s32 0, %v421
    %v423 = vrot.slane %v418, %v422
    %v429 = vcombine.high %v22, %v22
    %v431 = vunpack.c.l.s4 1966171168
    %v432 = vunpack.c.0.s8 %v431
    %v433 = vlaneseq
    %v434 = vshrl.u32 %v433, 7
    %v435 = vsub.s32 %v432, %v434
    %v436 = vrot.slane %v22, %v435
    %v438 = vunpack.c.l.s4 1966171168
    %v439 = vunpack.c.0.s8 %v438
    %v440 = vlaneseq
    %v441 = vshrl.u32 %v440, 7
    %v442 = vsub.s32 %v439, %v441
    %v443 = vrot.slane %v429, %v442
    %v444 = vcombine.high %v436, %v436
    %v445 = vcombine.high %v443, %v443
    %v447 = vunpack.c.l.s4 1966171168
    %v448 = vunpack.c.0.s8 %v447
    %v449 = vlaneseq
    %v450 = vshrl.u32 %v449, 7
    %v451 = vsub.s32 %v448, %v450
    %v452 = vrot.slane %v436, %v451
    %v454 = vunpack.c.l.s4 1966171168
    %v455 = vunpack.c.0.s8 %v454
    %v456 = vlaneseq
    %v457 = vshrl.u32 %v456, 7
    %v458 = vsub.s32 %v455, %v457
    %v459 = vrot.slane %v443, %v458
    %v461 = vunpack.c.l.s4 1966171168
    %v462 = vunpack.c.0.s8 %v461
    %v463 = vlaneseq
    %v464 = vshrl.u32 %v463, 7
    %v465 = vsub.s32 %v462, %v464
    %v466 = vrot.slane %v444, %v465
    %v468 = vunpack.c.l.s4 1966171168
    %v469 = vunpack.c.0.s8 %v468
    %v470 = vlaneseq
    %v471 = vshrl.u32 %v470, 7
    %v472 = vsub.s32 %v469, %v471
    %v473 = vrot.slane %v445, %v472
    %v474 = vcombine.high %v452, %v452
    %v475 = vcombine.high %v459, %v459
    %v476 = vcombine.high %v466, %v466
    %v477 = vcombine.high %v473, %v473
    %v478 = vcombine.high %v23, %v23
    %v480 = vunpack.c.l.s4 1966171168
    %v481 = vunpack.c.0.s8 %v480
    %v482 = vlaneseq
    %v483 = vshrl.u32 %v482, 7
    %v484 = vsub.s32 %v481, %v483
    %v485 = vrot.slane %v23, %v484
    %v487 = vunpack.c.l.s4 1966171168
    %v488 = vunpack.c.0.s8 %v487
    %v489 = vlaneseq
    %v490 = vshrl.u32 %v489, 7
    %v491 = vsub.s32 %v488, %v490
    %v492 = vrot.slane %v478, %v491
    %v493 = vcombine.high %v485, %v485
    %v494 = vcombine.high %v492, %v492
    %v496 = vunpack.c.l.s4 1966171168
    %v497 = vunpack.c.0.s8 %v496
    %v498 = vlaneseq
    %v499 = vshrl.u32 %v498, 7
    %v500 = vsub.s32 %v497, %v499
    %v501 = vrot.slane %v485, %v500
    %v503 = vunpack.c.l.s4 1966171168
    %v504 = vunpack.c.0.s8 %v503
    %v505 = vlaneseq
    %v506 = vshrl.u32 %v505, 7
    %v507 = vsub.s32 %v504, %v506
    %v508 = vrot.slane %v492, %v507
    %v510 = vunpack.c.l.s4 1966171168
    %v511 = vunpack.c.0.s8 %v510
    %v512 = vlaneseq
    %v513 = vshrl.u32 %v512, 7
    %v514 = vsub.s32 %v511, %v513
    %v515 = vrot.slane %v493, %v514
    %v517 = vunpack.c.l.s4 1966171168
    %v518 = vunpack.c.0.s8 %v517
    %v519 = vlaneseq
    %v520 = vshrl.u32 %v519, 7
    %v521 = vsub.s32 %v518, %v520
    %v522 = vrot.slane %v494, %v521
    %v523 = vcombine.high %v501, %v501
    %v524 = vcombine.high %v508, %v508
    %v525 = vcombine.high %v515, %v515
    %v526 = vcombine.high %v522, %v522
    %v527 = vcombine.high %v24, %v24
    %v529 = vunpack.c.l.s4 1966171168
    %v530 = vunpack.c.0.s8 %v529
    %v531 = vlaneseq
    %v532 = vshrl.u32 %v531, 7
    %v533 = vsub.s32 %v530, %v532
    %v534 = vrot.slane %v24, %v533
    %v536 = vunpack.c.l.s4 1966171168
    %v537 = vunpack.c.0.s8 %v536
    %v538 = vlaneseq
    %v539 = vshrl.u32 %v538, 7
    %v540 = vsub.s32 %v537, %v539
    %v541 = vrot.slane %v527, %v540
    %v542 = vcombine.high %v534, %v534
    %v543 = vcombine.high %v541, %v541
    %v545 = vunpack.c.l.s4 1966171168
    %v546 = vunpack.c.0.s8 %v545
    %v547 = vlaneseq
    %v548 = vshrl.u32 %v547, 7
    %v549 = vsub.s32 %v546, %v548
    %v550 = vrot.slane %v534, %v549
    %v552 = vunpack.c.l.s4 1966171168
    %v553 = vunpack.c.0.s8 %v552
    %v554 = vlaneseq
    %v555 = vshrl.u32 %v554, 7
    %v556 = vsub.s32 %v553, %v555
    %v557 = vrot.slane %v541, %v556
    %v559 = vunpack.c.l.s4 1966171168
    %v560 = vunpack.c.0.s8 %v559
    %v561 = vlaneseq
    %v562 = vshrl.u32 %v561, 7
    %v563 = vsub.s32 %v560, %v562
    %v564 = vrot.slane %v542, %v563
    %v566 = vunpack.c.l.s4 1966171168
    %v567 = vunpack.c.0.s8 %v566
    %v568 = vlaneseq
    %v569 = vshrl.u32 %v568, 7
    %v570 = vsub.s32 %v567, %v569
    %v571 = vrot.slane %v543, %v570
    %v572 = vcombine.high %v550, %v550
    %v573 = vcombine.high %v557, %v557
    %v574 = vcombine.high %v564, %v564
    %v575 = vcombine.high %v571, %v571
    %v577 = vunpack.c.l.s4 1966171168
    %v578 = vunpack.c.0.s8 %v577
    %v579 = vlaneseq
    %v580 = vshrl.u32 %v579, 7
    %v581 = vsub.s32 %v578, %v580
    %v582 = vrot.slane %v25, %v581
    %v584 = vunpack.c.l.s4 1966171168
    %v585 = vunpack.c.0.s8 %v584
    %v586 = vlaneseq
    %v587 = vshrl.u32 %v586, 7
    %v588 = vsub.s32 %v585, %v587
    %v589 = vrot.slane %v582, %v588
    %v1006 = vunpack.c.l.b16 %v26
    %v1007 = vunpack.c.l.b16 %v27
    %v1008 = vunpack.c.l.b16 %v28
    %v1009 = vunpack.c.l.b16 %v29
    %v1010 = vunpack.c.l.b16 %v30
    %v1011 = vunpack.c.l.b16 %v31
    %v1012 = vunpack.c.l.b16 %v32
    %v1013 = vunpack.c.l.b16 %v33
    %v1014 = vunpack.c.l.b16 %v34
    %v1015 = vunpack.c.l.b16 %v35
    %v1016 = vunpack.c.l.b16 %v36
    %v1017 = vunpack.c.l.b16 %v37
    %v1018 = vunpack.c.l.b16 %v38
    %v1019 = vunpack.c.l.b16 %v39
    %v1020 = vunpack.c.l.b16 %v40
    %v1021 = vunpack.c.l.b16 %v41
    %v1022 = vunpack.c.l.b16 %v42
    %v1023 = vunpack.c.l.b16 %v43
    %v1024 = vunpack.c.l.b16 %v44
    %v1025 = vunpack.c.l.b16 %v45
    %v1026 = vunpack.c.l.b16 %v46
    %v1027 = vunpack.c.l.b16 %v47
    %v1028 = vunpack.c.l.b16 %v48
    %v1029 = vunpack.c.l.b16 %v49
    %v1030 = vunpack.c.l.b16 %v50
    %v1031 = vunpack.c.l.b16 %v51
    %v1032 = vunpack.c.l.b16 %v52
    %v1033 = vunpack.c.l.b16 %v53
    %v1034 = vunpack.c.l.b16 %v54
    %v1035 = vunpack.c.l.b16 %v55
    %v1036 = vunpack.c.l.b16 %v56
    %v1037 = vunpack.c.l.b16 %v57
    %v1038 = vunpack.c.l.b16 %v58
    %v1039 = vunpack.c.l.b16 %v59
    %v1040 = vunpack.c.l.b16 %v60
    %v1041 = vunpack.c.l.b16 %v61
    %v1042 = vunpack.c.l.b16 %v62
    %v1043 = vunpack.c.l.b16 %v63
    %v1044 = vunpack.c.l.b16 %v64
    %v1045 = vunpack.c.l.b16 %v65
    %v1046 = vunpack.c.l.b16 %v66
    %v1047 = vunpack.c.l.b16 %v67
    %v1048 = vunpack.c.l.b16 %v68
    %v1049 = vunpack.c.l.b16 %v69
    %v1050 = vunpack.c.l.b16 %v70
    %v1051 = vunpack.c.l.b16 %v71
    %v1052 = vunpack.c.l.b16 %v72
    %v1053 = vunpack.c.l.b16 %v73
    %v1054 = vunpack.c.l.b16 %v74
    %v1055 = vunpack.c.l.b16 %v75
    %v1056 = vunpack.c.l.b16 %v76
    %v1057 = vunpack.c.l.b16 %v77
    %v1058 = vunpack.c.l.b16 %v78
    %v1059 = vunpack.c.l.b16 %v79
    %v1060 = vunpack.c.l.b16 %v80
    %v1061 = vunpack.c.l.b16 %v81
    %v1062 = vunpack.c.l.b16 %v82
    %v1063 = vunpack.c.l.b16 %v83
    %v1064 = vunpack.c.l.b16 %v84
    %v1065 = vunpack.c.l.b16 %v85
    %v1066 = vunpack.c.l.b16 %v86
    %v1067 = vunpack.c.l.b16 %v87
    %v1068 = vunpack.c.l.b16 %v88
    %v1069 = vunpack.c.l.b16 %v89
    %v1070 = vunpack.c.l.b16 %v90
    %v1071 = vunpack.c.l.b16 %v91
    %v1072 = vunpack.c.l.b16 %v92
    %v1073 = vunpack.c.l.b16 %v93
    %v1074 = vunpack.c.l.b16 %v94
    %v1075 = vunpack.c.l.b16 %v95
    %v1076 = vunpack.c.l.b16 %v96
    %v1077 = vunpack.c.l.b16 %v97
    %v1078 = vunpack.c.l.b16 %v98
    %v1079 = vunpack.c.l.b16 %v99
    %v1080 = vunpack.c.l.b16 %v100
    %v1081 = vunpack.c.l.b16 %v101
    %v1082 = vunpack.c.l.b16 %v102
    %v1083 = vunpack.c.l.b16 %v103
    %v1084 = vunpack.c.l.b16 %v104
    %v1085 = vunpack.c.l.b16 %v105
    %v1086 = vunpack.c.l.b16 %v106
    %v1087 = vunpack.c.l.b16 %v107
    %v1088 = vunpack.c.l.b16 %v108
    %v1089 = vunpack.c.l.b16 %v109
    %v1090 = vunpack.c.l.b16 %v110
    %v1091 = vunpack.c.l.b16 %v111
    %v1092 = vunpack.c.l.b16 %v112
    %v1093 = vunpack.c.l.b16 %v113
    %v1094 = vunpack.c.l.b16 %v114
    %v1095 = vunpack.c.l.b16 %v115
    %v1096 = vunpack.c.l.b16 %v116
    %v1097 = vunpack.c.l.b16 %v117
    %v1098 = vunpack.c.l.b16 %v118
    %v1099 = vunpack.c.l.b16 %v119
    %v1100 = vunpack.c.l.b16 %v120
    %v1101 = vunpack.c.l.b16 %v121
    %v1102 = vunpack.c.l.b16 %v122
    %v1103 = vunpack.c.l.b16 %v123
    %v1104 = vunpack.c.l.b16 %v124
    %v1105 = vunpack.c.l.b16 %v125
    %v1106 = vunpack.c.l.b16 %v126
    %v1107 = vunpack.c.l.b16 %v127
    %v1108 = vunpack.c.l.b16 %v128
    %v1109 = vunpack.c.l.b16 %v129
    %v1110 = vunpack.c.l.b16 %v130
    %v1111 = vunpack.c.l.b16 %v131
    %v1112 = vunpack.c.l.b16 %v132
    %v1113 = vunpack.c.l.b16 %v133
    %v1114 = vunpack.c.l.b16 %v134
    %v1115 = vunpack.c.l.b16 %v135
    %v1116 = vunpack.c.l.b16 %v136
    %v1117 = vunpack.c.l.b16 %v137
    %v1118 = vunpack.c.l.b16 %v138
    %v1119 = vunpack.c.l.b16 %v139
    %v1120 = vunpack.c.l.b16 %v140
    %v1121 = vunpack.c.l.b16 %v141
    %v1122 = vunpack.c.l.b16 %v142
    %v1123 = vunpack.c.l.b16 %v143
    %v1124 = vunpack.c.l.b16 %v144
    %v1125 = vunpack.c.l.b16 %v145
    %v1126 = vunpack.c.l.b16 %v146
    %v1127 = vunpack.c.l.b16 %v147
    %v1128 = vunpack.c.l.b16 %v148
    %v1129 = vunpack.c.l.b16 %v149
    %v1130 = vunpack.c.l.b16 %v150
    %v1131 = vunpack.c.l.b16 %v151
    %v1132 = vunpack.c.l.b16 %v152
    %v1133 = vunpack.c.l.b16 %v153
    %v1134 = vunpack.c.l.b16 %v154
    %v1135 = vunpack.c.l.b16 %v155
    %v1136 = vunpack.c.l.b16 %v156
    %v1137 = vunpack.c.l.b16 %v157
    %v1138 = vunpack.c.l.b16 %v158
    %v1139 = vunpack.c.l.b16 %v159
    %v1140 = vunpack.c.l.b16 %v160
    %v1141 = vunpack.c.l.b16 %v161
    %v1142 = vunpack.c.l.b16 %v162
    %v1143 = vunpack.c.l.b16 %v163
    %v1144 = vunpack.c.l.b16 %v164
    %v1145 = vunpack.c.l.b16 %v165
    %v1146 = vunpack.c.l.b16 %v166
    %v1147 = vunpack.c.l.b16 %v167
    %v1148 = vunpack.c.l.b16 %v168
    %v1149 = vunpack.c.l.b16 %v169
    %v1150 = vunpack.c.l.b16 %v170
    %v1151 = vunpack.c.l.b16 %v171
    %v1152 = vunpack.c.l.b16 %v172
    %v1153 = vunpack.c.l.b16 %v173
    %v1154 = vunpack.c.l.b16 %v174
    %v1155 = vunpack.c.l.b16 %v175
    %v1156 = vunpack.c.l.b16 %v176
    %v1157 = vunpack.c.l.b16 %v177
    %v1158 = vunpack.c.l.b16 %v178
    %v1159 = vunpack.c.l.b16 %v179
    %v1160 = vunpack.c.l.b16 %v180
    %v1161 = vunpack.c.l.b16 %v181
    %v1162 = vunpack.c.l.b16 %v182
    %v1163 = vunpack.c.l.b16 %v183
    %v1164 = vunpack.c.l.b16 %v184
    %v1165 = vunpack.c.l.b16 %v185
    %v1166 = vunpack.c.l.b16 %v186
    %v1167 = vunpack.c.l.b16 %v187
    %v1168 = vunpack.c.l.b16 %v188
    %v1169 = vunpack.c.l.b16 %v189
    %v1170 = vunpack.c.l.b16 %v190
    %v1171 = vunpack.c.l.b16 %v191
    %v1172 = vunpack.c.l.b16 %v192
    %v1173 = vunpack.c.l.b16 %v193
    %v1174 = vunpack.c.l.b16 %v194
    %v1175 = vunpack.c.l.b16 %v195
    %v1176 = vunpack.c.l.b16 %v196
    %v1177 = vunpack.c.l.b16 %v197
    %v1178 = vunpack.c.l.b16 %v198
    %v1179 = vunpack.c.l.b16 %v199
    %v1180 = vunpack.c.l.b16 %v200
    %v1181 = vunpack.c.l.b16 %v201
    %v1182 = vunpack.c.l.b16 %v202
    %v1183 = vunpack.c.l.b16 %v203
    %v1184 = vunpack.c.l.b16 %v204
    %v1185 = vunpack.c.l.b16 %v205
    %v1186 = vunpack.c.l.b16 %v206
    %v1187 = vunpack.c.l.b16 %v207
    %v1188 = vunpack.c.l.b16 %v208
    %v1189 = vunpack.c.l.b16 %v209
    %v1190 = vunpack.c.l.b16 %v210
    %v1191 = vunpack.c.l.b16 %v211
    %v1192 = vunpack.c.l.b16 %v212
    %v1193 = vunpack.c.l.b16 %v213
    %v1194 = vunpack.c.l.b16 %v214
    %v1195 = vunpack.c.l.b16 %v215
    %v1196 = vunpack.c.l.b16 %v216
    %v1197 = vunpack.c.l.b16 %v217
    %v1198 = vunpack.c.l.b16 %v218
    %v1199 = vunpack.c.l.b16 %v219
    %v1200 = vunpack.c.l.b16 %v220
    %v1201 = vunpack.c.l.b16 %v221
    %v1202 = vunpack.c.l.b16 %v222
    %v1203 = vunpack.c.l.b16 %v223
    %v1204 = vunpack.c.l.b16 %v224
    %v1205 = vunpack.c.l.b16 %v225
    %v1206 = vunpack.c.l.b16 %v226
    %v1207 = vunpack.c.l.b16 %v227
    %v1208 = vunpack.c.l.b16 %v228
    %v1209 = vunpack.c.l.b16 %v229
    %v1210 = vunpack.c.l.b16 %v230
    %v1211 = vunpack.c.l.b16 %v231
    %v1212 = vunpack.c.l.b16 %v232
    %v1213 = vunpack.c.l.b16 %v233
    %v1214 = vunpack.c.l.b16 %v234
    %v1215 = vunpack.c.l.b16 %v235
    %v1216 = vunpack.c.l.b16 %v236
    %v1217 = vunpack.c.l.b16 %v237
    %v1218 = vunpack.c.l.b16 %v238
    %v1219 = vunpack.c.l.b16 %v239
    %v1220 = vunpack.c.l.b16 %v240
    %v1221 = vunpack.c.l.b16 %v241
    %v1222 = vunpack.c.l.b16 %v242
    %v1223 = vunpack.c.l.b16 %v243
    %v1224 = vunpack.c.l.b16 %v244
    %v1225 = vunpack.c.l.b16 %v245
    %v1226 = vunpack.c.l.b16 %v246
    %v1227 = vunpack.c.l.b16 %v247
    %v1228 = vunpack.c.l.b16 %v248
    %v1229 = vunpack.c.l.b16 %v249
    %v1230 = vunpack.c.l.b16 %v250
    %v1231 = vunpack.c.l.b16 %v251
    %v1232 = vunpack.c.l.b16 %v252
    %v1233 = vunpack.c.l.b16 %v253
    %v1234 = vunpack.c.l.b16 %v254
    %v1235 = vunpack.c.l.b16 %v255
    %v1236 = vunpack.c.l.b16 %v256
    %v1237 = vunpack.c.l.b16 %v257
    %v1238 = vunpack.c.l.b16 %v258
    %v1239 = vunpack.c.l.b16 %v259
    %v1240 = vunpack.c.l.b16 %v260
    %v1241 = vunpack.c.l.b16 %v261
    %v1242 = vunpack.c.l.b16 %v262
    %v1243 = vunpack.c.l.b16 %v263
    %v1244 = vunpack.c.l.b16 %v264
    %v1245 = vunpack.c.l.b16 %v265
    %v1246 = vunpack.c.l.b16 %v266
    %v1247 = vunpack.c.l.b16 %v267
    %v1248 = vunpack.c.l.b16 %v268
    %v1249 = vunpack.c.l.b16 %v269
    %v1250 = vunpack.c.l.b16 %v270
    %v1251 = vunpack.c.l.b16 %v271
    %v1252 = vunpack.c.l.b16 %v272
    %v1253 = vunpack.c.l.b16 %v273
    %v1254 = vunpack.c.l.b16 %v274
    %v1255 = vunpack.c.l.b16 %v275
    %v1256 = vunpack.c.l.b16 %v276
    %v1257 = vunpack.c.l.b16 %v277
    %v1258 = vunpack.c.l.b16 %v278
    %v1259 = vunpack.c.l.b16 %v279
    %v1260 = vunpack.c.l.b16 %v280
    %v1261 = vunpack.c.l.b16 %v281
    %v1262 = vunpack.c.l.b16 %v282
    %v1263 = vunpack.c.l.b16 %v283
    %v1264 = vunpack.c.l.b16 %v284
    %v1265 = vunpack.c.l.b16 %v285
    %v1266 = vunpack.c.l.b16 %v286
    %v1267 = vunpack.c.l.b16 %v287
    %v1268 = vunpack.c.l.b16 %v288
    %v1269 = vunpack.c.l.b16 %v289
    %v1270 = vunpack.c.l.b16 %v290
    %v1271 = vunpack.c.l.b16 %v291
    %v1272 = vunpack.c.l.b16 %v292
    %v1273 = vunpack.c.l.b16 %v293
    %v1274 = vunpack.c.l.b16 %v294
    %v1275 = vunpack.c.l.b16 %v295
    %v1276 = vunpack.c.l.b16 %v296
    %v1277 = vunpack.c.l.b16 %v297
    %v1278 = vunpack.c.l.b16 %v298
    %v1279 = vunpack.c.l.b16 %v299
    %v1280 = vunpack.c.l.b16 %v300
    %v1281 = vunpack.c.l.b16 %v301
    %v1282 = vunpack.c.l.b16 %v302
    %v1283 = vunpack.c.l.b16 %v303
    %v1284 = vunpack.c.l.b16 %v304
    %v1285 = vunpack.c.l.b16 %v305
    %v1286 = vunpack.c.l.b16 %v306
    %v1287 = vunpack.c.l.b16 %v307
    %v1288 = vunpack.c.l.b16 %v308
    %v1289 = vunpack.c.l.b16 %v309
    %v1290 = vunpack.c.l.b16 %v310
    %v1291 = vunpack.c.l.b16 %v311
    %v1292 = vunpack.c.l.b16 %v312
    %v1293 = vunpack.c.l.b16 %v313
    %v1294 = vunpack.c.l.b16 %v314
    %v1295 = vunpack.c.l.b16 %v315
    %v1296 = vunpack.c.l.b16 %v316
    %v1297 = vunpack.c.l.b16 %v317
    %v1298 = vunpack.c.l.b16 %v318
    %v1299 = vunpack.c.l.b16 %v319
    %v1300 = vunpack.c.l.b16 %v320
    %v1301 = vunpack.c.l.b16 %v321
    %v1302 = vunpack.c.l.b16 %v322
    %v1303 = vunpack.c.l.b16 %v323
    %v1304 = vunpack.c.l.b16 %v324
    %v1305 = vunpack.c.l.b16 %v325
    %v1306 = vunpack.c.l.b16 %v326
    %v1307 = vunpack.c.l.b16 %v327
    %v1308 = vunpack.c.l.b16 %v328
    %v1309 = vunpack.c.l.b16 %v329
    %v1310 = vunpack.c.l.b16 %v330
    %v1311 = vunpack.c.l.b16 %v331
    %v1312 = vunpack.c.l.b16 %v332
    %v1313 = vunpack.c.l.b16 %v333
    %v1314 = vunpack.c.l.b16 %v334
    %v1315 = vunpack.c.l.b16 %v335
    %v1316 = vunpack.c.l.b16 %v336
    %v1317 = vunpack.c.l.b16 %v337
    %v1318 = vunpack.c.l.b16 %v338
    %v1319 = vunpack.c.l.b16 %v339
    %v1320 = vunpack.c.l.b16 %v340
    %v1321 = vunpack.c.l.b16 %v341
    %v1322 = vunpack.c.l.b16 %v342
    %v1323 = vunpack.c.l.b16 %v343
    %v1324 = vunpack.c.l.b16 %v344
    %v1325 = vunpack.c.l.b16 %v345
    %v1326 = vunpack.c.l.b16 %v346
    %v1327 = vunpack.c.l.b16 %v347
    %v1328 = vunpack.c.l.b16 %v348
    %v1329 = vunpack.c.l.b16 %v349
    %v1330 = vunpack.c.l.b16 %v350
    %v1331 = vunpack.c.l.b16 %v351
    %v1332 = vunpack.c.l.b16 %v352
    %v1333 = vunpack.c.l.b16 %v353
    %v1334 = vunpack.c.l.b16 %v354
    %v1335 = vunpack.c.l.b16 %v355
    %v1336 = vunpack.c.l.b16 %v356
    %v1337 = vunpack.c.l.b16 %v357
    %v1338 = vunpack.c.l.b16 %v358
    %v1339 = vunpack.c.l.b16 %v359
    %v1340 = vunpack.c.l.b16 %v360
    %v1341 = vunpack.c.l.b16 %v361
    %v1342 = vunpack.c.l.b16 %v362
    %v1343 = vunpack.c.l.b16 %v363
    %v1344 = vunpack.c.l.b16 %v364
    %v1345 = vunpack.c.l.b16 %v365
    %v1346 = vunpack.c.l.b16 %v366
    %v1347 = vunpack.c.l.b16 %v367
    %v1348 = vunpack.c.l.b16 %v368
    %v1349 = vunpack.c.l.b16 %v369
    %v1350 = vunpack.c.l.b16 %v370
    %v1351 = vunpack.c.l.b16 %v371
    %v1352 = vunpack.c.l.b16 %v372
    %v1353 = vunpack.c.l.b16 %v373
    %v1354 = vunpack.c.l.b16 %v374
    %v1355 = vunpack.c.l.b16 %v375
    %v1356 = vunpack.c.l.b16 %v376
    %v1357 = vunpack.c.l.b16 %v377
    %v1358 = vunpack.c.l.b16 %v378
    %v1359 = vunpack.c.l.b16 %v379
    %v1360 = vunpack.c.l.b16 %v380
    %v1361 = vunpack.c.l.b16 %v381
    %v1362 = vunpack.c.l.b16 %v382
    %v1363 = vunpack.c.l.b16 %v383
    %v1364 = vunpack.c.l.b16 %v384
    %v1365 = vunpack.c.l.b16 %v385
    %v1366 = vunpack.c.l.b16 %v386
    %v1367 = vunpack.c.l.b16 %v387
    %v1368 = vunpack.c.l.b16 %v388
    %v1369 = vunpack.c.l.b16 %v389
    %v1370 = vunpack.c.l.b16 %v390
    %v1371 = vunpack.c.l.b16 %v391
    %v1372 = vunpack.c.l.b16 %v392
    %v1373 = vunpack.c.l.b16 %v393
    %v1374 = vunpack.c.l.b16 %v394
    %v1375 = vunpack.c.l.b16 %v395
    %v1376 = vunpack.c.l.b16 %v396
    %v1377 = vunpack.c.l.b16 %v397
    %v1378 = vunpack.c.l.b16 %v398
    %v1379 = vunpack.c.l.b16 %v399
    %v1380 = vunpack.c.l.b16 %v400
    %v1381 = vunpack.c.l.b16 %v401
    %v1382 = vunpack.c.l.b16 %v402
    %v1383 = vunpack.c.l.b16 %v403
    %v1384 = vunpack.c.l.b16 %v404
    %v1385 = vunpack.c.l.b16 %v405
    %v1386 = vunpack.c.l.b16 %v406
    %v1387 = vunpack.c.l.b16 %v407
    %v1388 = vunpack.c.l.b16 %v408
    %v1389 = vunpack.c.l.b16 %v409
    %v1390 = vunpack.c.l.b16 %v410
    %v1391 = vunpack.c.l.b16 %v411
    %v1392 = vunpack.c.l.b16 %v412
    %v1393 = vunpack.c.l.b16 %v413
    %v1394 = vunpack.c.l.b16 %v414
    %v1395 = vunpack.c.l.b16 %v415
    %v1396 = vunpack.c.l.b16 %v416
    %v1397 = vunpack.c.l.b16 %v417
    %v1398 = vpack.c.b16 %v1007, %v1006
    %v1399 = vpack.c.b16 %v1009, %v1008
    %v1400 = vpack.c.b16 %v1011, %v1010
    %v1401 = vpack.c.b16 %v1013, %v1012
    %v1402 = vpack.c.b16 %v1015, %v1014
    %v1403 = vpack.c.b16 %v1017, %v1016
    %v1404 = vpack.c.b16 %v1019, %v1018
    %v1405 = vpack.c.b16 %v1021, %v1020
    %v1406 = vpack.c.b16 %v1023, %v1022
    %v1407 = vpack.c.b16 %v1025, %v1024
    %v1408 = vpack.c.b16 %v1027, %v1026
    %v1409 = vpack.c.b16 %v1029, %v1028
    %v1410 = vpack.c.b16 %v1031, %v1030
    %v1411 = vpack.c.b16 %v1033, %v1032
    %v1412 = vpack.c.b16 %v1035, %v1034
    %v1413 = vpack.c.b16 %v1037, %v1036
    %v1414 = vpack.c.b16 %v1039, %v1038
    %v1415 = vpack.c.b16 %v1041, %v1040
    %v1416 = vpack.c.b16 %v1043, %v1042
    %v1417 = vpack.c.b16 %v1045, %v1044
    %v1418 = vpack.c.b16 %v1047, %v1046
    %v1419 = vpack.c.b16 %v1049, %v1048
    %v1420 = vpack.c.b16 %v1051, %v1050
    %v1421 = vpack.c.b16 %v1053, %v1052
    %v1422 = vpack.c.b16 %v1055, %v1054
    %v1423 = vpack.c.b16 %v1057, %v1056
    %v1424 = vpack.c.b16 %v1059, %v1058
    %v1425 = vpack.c.b16 %v1061, %v1060
    %v1426 = vpack.c.b16 %v1063, %v1062
    %v1427 = vpack.c.b16 %v1065, %v1064
    %v1428 = vpack.c.b16 %v1067, %v1066
    %v1429 = vpack.c.b16 %v1069, %v1068
    %v1430 = vpack.c.b16 %v1071, %v1070
    %v1431 = vpack.c.b16 %v1073, %v1072
    %v1432 = vpack.c.b16 %v1075, %v1074
    %v1433 = vpack.c.b16 %v1077, %v1076
    %v1434 = vpack.c.b16 %v1079, %v1078
    %v1435 = vpack.c.b16 %v1081, %v1080
    %v1436 = vpack.c.b16 %v1083, %v1082
    %v1437 = vpack.c.b16 %v1085, %v1084
    %v1438 = vpack.c.b16 %v1087, %v1086
    %v1439 = vpack.c.b16 %v1089, %v1088
    %v1440 = vpack.c.b16 %v1091, %v1090
    %v1441 = vpack.c.b16 %v1093, %v1092
    %v1442 = vpack.c.b16 %v1095, %v1094
    %v1443 = vpack.c.b16 %v1097, %v1096
    %v1444 = vpack.c.b16 %v1099, %v1098
    %v1445 = vpack.c.b16 %v1101, %v1100
    %v1446 = vpack.c.b16 %v1103, %v1102
    %v1447 = vpack.c.b16 %v1105, %v1104
    %v1448 = vpack.c.b16 %v1107, %v1106
    %v1449 = vpack.c.b16 %v1109, %v1108
    %v1450 = vpack.c.b16 %v1111, %v1110
    %v1451 = vpack.c.b16 %v1113, %v1112
    %v1452 = vpack.c.b16 %v1115, %v1114
    %v1453 = vpack.c.b16 %v1117, %v1116
    %v1454 = vpack.c.b16 %v1119, %v1118
    %v1455 = vpack.c.b16 %v1121, %v1120
    %v1456 = vpack.c.b16 %v1123, %v1122
    %v1457 = vpack.c.b16 %v1125, %v1124
    %v1458 = vpack.c.b16 %v1127, %v1126
    %v1459 = vpack.c.b16 %v1129, %v1128
    %v1460 = vpack.c.b16 %v1131, %v1130
    %v1461 = vpack.c.b16 %v1133, %v1132
    %v1462 = vpack.c.b16 %v1135, %v1134
    %v1463 = vpack.c.b16 %v1137, %v1136
    %v1464 = vpack.c.b16 %v1139, %v1138
    %v1465 = vpack.c.b16 %v1141, %v1140
    %v1466 = vpack.c.b16 %v1143, %v1142
    %v1467 = vpack.c.b16 %v1145, %v1144
    %v1468 = vpack.c.b16 %v1147, %v1146
    %v1469 = vpack.c.b16 %v1149, %v1148
    %v1470 = vpack.c.b16 %v1151, %v1150
    %v1471 = vpack.c.b16 %v1153, %v1152
    %v1472 = vpack.c.b16 %v1155, %v1154
    %v1473 = vpack.c.b16 %v1157, %v1156
    %v1474 = vpack.c.b16 %v1159, %v1158
    %v1475 = vpack.c.b16 %v1161, %v1160
    %v1476 = vpack.c.b16 %v1163, %v1162
    %v1477 = vpack.c.b16 %v1165, %v1164
    %v1478 = vpack.c.b16 %v1167, %v1166
    %v1479 = vpack.c.b16 %v1169, %v1168
    %v1480 = vpack.c.b16 %v1171, %v1170
    %v1481 = vpack.c.b16 %v1173, %v1172
    %v1482 = vpack.c.b16 %v1175, %v1174
    %v1483 = vpack.c.b16 %v1177, %v1176
    %v1484 = vpack.c.b16 %v1179, %v1178
    %v1485 = vpack.c.b16 %v1181, %v1180
    %v1486 = vpack.c.b16 %v1183, %v1182
    %v1487 = vpack.c.b16 %v1185, %v1184
    %v1488 = vpack.c.b16 %v1187, %v1186
    %v1489 = vpack.c.b16 %v1189, %v1188
    %v1490 = vpack.c.b16 %v1191, %v1190
    %v1491 = vpack.c.b16 %v1193, %v1192
    %v1492 = vpack.c.b16 %v1195, %v1194
    %v1493 = vpack.c.b16 %v1197, %v1196
    %v1494 = vpack.c.b16 %v1199, %v1198
    %v1495 = vpack.c.b16 %v1201, %v1200
    %v1496 = vpack.c.b16 %v1203, %v1202
    %v1497 = vpack.c.b16 %v1205, %v1204
    %v1498 = vpack.c.b16 %v1207, %v1206
    %v1499 = vpack.c.b16 %v1209, %v1208
    %v1500 = vpack.c.b16 %v1211, %v1210
    %v1501 = vpack.c.b16 %v1213, %v1212
    %v1502 = vpack.c.b16 %v1215, %v1214
    %v1503 = vpack.c.b16 %v1217, %v1216
    %v1504 = vpack.c.b16 %v1219, %v1218
    %v1505 = vpack.c.b16 %v1221, %v1220
    %v1506 = vpack.c.b16 %v1223, %v1222
    %v1507 = vpack.c.b16 %v1225, %v1224
    %v1508 = vpack.c.b16 %v1227, %v1226
    %v1509 = vpack.c.b16 %v1229, %v1228
    %v1510 = vpack.c.b16 %v1231, %v1230
    %v1511 = vpack.c.b16 %v1233, %v1232
    %v1512 = vpack.c.b16 %v1235, %v1234
    %v1513 = vpack.c.b16 %v1237, %v1236
    %v1514 = vpack.c.b16 %v1239, %v1238
    %v1515 = vpack.c.b16 %v1241, %v1240
    %v1516 = vpack.c.b16 %v1243, %v1242
    %v1517 = vpack.c.b16 %v1245, %v1244
    %v1518 = vpack.c.b16 %v1247, %v1246
    %v1519 = vpack.c.b16 %v1249, %v1248
    %v1520 = vpack.c.b16 %v1251, %v1250
    %v1521 = vpack.c.b16 %v1253, %v1252
    %v1522 = vpack.c.b16 %v1255, %v1254
    %v1523 = vpack.c.b16 %v1257, %v1256
    %v1524 = vpack.c.b16 %v1259, %v1258
    %v1525 = vpack.c.b16 %v1261, %v1260
    %v1526 = vpack.c.b16 %v1263, %v1262
    %v1527 = vpack.c.b16 %v1265, %v1264
    %v1528 = vpack.c.b16 %v1267, %v1266
    %v1529 = vpack.c.b16 %v1269, %v1268
    %v1530 = vpack.c.b16 %v1271, %v1270
    %v1531 = vpack.c.b16 %v1273, %v1272
    %v1532 = vpack.c.b16 %v1275, %v1274
    %v1533 = vpack.c.b16 %v1277, %v1276
    %v1534 = vpack.c.b16 %v1279, %v1278
    %v1535 = vpack.c.b16 %v1281, %v1280
    %v1536 = vpack.c.b16 %v1283, %v1282
    %v1537 = vpack.c.b16 %v1285, %v1284
    %v1538 = vpack.c.b16 %v1287, %v1286
    %v1539 = vpack.c.b16 %v1289, %v1288
    %v1540 = vpack.c.b16 %v1291, %v1290
    %v1541 = vpack.c.b16 %v1293, %v1292
    %v1542 = vpack.c.b16 %v1295, %v1294
    %v1543 = vpack.c.b16 %v1297, %v1296
    %v1544 = vpack.c.b16 %v1299, %v1298
    %v1545 = vpack.c.b16 %v1301, %v1300
    %v1546 = vpack.c.b16 %v1303, %v1302
    %v1547 = vpack.c.b16 %v1305, %v1304
    %v1548 = vpack.c.b16 %v1307, %v1306
    %v1549 = vpack.c.b16 %v1309, %v1308
    %v1550 = vpack.c.b16 %v1311, %v1310
    %v1551 = vpack.c.b16 %v1313, %v1312
    %v1552 = vpack.c.b16 %v1315, %v1314
    %v1553 = vpack.c.b16 %v1317, %v1316
    %v1554 = vpack.c.b16 %v1319, %v1318
    %v1555 = vpack.c.b16 %v1321, %v1320
    %v1556 = vpack.c.b16 %v1323, %v1322
    %v1557 = vpack.c.b16 %v1325, %v1324
    %v1558 = vpack.c.b16 %v1327, %v1326
    %v1559 = vpack.c.b16 %v1329, %v1328
    %v1560 = vpack.c.b16 %v1331, %v1330
    %v1561 = vpack.c.b16 %v1333, %v1332
    %v1562 = vpack.c.b16 %v1335, %v1334
    %v1563 = vpack.c.b16 %v1337, %v1336
    %v1564 = vpack.c.b16 %v1339, %v1338
    %v1565 = vpack.c.b16 %v1341, %v1340
    %v1566 = vpack.c.b16 %v1343, %v1342
    %v1567 = vpack.c.b16 %v1345, %v1344
    %v1568 = vpack.c.b16 %v1347, %v1346
    %v1569 = vpack.c.b16 %v1349, %v1348
    %v1570 = vpack.c.b16 %v1351, %v1350
    %v1571 = vpack.c.b16 %v1353, %v1352
    %v1572 = vpack.c.b16 %v1355, %v1354
    %v1573 = vpack.c.b16 %v1357, %v1356
    %v1574 = vpack.c.b16 %v1359, %v1358
    %v1575 = vpack.c.b16 %v1361, %v1360
    %v1576 = vpack.c.b16 %v1363, %v1362
    %v1577 = vpack.c.b16 %v1365, %v1364
    %v1578 = vpack.c.b16 %v1367, %v1366
    %v1579 = vpack.c.b16 %v1369, %v1368
    %v1580 = vpack.c.b16 %v1371, %v1370
    %v1581 = vpack.c.b16 %v1373, %v1372
    %v1582 = vpack.c.b16 %v1375, %v1374
    %v1583 = vpack.c.b16 %v1377, %v1376
    %v1584 = vpack.c.b16 %v1379, %v1378
    %v1585 = vpack.c.b16 %v1381, %v1380
    %v1586 = vpack.c.b16 %v1383, %v1382
    %v1587 = vpack.c.b16 %v1385, %v1384
    %v1588 = vpack.c.b16 %v1387, %v1386
    %v1589 = vpack.c.b16 %v1389, %v1388
    %v1590 = vpack.c.b16 %v1391, %v1390
    %v1591 = vpack.c.b16 %v1393, %v1392
    %v1592 = vpack.c.b16 %v1395, %v1394
    %v1593 = vpack.c.b16 %v1397, %v1396
    %vm1790 = vcmask 523264
    %v1792 = vsel %vm1790, %v589, 0
    %1794 = vmatprep.subr.bf16.mxu0 0
    %1795 = vmatpush1.bf16.msra.mxu0 %v1405
    %1796 = vmatprep.subr.bf16.mxu0 0
    %1797 = vmatpush1.bf16.msra.mxu0 %v1404
    %1798 = vmatprep.subr.bf16.mxu0 0
    %1799 = vmatpush1.bf16.msra.mxu0 %v1403
    %1800 = vmatprep.subr.bf16.mxu0 0
    %1801 = vmatpush1.bf16.msra.mxu0 %v1402
    %1802 = vmatprep.subr.bf16.mxu0 0
    %1803 = vmatpush1.bf16.msra.mxu0 %v1401
    %1804 = vmatprep.subr.bf16.mxu0 0
    %1805 = vmatpush1.bf16.msra.mxu0 %v1400
    %1806 = vmatprep.subr.bf16.mxu0 0
    %1807 = vmatpush1.bf16.msra.mxu0 %v1399
    %1808 = vmatprep.subr.bf16.mxu0 0
    %1809 = vmatpush1.bf16.msra.mxu0 %v1398
    %1810 = vmatprep.subr.bf16.mxu0 0
    %1811 = vmatpush2.bf16.msra.mxu0 %v1413
    %1812 = vmatprep.subr.bf16.mxu0 0
    %1813 = vmatpush2.bf16.msra.mxu0 %v1412
    %1814 = vmatprep.subr.bf16.mxu0 0
    %1815 = vmatpush2.bf16.msra.mxu0 %v1411
    %1816 = vmatprep.subr.bf16.mxu0 0
    %1817 = vmatpush2.bf16.msra.mxu0 %v1410
    %1818 = vmatprep.subr.bf16.mxu0 0
    %1819 = vmatpush2.bf16.msra.mxu0 %v1409
    %1820 = vmatprep.subr.bf16.mxu0 0
    %1821 = vmatpush2.bf16.msra.mxu0 %v1408
    %1822 = vmatprep.subr.bf16.mxu0 0
    %1823 = vmatpush2.bf16.msra.mxu0 %v1407
    %1824 = vmatprep.subr.bf16.mxu0 0
    %1825 = vmatpush2.bf16.msra.mxu0 %v1406
    %1826 = vmatprep.mubr.bf16.mxu0 %v466
    %1827 = vmatmul.mubr.bf16.gmra.mxu0 %v452
    %v1828 = vpop.f32.mrf.mxu0
    %v1829 = vadd.f32 %v423, %v1828
    %v1830 = vpop.f32.mrf.mxu0
    %v1831 = vpop.f32.mrf.mxu0
    %v1832 = vpop.f32.mrf.mxu0
    %1833 = vdwg.mxu0
    %1834 = vmatprep.subr.bf16.mxu0 0
    %1835 = vmatpush1.bf16.msra.mxu0 %v1421
    %1836 = vmatprep.subr.bf16.mxu0 0
    %1837 = vmatpush1.bf16.msra.mxu0 %v1420
    %1838 = vmatprep.subr.bf16.mxu0 0
    %1839 = vmatpush1.bf16.msra.mxu0 %v1419
    %1840 = vmatprep.subr.bf16.mxu0 0
    %1841 = vmatpush1.bf16.msra.mxu0 %v1418
    %1842 = vmatprep.subr.bf16.mxu0 0
    %1843 = vmatpush1.bf16.msra.mxu0 %v1417
    %1844 = vmatprep.subr.bf16.mxu0 0
    %1845 = vmatpush1.bf16.msra.mxu0 %v1416
    %1846 = vmatprep.subr.bf16.mxu0 0
    %1847 = vmatpush1.bf16.msra.mxu0 %v1415
    %1848 = vmatprep.subr.bf16.mxu0 0
    %1849 = vmatpush1.bf16.msra.mxu0 %v1414
    %1850 = vmatprep.subr.bf16.mxu0 0
    %1851 = vmatpush2.bf16.msra.mxu0 %v1429
    %1852 = vmatprep.subr.bf16.mxu0 0
    %1853 = vmatpush2.bf16.msra.mxu0 %v1428
    %1854 = vmatprep.subr.bf16.mxu0 0
    %1855 = vmatpush2.bf16.msra.mxu0 %v1427
    %1856 = vmatprep.subr.bf16.mxu0 0
    %1857 = vmatpush2.bf16.msra.mxu0 %v1426
    %1858 = vmatprep.subr.bf16.mxu0 0
    %1859 = vmatpush2.bf16.msra.mxu0 %v1425
    %1860 = vmatprep.subr.bf16.mxu0 0
    %1861 = vmatpush2.bf16.msra.mxu0 %v1424
    %1862 = vmatprep.subr.bf16.mxu0 0
    %1863 = vmatpush2.bf16.msra.mxu0 %v1423
    %1864 = vmatprep.subr.bf16.mxu0 0
    %1865 = vmatpush2.bf16.msra.mxu0 %v1422
    %1866 = vmatprep.mubr.bf16.mxu0 %v476
    %1867 = vmatmul.mubr.bf16.gmra.mxu0 %v474
    %v1868 = vpop.f32.mrf.mxu0
    %v1869 = vadd.f32 %v1829, %v1868
    %v1870 = vpop.f32.mrf.mxu0
    %v1871 = vpop.f32.mrf.mxu0
    %v1872 = vpop.f32.mrf.mxu0
    %1873 = vdwg.mxu0
    %1874 = vmatprep.subr.bf16.mxu0 0
    %1875 = vmatpush1.bf16.msra.mxu0 %v1437
    %1876 = vmatprep.subr.bf16.mxu0 0
    %1877 = vmatpush1.bf16.msra.mxu0 %v1436
    %1878 = vmatprep.subr.bf16.mxu0 0
    %1879 = vmatpush1.bf16.msra.mxu0 %v1435
    %1880 = vmatprep.subr.bf16.mxu0 0
    %1881 = vmatpush1.bf16.msra.mxu0 %v1434
    %1882 = vmatprep.subr.bf16.mxu0 0
    %1883 = vmatpush1.bf16.msra.mxu0 %v1433
    %1884 = vmatprep.subr.bf16.mxu0 0
    %1885 = vmatpush1.bf16.msra.mxu0 %v1432
    %1886 = vmatprep.subr.bf16.mxu0 0
    %1887 = vmatpush1.bf16.msra.mxu0 %v1431
    %1888 = vmatprep.subr.bf16.mxu0 0
    %1889 = vmatpush1.bf16.msra.mxu0 %v1430
    %1890 = vmatprep.subr.bf16.mxu0 0
    %1891 = vmatpush2.bf16.msra.mxu0 %v1445
    %1892 = vmatprep.subr.bf16.mxu0 0
    %1893 = vmatpush2.bf16.msra.mxu0 %v1444
    %1894 = vmatprep.subr.bf16.mxu0 0
    %1895 = vmatpush2.bf16.msra.mxu0 %v1443
    %1896 = vmatprep.subr.bf16.mxu0 0
    %1897 = vmatpush2.bf16.msra.mxu0 %v1442
    %1898 = vmatprep.subr.bf16.mxu0 0
    %1899 = vmatpush2.bf16.msra.mxu0 %v1441
    %1900 = vmatprep.subr.bf16.mxu0 0
    %1901 = vmatpush2.bf16.msra.mxu0 %v1440
    %1902 = vmatprep.subr.bf16.mxu0 0
    %1903 = vmatpush2.bf16.msra.mxu0 %v1439
    %1904 = vmatprep.subr.bf16.mxu0 0
    %1905 = vmatpush2.bf16.msra.mxu0 %v1438
    %1906 = vmatprep.mubr.bf16.mxu0 %v473
    %1907 = vmatmul.mubr.bf16.gmra.mxu0 %v459
    %v1908 = vpop.f32.mrf.mxu0
    %v1909 = vadd.f32 %v1869, %v1908
    %v1910 = vpop.f32.mrf.mxu0
    %v1911 = vpop.f32.mrf.mxu0
    %v1912 = vpop.f32.mrf.mxu0
    %1913 = vdwg.mxu0
    %1914 = vmatprep.subr.bf16.mxu0 0
    %1915 = vmatpush1.bf16.msra.mxu0 %v1453
    %1916 = vmatprep.subr.bf16.mxu0 0
    %1917 = vmatpush1.bf16.msra.mxu0 %v1452
    %1918 = vmatprep.subr.bf16.mxu0 0
    %1919 = vmatpush1.bf16.msra.mxu0 %v1451
    %1920 = vmatprep.subr.bf16.mxu0 0
    %1921 = vmatpush1.bf16.msra.mxu0 %v1450
    %1922 = vmatprep.subr.bf16.mxu0 0
    %1923 = vmatpush1.bf16.msra.mxu0 %v1449
    %1924 = vmatprep.subr.bf16.mxu0 0
    %1925 = vmatpush1.bf16.msra.mxu0 %v1448
    %1926 = vmatprep.subr.bf16.mxu0 0
    %1927 = vmatpush1.bf16.msra.mxu0 %v1447
    %1928 = vmatprep.subr.bf16.mxu0 0
    %1929 = vmatpush1.bf16.msra.mxu0 %v1446
    %1930 = vmatprep.subr.bf16.mxu0 0
    %1931 = vmatpush2.bf16.msra.mxu0 %v1461
    %1932 = vmatprep.subr.bf16.mxu0 0
    %1933 = vmatpush2.bf16.msra.mxu0 %v1460
    %1934 = vmatprep.subr.bf16.mxu0 0
    %1935 = vmatpush2.bf16.msra.mxu0 %v1459
    %1936 = vmatprep.subr.bf16.mxu0 0
    %1937 = vmatpush2.bf16.msra.mxu0 %v1458
    %1938 = vmatprep.subr.bf16.mxu0 0
    %1939 = vmatpush2.bf16.msra.mxu0 %v1457
    %1940 = vmatprep.subr.bf16.mxu0 0
    %1941 = vmatpush2.bf16.msra.mxu0 %v1456
    %1942 = vmatprep.subr.bf16.mxu0 0
    %1943 = vmatpush2.bf16.msra.mxu0 %v1455
    %1944 = vmatprep.subr.bf16.mxu0 0
    %1945 = vmatpush2.bf16.msra.mxu0 %v1454
    %1946 = vmatprep.mubr.bf16.mxu0 %v477
    %1947 = vmatmul.mubr.bf16.gmra.mxu0 %v475
    %v1948 = vpop.f32.mrf.mxu0
    %v1949 = vadd.f32 %v1909, %v1948
    %v1950 = vpop.f32.mrf.mxu0
    %v1951 = vpop.f32.mrf.mxu0
    %v1952 = vpop.f32.mrf.mxu0
    %1953 = vdwg.mxu0
    %1954 = vmatprep.subr.bf16.mxu0 0
    %1955 = vmatpush1.bf16.msra.mxu0 %v1469
    %1956 = vmatprep.subr.bf16.mxu0 0
    %1957 = vmatpush1.bf16.msra.mxu0 %v1468
    %1958 = vmatprep.subr.bf16.mxu0 0
    %1959 = vmatpush1.bf16.msra.mxu0 %v1467
    %1960 = vmatprep.subr.bf16.mxu0 0
    %1961 = vmatpush1.bf16.msra.mxu0 %v1466
    %1962 = vmatprep.subr.bf16.mxu0 0
    %1963 = vmatpush1.bf16.msra.mxu0 %v1465
    %1964 = vmatprep.subr.bf16.mxu0 0
    %1965 = vmatpush1.bf16.msra.mxu0 %v1464
    %1966 = vmatprep.subr.bf16.mxu0 0
    %1967 = vmatpush1.bf16.msra.mxu0 %v1463
    %1968 = vmatprep.subr.bf16.mxu0 0
    %1969 = vmatpush1.bf16.msra.mxu0 %v1462
    %1970 = vmatprep.subr.bf16.mxu0 0
    %1971 = vmatpush2.bf16.msra.mxu0 %v1477
    %1972 = vmatprep.subr.bf16.mxu0 0
    %1973 = vmatpush2.bf16.msra.mxu0 %v1476
    %1974 = vmatprep.subr.bf16.mxu0 0
    %1975 = vmatpush2.bf16.msra.mxu0 %v1475
    %1976 = vmatprep.subr.bf16.mxu0 0
    %1977 = vmatpush2.bf16.msra.mxu0 %v1474
    %1978 = vmatprep.subr.bf16.mxu0 0
    %1979 = vmatpush2.bf16.msra.mxu0 %v1473
    %1980 = vmatprep.subr.bf16.mxu0 0
    %1981 = vmatpush2.bf16.msra.mxu0 %v1472
    %1982 = vmatprep.subr.bf16.mxu0 0
    %1983 = vmatpush2.bf16.msra.mxu0 %v1471
    %1984 = vmatprep.subr.bf16.mxu0 0
    %1985 = vmatpush2.bf16.msra.mxu0 %v1470
    %1986 = vmatprep.mubr.bf16.mxu0 %v515
    %1987 = vmatmul.mubr.bf16.gmra.mxu0 %v501
    %v1988 = vpop.f32.mrf.mxu0
    %v1989 = vadd.f32 %v1949, %v1988
    %v1990 = vpop.f32.mrf.mxu0
    %v1991 = vpop.f32.mrf.mxu0
    %v1992 = vpop.f32.mrf.mxu0
    %1993 = vdwg.mxu0
    %1994 = vmatprep.subr.bf16.mxu0 0
    %1995 = vmatpush1.bf16.msra.mxu0 %v1485
    %1996 = vmatprep.subr.bf16.mxu0 0
    %1997 = vmatpush1.bf16.msra.mxu0 %v1484
    %1998 = vmatprep.subr.bf16.mxu0 0
    %1999 = vmatpush1.bf16.msra.mxu0 %v1483
    %2000 = vmatprep.subr.bf16.mxu0 0
    %2001 = vmatpush1.bf16.msra.mxu0 %v1482
    %2002 = vmatprep.subr.bf16.mxu0 0
    %2003 = vmatpush1.bf16.msra.mxu0 %v1481
    %2004 = vmatprep.subr.bf16.mxu0 0
    %2005 = vmatpush1.bf16.msra.mxu0 %v1480
    %2006 = vmatprep.subr.bf16.mxu0 0
    %2007 = vmatpush1.bf16.msra.mxu0 %v1479
    %2008 = vmatprep.subr.bf16.mxu0 0
    %2009 = vmatpush1.bf16.msra.mxu0 %v1478
    %2010 = vmatprep.subr.bf16.mxu0 0
    %2011 = vmatpush2.bf16.msra.mxu0 %v1493
    %2012 = vmatprep.subr.bf16.mxu0 0
    %2013 = vmatpush2.bf16.msra.mxu0 %v1492
    %2014 = vmatprep.subr.bf16.mxu0 0
    %2015 = vmatpush2.bf16.msra.mxu0 %v1491
    %2016 = vmatprep.subr.bf16.mxu0 0
    %2017 = vmatpush2.bf16.msra.mxu0 %v1490
    %2018 = vmatprep.subr.bf16.mxu0 0
    %2019 = vmatpush2.bf16.msra.mxu0 %v1489
    %2020 = vmatprep.subr.bf16.mxu0 0
    %2021 = vmatpush2.bf16.msra.mxu0 %v1488
    %2022 = vmatprep.subr.bf16.mxu0 0
    %2023 = vmatpush2.bf16.msra.mxu0 %v1487
    %2024 = vmatprep.subr.bf16.mxu0 0
    %2025 = vmatpush2.bf16.msra.mxu0 %v1486
    %2026 = vmatprep.mubr.bf16.mxu0 %v525
    %2027 = vmatmul.mubr.bf16.gmra.mxu0 %v523
    %v2028 = vpop.f32.mrf.mxu0
    %v2029 = vadd.f32 %v1989, %v2028
    %v2030 = vpop.f32.mrf.mxu0
    %v2031 = vpop.f32.mrf.mxu0
    %v2032 = vpop.f32.mrf.mxu0
    %2033 = vdwg.mxu0
    %2034 = vmatprep.subr.bf16.mxu0 0
    %2035 = vmatpush1.bf16.msra.mxu0 %v1501
    %2036 = vmatprep.subr.bf16.mxu0 0
    %2037 = vmatpush1.bf16.msra.mxu0 %v1500
    %2038 = vmatprep.subr.bf16.mxu0 0
    %2039 = vmatpush1.bf16.msra.mxu0 %v1499
    %2040 = vmatprep.subr.bf16.mxu0 0
    %2041 = vmatpush1.bf16.msra.mxu0 %v1498
    %2042 = vmatprep.subr.bf16.mxu0 0
    %2043 = vmatpush1.bf16.msra.mxu0 %v1497
    %2044 = vmatprep.subr.bf16.mxu0 0
    %2045 = vmatpush1.bf16.msra.mxu0 %v1496
    %2046 = vmatprep.subr.bf16.mxu0 0
    %2047 = vmatpush1.bf16.msra.mxu0 %v1495
    %2048 = vmatprep.subr.bf16.mxu0 0
    %2049 = vmatpush1.bf16.msra.mxu0 %v1494
    %2050 = vmatprep.subr.bf16.mxu0 0
    %2051 = vmatpush2.bf16.msra.mxu0 %v1509
    %2052 = vmatprep.subr.bf16.mxu0 0
    %2053 = vmatpush2.bf16.msra.mxu0 %v1508
    %2054 = vmatprep.subr.bf16.mxu0 0
    %2055 = vmatpush2.bf16.msra.mxu0 %v1507
    %2056 = vmatprep.subr.bf16.mxu0 0
    %2057 = vmatpush2.bf16.msra.mxu0 %v1506
    %2058 = vmatprep.subr.bf16.mxu0 0
    %2059 = vmatpush2.bf16.msra.mxu0 %v1505
    %2060 = vmatprep.subr.bf16.mxu0 0
    %2061 = vmatpush2.bf16.msra.mxu0 %v1504
    %2062 = vmatprep.subr.bf16.mxu0 0
    %2063 = vmatpush2.bf16.msra.mxu0 %v1503
    %2064 = vmatprep.subr.bf16.mxu0 0
    %2065 = vmatpush2.bf16.msra.mxu0 %v1502
    %2066 = vmatprep.mubr.bf16.mxu0 %v522
    %2067 = vmatmul.mubr.bf16.gmra.mxu0 %v508
    %v2068 = vpop.f32.mrf.mxu0
    %v2069 = vadd.f32 %v2029, %v2068
    %v2070 = vpop.f32.mrf.mxu0
    %v2071 = vpop.f32.mrf.mxu0
    %v2072 = vpop.f32.mrf.mxu0
    %2073 = vdwg.mxu0
    %2074 = vmatprep.subr.bf16.mxu0 0
    %2075 = vmatpush1.bf16.msra.mxu0 %v1517
    %2076 = vmatprep.subr.bf16.mxu0 0
    %2077 = vmatpush1.bf16.msra.mxu0 %v1516
    %2078 = vmatprep.subr.bf16.mxu0 0
    %2079 = vmatpush1.bf16.msra.mxu0 %v1515
    %2080 = vmatprep.subr.bf16.mxu0 0
    %2081 = vmatpush1.bf16.msra.mxu0 %v1514
    %2082 = vmatprep.subr.bf16.mxu0 0
    %2083 = vmatpush1.bf16.msra.mxu0 %v1513
    %2084 = vmatprep.subr.bf16.mxu0 0
    %2085 = vmatpush1.bf16.msra.mxu0 %v1512
    %2086 = vmatprep.subr.bf16.mxu0 0
    %2087 = vmatpush1.bf16.msra.mxu0 %v1511
    %2088 = vmatprep.subr.bf16.mxu0 0
    %2089 = vmatpush1.bf16.msra.mxu0 %v1510
    %2090 = vmatprep.subr.bf16.mxu0 0
    %2091 = vmatpush2.bf16.msra.mxu0 %v1525
    %2092 = vmatprep.subr.bf16.mxu0 0
    %2093 = vmatpush2.bf16.msra.mxu0 %v1524
    %2094 = vmatprep.subr.bf16.mxu0 0
    %2095 = vmatpush2.bf16.msra.mxu0 %v1523
    %2096 = vmatprep.subr.bf16.mxu0 0
    %2097 = vmatpush2.bf16.msra.mxu0 %v1522
    %2098 = vmatprep.subr.bf16.mxu0 0
    %2099 = vmatpush2.bf16.msra.mxu0 %v1521
    %2100 = vmatprep.subr.bf16.mxu0 0
    %2101 = vmatpush2.bf16.msra.mxu0 %v1520
    %2102 = vmatprep.subr.bf16.mxu0 0
    %2103 = vmatpush2.bf16.msra.mxu0 %v1519
    %2104 = vmatprep.subr.bf16.mxu0 0
    %2105 = vmatpush2.bf16.msra.mxu0 %v1518
    %2106 = vmatprep.mubr.bf16.mxu0 %v526
    %2107 = vmatmul.mubr.bf16.gmra.mxu0 %v524
    %v2108 = vpop.f32.mrf.mxu0
    %v2109 = vadd.f32 %v2069, %v2108
    %v2110 = vpop.f32.mrf.mxu0
    %v2111 = vpop.f32.mrf.mxu0
    %v2112 = vpop.f32.mrf.mxu0
    %2113 = vdwg.mxu0
    %2114 = vmatprep.subr.bf16.mxu0 0
    %2115 = vmatpush1.bf16.msra.mxu0 %v1533
    %2116 = vmatprep.subr.bf16.mxu0 0
    %2117 = vmatpush1.bf16.msra.mxu0 %v1532
    %2118 = vmatprep.subr.bf16.mxu0 0
    %2119 = vmatpush1.bf16.msra.mxu0 %v1531
    %2120 = vmatprep.subr.bf16.mxu0 0
    %2121 = vmatpush1.bf16.msra.mxu0 %v1530
    %2122 = vmatprep.subr.bf16.mxu0 0
    %2123 = vmatpush1.bf16.msra.mxu0 %v1529
    %2124 = vmatprep.subr.bf16.mxu0 0
    %2125 = vmatpush1.bf16.msra.mxu0 %v1528
    %2126 = vmatprep.subr.bf16.mxu0 0
    %2127 = vmatpush1.bf16.msra.mxu0 %v1527
    %2128 = vmatprep.subr.bf16.mxu0 0
    %2129 = vmatpush1.bf16.msra.mxu0 %v1526
    %2130 = vmatprep.subr.bf16.mxu0 0
    %2131 = vmatpush2.bf16.msra.mxu0 %v1541
    %2132 = vmatprep.subr.bf16.mxu0 0
    %2133 = vmatpush2.bf16.msra.mxu0 %v1540
    %2134 = vmatprep.subr.bf16.mxu0 0
    %2135 = vmatpush2.bf16.msra.mxu0 %v1539
    %2136 = vmatprep.subr.bf16.mxu0 0
    %2137 = vmatpush2.bf16.msra.mxu0 %v1538
    %2138 = vmatprep.subr.bf16.mxu0 0
    %2139 = vmatpush2.bf16.msra.mxu0 %v1537
    %2140 = vmatprep.subr.bf16.mxu0 0
    %2141 = vmatpush2.bf16.msra.mxu0 %v1536
    %2142 = vmatprep.subr.bf16.mxu0 0
    %2143 = vmatpush2.bf16.msra.mxu0 %v1535
    %2144 = vmatprep.subr.bf16.mxu0 0
    %2145 = vmatpush2.bf16.msra.mxu0 %v1534
    %2146 = vmatprep.mubr.bf16.mxu0 %v564
    %2147 = vmatmul.mubr.bf16.gmra.mxu0 %v550
    %v2148 = vpop.f32.mrf.mxu0
    %v2149 = vadd.f32 %v2109, %v2148
    %v2150 = vpop.f32.mrf.mxu0
    %v2151 = vpop.f32.mrf.mxu0
    %v2152 = vpop.f32.mrf.mxu0
    %2153 = vdwg.mxu0
    %2154 = vmatprep.subr.bf16.mxu0 0
    %2155 = vmatpush1.bf16.msra.mxu0 %v1549
    %2156 = vmatprep.subr.bf16.mxu0 0
    %2157 = vmatpush1.bf16.msra.mxu0 %v1548
    %2158 = vmatprep.subr.bf16.mxu0 0
    %2159 = vmatpush1.bf16.msra.mxu0 %v1547
    %2160 = vmatprep.subr.bf16.mxu0 0
    %2161 = vmatpush1.bf16.msra.mxu0 %v1546
    %2162 = vmatprep.subr.bf16.mxu0 0
    %2163 = vmatpush1.bf16.msra.mxu0 %v1545
    %2164 = vmatprep.subr.bf16.mxu0 0
    %2165 = vmatpush1.bf16.msra.mxu0 %v1544
    %2166 = vmatprep.subr.bf16.mxu0 0
    %2167 = vmatpush1.bf16.msra.mxu0 %v1543
    %2168 = vmatprep.subr.bf16.mxu0 0
    %2169 = vmatpush1.bf16.msra.mxu0 %v1542
    %2170 = vmatprep.subr.bf16.mxu0 0
    %2171 = vmatpush2.bf16.msra.mxu0 %v1557
    %2172 = vmatprep.subr.bf16.mxu0 0
    %2173 = vmatpush2.bf16.msra.mxu0 %v1556
    %2174 = vmatprep.subr.bf16.mxu0 0
    %2175 = vmatpush2.bf16.msra.mxu0 %v1555
    %2176 = vmatprep.subr.bf16.mxu0 0
    %2177 = vmatpush2.bf16.msra.mxu0 %v1554
    %2178 = vmatprep.subr.bf16.mxu0 0
    %2179 = vmatpush2.bf16.msra.mxu0 %v1553
    %2180 = vmatprep.subr.bf16.mxu0 0
    %2181 = vmatpush2.bf16.msra.mxu0 %v1552
    %2182 = vmatprep.subr.bf16.mxu0 0
    %2183 = vmatpush2.bf16.msra.mxu0 %v1551
    %2184 = vmatprep.subr.bf16.mxu0 0
    %2185 = vmatpush2.bf16.msra.mxu0 %v1550
    %2186 = vmatprep.mubr.bf16.mxu0 %v574
    %2187 = vmatmul.mubr.bf16.gmra.mxu0 %v572
    %v2188 = vpop.f32.mrf.mxu0
    %v2189 = vadd.f32 %v2149, %v2188
    %v2190 = vpop.f32.mrf.mxu0
    %v2191 = vpop.f32.mrf.mxu0
    %v2192 = vpop.f32.mrf.mxu0
    %2193 = vdwg.mxu0
    %2194 = vmatprep.subr.bf16.mxu0 0
    %2195 = vmatpush1.bf16.msra.mxu0 %v1565
    %2196 = vmatprep.subr.bf16.mxu0 0
    %2197 = vmatpush1.bf16.msra.mxu0 %v1564
    %2198 = vmatprep.subr.bf16.mxu0 0
    %2199 = vmatpush1.bf16.msra.mxu0 %v1563
    %2200 = vmatprep.subr.bf16.mxu0 0
    %2201 = vmatpush1.bf16.msra.mxu0 %v1562
    %2202 = vmatprep.subr.bf16.mxu0 0
    %2203 = vmatpush1.bf16.msra.mxu0 %v1561
    %2204 = vmatprep.subr.bf16.mxu0 0
    %2205 = vmatpush1.bf16.msra.mxu0 %v1560
    %2206 = vmatprep.subr.bf16.mxu0 0
    %2207 = vmatpush1.bf16.msra.mxu0 %v1559
    %2208 = vmatprep.subr.bf16.mxu0 0
    %2209 = vmatpush1.bf16.msra.mxu0 %v1558
    %2210 = vmatprep.subr.bf16.mxu0 0
    %2211 = vmatpush2.bf16.msra.mxu0 %v1573
    %2212 = vmatprep.subr.bf16.mxu0 0
    %2213 = vmatpush2.bf16.msra.mxu0 %v1572
    %2214 = vmatprep.subr.bf16.mxu0 0
    %2215 = vmatpush2.bf16.msra.mxu0 %v1571
    %2216 = vmatprep.subr.bf16.mxu0 0
    %2217 = vmatpush2.bf16.msra.mxu0 %v1570
    %2218 = vmatprep.subr.bf16.mxu0 0
    %2219 = vmatpush2.bf16.msra.mxu0 %v1569
    %2220 = vmatprep.subr.bf16.mxu0 0
    %2221 = vmatpush2.bf16.msra.mxu0 %v1568
    %2222 = vmatprep.subr.bf16.mxu0 0
    %2223 = vmatpush2.bf16.msra.mxu0 %v1567
    %2224 = vmatprep.subr.bf16.mxu0 0
    %2225 = vmatpush2.bf16.msra.mxu0 %v1566
    %2226 = vmatprep.mubr.bf16.mxu0 %v571
    %2227 = vmatmul.mubr.bf16.gmra.mxu0 %v557
    %v2228 = vpop.f32.mrf.mxu0
    %v2229 = vadd.f32 %v2189, %v2228
    %v2230 = vpop.f32.mrf.mxu0
    %v2231 = vpop.f32.mrf.mxu0
    %v2232 = vpop.f32.mrf.mxu0
    %2233 = vdwg.mxu0
    %2234 = vmatprep.subr.bf16.mxu0 0
    %2235 = vmatpush1.bf16.msra.mxu0 %v1581
    %2236 = vmatprep.subr.bf16.mxu0 0
    %2237 = vmatpush1.bf16.msra.mxu0 %v1580
    %2238 = vmatprep.subr.bf16.mxu0 0
    %2239 = vmatpush1.bf16.msra.mxu0 %v1579
    %2240 = vmatprep.subr.bf16.mxu0 0
    %2241 = vmatpush1.bf16.msra.mxu0 %v1578
    %2242 = vmatprep.subr.bf16.mxu0 0
    %2243 = vmatpush1.bf16.msra.mxu0 %v1577
    %2244 = vmatprep.subr.bf16.mxu0 0
    %2245 = vmatpush1.bf16.msra.mxu0 %v1576
    %2246 = vmatprep.subr.bf16.mxu0 0
    %2247 = vmatpush1.bf16.msra.mxu0 %v1575
    %2248 = vmatprep.subr.bf16.mxu0 0
    %2249 = vmatpush1.bf16.msra.mxu0 %v1574
    %2250 = vmatprep.subr.bf16.mxu0 0
    %2251 = vmatpush2.bf16.msra.mxu0 %v1589
    %2252 = vmatprep.subr.bf16.mxu0 0
    %2253 = vmatpush2.bf16.msra.mxu0 %v1588
    %2254 = vmatprep.subr.bf16.mxu0 0
    %2255 = vmatpush2.bf16.msra.mxu0 %v1587
    %2256 = vmatprep.subr.bf16.mxu0 0
    %2257 = vmatpush2.bf16.msra.mxu0 %v1586
    %2258 = vmatprep.subr.bf16.mxu0 0
    %2259 = vmatpush2.bf16.msra.mxu0 %v1585
    %2260 = vmatprep.subr.bf16.mxu0 0
    %2261 = vmatpush2.bf16.msra.mxu0 %v1584
    %2262 = vmatprep.subr.bf16.mxu0 0
    %2263 = vmatpush2.bf16.msra.mxu0 %v1583
    %2264 = vmatprep.subr.bf16.mxu0 0
    %2265 = vmatpush2.bf16.msra.mxu0 %v1582
    %2266 = vmatprep.mubr.bf16.mxu0 %v575
    %2267 = vmatmul.mubr.bf16.gmra.mxu0 %v573
    %v2268 = vpop.f32.mrf.mxu0
    %v2269 = vadd.f32 %v2229, %v2268
    %v2270 = vpop.f32.mrf.mxu0
    %v2271 = vpop.f32.mrf.mxu0
    %v2272 = vpop.f32.mrf.mxu0
    %2273 = vdwg.mxu0
    %2274 = vmatprep.subr.bf16.mxu0 0
    %2275 = vmatpush1.bf16.msra.mxu0 0
    %2276 = vmatprep.subr.bf16.mxu0 0
    %2277 = vmatpush1.bf16.msra.mxu0 0
    %2278 = vmatprep.subr.bf16.mxu0 0
    %2279 = vmatpush1.bf16.msra.mxu0 0
    %2280 = vmatprep.subr.bf16.mxu0 0
    %2281 = vmatpush1.bf16.msra.mxu0 0
    %2282 = vmatprep.subr.bf16.mxu0 0
    %2283 = vmatpush1.bf16.msra.mxu0 %v1593
    %2284 = vmatprep.subr.bf16.mxu0 0
    %2285 = vmatpush1.bf16.msra.mxu0 %v1592
    %2286 = vmatprep.subr.bf16.mxu0 0
    %2287 = vmatpush1.bf16.msra.mxu0 %v1591
    %2288 = vmatprep.subr.bf16.mxu0 0
    %2289 = vmatpush1.bf16.msra.mxu0 %v1590
    %2290 = vmatprep.subr.bf16.mxu0 0
    %2291 = vmatpush2.bf16.msra.mxu0 0
    %2292 = vmatprep.subr.bf16.mxu0 0
    %2293 = vmatpush2.bf16.msra.mxu0 0
    %2294 = vmatprep.subr.bf16.mxu0 0
    %2295 = vmatpush2.bf16.msra.mxu0 0
    %2296 = vmatprep.subr.bf16.mxu0 0
    %2297 = vmatpush2.bf16.msra.mxu0 0
    %2298 = vmatprep.subr.bf16.mxu0 0
    %2299 = vmatpush2.bf16.msra.mxu0 0
    %2300 = vmatprep.subr.bf16.mxu0 0
    %2301 = vmatpush2.bf16.msra.mxu0 0
    %2302 = vmatprep.subr.bf16.mxu0 0
    %2303 = vmatpush2.bf16.msra.mxu0 0
    %2304 = vmatprep.subr.bf16.mxu0 0
    %2305 = vmatpush2.bf16.msra.mxu0 0
    %2306 = vmatprep.mubr.bf16.mxu0 0
    %2307 = vmatmul.mubr.bf16.gmra.mxu0 %v1792
    %v2308 = vpop.f32.mrf.mxu0
    %v2309 = vadd.f32 %v2269, %v2308
    %v2310 = vpop.f32.mrf.mxu0
    %v2311 = vpop.f32.mrf.mxu0
    %v2312 = vpop.f32.mrf.mxu0
    %2313 = vdwg.mxu0
    %v2314 = vmax.f32 %v2309, 0.0
    %v2315 = vpack.c.bf16 %v2314, %v2314
    %v2316 = vld [vmem:[%s3] sm:$0xf]
    %v2317 = vld [vmem:[%s3 + $0x4] sm:$0xf]
    %v2318 = vld [vmem:[%s3 + $0x8] sm:$0xf]
    %v2319 = vld [vmem:[%s3 + $0xc] sm:$0xf]
    %v2320 = vld [vmem:[%s3 + $0x10] sm:$0xf]
    %v2321 = vld [vmem:[%s3 + $0x14] sm:$0xf]
    %v2322 = vld [vmem:[%s3 + $0x18] sm:$0xf]
    %v2323 = vld [vmem:[%s3 + $0x1c] sm:$0xf]
    %v2324 = vld [vmem:[%s3 + $0x20] sm:$0xf]
    %v2325 = vld [vmem:[%s3 + $0x24] sm:$0xf]
    %v2326 = vld [vmem:[%s3 + $0x28] sm:$0xf]
    %v2327 = vld [vmem:[%s3 + $0x2c] sm:$0xf]
    %v2328 = vld [vmem:[%s3 + $0x30] sm:$0xf]
    %v2329 = vld [vmem:[%s3 + $0x34] sm:$0xf]
    %v2330 = vld [vmem:[%s3 + $0x38] sm:$0xf]
    %v2331 = vld [vmem:[%s3 + $0x3c] sm:$0xf]
    %v2332 = vld [vmem:[%s4] sm:$0x1]
    %v2334 = vlaneseq
    %v2335 = vshrl.u32 %v2334, 7
    %v2336 = vsub.s32 0, %v2335
    %v2337 = vrot.slane %v2332, %v2336
    %v2355 = vunpack.c.l.b16 %v2316
    %v2356 = vunpack.c.l.b16 %v2317
    %v2357 = vunpack.c.l.b16 %v2318
    %v2358 = vunpack.c.l.b16 %v2319
    %v2359 = vunpack.c.l.b16 %v2320
    %v2360 = vunpack.c.l.b16 %v2321
    %v2361 = vunpack.c.l.b16 %v2322
    %v2362 = vunpack.c.l.b16 %v2323
    %v2363 = vunpack.c.l.b16 %v2324
    %v2364 = vunpack.c.l.b16 %v2325
    %v2365 = vunpack.c.l.b16 %v2326
    %v2366 = vunpack.c.l.b16 %v2327
    %v2367 = vunpack.c.l.b16 %v2328
    %v2368 = vunpack.c.l.b16 %v2329
    %v2369 = vunpack.c.l.b16 %v2330
    %v2370 = vunpack.c.l.b16 %v2331
    %v2371 = vpack.c.b16 %v2356, %v2355
    %v2372 = vpack.c.b16 %v2358, %v2357
    %v2373 = vpack.c.b16 %v2360, %v2359
    %v2374 = vpack.c.b16 %v2362, %v2361
    %v2375 = vpack.c.b16 %v2364, %v2363
    %v2376 = vpack.c.b16 %v2366, %v2365
    %v2377 = vpack.c.b16 %v2368, %v2367
    %v2378 = vpack.c.b16 %v2370, %v2369
    %2387 = vmatprep.subr.bf16.mxu0 0
    %2388 = vmatpush1.bf16.msra.mxu0 %v2378
    %2389 = vmatprep.subr.bf16.mxu0 0
    %2390 = vmatpush1.bf16.msra.mxu0 %v2377
    %2391 = vmatprep.subr.bf16.mxu0 0
    %2392 = vmatpush1.bf16.msra.mxu0 %v2376
    %2393 = vmatprep.subr.bf16.mxu0 0
    %2394 = vmatpush1.bf16.msra.mxu0 %v2375
    %2395 = vmatprep.subr.bf16.mxu0 0
    %2396 = vmatpush1.bf16.msra.mxu0 %v2374
    %2397 = vmatprep.subr.bf16.mxu0 0
    %2398 = vmatpush1.bf16.msra.mxu0 %v2373
    %2399 = vmatprep.subr.bf16.mxu0 0
    %2400 = vmatpush1.bf16.msra.mxu0 %v2372
    %2401 = vmatprep.subr.bf16.mxu0 0
    %2402 = vmatpush1.bf16.msra.mxu0 %v2371
    %2403 = vmatprep.subr.bf16.mxu0 0
    %2404 = vmatpush2.bf16.msra.mxu0 0
    %2405 = vmatprep.subr.bf16.mxu0 0
    %2406 = vmatpush2.bf16.msra.mxu0 0
    %2407 = vmatprep.subr.bf16.mxu0 0
    %2408 = vmatpush2.bf16.msra.mxu0 0
    %2409 = vmatprep.subr.bf16.mxu0 0
    %2410 = vmatpush2.bf16.msra.mxu0 0
    %2411 = vmatprep.subr.bf16.mxu0 0
    %2412 = vmatpush2.bf16.msra.mxu0 0
    %2413 = vmatprep.subr.bf16.mxu0 0
    %2414 = vmatpush2.bf16.msra.mxu0 0
    %2415 = vmatprep.subr.bf16.mxu0 0
    %2416 = vmatpush2.bf16.msra.mxu0 0
    %2417 = vmatprep.subr.bf16.mxu0 0
    %2418 = vmatpush2.bf16.msra.mxu0 0
    %2419 = vmatprep.mubr.bf16.mxu0 0
    %2420 = vmatmul.mubr.bf16.gmra.mxu0 %v2315
    %v2421 = vpop.f32.mrf.mxu0
    %v2422 = vadd.f32 %v2337, %v2421
    %v2423 = vpop.f32.mrf.mxu0
    %v2424 = vpop.f32.mrf.mxu0
    %v2425 = vpop.f32.mrf.mxu0
    %2426 = vdwg.mxu0
    %vm2427 = vcmask 74752
    %2428 = vst.msk [vmem:[#allocation2] sm:$0x3] %vm2427, %v2422
    // Predicated region
    $region22: #{cnn_forward.3} parent=1 // pred_check
      _
    $region23: #{cnn_forward.3} parent=1 // pred_check_branch
      %2430 = sbr.rel (0) target = $region25
    $region24: #{cnn_forward.3} parent=1 // pred_region
      %s2432 = ssub.s32 32, 32
      %2433 = vsyncadd [#allocation3], %s2432
      %s2435 = sshll.u32 [#allocation2], 4
      %s2436 = int_to_ptr.vmem [resolvable:$true] %s2435
      %2438 = dma.vmem_to_hbm [thread:$0]  %s2436, 32, %s5, [#allocation3]
    $region25: #{cnn_forward.3} parent=1 // pred_fallthru
      _
    // Predicated region
    $region26: #{cnn_forward.3} parent=1 // pred_check
      _
    $region27: #{cnn_forward.3} parent=1 // pred_check_branch
      %2440 = sbr.rel (0) target = $region29
    $region28: #{cnn_forward.3} parent=1 // pred_region
      %2441 = dma.done [#allocation3], 32
    $region29: #{cnn_forward.3} parent=1 // pred_fallthru
      _
    %2442 = vsyncpa [#allocation3], 1

// kernel: cnn_forward.2
$region0: #{cnn_forward.2}
  #allocation0 [shape = 'u32[]', space=smem, size = 0x4, offset = 0x4, fixed_abs, tag = 'smem constant byte address 0x4 - core index']
  #allocation1 [shape = 'u32[144,128]{1,0:T(1,128)}', space=vmem, size = 0x12000, scoped, tag = 'internal scratch']
  #allocation2 [shape = 'f32[1568,32]{1,0:T(8,128)}', space=vmem, size = 0xc4000, scoped, tag = 'scratch operand']
  #allocation3 [shape = 'bf16[2,288,32]{2,1,0:T(8,128)(2,1)}', space=vmem, size = 0x24000, scoped, tag = 'scratch operand']
  #allocation4 [shape = 'bf16[448,288]{1,0:T(8,128)(2,1)}', space=vmem, size = 0x54000, scoped, tag = 'scratch operand']
  #allocation5 [shape = 'f32[448,64]{1,0:T(8,128)}', space=vmem, size = 0x38000, scoped, tag = 'scratch operand']
  %s0 = inlined_call_operand.vmem [shape: bf16[1568,9], index: 0, kind: input, shape index: {}]
  %s1 = inlined_call_operand.vmem [shape: bf16[9,32], index: 1, kind: input, shape index: {}]
  %s2 = inlined_call_operand.vmem [shape: f32[1,32], index: 2, kind: input, shape index: {}]
  %s3 = inlined_call_operand.vmem [shape: bf16[288,64], index: 3, kind: input, shape index: {}]
  %s4 = inlined_call_operand.vmem [shape: f32[1,64], index: 4, kind: input, shape index: {}]
  %s5 = inlined_call_operand.vmem [shape: bf16[2,49,64], index: 5, kind: output, shape index: {}]
  %s6 = sld [smem:[#allocation0]]
  $region30: #{cnn_forward.2} parent=0
    _
  %s8 = ssub.s32 1, %s6
  %s9 = scalar_select 0, %s8, %s6
  // Predicated region
  $region2: #{cnn_forward.2} parent=0 // pred_check
    _
  $region3: #{cnn_forward.2} parent=0 // pred_check_branch
    %11 = sbr.rel (0) target = $region5
  $region4: #{cnn_forward.2} parent=0 // pred_region
    _
  $region5: #{cnn_forward.2} parent=0 // pred_fallthru
    _
  // Predicated region
  $region6: #{cnn_forward.2} parent=0 // pred_check
    _
  $region7: #{cnn_forward.2} parent=0 // pred_check_branch
    %13 = sbr.rel (0) target = $region9
  $region8: #{cnn_forward.2} parent=0 // pred_region
    _
  $region9: #{cnn_forward.2} parent=0 // pred_fallthru
    _
  // Predicated region
  $region10: #{cnn_forward.2} parent=0 // pred_check
    _
  $region11: #{cnn_forward.2} parent=0 // pred_check_branch
    %15 = sbr.rel (0) target = $region13
  $region12: #{cnn_forward.2} parent=0 // pred_region
    _
  $region13: #{cnn_forward.2} parent=0 // pred_fallthru
    _
  // Predicated region
  $region14: #{cnn_forward.2} parent=0 // pred_check
    _
  $region15: #{cnn_forward.2} parent=0 // pred_check_branch
    %17 = sbr.rel (0) target = $region17
  $region16: #{cnn_forward.2} parent=0 // pred_region
    _
  $region17: #{cnn_forward.2} parent=0 // pred_fallthru
    _
  // Predicated region
  $region18: #{cnn_forward.2} parent=0 // pred_check
    _
  $region19: #{cnn_forward.2} parent=0 // pred_check_branch
    %19 = sbr.rel (0) target = $region21
  $region20: #{cnn_forward.2} parent=0 // pred_region
    _
  $region21: #{cnn_forward.2} parent=0 // pred_fallthru
    _
  %v21 = vld [vmem:[%s0] sm:$0xf]
  %v22 = vld [vmem:[%s0 + $0x4] sm:$0xf]
  %v23 = vld [vmem:[%s0 + $0x8] sm:$0xf]
  %v24 = vld [vmem:[%s0 + $0xc] sm:$0xf]
  %v25 = vld [vmem:[%s0 + $0x10] sm:$0xf]
  %v26 = vld [vmem:[%s0 + $0x14] sm:$0xf]
  %v27 = vld [vmem:[%s0 + $0x18] sm:$0xf]
  %v28 = vld [vmem:[%s0 + $0x1c] sm:$0xf]
  %v29 = vld [vmem:[%s0 + $0x20] sm:$0xf]
  %v30 = vld [vmem:[%s0 + $0x24] sm:$0xf]
  %v31 = vld [vmem:[%s0 + $0x28] sm:$0xf]
  %v32 = vld [vmem:[%s0 + $0x2c] sm:$0xf]
  %v33 = vld [vmem:[%s0 + $0x30] sm:$0xf]
  %v34 = vld [vmem:[%s0 + $0x34] sm:$0xf]
  %v35 = vld [vmem:[%s0 + $0x38] sm:$0xf]
  %v36 = vld [vmem:[%s0 + $0x3c] sm:$0xf]
  %v37 = vld [vmem:[%s0 + $0x40] sm:$0xf]
  %v38 = vld [vmem:[%s0 + $0x44] sm:$0xf]
  %v39 = vld [vmem:[%s0 + $0x48] sm:$0xf]
  %v40 = vld [vmem:[%s0 + $0x4c] sm:$0xf]
  %v41 = vld [vmem:[%s0 + $0x50] sm:$0xf]
  %v42 = vld [vmem:[%s0 + $0x54] sm:$0xf]
  %v43 = vld [vmem:[%s0 + $0x58] sm:$0xf]
  %v44 = vld [vmem:[%s0 + $0x5c] sm:$0xf]
  %v45 = vld [vmem:[%s0 + $0x60] sm:$0xf]
  %v46 = vld [vmem:[%s0 + $0x64] sm:$0xf]
  %v47 = vld [vmem:[%s0 + $0x68] sm:$0xf]
  %v48 = vld [vmem:[%s0 + $0x6c] sm:$0xf]
  %v49 = vld [vmem:[%s0 + $0x70] sm:$0xf]
  %v50 = vld [vmem:[%s0 + $0x74] sm:$0xf]
  %v51 = vld [vmem:[%s0 + $0x78] sm:$0xf]
  %v52 = vld [vmem:[%s0 + $0x7c] sm:$0xf]
  %v53 = vld [vmem:[%s0 + $0x80] sm:$0xf]
  %v54 = vld [vmem:[%s0 + $0x84] sm:$0xf]
  %v55 = vld [vmem:[%s0 + $0x88] sm:$0xf]
  %v56 = vld [vmem:[%s0 + $0x8c] sm:$0xf]
  %v57 = vld [vmem:[%s0 + $0x90] sm:$0xf]
  %v58 = vld [vmem:[%s0 + $0x94] sm:$0xf]
  %v59 = vld [vmem:[%s0 + $0x98] sm:$0xf]
  %v60 = vld [vmem:[%s0 + $0x9c] sm:$0xf]
  %v61 = vld [vmem:[%s0 + $0xa0] sm:$0xf]
  %v62 = vld [vmem:[%s0 + $0xa4] sm:$0xf]
  %v63 = vld [vmem:[%s0 + $0xa8] sm:$0xf]
  %v64 = vld [vmem:[%s0 + $0xac] sm:$0xf]
  %v65 = vld [vmem:[%s0 + $0xb0] sm:$0xf]
  %v66 = vld [vmem:[%s0 + $0xb4] sm:$0xf]
  %v67 = vld [vmem:[%s0 + $0xb8] sm:$0xf]
  %v68 = vld [vmem:[%s0 + $0xbc] sm:$0xf]
  %v69 = vld [vmem:[%s0 + $0xc0] sm:$0xf]
  %v70 = vld [vmem:[%s0 + $0xc4] sm:$0xf]
  %v71 = vld [vmem:[%s0 + $0xc8] sm:$0xf]
  %v72 = vld [vmem:[%s0 + $0xcc] sm:$0xf]
  %v73 = vld [vmem:[%s0 + $0xd0] sm:$0xf]
  %v74 = vld [vmem:[%s0 + $0xd4] sm:$0xf]
  %v75 = vld [vmem:[%s0 + $0xd8] sm:$0xf]
  %v76 = vld [vmem:[%s0 + $0xdc] sm:$0xf]
  %v77 = vld [vmem:[%s0 + $0xe0] sm:$0xf]
  %v78 = vld [vmem:[%s0 + $0xe4] sm:$0xf]
  %v79 = vld [vmem:[%s0 + $0xe8] sm:$0xf]
  %v80 = vld [vmem:[%s0 + $0xec] sm:$0xf]
  %v81 = vld [vmem:[%s0 + $0xf0] sm:$0xf]
  %v82 = vld [vmem:[%s0 + $0xf4] sm:$0xf]
  %v83 = vld [vmem:[%s0 + $0xf8] sm:$0xf]
  %v84 = vld [vmem:[%s0 + $0xfc] sm:$0xf]
  %v85 = vld [vmem:[%s0 + $0x100] sm:$0xf]
  %v86 = vld [vmem:[%s0 + $0x104] sm:$0xf]
  %v87 = vld [vmem:[%s0 + $0x108] sm:$0xf]
  %v88 = vld [vmem:[%s0 + $0x10c] sm:$0xf]
  %v89 = vld [vmem:[%s0 + $0x110] sm:$0xf]
  %v90 = vld [vmem:[%s0 + $0x114] sm:$0xf]
  %v91 = vld [vmem:[%s0 + $0x118] sm:$0xf]
  %v92 = vld [vmem:[%s0 + $0x11c] sm:$0xf]
  %v93 = vld [vmem:[%s0 + $0x120] sm:$0xf]
  %v94 = vld [vmem:[%s0 + $0x124] sm:$0xf]
  %v95 = vld [vmem:[%s0 + $0x128] sm:$0xf]
  %v96 = vld [vmem:[%s0 + $0x12c] sm:$0xf]
  %v97 = vld [vmem:[%s0 + $0x130] sm:$0xf]
  %v98 = vld [vmem:[%s0 + $0x134] sm:$0xf]
  %v99 = vld [vmem:[%s0 + $0x138] sm:$0xf]
  %v100 = vld [vmem:[%s0 + $0x13c] sm:$0xf]
  %v101 = vld [vmem:[%s0 + $0x140] sm:$0xf]
  %v102 = vld [vmem:[%s0 + $0x144] sm:$0xf]
  %v103 = vld [vmem:[%s0 + $0x148] sm:$0xf]
  %v104 = vld [vmem:[%s0 + $0x14c] sm:$0xf]
  %v105 = vld [vmem:[%s0 + $0x150] sm:$0xf]
  %v106 = vld [vmem:[%s0 + $0x154] sm:$0xf]
  %v107 = vld [vmem:[%s0 + $0x158] sm:$0xf]
  %v108 = vld [vmem:[%s0 + $0x15c] sm:$0xf]
  %v109 = vld [vmem:[%s0 + $0x160] sm:$0xf]
  %v110 = vld [vmem:[%s0 + $0x164] sm:$0xf]
  %v111 = vld [vmem:[%s0 + $0x168] sm:$0xf]
  %v112 = vld [vmem:[%s0 + $0x16c] sm:$0xf]
  %v113 = vld [vmem:[%s0 + $0x170] sm:$0xf]
  %v114 = vld [vmem:[%s0 + $0x174] sm:$0xf]
  %v115 = vld [vmem:[%s0 + $0x178] sm:$0xf]
  %v116 = vld [vmem:[%s0 + $0x17c] sm:$0xf]
  %v117 = vld [vmem:[%s0 + $0x180] sm:$0xf]
  %v118 = vld [vmem:[%s0 + $0x184] sm:$0xf]
  %v119 = vld [vmem:[%s0 + $0x188] sm:$0xf]
  %v120 = vld [vmem:[%s0 + $0x18c] sm:$0xf]
  %v121 = vld [vmem:[%s0 + $0x190] sm:$0xf]
  %v122 = vld [vmem:[%s0 + $0x194] sm:$0xf]
  %v123 = vld [vmem:[%s0 + $0x198] sm:$0xf]
  %v124 = vld [vmem:[%s0 + $0x19c] sm:$0xf]
  %v125 = vld [vmem:[%s0 + $0x1a0] sm:$0xf]
  %v126 = vld [vmem:[%s0 + $0x1a4] sm:$0xf]
  %v127 = vld [vmem:[%s0 + $0x1a8] sm:$0xf]
  %v128 = vld [vmem:[%s0 + $0x1ac] sm:$0xf]
  %v129 = vld [vmem:[%s0 + $0x1b0] sm:$0xf]
  %v130 = vld [vmem:[%s0 + $0x1b4] sm:$0xf]
  %v131 = vld [vmem:[%s0 + $0x1b8] sm:$0xf]
  %v132 = vld [vmem:[%s0 + $0x1bc] sm:$0xf]
  %v133 = vld [vmem:[%s0 + $0x1c0] sm:$0xf]
  %v134 = vld [vmem:[%s0 + $0x1c4] sm:$0xf]
  %v135 = vld [vmem:[%s0 + $0x1c8] sm:$0xf]
  %v136 = vld [vmem:[%s0 + $0x1cc] sm:$0xf]
  %v137 = vld [vmem:[%s0 + $0x1d0] sm:$0xf]
  %v138 = vld [vmem:[%s0 + $0x1d4] sm:$0xf]
  %v139 = vld [vmem:[%s0 + $0x1d8] sm:$0xf]
  %v140 = vld [vmem:[%s0 + $0x1dc] sm:$0xf]
  %v141 = vld [vmem:[%s0 + $0x1e0] sm:$0xf]
  %v142 = vld [vmem:[%s0 + $0x1e4] sm:$0xf]
  %v143 = vld [vmem:[%s0 + $0x1e8] sm:$0xf]
  %v144 = vld [vmem:[%s0 + $0x1ec] sm:$0xf]
  %v145 = vld [vmem:[%s0 + $0x1f0] sm:$0xf]
  %v146 = vld [vmem:[%s0 + $0x1f4] sm:$0xf]
  %v147 = vld [vmem:[%s0 + $0x1f8] sm:$0xf]
  %v148 = vld [vmem:[%s0 + $0x1fc] sm:$0xf]
  %v149 = vld [vmem:[%s0 + $0x200] sm:$0xf]
  %v150 = vld [vmem:[%s0 + $0x204] sm:$0xf]
  %v151 = vld [vmem:[%s0 + $0x208] sm:$0xf]
  %v152 = vld [vmem:[%s0 + $0x20c] sm:$0xf]
  %v153 = vld [vmem:[%s0 + $0x210] sm:$0xf]
  %v154 = vld [vmem:[%s0 + $0x214] sm:$0xf]
  %v155 = vld [vmem:[%s0 + $0x218] sm:$0xf]
  %v156 = vld [vmem:[%s0 + $0x21c] sm:$0xf]
  %v157 = vld [vmem:[%s0 + $0x220] sm:$0xf]
  %v158 = vld [vmem:[%s0 + $0x224] sm:$0xf]
  %v159 = vld [vmem:[%s0 + $0x228] sm:$0xf]
  %v160 = vld [vmem:[%s0 + $0x22c] sm:$0xf]
  %v161 = vld [vmem:[%s0 + $0x230] sm:$0xf]
  %v162 = vld [vmem:[%s0 + $0x234] sm:$0xf]
  %v163 = vld [vmem:[%s0 + $0x238] sm:$0xf]
  %v164 = vld [vmem:[%s0 + $0x23c] sm:$0xf]
  %v165 = vld [vmem:[%s0 + $0x240] sm:$0xf]
  %v166 = vld [vmem:[%s0 + $0x244] sm:$0xf]
  %v167 = vld [vmem:[%s0 + $0x248] sm:$0xf]
  %v168 = vld [vmem:[%s0 + $0x24c] sm:$0xf]
  %v169 = vld [vmem:[%s0 + $0x250] sm:$0xf]
  %v170 = vld [vmem:[%s0 + $0x254] sm:$0xf]
  %v171 = vld [vmem:[%s0 + $0x258] sm:$0xf]
  %v172 = vld [vmem:[%s0 + $0x25c] sm:$0xf]
  %v173 = vld [vmem:[%s0 + $0x260] sm:$0xf]
  %v174 = vld [vmem:[%s0 + $0x264] sm:$0xf]
  %v175 = vld [vmem:[%s0 + $0x268] sm:$0xf]
  %v176 = vld [vmem:[%s0 + $0x26c] sm:$0xf]
  %v177 = vld [vmem:[%s0 + $0x270] sm:$0xf]
  %v178 = vld [vmem:[%s0 + $0x274] sm:$0xf]
  %v179 = vld [vmem:[%s0 + $0x278] sm:$0xf]
  %v180 = vld [vmem:[%s0 + $0x27c] sm:$0xf]
  %v181 = vld [vmem:[%s0 + $0x280] sm:$0xf]
  %v182 = vld [vmem:[%s0 + $0x284] sm:$0xf]
  %v183 = vld [vmem:[%s0 + $0x288] sm:$0xf]
  %v184 = vld [vmem:[%s0 + $0x28c] sm:$0xf]
  %v185 = vld [vmem:[%s0 + $0x290] sm:$0xf]
  %v186 = vld [vmem:[%s0 + $0x294] sm:$0xf]
  %v187 = vld [vmem:[%s0 + $0x298] sm:$0xf]
  %v188 = vld [vmem:[%s0 + $0x29c] sm:$0xf]
  %v189 = vld [vmem:[%s0 + $0x2a0] sm:$0xf]
  %v190 = vld [vmem:[%s0 + $0x2a4] sm:$0xf]
  %v191 = vld [vmem:[%s0 + $0x2a8] sm:$0xf]
  %v192 = vld [vmem:[%s0 + $0x2ac] sm:$0xf]
  %v193 = vld [vmem:[%s0 + $0x2b0] sm:$0xf]
  %v194 = vld [vmem:[%s0 + $0x2b4] sm:$0xf]
  %v195 = vld [vmem:[%s0 + $0x2b8] sm:$0xf]
  %v196 = vld [vmem:[%s0 + $0x2bc] sm:$0xf]
  %v197 = vld [vmem:[%s0 + $0x2c0] sm:$0xf]
  %v198 = vld [vmem:[%s0 + $0x2c4] sm:$0xf]
  %v199 = vld [vmem:[%s0 + $0x2c8] sm:$0xf]
  %v200 = vld [vmem:[%s0 + $0x2cc] sm:$0xf]
  %v201 = vld [vmem:[%s0 + $0x2d0] sm:$0xf]
  %v202 = vld [vmem:[%s0 + $0x2d4] sm:$0xf]
  %v203 = vld [vmem:[%s0 + $0x2d8] sm:$0xf]
  %v204 = vld [vmem:[%s0 + $0x2dc] sm:$0xf]
  %v205 = vld [vmem:[%s0 + $0x2e0] sm:$0xf]
  %v206 = vld [vmem:[%s0 + $0x2e4] sm:$0xf]
  %v207 = vld [vmem:[%s0 + $0x2e8] sm:$0xf]
  %v208 = vld [vmem:[%s0 + $0x2ec] sm:$0xf]
  %v209 = vld [vmem:[%s0 + $0x2f0] sm:$0xf]
  %v210 = vld [vmem:[%s0 + $0x2f4] sm:$0xf]
  %v211 = vld [vmem:[%s0 + $0x2f8] sm:$0xf]
  %v212 = vld [vmem:[%s0 + $0x2fc] sm:$0xf]
  %v213 = vld [vmem:[%s0 + $0x300] sm:$0xf]
  %v214 = vld [vmem:[%s0 + $0x304] sm:$0xf]
  %v215 = vld [vmem:[%s0 + $0x308] sm:$0xf]
  %v216 = vld [vmem:[%s0 + $0x30c] sm:$0xf]
  %v217 = vld [vmem:[%s1] sm:$0xf]
  %v218 = vld [vmem:[%s1 + $0x4] sm:$0x1]
  %v219 = vld [vmem:[%s2] sm:$0x1]
  %v221 = vlaneseq
  %v222 = vshrl.u32 %v221, 7
  %v223 = vsub.s32 0, %v222
  %v224 = vrot.slane %v219, %v223
  %v422 = vunpack.c.l.b16 %v21
  %v423 = vunpack.c.l.b16 %v22
  %v424 = vunpack.c.l.b16 %v23
  %v425 = vunpack.c.l.b16 %v24
  %v426 = vunpack.c.l.b16 %v25
  %v427 = vunpack.c.l.b16 %v26
  %v428 = vunpack.c.l.b16 %v27
  %v429 = vunpack.c.l.b16 %v28
  %v430 = vunpack.c.l.b16 %v29
  %v431 = vunpack.c.l.b16 %v30
  %v432 = vunpack.c.l.b16 %v31
  %v433 = vunpack.c.l.b16 %v32
  %v434 = vunpack.c.l.b16 %v33
  %v435 = vunpack.c.l.b16 %v34
  %v436 = vunpack.c.l.b16 %v35
  %v437 = vunpack.c.l.b16 %v36
  %v438 = vunpack.c.l.b16 %v37
  %v439 = vunpack.c.l.b16 %v38
  %v440 = vunpack.c.l.b16 %v39
  %v441 = vunpack.c.l.b16 %v40
  %v442 = vunpack.c.l.b16 %v41
  %v443 = vunpack.c.l.b16 %v42
  %v444 = vunpack.c.l.b16 %v43
  %v445 = vunpack.c.l.b16 %v44
  %v446 = vunpack.c.l.b16 %v45
  %v447 = vunpack.c.l.b16 %v46
  %v448 = vunpack.c.l.b16 %v47
  %v449 = vunpack.c.l.b16 %v48
  %v450 = vunpack.c.l.b16 %v49
  %v451 = vunpack.c.l.b16 %v50
  %v452 = vunpack.c.l.b16 %v51
  %v453 = vunpack.c.l.b16 %v52
  %v454 = vunpack.c.l.b16 %v53
  %v455 = vunpack.c.l.b16 %v54
  %v456 = vunpack.c.l.b16 %v55
  %v457 = vunpack.c.l.b16 %v56
  %v458 = vunpack.c.l.b16 %v57
  %v459 = vunpack.c.l.b16 %v58
  %v460 = vunpack.c.l.b16 %v59
  %v461 = vunpack.c.l.b16 %v60
  %v462 = vunpack.c.l.b16 %v61
  %v463 = vunpack.c.l.b16 %v62
  %v464 = vunpack.c.l.b16 %v63
  %v465 = vunpack.c.l.b16 %v64
  %v466 = vunpack.c.l.b16 %v65
  %v467 = vunpack.c.l.b16 %v66
  %v468 = vunpack.c.l.b16 %v67
  %v469 = vunpack.c.l.b16 %v68
  %v470 = vunpack.c.l.b16 %v69
  %v471 = vunpack.c.l.b16 %v70
  %v472 = vunpack.c.l.b16 %v71
  %v473 = vunpack.c.l.b16 %v72
  %v474 = vunpack.c.l.b16 %v73
  %v475 = vunpack.c.l.b16 %v74
  %v476 = vunpack.c.l.b16 %v75
  %v477 = vunpack.c.l.b16 %v76
  %v478 = vunpack.c.l.b16 %v77
  %v479 = vunpack.c.l.b16 %v78
  %v480 = vunpack.c.l.b16 %v79
  %v481 = vunpack.c.l.b16 %v80
  %v482 = vunpack.c.l.b16 %v81
  %v483 = vunpack.c.l.b16 %v82
  %v484 = vunpack.c.l.b16 %v83
  %v485 = vunpack.c.l.b16 %v84
  %v486 = vunpack.c.l.b16 %v85
  %v487 = vunpack.c.l.b16 %v86
  %v488 = vunpack.c.l.b16 %v87
  %v489 = vunpack.c.l.b16 %v88
  %v490 = vunpack.c.l.b16 %v89
  %v491 = vunpack.c.l.b16 %v90
  %v492 = vunpack.c.l.b16 %v91
  %v493 = vunpack.c.l.b16 %v92
  %v494 = vunpack.c.l.b16 %v93
  %v495 = vunpack.c.l.b16 %v94
  %v496 = vunpack.c.l.b16 %v95
  %v497 = vunpack.c.l.b16 %v96
  %v498 = vunpack.c.l.b16 %v97
  %v499 = vunpack.c.l.b16 %v98
  %v500 = vunpack.c.l.b16 %v99
  %v501 = vunpack.c.l.b16 %v100
  %v502 = vunpack.c.l.b16 %v101
  %v503 = vunpack.c.l.b16 %v102
  %v504 = vunpack.c.l.b16 %v103
  %v505 = vunpack.c.l.b16 %v104
  %v506 = vunpack.c.l.b16 %v105
  %v507 = vunpack.c.l.b16 %v106
  %v508 = vunpack.c.l.b16 %v107
  %v509 = vunpack.c.l.b16 %v108
  %v510 = vunpack.c.l.b16 %v109
  %v511 = vunpack.c.l.b16 %v110
  %v512 = vunpack.c.l.b16 %v111
  %v513 = vunpack.c.l.b16 %v112
  %v514 = vunpack.c.l.b16 %v113
  %v515 = vunpack.c.l.b16 %v114
  %v516 = vunpack.c.l.b16 %v115
  %v517 = vunpack.c.l.b16 %v116
  %v518 = vunpack.c.l.b16 %v117
  %v519 = vunpack.c.l.b16 %v118
  %v520 = vunpack.c.l.b16 %v119
  %v521 = vunpack.c.l.b16 %v120
  %v522 = vunpack.c.l.b16 %v121
  %v523 = vunpack.c.l.b16 %v122
  %v524 = vunpack.c.l.b16 %v123
  %v525 = vunpack.c.l.b16 %v124
  %v526 = vunpack.c.l.b16 %v125
  %v527 = vunpack.c.l.b16 %v126
  %v528 = vunpack.c.l.b16 %v127
  %v529 = vunpack.c.l.b16 %v128
  %v530 = vunpack.c.l.b16 %v129
  %v531 = vunpack.c.l.b16 %v130
  %v532 = vunpack.c.l.b16 %v131
  %v533 = vunpack.c.l.b16 %v132
  %v534 = vunpack.c.l.b16 %v133
  %v535 = vunpack.c.l.b16 %v134
  %v536 = vunpack.c.l.b16 %v135
  %v537 = vunpack.c.l.b16 %v136
  %v538 = vunpack.c.l.b16 %v137
  %v539 = vunpack.c.l.b16 %v138
  %v540 = vunpack.c.l.b16 %v139
  %v541 = vunpack.c.l.b16 %v140
  %v542 = vunpack.c.l.b16 %v141
  %v543 = vunpack.c.l.b16 %v142
  %v544 = vunpack.c.l.b16 %v143
  %v545 = vunpack.c.l.b16 %v144
  %v546 = vunpack.c.l.b16 %v145
  %v547 = vunpack.c.l.b16 %v146
  %v548 = vunpack.c.l.b16 %v147
  %v549 = vunpack.c.l.b16 %v148
  %v550 = vunpack.c.l.b16 %v149
  %v551 = vunpack.c.l.b16 %v150
  %v552 = vunpack.c.l.b16 %v151
  %v553 = vunpack.c.l.b16 %v152
  %v554 = vunpack.c.l.b16 %v153
  %v555 = vunpack.c.l.b16 %v154
  %v556 = vunpack.c.l.b16 %v155
  %v557 = vunpack.c.l.b16 %v156
  %v558 = vunpack.c.l.b16 %v157
  %v559 = vunpack.c.l.b16 %v158
  %v560 = vunpack.c.l.b16 %v159
  %v561 = vunpack.c.l.b16 %v160
  %v562 = vunpack.c.l.b16 %v161
  %v563 = vunpack.c.l.b16 %v162
  %v564 = vunpack.c.l.b16 %v163
  %v565 = vunpack.c.l.b16 %v164
  %v566 = vunpack.c.l.b16 %v165
  %v567 = vunpack.c.l.b16 %v166
  %v568 = vunpack.c.l.b16 %v167
  %v569 = vunpack.c.l.b16 %v168
  %v570 = vunpack.c.l.b16 %v169
  %v571 = vunpack.c.l.b16 %v170
  %v572 = vunpack.c.l.b16 %v171
  %v573 = vunpack.c.l.b16 %v172
  %v574 = vunpack.c.l.b16 %v173
  %v575 = vunpack.c.l.b16 %v174
  %v576 = vunpack.c.l.b16 %v175
  %v577 = vunpack.c.l.b16 %v176
  %v578 = vunpack.c.l.b16 %v177
  %v579 = vunpack.c.l.b16 %v178
  %v580 = vunpack.c.l.b16 %v179
  %v581 = vunpack.c.l.b16 %v180
  %v582 = vunpack.c.l.b16 %v181
  %v583 = vunpack.c.l.b16 %v182
  %v584 = vunpack.c.l.b16 %v183
  %v585 = vunpack.c.l.b16 %v184
  %v586 = vunpack.c.l.b16 %v185
  %v587 = vunpack.c.l.b16 %v186
  %v588 = vunpack.c.l.b16 %v187
  %v589 = vunpack.c.l.b16 %v188
  %v590 = vunpack.c.l.b16 %v189
  %v591 = vunpack.c.l.b16 %v190
  %v592 = vunpack.c.l.b16 %v191
  %v593 = vunpack.c.l.b16 %v192
  %v594 = vunpack.c.l.b16 %v193
  %v595 = vunpack.c.l.b16 %v194
  %v596 = vunpack.c.l.b16 %v195
  %v597 = vunpack.c.l.b16 %v196
  %v598 = vunpack.c.l.b16 %v197
  %v599 = vunpack.c.l.b16 %v198
  %v600 = vunpack.c.l.b16 %v199
  %v601 = vunpack.c.l.b16 %v200
  %v602 = vunpack.c.l.b16 %v201
  %v603 = vunpack.c.l.b16 %v202
  %v604 = vunpack.c.l.b16 %v203
  %v605 = vunpack.c.l.b16 %v204
  %v606 = vunpack.c.l.b16 %v205
  %v607 = vunpack.c.l.b16 %v206
  %v608 = vunpack.c.l.b16 %v207
  %v609 = vunpack.c.l.b16 %v208
  %v610 = vunpack.c.l.b16 %v209
  %v611 = vunpack.c.l.b16 %v210
  %v612 = vunpack.c.l.b16 %v211
  %v613 = vunpack.c.l.b16 %v212
  %v614 = vunpack.c.l.b16 %v213
  %v615 = vunpack.c.l.b16 %v214
  %v616 = vunpack.c.l.b16 %v215
  %v617 = vunpack.c.l.b16 %v216
  %v618 = vpack.c.b16 %v423, %v422
  %v619 = vpack.c.b16 %v425, %v424
  %v620 = vpack.c.b16 %v427, %v426
  %v621 = vpack.c.b16 %v429, %v428
  %v622 = vpack.c.b16 %v431, %v430
  %v623 = vpack.c.b16 %v433, %v432
  %v624 = vpack.c.b16 %v435, %v434
  %v625 = vpack.c.b16 %v437, %v436
  %v626 = vpack.c.b16 %v439, %v438
  %v627 = vpack.c.b16 %v441, %v440
  %v628 = vpack.c.b16 %v443, %v442
  %v629 = vpack.c.b16 %v445, %v444
  %v630 = vpack.c.b16 %v447, %v446
  %v631 = vpack.c.b16 %v449, %v448
  %v632 = vpack.c.b16 %v451, %v450
  %v633 = vpack.c.b16 %v453, %v452
  %v634 = vpack.c.b16 %v455, %v454
  %v635 = vpack.c.b16 %v457, %v456
  %v636 = vpack.c.b16 %v459, %v458
  %v637 = vpack.c.b16 %v461, %v460
  %v638 = vpack.c.b16 %v463, %v462
  %v639 = vpack.c.b16 %v465, %v464
  %v640 = vpack.c.b16 %v467, %v466
  %v641 = vpack.c.b16 %v469, %v468
  %v642 = vpack.c.b16 %v471, %v470
  %v643 = vpack.c.b16 %v473, %v472
  %v644 = vpack.c.b16 %v475, %v474
  %v645 = vpack.c.b16 %v477, %v476
  %v646 = vpack.c.b16 %v479, %v478
  %v647 = vpack.c.b16 %v481, %v480
  %v648 = vpack.c.b16 %v483, %v482
  %v649 = vpack.c.b16 %v485, %v484
  %v650 = vpack.c.b16 %v487, %v486
  %v651 = vpack.c.b16 %v489, %v488
  %v652 = vpack.c.b16 %v491, %v490
  %v653 = vpack.c.b16 %v493, %v492
  %v654 = vpack.c.b16 %v495, %v494
  %v655 = vpack.c.b16 %v497, %v496
  %v656 = vpack.c.b16 %v499, %v498
  %v657 = vpack.c.b16 %v501, %v500
  %v658 = vpack.c.b16 %v503, %v502
  %v659 = vpack.c.b16 %v505, %v504
  %v660 = vpack.c.b16 %v507, %v506
  %v661 = vpack.c.b16 %v509, %v508
  %v662 = vpack.c.b16 %v511, %v510
  %v663 = vpack.c.b16 %v513, %v512
  %v664 = vpack.c.b16 %v515, %v514
  %v665 = vpack.c.b16 %v517, %v516
  %v666 = vpack.c.b16 %v519, %v518
  %v667 = vpack.c.b16 %v521, %v520
  %v668 = vpack.c.b16 %v523, %v522
  %v669 = vpack.c.b16 %v525, %v524
  %v670 = vpack.c.b16 %v527, %v526
  %v671 = vpack.c.b16 %v529, %v528
  %v672 = vpack.c.b16 %v531, %v530
  %v673 = vpack.c.b16 %v533, %v532
  %v674 = vpack.c.b16 %v535, %v534
  %v675 = vpack.c.b16 %v537, %v536
  %v676 = vpack.c.b16 %v539, %v538
  %v677 = vpack.c.b16 %v541, %v540
  %v678 = vpack.c.b16 %v543, %v542
  %v679 = vpack.c.b16 %v545, %v544
  %v680 = vpack.c.b16 %v547, %v546
  %v681 = vpack.c.b16 %v549, %v548
  %v682 = vpack.c.b16 %v551, %v550
  %v683 = vpack.c.b16 %v553, %v552
  %v684 = vpack.c.b16 %v555, %v554
  %v685 = vpack.c.b16 %v557, %v556
  %v686 = vpack.c.b16 %v559, %v558
  %v687 = vpack.c.b16 %v561, %v560
  %v688 = vpack.c.b16 %v563, %v562
  %v689 = vpack.c.b16 %v565, %v564
  %v690 = vpack.c.b16 %v567, %v566
  %v691 = vpack.c.b16 %v569, %v568
  %v692 = vpack.c.b16 %v571, %v570
  %v693 = vpack.c.b16 %v573, %v572
  %v694 = vpack.c.b16 %v575, %v574
  %v695 = vpack.c.b16 %v577, %v576
  %v696 = vpack.c.b16 %v579, %v578
  %v697 = vpack.c.b16 %v581, %v580
  %v698 = vpack.c.b16 %v583, %v582
  %v699 = vpack.c.b16 %v585, %v584
  %v700 = vpack.c.b16 %v587, %v586
  %v701 = vpack.c.b16 %v589, %v588
  %v702 = vpack.c.b16 %v591, %v590
  %v703 = vpack.c.b16 %v593, %v592
  %v704 = vpack.c.b16 %v595, %v594
  %v705 = vpack.c.b16 %v597, %v596
  %v706 = vpack.c.b16 %v599, %v598
  %v707 = vpack.c.b16 %v601, %v600
  %v708 = vpack.c.b16 %v603, %v602
  %v709 = vpack.c.b16 %v605, %v604
  %v710 = vpack.c.b16 %v607, %v606
  %v711 = vpack.c.b16 %v609, %v608
  %v712 = vpack.c.b16 %v611, %v610
  %v713 = vpack.c.b16 %v613, %v612
  %v714 = vpack.c.b16 %v615, %v614
  %v715 = vpack.c.b16 %v617, %v616
  %v718 = vunpack.c.l.b16 %v217
  %v719 = vunpack.c.l.b16 %v218
  %v720 = vpack.c.b16 %v719, %v718
  %vm721 = vcmask 72704
  %v723 = vsel %vm721, %v618, 0
  %v726 = vsel %vm721, %v619, 0
  %v729 = vsel %vm721, %v620, 0
  %v732 = vsel %vm721, %v621, 0
  %v735 = vsel %vm721, %v622, 0
  %v738 = vsel %vm721, %v623, 0
  %v741 = vsel %vm721, %v624, 0
  %v744 = vsel %vm721, %v625, 0
  %v747 = vsel %vm721, %v626, 0
  %v750 = vsel %vm721, %v627, 0
  %v753 = vsel %vm721, %v628, 0
  %v756 = vsel %vm721, %v629, 0
  %v759 = vsel %vm721, %v630, 0
  %v762 = vsel %vm721, %v631, 0
  %v765 = vsel %vm721, %v632, 0
  %v768 = vsel %vm721, %v633, 0
  %v771 = vsel %vm721, %v634, 0
  %v774 = vsel %vm721, %v635, 0
  %v777 = vsel %vm721, %v636, 0
  %v780 = vsel %vm721, %v637, 0
  %v783 = vsel %vm721, %v638, 0
  %v786 = vsel %vm721, %v639, 0
  %v789 = vsel %vm721, %v640, 0
  %v792 = vsel %vm721, %v641, 0
  %v795 = vsel %vm721, %v642, 0
  %v798 = vsel %vm721, %v643, 0
  %v801 = vsel %vm721, %v644, 0
  %v804 = vsel %vm721, %v645, 0
  %v807 = vsel %vm721, %v646, 0
  %v810 = vsel %vm721, %v647, 0
  %v813 = vsel %vm721, %v648, 0
  %v816 = vsel %vm721, %v649, 0
  %v819 = vsel %vm721, %v650, 0
  %v822 = vsel %vm721, %v651, 0
  %v825 = vsel %vm721, %v652, 0
  %v828 = vsel %vm721, %v653, 0
  %v831 = vsel %vm721, %v654, 0
  %v834 = vsel %vm721, %v655, 0
  %v837 = vsel %vm721, %v656, 0
  %v840 = vsel %vm721, %v657, 0
  %v843 = vsel %vm721, %v658, 0
  %v846 = vsel %vm721, %v659, 0
  %v849 = vsel %vm721, %v660, 0
  %v852 = vsel %vm721, %v661, 0
  %v855 = vsel %vm721, %v662, 0
  %v858 = vsel %vm721, %v663, 0
  %v861 = vsel %vm721, %v664, 0
  %v864 = vsel %vm721, %v665, 0
  %v867 = vsel %vm721, %v666, 0
  %v870 = vsel %vm721, %v667, 0
  %v873 = vsel %vm721, %v668, 0
  %v876 = vsel %vm721, %v669, 0
  %v879 = vsel %vm721, %v670, 0
  %v882 = vsel %vm721, %v671, 0
  %v885 = vsel %vm721, %v672, 0
  %v888 = vsel %vm721, %v673, 0
  %v891 = vsel %vm721, %v674, 0
  %v894 = vsel %vm721, %v675, 0
  %v897 = vsel %vm721, %v676, 0
  %v900 = vsel %vm721, %v677, 0
  %v903 = vsel %vm721, %v678, 0
  %v906 = vsel %vm721, %v679, 0
  %v909 = vsel %vm721, %v680, 0
  %v912 = vsel %vm721, %v681, 0
  %v915 = vsel %vm721, %v682, 0
  %v918 = vsel %vm721, %v683, 0
  %v921 = vsel %vm721, %v684, 0
  %v924 = vsel %vm721, %v685, 0
  %v927 = vsel %vm721, %v686, 0
  %v930 = vsel %vm721, %v687, 0
  %v933 = vsel %vm721, %v688, 0
  %v936 = vsel %vm721, %v689, 0
  %v939 = vsel %vm721, %v690, 0
  %v942 = vsel %vm721, %v691, 0
  %v945 = vsel %vm721, %v692, 0
  %v948 = vsel %vm721, %v693, 0
  %v951 = vsel %vm721, %v694, 0
  %v954 = vsel %vm721, %v695, 0
  %v957 = vsel %vm721, %v696, 0
  %v960 = vsel %vm721, %v697, 0
  %v963 = vsel %vm721, %v698, 0
  %v966 = vsel %vm721, %v699, 0
  %v969 = vsel %vm721, %v700, 0
  %v972 = vsel %vm721, %v701, 0
  %v975 = vsel %vm721, %v702, 0
  %v978 = vsel %vm721, %v703, 0
  %v981 = vsel %vm721, %v704, 0
  %v984 = vsel %vm721, %v705, 0
  %v987 = vsel %vm721, %v706, 0
  %v990 = vsel %vm721, %v707, 0
  %v993 = vsel %vm721, %v708, 0
  %v996 = vsel %vm721, %v709, 0
  %v999 = vsel %vm721, %v710, 0
  %v1002 = vsel %vm721, %v711, 0
  %v1005 = vsel %vm721, %v712, 0
  %v1008 = vsel %vm721, %v713, 0
  %v1011 = vsel %vm721, %v714, 0
  %v1014 = vsel %vm721, %v715, 0
  %vm1016 = vcmask 1043456
  %vm1017 = vcmask 1044480
  %v1018 = vsel %vm1016, 4294967295, 65535
  %v1019 = vsel %vm1017, %v1018, 0
  %v1021 = vand.u32 %v720, %v1019
  %1023 = vmatprep.subr.bf16.mxu0 0
  %1024 = vmatpush1.bf16.msra.mxu0 0
  %1025 = vmatprep.subr.bf16.mxu0 0
  %1026 = vmatpush1.bf16.msra.mxu0 0
  %1027 = vmatprep.subr.bf16.mxu0 0
  %1028 = vmatpush1.bf16.msra.mxu0 0
  %1029 = vmatprep.subr.bf16.mxu0 0
  %1030 = vmatpush1.bf16.msra.mxu0 0
  %1031 = vmatprep.subr.bf16.mxu0 0
  %1032 = vmatpush1.bf16.msra.mxu0 0
  %1033 = vmatprep.subr.bf16.mxu0 0
  %1034 = vmatpush1.bf16.msra.mxu0 0
  %1035 = vmatprep.subr.bf16.mxu0 0
  %1036 = vmatpush1.bf16.msra.mxu0 0
  %1037 = vmatprep.subr.bf16.mxu0 0
  %1038 = vmatpush1.bf16.msra.mxu0 %v1021
  %1039 = vmatprep.subr.bf16.mxu0 0
  %1040 = vmatpush2.bf16.msra.mxu0 0
  %1041 = vmatprep.subr.bf16.mxu0 0
  %1042 = vmatpush2.bf16.msra.mxu0 0
  %1043 = vmatprep.subr.bf16.mxu0 0
  %1044 = vmatpush2.bf16.msra.mxu0 0
  %1045 = vmatprep.subr.bf16.mxu0 0
  %1046 = vmatpush2.bf16.msra.mxu0 0
  %1047 = vmatprep.subr.bf16.mxu0 0
  %1048 = vmatpush2.bf16.msra.mxu0 0
  %1049 = vmatprep.subr.bf16.mxu0 0
  %1050 = vmatpush2.bf16.msra.mxu0 0
  %1051 = vmatprep.subr.bf16.mxu0 0
  %1052 = vmatpush2.bf16.msra.mxu0 0
  %1053 = vmatprep.subr.bf16.mxu0 0
  %1054 = vmatpush2.bf16.msra.mxu0 0
  %1055 = vmatprep.mubr.bf16.mxu0 0
  %1056 = vmatmul.mubr.bf16.gmra.mxu0 %v723
  %v1057 = vpop.f32.mrf.mxu0
  %v1058 = vadd.f32 %v224, %v1057
  %v1059 = vpop.f32.mrf.mxu0
  %v1060 = vpop.f32.mrf.mxu0
  %v1061 = vadd.f32 %v224, %v1060
  %v1062 = vpop.f32.mrf.mxu0
  %1063 = vmatprep.mubr.bf16.mxu0 0
  %1064 = vmatmul.mubr.bf16.gmra.mxu0 %v726
  %v1065 = vpop.f32.mrf.mxu0
  %v1066 = vadd.f32 %v224, %v1065
  %v1067 = vpop.f32.mrf.mxu0
  %v1068 = vpop.f32.mrf.mxu0
  %v1069 = vadd.f32 %v224, %v1068
  %v1070 = vpop.f32.mrf.mxu0
  %1071 = vmatprep.mubr.bf16.mxu0 0
  %1072 = vmatmul.mubr.bf16.gmra.mxu0 %v729
  %v1073 = vpop.f32.mrf.mxu0
  %v1074 = vadd.f32 %v224, %v1073
  %v1075 = vpop.f32.mrf.mxu0
  %v1076 = vpop.f32.mrf.mxu0
  %v1077 = vadd.f32 %v224, %v1076
  %v1078 = vpop.f32.mrf.mxu0
  %1079 = vmatprep.mubr.bf16.mxu0 0
  %1080 = vmatmul.mubr.bf16.gmra.mxu0 %v732
  %v1081 = vpop.f32.mrf.mxu0
  %v1082 = vadd.f32 %v224, %v1081
  %v1083 = vpop.f32.mrf.mxu0
  %v1084 = vpop.f32.mrf.mxu0
  %v1085 = vadd.f32 %v224, %v1084
  %v1086 = vpop.f32.mrf.mxu0
  %1087 = vmatprep.mubr.bf16.mxu0 0
  %1088 = vmatmul.mubr.bf16.gmra.mxu0 %v735
  %v1089 = vpop.f32.mrf.mxu0
  %v1090 = vadd.f32 %v224, %v1089
  %v1091 = vpop.f32.mrf.mxu0
  %v1092 = vpop.f32.mrf.mxu0
  %v1093 = vadd.f32 %v224, %v1092
  %v1094 = vpop.f32.mrf.mxu0
  %1095 = vmatprep.mubr.bf16.mxu0 0
  %1096 = vmatmul.mubr.bf16.gmra.mxu0 %v738
  %v1097 = vpop.f32.mrf.mxu0
  %v1098 = vadd.f32 %v224, %v1097
  %v1099 = vpop.f32.mrf.mxu0
  %v1100 = vpop.f32.mrf.mxu0
  %v1101 = vadd.f32 %v224, %v1100
  %v1102 = vpop.f32.mrf.mxu0
  %1103 = vmatprep.mubr.bf16.mxu0 0
  %1104 = vmatmul.mubr.bf16.gmra.mxu0 %v741
  %v1105 = vpop.f32.mrf.mxu0
  %v1106 = vadd.f32 %v224, %v1105
  %v1107 = vpop.f32.mrf.mxu0
  %v1108 = vpop.f32.mrf.mxu0
  %v1109 = vadd.f32 %v224, %v1108
  %v1110 = vpop.f32.mrf.mxu0
  %1111 = vmatprep.mubr.bf16.mxu0 0
  %1112 = vmatmul.mubr.bf16.gmra.mxu0 %v744
  %v1113 = vpop.f32.mrf.mxu0
  %v1114 = vadd.f32 %v224, %v1113
  %v1115 = vpop.f32.mrf.mxu0
  %v1116 = vpop.f32.mrf.mxu0
  %v1117 = vadd.f32 %v224, %v1116
  %v1118 = vpop.f32.mrf.mxu0
  %1119 = vmatprep.mubr.bf16.mxu0 0
  %1120 = vmatmul.mubr.bf16.gmra.mxu0 %v747
  %v1121 = vpop.f32.mrf.mxu0
  %v1122 = vadd.f32 %v224, %v1121
  %v1123 = vpop.f32.mrf.mxu0
  %v1124 = vpop.f32.mrf.mxu0
  %v1125 = vadd.f32 %v224, %v1124
  %v1126 = vpop.f32.mrf.mxu0
  %1127 = vmatprep.mubr.bf16.mxu0 0
  %1128 = vmatmul.mubr.bf16.gmra.mxu0 %v750
  %v1129 = vpop.f32.mrf.mxu0
  %v1130 = vadd.f32 %v224, %v1129
  %v1131 = vpop.f32.mrf.mxu0
  %v1132 = vpop.f32.mrf.mxu0
  %v1133 = vadd.f32 %v224, %v1132
  %v1134 = vpop.f32.mrf.mxu0
  %1135 = vmatprep.mubr.bf16.mxu0 0
  %1136 = vmatmul.mubr.bf16.gmra.mxu0 %v753
  %v1137 = vpop.f32.mrf.mxu0
  %v1138 = vadd.f32 %v224, %v1137
  %v1139 = vpop.f32.mrf.mxu0
  %v1140 = vpop.f32.mrf.mxu0
  %v1141 = vadd.f32 %v224, %v1140
  %v1142 = vpop.f32.mrf.mxu0
  %1143 = vmatprep.mubr.bf16.mxu0 0
  %1144 = vmatmul.mubr.bf16.gmra.mxu0 %v756
  %v1145 = vpop.f32.mrf.mxu0
  %v1146 = vadd.f32 %v224, %v1145
  %v1147 = vpop.f32.mrf.mxu0
  %v1148 = vpop.f32.mrf.mxu0
  %v1149 = vadd.f32 %v224, %v1148
  %v1150 = vpop.f32.mrf.mxu0
  %1151 = vmatprep.mubr.bf16.mxu0 0
  %1152 = vmatmul.mubr.bf16.gmra.mxu0 %v759
  %v1153 = vpop.f32.mrf.mxu0
  %v1154 = vadd.f32 %v224, %v1153
  %v1155 = vpop.f32.mrf.mxu0
  %v1156 = vpop.f32.mrf.mxu0
  %v1157 = vadd.f32 %v224, %v1156
  %v1158 = vpop.f32.mrf.mxu0
  %1159 = vmatprep.mubr.bf16.mxu0 0
  %1160 = vmatmul.mubr.bf16.gmra.mxu0 %v762
  %v1161 = vpop.f32.mrf.mxu0
  %v1162 = vadd.f32 %v224, %v1161
  %v1163 = vpop.f32.mrf.mxu0
  %v1164 = vpop.f32.mrf.mxu0
  %v1165 = vadd.f32 %v224, %v1164
  %v1166 = vpop.f32.mrf.mxu0
  %1167 = vmatprep.mubr.bf16.mxu0 0
  %1168 = vmatmul.mubr.bf16.gmra.mxu0 %v765
  %v1169 = vpop.f32.mrf.mxu0
  %v1170 = vadd.f32 %v224, %v1169
  %v1171 = vpop.f32.mrf.mxu0
  %v1172 = vpop.f32.mrf.mxu0
  %v1173 = vadd.f32 %v224, %v1172
  %v1174 = vpop.f32.mrf.mxu0
  %1175 = vmatprep.mubr.bf16.mxu0 0
  %1176 = vmatmul.mubr.bf16.gmra.mxu0 %v768
  %v1177 = vpop.f32.mrf.mxu0
  %v1178 = vadd.f32 %v224, %v1177
  %v1179 = vpop.f32.mrf.mxu0
  %v1180 = vpop.f32.mrf.mxu0
  %v1181 = vadd.f32 %v224, %v1180
  %v1182 = vpop.f32.mrf.mxu0
  %1183 = vmatprep.mubr.bf16.mxu0 0
  %1184 = vmatmul.mubr.bf16.gmra.mxu0 %v771
  %v1185 = vpop.f32.mrf.mxu0
  %v1186 = vadd.f32 %v224, %v1185
  %v1187 = vpop.f32.mrf.mxu0
  %v1188 = vpop.f32.mrf.mxu0
  %v1189 = vadd.f32 %v224, %v1188
  %v1190 = vpop.f32.mrf.mxu0
  %1191 = vmatprep.mubr.bf16.mxu0 0
  %1192 = vmatmul.mubr.bf16.gmra.mxu0 %v774
  %v1193 = vpop.f32.mrf.mxu0
  %v1194 = vadd.f32 %v224, %v1193
  %v1195 = vpop.f32.mrf.mxu0
  %v1196 = vpop.f32.mrf.mxu0
  %v1197 = vadd.f32 %v224, %v1196
  %v1198 = vpop.f32.mrf.mxu0
  %1199 = vmatprep.mubr.bf16.mxu0 0
  %1200 = vmatmul.mubr.bf16.gmra.mxu0 %v777
  %v1201 = vpop.f32.mrf.mxu0
  %v1202 = vadd.f32 %v224, %v1201
  %v1203 = vpop.f32.mrf.mxu0
  %v1204 = vpop.f32.mrf.mxu0
  %v1205 = vadd.f32 %v224, %v1204
  %v1206 = vpop.f32.mrf.mxu0
  %1207 = vmatprep.mubr.bf16.mxu0 0
  %1208 = vmatmul.mubr.bf16.gmra.mxu0 %v780
  %v1209 = vpop.f32.mrf.mxu0
  %v1210 = vadd.f32 %v224, %v1209
  %v1211 = vpop.f32.mrf.mxu0
  %v1212 = vpop.f32.mrf.mxu0
  %v1213 = vadd.f32 %v224, %v1212
  %v1214 = vpop.f32.mrf.mxu0
  %1215 = vmatprep.mubr.bf16.mxu0 0
  %1216 = vmatmul.mubr.bf16.gmra.mxu0 %v783
  %v1217 = vpop.f32.mrf.mxu0
  %v1218 = vadd.f32 %v224, %v1217
  %v1219 = vpop.f32.mrf.mxu0
  %v1220 = vpop.f32.mrf.mxu0
  %v1221 = vadd.f32 %v224, %v1220
  %v1222 = vpop.f32.mrf.mxu0
  %1223 = vmatprep.mubr.bf16.mxu0 0
  %1224 = vmatmul.mubr.bf16.gmra.mxu0 %v786
  %v1225 = vpop.f32.mrf.mxu0
  %v1226 = vadd.f32 %v224, %v1225
  %v1227 = vpop.f32.mrf.mxu0
  %v1228 = vpop.f32.mrf.mxu0
  %v1229 = vadd.f32 %v224, %v1228
  %v1230 = vpop.f32.mrf.mxu0
  %1231 = vmatprep.mubr.bf16.mxu0 0
  %1232 = vmatmul.mubr.bf16.gmra.mxu0 %v789
  %v1233 = vpop.f32.mrf.mxu0
  %v1234 = vadd.f32 %v224, %v1233
  %v1235 = vpop.f32.mrf.mxu0
  %v1236 = vpop.f32.mrf.mxu0
  %v1237 = vadd.f32 %v224, %v1236
  %v1238 = vpop.f32.mrf.mxu0
  %1239 = vmatprep.mubr.bf16.mxu0 0
  %1240 = vmatmul.mubr.bf16.gmra.mxu0 %v792
  %v1241 = vpop.f32.mrf.mxu0
  %v1242 = vadd.f32 %v224, %v1241
  %v1243 = vpop.f32.mrf.mxu0
  %v1244 = vpop.f32.mrf.mxu0
  %v1245 = vadd.f32 %v224, %v1244
  %v1246 = vpop.f32.mrf.mxu0
  %1247 = vmatprep.mubr.bf16.mxu0 0
  %1248 = vmatmul.mubr.bf16.gmra.mxu0 %v795
  %v1249 = vpop.f32.mrf.mxu0
  %v1250 = vadd.f32 %v224, %v1249
  %v1251 = vpop.f32.mrf.mxu0
  %v1252 = vpop.f32.mrf.mxu0
  %v1253 = vadd.f32 %v224, %v1252
  %v1254 = vpop.f32.mrf.mxu0
  %1255 = vmatprep.mubr.bf16.mxu0 0
  %1256 = vmatmul.mubr.bf16.gmra.mxu0 %v798
  %v1257 = vpop.f32.mrf.mxu0
  %v1258 = vadd.f32 %v224, %v1257
  %v1259 = vpop.f32.mrf.mxu0
  %v1260 = vpop.f32.mrf.mxu0
  %v1261 = vadd.f32 %v224, %v1260
  %v1262 = vpop.f32.mrf.mxu0
  %1263 = vmatprep.mubr.bf16.mxu0 0
  %1264 = vmatmul.mubr.bf16.gmra.mxu0 %v801
  %v1265 = vpop.f32.mrf.mxu0
  %v1266 = vadd.f32 %v224, %v1265
  %v1267 = vpop.f32.mrf.mxu0
  %v1268 = vpop.f32.mrf.mxu0
  %v1269 = vadd.f32 %v224, %v1268
  %v1270 = vpop.f32.mrf.mxu0
  %1271 = vmatprep.mubr.bf16.mxu0 0
  %1272 = vmatmul.mubr.bf16.gmra.mxu0 %v804
  %v1273 = vpop.f32.mrf.mxu0
  %v1274 = vadd.f32 %v224, %v1273
  %v1275 = vpop.f32.mrf.mxu0
  %v1276 = vpop.f32.mrf.mxu0
  %v1277 = vadd.f32 %v224, %v1276
  %v1278 = vpop.f32.mrf.mxu0
  %1279 = vmatprep.mubr.bf16.mxu0 0
  %1280 = vmatmul.mubr.bf16.gmra.mxu0 %v807
  %v1281 = vpop.f32.mrf.mxu0
  %v1282 = vadd.f32 %v224, %v1281
  %v1283 = vpop.f32.mrf.mxu0
  %v1284 = vpop.f32.mrf.mxu0
  %v1285 = vadd.f32 %v224, %v1284
  %v1286 = vpop.f32.mrf.mxu0
  %1287 = vmatprep.mubr.bf16.mxu0 0
  %1288 = vmatmul.mubr.bf16.gmra.mxu0 %v810
  %v1289 = vpop.f32.mrf.mxu0
  %v1290 = vadd.f32 %v224, %v1289
  %v1291 = vpop.f32.mrf.mxu0
  %v1292 = vpop.f32.mrf.mxu0
  %v1293 = vadd.f32 %v224, %v1292
  %v1294 = vpop.f32.mrf.mxu0
  %1295 = vmatprep.mubr.bf16.mxu0 0
  %1296 = vmatmul.mubr.bf16.gmra.mxu0 %v813
  %v1297 = vpop.f32.mrf.mxu0
  %v1298 = vadd.f32 %v224, %v1297
  %v1299 = vpop.f32.mrf.mxu0
  %v1300 = vpop.f32.mrf.mxu0
  %v1301 = vadd.f32 %v224, %v1300
  %v1302 = vpop.f32.mrf.mxu0
  %1303 = vmatprep.mubr.bf16.mxu0 0
  %1304 = vmatmul.mubr.bf16.gmra.mxu0 %v816
  %v1305 = vpop.f32.mrf.mxu0
  %v1306 = vadd.f32 %v224, %v1305
  %v1307 = vpop.f32.mrf.mxu0
  %v1308 = vpop.f32.mrf.mxu0
  %v1309 = vadd.f32 %v224, %v1308
  %v1310 = vpop.f32.mrf.mxu0
  %1311 = vmatprep.mubr.bf16.mxu0 0
  %1312 = vmatmul.mubr.bf16.gmra.mxu0 %v819
  %v1313 = vpop.f32.mrf.mxu0
  %v1314 = vadd.f32 %v224, %v1313
  %v1315 = vpop.f32.mrf.mxu0
  %v1316 = vpop.f32.mrf.mxu0
  %v1317 = vadd.f32 %v224, %v1316
  %v1318 = vpop.f32.mrf.mxu0
  %1319 = vmatprep.mubr.bf16.mxu0 0
  %1320 = vmatmul.mubr.bf16.gmra.mxu0 %v822
  %v1321 = vpop.f32.mrf.mxu0
  %v1322 = vadd.f32 %v224, %v1321
  %v1323 = vpop.f32.mrf.mxu0
  %v1324 = vpop.f32.mrf.mxu0
  %v1325 = vadd.f32 %v224, %v1324
  %v1326 = vpop.f32.mrf.mxu0
  %1327 = vmatprep.mubr.bf16.mxu0 0
  %1328 = vmatmul.mubr.bf16.gmra.mxu0 %v825
  %v1329 = vpop.f32.mrf.mxu0
  %v1330 = vadd.f32 %v224, %v1329
  %v1331 = vpop.f32.mrf.mxu0
  %v1332 = vpop.f32.mrf.mxu0
  %v1333 = vadd.f32 %v224, %v1332
  %v1334 = vpop.f32.mrf.mxu0
  %1335 = vmatprep.mubr.bf16.mxu0 0
  %1336 = vmatmul.mubr.bf16.gmra.mxu0 %v828
  %v1337 = vpop.f32.mrf.mxu0
  %v1338 = vadd.f32 %v224, %v1337
  %v1339 = vpop.f32.mrf.mxu0
  %v1340 = vpop.f32.mrf.mxu0
  %v1341 = vadd.f32 %v224, %v1340
  %v1342 = vpop.f32.mrf.mxu0
  %1343 = vmatprep.mubr.bf16.mxu0 0
  %1344 = vmatmul.mubr.bf16.gmra.mxu0 %v831
  %v1345 = vpop.f32.mrf.mxu0
  %v1346 = vadd.f32 %v224, %v1345
  %v1347 = vpop.f32.mrf.mxu0
  %v1348 = vpop.f32.mrf.mxu0
  %v1349 = vadd.f32 %v224, %v1348
  %v1350 = vpop.f32.mrf.mxu0
  %1351 = vmatprep.mubr.bf16.mxu0 0
  %1352 = vmatmul.mubr.bf16.gmra.mxu0 %v834
  %v1353 = vpop.f32.mrf.mxu0
  %v1354 = vadd.f32 %v224, %v1353
  %v1355 = vpop.f32.mrf.mxu0
  %v1356 = vpop.f32.mrf.mxu0
  %v1357 = vadd.f32 %v224, %v1356
  %v1358 = vpop.f32.mrf.mxu0
  %1359 = vmatprep.mubr.bf16.mxu0 0
  %1360 = vmatmul.mubr.bf16.gmra.mxu0 %v837
  %v1361 = vpop.f32.mrf.mxu0
  %v1362 = vadd.f32 %v224, %v1361
  %v1363 = vpop.f32.mrf.mxu0
  %v1364 = vpop.f32.mrf.mxu0
  %v1365 = vadd.f32 %v224, %v1364
  %v1366 = vpop.f32.mrf.mxu0
  %1367 = vmatprep.mubr.bf16.mxu0 0
  %1368 = vmatmul.mubr.bf16.gmra.mxu0 %v840
  %v1369 = vpop.f32.mrf.mxu0
  %v1370 = vadd.f32 %v224, %v1369
  %v1371 = vpop.f32.mrf.mxu0
  %v1372 = vpop.f32.mrf.mxu0
  %v1373 = vadd.f32 %v224, %v1372
  %v1374 = vpop.f32.mrf.mxu0
  %1375 = vmatprep.mubr.bf16.mxu0 0
  %1376 = vmatmul.mubr.bf16.gmra.mxu0 %v843
  %v1377 = vpop.f32.mrf.mxu0
  %v1378 = vadd.f32 %v224, %v1377
  %v1379 = vpop.f32.mrf.mxu0
  %v1380 = vpop.f32.mrf.mxu0
  %v1381 = vadd.f32 %v224, %v1380
  %v1382 = vpop.f32.mrf.mxu0
  %1383 = vmatprep.mubr.bf16.mxu0 0
  %1384 = vmatmul.mubr.bf16.gmra.mxu0 %v846
  %v1385 = vpop.f32.mrf.mxu0
  %v1386 = vadd.f32 %v224, %v1385
  %v1387 = vpop.f32.mrf.mxu0
  %v1388 = vpop.f32.mrf.mxu0
  %v1389 = vadd.f32 %v224, %v1388
  %v1390 = vpop.f32.mrf.mxu0
  %1391 = vmatprep.mubr.bf16.mxu0 0
  %1392 = vmatmul.mubr.bf16.gmra.mxu0 %v849
  %v1393 = vpop.f32.mrf.mxu0
  %v1394 = vadd.f32 %v224, %v1393
  %v1395 = vpop.f32.mrf.mxu0
  %v1396 = vpop.f32.mrf.mxu0
  %v1397 = vadd.f32 %v224, %v1396
  %v1398 = vpop.f32.mrf.mxu0
  %1399 = vmatprep.mubr.bf16.mxu0 0
  %1400 = vmatmul.mubr.bf16.gmra.mxu0 %v852
  %v1401 = vpop.f32.mrf.mxu0
  %v1402 = vadd.f32 %v224, %v1401
  %v1403 = vpop.f32.mrf.mxu0
  %v1404 = vpop.f32.mrf.mxu0
  %v1405 = vadd.f32 %v224, %v1404
  %v1406 = vpop.f32.mrf.mxu0
  %1407 = vmatprep.mubr.bf16.mxu0 0
  %1408 = vmatmul.mubr.bf16.gmra.mxu0 %v855
  %v1409 = vpop.f32.mrf.mxu0
  %v1410 = vadd.f32 %v224, %v1409
  %v1411 = vpop.f32.mrf.mxu0
  %v1412 = vpop.f32.mrf.mxu0
  %v1413 = vadd.f32 %v224, %v1412
  %v1414 = vpop.f32.mrf.mxu0
  %1415 = vmatprep.mubr.bf16.mxu0 0
  %1416 = vmatmul.mubr.bf16.gmra.mxu0 %v858
  %v1417 = vpop.f32.mrf.mxu0
  %v1418 = vadd.f32 %v224, %v1417
  %v1419 = vpop.f32.mrf.mxu0
  %v1420 = vpop.f32.mrf.mxu0
  %v1421 = vadd.f32 %v224, %v1420
  %v1422 = vpop.f32.mrf.mxu0
  %1423 = vmatprep.mubr.bf16.mxu0 0
  %1424 = vmatmul.mubr.bf16.gmra.mxu0 %v861
  %v1425 = vpop.f32.mrf.mxu0
  %v1426 = vadd.f32 %v224, %v1425
  %v1427 = vpop.f32.mrf.mxu0
  %v1428 = vpop.f32.mrf.mxu0
  %v1429 = vadd.f32 %v224, %v1428
  %v1430 = vpop.f32.mrf.mxu0
  %1431 = vmatprep.mubr.bf16.mxu0 0
  %1432 = vmatmul.mubr.bf16.gmra.mxu0 %v864
  %v1433 = vpop.f32.mrf.mxu0
  %v1434 = vadd.f32 %v224, %v1433
  %v1435 = vpop.f32.mrf.mxu0
  %v1436 = vpop.f32.mrf.mxu0
  %v1437 = vadd.f32 %v224, %v1436
  %v1438 = vpop.f32.mrf.mxu0
  %1439 = vmatprep.mubr.bf16.mxu0 0
  %1440 = vmatmul.mubr.bf16.gmra.mxu0 %v867
  %v1441 = vpop.f32.mrf.mxu0
  %v1442 = vadd.f32 %v224, %v1441
  %v1443 = vpop.f32.mrf.mxu0
  %v1444 = vpop.f32.mrf.mxu0
  %v1445 = vadd.f32 %v224, %v1444
  %v1446 = vpop.f32.mrf.mxu0
  %1447 = vmatprep.mubr.bf16.mxu0 0
  %1448 = vmatmul.mubr.bf16.gmra.mxu0 %v870
  %v1449 = vpop.f32.mrf.mxu0
  %v1450 = vadd.f32 %v224, %v1449
  %v1451 = vpop.f32.mrf.mxu0
  %v1452 = vpop.f32.mrf.mxu0
  %v1453 = vadd.f32 %v224, %v1452
  %v1454 = vpop.f32.mrf.mxu0
  %1455 = vmatprep.mubr.bf16.mxu0 0
  %1456 = vmatmul.mubr.bf16.gmra.mxu0 %v873
  %v1457 = vpop.f32.mrf.mxu0
  %v1458 = vadd.f32 %v224, %v1457
  %v1459 = vpop.f32.mrf.mxu0
  %v1460 = vpop.f32.mrf.mxu0
  %v1461 = vadd.f32 %v224, %v1460
  %v1462 = vpop.f32.mrf.mxu0
  %1463 = vmatprep.mubr.bf16.mxu0 0
  %1464 = vmatmul.mubr.bf16.gmra.mxu0 %v876
  %v1465 = vpop.f32.mrf.mxu0
  %v1466 = vadd.f32 %v224, %v1465
  %v1467 = vpop.f32.mrf.mxu0
  %v1468 = vpop.f32.mrf.mxu0
  %v1469 = vadd.f32 %v224, %v1468
  %v1470 = vpop.f32.mrf.mxu0
  %1471 = vmatprep.mubr.bf16.mxu0 0
  %1472 = vmatmul.mubr.bf16.gmra.mxu0 %v879
  %v1473 = vpop.f32.mrf.mxu0
  %v1474 = vadd.f32 %v224, %v1473
  %v1475 = vpop.f32.mrf.mxu0
  %v1476 = vpop.f32.mrf.mxu0
  %v1477 = vadd.f32 %v224, %v1476
  %v1478 = vpop.f32.mrf.mxu0
  %1479 = vmatprep.mubr.bf16.mxu0 0
  %1480 = vmatmul.mubr.bf16.gmra.mxu0 %v882
  %v1481 = vpop.f32.mrf.mxu0
  %v1482 = vadd.f32 %v224, %v1481
  %v1483 = vpop.f32.mrf.mxu0
  %v1484 = vpop.f32.mrf.mxu0
  %v1485 = vadd.f32 %v224, %v1484
  %v1486 = vpop.f32.mrf.mxu0
  %1487 = vmatprep.mubr.bf16.mxu0 0
  %1488 = vmatmul.mubr.bf16.gmra.mxu0 %v885
  %v1489 = vpop.f32.mrf.mxu0
  %v1490 = vadd.f32 %v224, %v1489
  %v1491 = vpop.f32.mrf.mxu0
  %v1492 = vpop.f32.mrf.mxu0
  %v1493 = vadd.f32 %v224, %v1492
  %v1494 = vpop.f32.mrf.mxu0
  %1495 = vmatprep.mubr.bf16.mxu0 0
  %1496 = vmatmul.mubr.bf16.gmra.mxu0 %v888
  %v1497 = vpop.f32.mrf.mxu0
  %v1498 = vadd.f32 %v224, %v1497
  %v1499 = vpop.f32.mrf.mxu0
  %v1500 = vpop.f32.mrf.mxu0
  %v1501 = vadd.f32 %v224, %v1500
  %v1502 = vpop.f32.mrf.mxu0
  %1503 = vmatprep.mubr.bf16.mxu0 0
  %1504 = vmatmul.mubr.bf16.gmra.mxu0 %v891
  %v1505 = vpop.f32.mrf.mxu0
  %v1506 = vadd.f32 %v224, %v1505
  %v1507 = vpop.f32.mrf.mxu0
  %v1508 = vpop.f32.mrf.mxu0
  %v1509 = vadd.f32 %v224, %v1508
  %v1510 = vpop.f32.mrf.mxu0
  %1511 = vmatprep.mubr.bf16.mxu0 0
  %1512 = vmatmul.mubr.bf16.gmra.mxu0 %v894
  %v1513 = vpop.f32.mrf.mxu0
  %v1514 = vadd.f32 %v224, %v1513
  %v1515 = vpop.f32.mrf.mxu0
  %v1516 = vpop.f32.mrf.mxu0
  %v1517 = vadd.f32 %v224, %v1516
  %v1518 = vpop.f32.mrf.mxu0
  %1519 = vmatprep.mubr.bf16.mxu0 0
  %1520 = vmatmul.mubr.bf16.gmra.mxu0 %v897
  %v1521 = vpop.f32.mrf.mxu0
  %v1522 = vadd.f32 %v224, %v1521
  %v1523 = vpop.f32.mrf.mxu0
  %v1524 = vpop.f32.mrf.mxu0
  %v1525 = vadd.f32 %v224, %v1524
  %v1526 = vpop.f32.mrf.mxu0
  %1527 = vmatprep.mubr.bf16.mxu0 0
  %1528 = vmatmul.mubr.bf16.gmra.mxu0 %v900
  %v1529 = vpop.f32.mrf.mxu0
  %v1530 = vadd.f32 %v224, %v1529
  %v1531 = vpop.f32.mrf.mxu0
  %v1532 = vpop.f32.mrf.mxu0
  %v1533 = vadd.f32 %v224, %v1532
  %v1534 = vpop.f32.mrf.mxu0
  %1535 = vmatprep.mubr.bf16.mxu0 0
  %1536 = vmatmul.mubr.bf16.gmra.mxu0 %v903
  %v1537 = vpop.f32.mrf.mxu0
  %v1538 = vadd.f32 %v224, %v1537
  %v1539 = vpop.f32.mrf.mxu0
  %v1540 = vpop.f32.mrf.mxu0
  %v1541 = vadd.f32 %v224, %v1540
  %v1542 = vpop.f32.mrf.mxu0
  %1543 = vmatprep.mubr.bf16.mxu0 0
  %1544 = vmatmul.mubr.bf16.gmra.mxu0 %v906
  %v1545 = vpop.f32.mrf.mxu0
  %v1546 = vadd.f32 %v224, %v1545
  %v1547 = vpop.f32.mrf.mxu0
  %v1548 = vpop.f32.mrf.mxu0
  %v1549 = vadd.f32 %v224, %v1548
  %v1550 = vpop.f32.mrf.mxu0
  %1551 = vmatprep.mubr.bf16.mxu0 0
  %1552 = vmatmul.mubr.bf16.gmra.mxu0 %v909
  %v1553 = vpop.f32.mrf.mxu0
  %v1554 = vadd.f32 %v224, %v1553
  %v1555 = vpop.f32.mrf.mxu0
  %v1556 = vpop.f32.mrf.mxu0
  %v1557 = vadd.f32 %v224, %v1556
  %v1558 = vpop.f32.mrf.mxu0
  %1559 = vmatprep.mubr.bf16.mxu0 0
  %1560 = vmatmul.mubr.bf16.gmra.mxu0 %v912
  %v1561 = vpop.f32.mrf.mxu0
  %v1562 = vadd.f32 %v224, %v1561
  %v1563 = vpop.f32.mrf.mxu0
  %v1564 = vpop.f32.mrf.mxu0
  %v1565 = vadd.f32 %v224, %v1564
  %v1566 = vpop.f32.mrf.mxu0
  %1567 = vmatprep.mubr.bf16.mxu0 0
  %1568 = vmatmul.mubr.bf16.gmra.mxu0 %v915
  %v1569 = vpop.f32.mrf.mxu0
  %v1570 = vadd.f32 %v224, %v1569
  %v1571 = vpop.f32.mrf.mxu0
  %v1572 = vpop.f32.mrf.mxu0
  %v1573 = vadd.f32 %v224, %v1572
  %v1574 = vpop.f32.mrf.mxu0
  %1575 = vmatprep.mubr.bf16.mxu0 0
  %1576 = vmatmul.mubr.bf16.gmra.mxu0 %v918
  %v1577 = vpop.f32.mrf.mxu0
  %v1578 = vadd.f32 %v224, %v1577
  %v1579 = vpop.f32.mrf.mxu0
  %v1580 = vpop.f32.mrf.mxu0
  %v1581 = vadd.f32 %v224, %v1580
  %v1582 = vpop.f32.mrf.mxu0
  %1583 = vmatprep.mubr.bf16.mxu0 0
  %1584 = vmatmul.mubr.bf16.gmra.mxu0 %v921
  %v1585 = vpop.f32.mrf.mxu0
  %v1586 = vadd.f32 %v224, %v1585
  %v1587 = vpop.f32.mrf.mxu0
  %v1588 = vpop.f32.mrf.mxu0
  %v1589 = vadd.f32 %v224, %v1588
  %v1590 = vpop.f32.mrf.mxu0
  %1591 = vmatprep.mubr.bf16.mxu0 0
  %1592 = vmatmul.mubr.bf16.gmra.mxu0 %v924
  %v1593 = vpop.f32.mrf.mxu0
  %v1594 = vadd.f32 %v224, %v1593
  %v1595 = vpop.f32.mrf.mxu0
  %v1596 = vpop.f32.mrf.mxu0
  %v1597 = vadd.f32 %v224, %v1596
  %v1598 = vpop.f32.mrf.mxu0
  %1599 = vmatprep.mubr.bf16.mxu0 0
  %1600 = vmatmul.mubr.bf16.gmra.mxu0 %v927
  %v1601 = vpop.f32.mrf.mxu0
  %v1602 = vadd.f32 %v224, %v1601
  %v1603 = vpop.f32.mrf.mxu0
  %v1604 = vpop.f32.mrf.mxu0
  %v1605 = vadd.f32 %v224, %v1604
  %v1606 = vpop.f32.mrf.mxu0
  %1607 = vmatprep.mubr.bf16.mxu0 0
  %1608 = vmatmul.mubr.bf16.gmra.mxu0 %v930
  %v1609 = vpop.f32.mrf.mxu0
  %v1610 = vadd.f32 %v224, %v1609
  %v1611 = vpop.f32.mrf.mxu0
  %v1612 = vpop.f32.mrf.mxu0
  %v1613 = vadd.f32 %v224, %v1612
  %v1614 = vpop.f32.mrf.mxu0
  %1615 = vmatprep.mubr.bf16.mxu0 0
  %1616 = vmatmul.mubr.bf16.gmra.mxu0 %v933
  %v1617 = vpop.f32.mrf.mxu0
  %v1618 = vadd.f32 %v224, %v1617
  %v1619 = vpop.f32.mrf.mxu0
  %v1620 = vpop.f32.mrf.mxu0
  %v1621 = vadd.f32 %v224, %v1620
  %v1622 = vpop.f32.mrf.mxu0
  %1623 = vmatprep.mubr.bf16.mxu0 0
  %1624 = vmatmul.mubr.bf16.gmra.mxu0 %v936
  %v1625 = vpop.f32.mrf.mxu0
  %v1626 = vadd.f32 %v224, %v1625
  %v1627 = vpop.f32.mrf.mxu0
  %v1628 = vpop.f32.mrf.mxu0
  %v1629 = vadd.f32 %v224, %v1628
  %v1630 = vpop.f32.mrf.mxu0
  %1631 = vmatprep.mubr.bf16.mxu0 0
  %1632 = vmatmul.mubr.bf16.gmra.mxu0 %v939
  %v1633 = vpop.f32.mrf.mxu0
  %v1634 = vadd.f32 %v224, %v1633
  %v1635 = vpop.f32.mrf.mxu0
  %v1636 = vpop.f32.mrf.mxu0
  %v1637 = vadd.f32 %v224, %v1636
  %v1638 = vpop.f32.mrf.mxu0
  %1639 = vmatprep.mubr.bf16.mxu0 0
  %1640 = vmatmul.mubr.bf16.gmra.mxu0 %v942
  %v1641 = vpop.f32.mrf.mxu0
  %v1642 = vadd.f32 %v224, %v1641
  %v1643 = vpop.f32.mrf.mxu0
  %v1644 = vpop.f32.mrf.mxu0
  %v1645 = vadd.f32 %v224, %v1644
  %v1646 = vpop.f32.mrf.mxu0
  %1647 = vmatprep.mubr.bf16.mxu0 0
  %1648 = vmatmul.mubr.bf16.gmra.mxu0 %v945
  %v1649 = vpop.f32.mrf.mxu0
  %v1650 = vadd.f32 %v224, %v1649
  %v1651 = vpop.f32.mrf.mxu0
  %v1652 = vpop.f32.mrf.mxu0
  %v1653 = vadd.f32 %v224, %v1652
  %v1654 = vpop.f32.mrf.mxu0
  %1655 = vmatprep.mubr.bf16.mxu0 0
  %1656 = vmatmul.mubr.bf16.gmra.mxu0 %v948
  %v1657 = vpop.f32.mrf.mxu0
  %v1658 = vadd.f32 %v224, %v1657
  %v1659 = vpop.f32.mrf.mxu0
  %v1660 = vpop.f32.mrf.mxu0
  %v1661 = vadd.f32 %v224, %v1660
  %v1662 = vpop.f32.mrf.mxu0
  %1663 = vmatprep.mubr.bf16.mxu0 0
  %1664 = vmatmul.mubr.bf16.gmra.mxu0 %v951
  %v1665 = vpop.f32.mrf.mxu0
  %v1666 = vadd.f32 %v224, %v1665
  %v1667 = vpop.f32.mrf.mxu0
  %v1668 = vpop.f32.mrf.mxu0
  %v1669 = vadd.f32 %v224, %v1668
  %v1670 = vpop.f32.mrf.mxu0
  %1671 = vmatprep.mubr.bf16.mxu0 0
  %1672 = vmatmul.mubr.bf16.gmra.mxu0 %v954
  %v1673 = vpop.f32.mrf.mxu0
  %v1674 = vadd.f32 %v224, %v1673
  %v1675 = vpop.f32.mrf.mxu0
  %v1676 = vpop.f32.mrf.mxu0
  %v1677 = vadd.f32 %v224, %v1676
  %v1678 = vpop.f32.mrf.mxu0
  %1679 = vmatprep.mubr.bf16.mxu0 0
  %1680 = vmatmul.mubr.bf16.gmra.mxu0 %v957
  %v1681 = vpop.f32.mrf.mxu0
  %v1682 = vadd.f32 %v224, %v1681
  %v1683 = vpop.f32.mrf.mxu0
  %v1684 = vpop.f32.mrf.mxu0
  %v1685 = vadd.f32 %v224, %v1684
  %v1686 = vpop.f32.mrf.mxu0
  %1687 = vmatprep.mubr.bf16.mxu0 0
  %1688 = vmatmul.mubr.bf16.gmra.mxu0 %v960
  %v1689 = vpop.f32.mrf.mxu0
  %v1690 = vadd.f32 %v224, %v1689
  %v1691 = vpop.f32.mrf.mxu0
  %v1692 = vpop.f32.mrf.mxu0
  %v1693 = vadd.f32 %v224, %v1692
  %v1694 = vpop.f32.mrf.mxu0
  %1695 = vmatprep.mubr.bf16.mxu0 0
  %1696 = vmatmul.mubr.bf16.gmra.mxu0 %v963
  %v1697 = vpop.f32.mrf.mxu0
  %v1698 = vadd.f32 %v224, %v1697
  %v1699 = vpop.f32.mrf.mxu0
  %v1700 = vpop.f32.mrf.mxu0
  %v1701 = vadd.f32 %v224, %v1700
  %v1702 = vpop.f32.mrf.mxu0
  %1703 = vmatprep.mubr.bf16.mxu0 0
  %1704 = vmatmul.mubr.bf16.gmra.mxu0 %v966
  %v1705 = vpop.f32.mrf.mxu0
  %v1706 = vadd.f32 %v224, %v1705
  %v1707 = vpop.f32.mrf.mxu0
  %v1708 = vpop.f32.mrf.mxu0
  %v1709 = vadd.f32 %v224, %v1708
  %v1710 = vpop.f32.mrf.mxu0
  %1711 = vmatprep.mubr.bf16.mxu0 0
  %1712 = vmatmul.mubr.bf16.gmra.mxu0 %v969
  %v1713 = vpop.f32.mrf.mxu0
  %v1714 = vadd.f32 %v224, %v1713
  %v1715 = vpop.f32.mrf.mxu0
  %v1716 = vpop.f32.mrf.mxu0
  %v1717 = vadd.f32 %v224, %v1716
  %v1718 = vpop.f32.mrf.mxu0
  %1719 = vmatprep.mubr.bf16.mxu0 0
  %1720 = vmatmul.mubr.bf16.gmra.mxu0 %v972
  %v1721 = vpop.f32.mrf.mxu0
  %v1722 = vadd.f32 %v224, %v1721
  %v1723 = vpop.f32.mrf.mxu0
  %v1724 = vpop.f32.mrf.mxu0
  %v1725 = vadd.f32 %v224, %v1724
  %v1726 = vpop.f32.mrf.mxu0
  %1727 = vmatprep.mubr.bf16.mxu0 0
  %1728 = vmatmul.mubr.bf16.gmra.mxu0 %v975
  %v1729 = vpop.f32.mrf.mxu0
  %v1730 = vadd.f32 %v224, %v1729
  %v1731 = vpop.f32.mrf.mxu0
  %v1732 = vpop.f32.mrf.mxu0
  %v1733 = vadd.f32 %v224, %v1732
  %v1734 = vpop.f32.mrf.mxu0
  %1735 = vmatprep.mubr.bf16.mxu0 0
  %1736 = vmatmul.mubr.bf16.gmra.mxu0 %v978
  %v1737 = vpop.f32.mrf.mxu0
  %v1738 = vadd.f32 %v224, %v1737
  %v1739 = vpop.f32.mrf.mxu0
  %v1740 = vpop.f32.mrf.mxu0
  %v1741 = vadd.f32 %v224, %v1740
  %v1742 = vpop.f32.mrf.mxu0
  %1743 = vmatprep.mubr.bf16.mxu0 0
  %1744 = vmatmul.mubr.bf16.gmra.mxu0 %v981
  %v1745 = vpop.f32.mrf.mxu0
  %v1746 = vadd.f32 %v224, %v1745
  %v1747 = vpop.f32.mrf.mxu0
  %v1748 = vpop.f32.mrf.mxu0
  %v1749 = vadd.f32 %v224, %v1748
  %v1750 = vpop.f32.mrf.mxu0
  %1751 = vmatprep.mubr.bf16.mxu0 0
  %1752 = vmatmul.mubr.bf16.gmra.mxu0 %v984
  %v1753 = vpop.f32.mrf.mxu0
  %v1754 = vadd.f32 %v224, %v1753
  %v1755 = vpop.f32.mrf.mxu0
  %v1756 = vpop.f32.mrf.mxu0
  %v1757 = vadd.f32 %v224, %v1756
  %v1758 = vpop.f32.mrf.mxu0
  %1759 = vmatprep.mubr.bf16.mxu0 0
  %1760 = vmatmul.mubr.bf16.gmra.mxu0 %v987
  %v1761 = vpop.f32.mrf.mxu0
  %v1762 = vadd.f32 %v224, %v1761
  %v1763 = vpop.f32.mrf.mxu0
  %v1764 = vpop.f32.mrf.mxu0
  %v1765 = vadd.f32 %v224, %v1764
  %v1766 = vpop.f32.mrf.mxu0
  %1767 = vmatprep.mubr.bf16.mxu0 0
  %1768 = vmatmul.mubr.bf16.gmra.mxu0 %v990
  %v1769 = vpop.f32.mrf.mxu0
  %v1770 = vadd.f32 %v224, %v1769
  %v1771 = vpop.f32.mrf.mxu0
  %v1772 = vpop.f32.mrf.mxu0
  %v1773 = vadd.f32 %v224, %v1772
  %v1774 = vpop.f32.mrf.mxu0
  %1775 = vmatprep.mubr.bf16.mxu0 0
  %1776 = vmatmul.mubr.bf16.gmra.mxu0 %v993
  %v1777 = vpop.f32.mrf.mxu0
  %v1778 = vadd.f32 %v224, %v1777
  %v1779 = vpop.f32.mrf.mxu0
  %v1780 = vpop.f32.mrf.mxu0
  %v1781 = vadd.f32 %v224, %v1780
  %v1782 = vpop.f32.mrf.mxu0
  %1783 = vmatprep.mubr.bf16.mxu0 0
  %1784 = vmatmul.mubr.bf16.gmra.mxu0 %v996
  %v1785 = vpop.f32.mrf.mxu0
  %v1786 = vadd.f32 %v224, %v1785
  %v1787 = vpop.f32.mrf.mxu0
  %v1788 = vpop.f32.mrf.mxu0
  %v1789 = vadd.f32 %v224, %v1788
  %v1790 = vpop.f32.mrf.mxu0
  %1791 = vmatprep.mubr.bf16.mxu0 0
  %1792 = vmatmul.mubr.bf16.gmra.mxu0 %v999
  %v1793 = vpop.f32.mrf.mxu0
  %v1794 = vadd.f32 %v224, %v1793
  %v1795 = vpop.f32.mrf.mxu0
  %v1796 = vpop.f32.mrf.mxu0
  %v1797 = vadd.f32 %v224, %v1796
  %v1798 = vpop.f32.mrf.mxu0
  %1799 = vmatprep.mubr.bf16.mxu0 0
  %1800 = vmatmul.mubr.bf16.gmra.mxu0 %v1002
  %v1801 = vpop.f32.mrf.mxu0
  %v1802 = vadd.f32 %v224, %v1801
  %v1803 = vpop.f32.mrf.mxu0
  %v1804 = vpop.f32.mrf.mxu0
  %v1805 = vadd.f32 %v224, %v1804
  %v1806 = vpop.f32.mrf.mxu0
  %1807 = vmatprep.mubr.bf16.mxu0 0
  %1808 = vmatmul.mubr.bf16.gmra.mxu0 %v1005
  %v1809 = vpop.f32.mrf.mxu0
  %v1810 = vadd.f32 %v224, %v1809
  %v1811 = vpop.f32.mrf.mxu0
  %v1812 = vpop.f32.mrf.mxu0
  %v1813 = vadd.f32 %v224, %v1812
  %v1814 = vpop.f32.mrf.mxu0
  %1815 = vmatprep.mubr.bf16.mxu0 0
  %1816 = vmatmul.mubr.bf16.gmra.mxu0 %v1008
  %v1817 = vpop.f32.mrf.mxu0
  %v1818 = vadd.f32 %v224, %v1817
  %v1819 = vpop.f32.mrf.mxu0
  %v1820 = vpop.f32.mrf.mxu0
  %v1821 = vadd.f32 %v224, %v1820
  %v1822 = vpop.f32.mrf.mxu0
  %1823 = vmatprep.mubr.bf16.mxu0 0
  %1824 = vmatmul.mubr.bf16.gmra.mxu0 %v1011
  %v1825 = vpop.f32.mrf.mxu0
  %v1826 = vadd.f32 %v224, %v1825
  %v1827 = vpop.f32.mrf.mxu0
  %v1828 = vpop.f32.mrf.mxu0
  %v1829 = vadd.f32 %v224, %v1828
  %v1830 = vpop.f32.mrf.mxu0
  %1831 = vmatprep.mubr.bf16.mxu0 0
  %1832 = vmatmul.mubr.bf16.gmra.mxu0 %v1014
  %v1833 = vpop.f32.mrf.mxu0
  %v1834 = vadd.f32 %v224, %v1833
  %v1835 = vpop.f32.mrf.mxu0
  %v1836 = vpop.f32.mrf.mxu0
  %v1837 = vadd.f32 %v224, %v1836
  %v1838 = vpop.f32.mrf.mxu0
  %1839 = vdwg.mxu0
  %v1840 = vmax.f32 %v1058, 0.0
  %v1841 = vmax.f32 %v1061, 0.0
  %v1842 = vmax.f32 %v1066, 0.0
  %v1843 = vmax.f32 %v1069, 0.0
  %v1844 = vmax.f32 %v1074, 0.0
  %v1845 = vmax.f32 %v1077, 0.0
  %v1846 = vmax.f32 %v1082, 0.0
  %v1847 = vmax.f32 %v1085, 0.0
  %v1848 = vmax.f32 %v1090, 0.0
  %v1849 = vmax.f32 %v1093, 0.0
  %v1850 = vmax.f32 %v1098, 0.0
  %v1851 = vmax.f32 %v1101, 0.0
  %v1852 = vmax.f32 %v1106, 0.0
  %v1853 = vmax.f32 %v1109, 0.0
  %v1854 = vmax.f32 %v1114, 0.0
  %v1855 = vmax.f32 %v1117, 0.0
  %v1856 = vmax.f32 %v1122, 0.0
  %v1857 = vmax.f32 %v1125, 0.0
  %v1858 = vmax.f32 %v1130, 0.0
  %v1859 = vmax.f32 %v1133, 0.0
  %v1860 = vmax.f32 %v1138, 0.0
  %v1861 = vmax.f32 %v1141, 0.0
  %v1862 = vmax.f32 %v1146, 0.0
  %v1863 = vmax.f32 %v1149, 0.0
  %v1864 = vmax.f32 %v1154, 0.0
  %v1865 = vmax.f32 %v1157, 0.0
  %v1866 = vmax.f32 %v1162, 0.0
  %v1867 = vmax.f32 %v1165, 0.0
  %v1868 = vmax.f32 %v1170, 0.0
  %v1869 = vmax.f32 %v1173, 0.0
  %v1870 = vmax.f32 %v1178, 0.0
  %v1871 = vmax.f32 %v1181, 0.0
  %v1872 = vmax.f32 %v1186, 0.0
  %v1873 = vmax.f32 %v1189, 0.0
  %v1874 = vmax.f32 %v1194, 0.0
  %v1875 = vmax.f32 %v1197, 0.0
  %v1876 = vmax.f32 %v1202, 0.0
  %v1877 = vmax.f32 %v1205, 0.0
  %v1878 = vmax.f32 %v1210, 0.0
  %v1879 = vmax.f32 %v1213, 0.0
  %v1880 = vmax.f32 %v1218, 0.0
  %v1881 = vmax.f32 %v1221, 0.0
  %v1882 = vmax.f32 %v1226, 0.0
  %v1883 = vmax.f32 %v1229, 0.0
  %v1884 = vmax.f32 %v1234, 0.0
  %v1885 = vmax.f32 %v1237, 0.0
  %v1886 = vmax.f32 %v1242, 0.0
  %v1887 = vmax.f32 %v1245, 0.0
  %v1888 = vmax.f32 %v1250, 0.0
  %v1889 = vmax.f32 %v1253, 0.0
  %v1890 = vmax.f32 %v1258, 0.0
  %v1891 = vmax.f32 %v1261, 0.0
  %v1892 = vmax.f32 %v1266, 0.0
  %v1893 = vmax.f32 %v1269, 0.0
  %v1894 = vmax.f32 %v1274, 0.0
  %v1895 = vmax.f32 %v1277, 0.0
  %v1896 = vmax.f32 %v1282, 0.0
  %v1897 = vmax.f32 %v1285, 0.0
  %v1898 = vmax.f32 %v1290, 0.0
  %v1899 = vmax.f32 %v1293, 0.0
  %v1900 = vmax.f32 %v1298, 0.0
  %v1901 = vmax.f32 %v1301, 0.0
  %v1902 = vmax.f32 %v1306, 0.0
  %v1903 = vmax.f32 %v1309, 0.0
  %v1904 = vmax.f32 %v1314, 0.0
  %v1905 = vmax.f32 %v1317, 0.0
  %v1906 = vmax.f32 %v1322, 0.0
  %v1907 = vmax.f32 %v1325, 0.0
  %v1908 = vmax.f32 %v1330, 0.0
  %v1909 = vmax.f32 %v1333, 0.0
  %v1910 = vmax.f32 %v1338, 0.0
  %v1911 = vmax.f32 %v1341, 0.0
  %v1912 = vmax.f32 %v1346, 0.0
  %v1913 = vmax.f32 %v1349, 0.0
  %v1914 = vmax.f32 %v1354, 0.0
  %v1915 = vmax.f32 %v1357, 0.0
  %v1916 = vmax.f32 %v1362, 0.0
  %v1917 = vmax.f32 %v1365, 0.0
  %v1918 = vmax.f32 %v1370, 0.0
  %v1919 = vmax.f32 %v1373, 0.0
  %v1920 = vmax.f32 %v1378, 0.0
  %v1921 = vmax.f32 %v1381, 0.0
  %v1922 = vmax.f32 %v1386, 0.0
  %v1923 = vmax.f32 %v1389, 0.0
  %v1924 = vmax.f32 %v1394, 0.0
  %v1925 = vmax.f32 %v1397, 0.0
  %v1926 = vmax.f32 %v1402, 0.0
  %v1927 = vmax.f32 %v1405, 0.0
  %v1928 = vmax.f32 %v1410, 0.0
  %v1929 = vmax.f32 %v1413, 0.0
  %v1930 = vmax.f32 %v1418, 0.0
  %v1931 = vmax.f32 %v1421, 0.0
  %v1932 = vmax.f32 %v1426, 0.0
  %v1933 = vmax.f32 %v1429, 0.0
  %v1934 = vmax.f32 %v1434, 0.0
  %v1935 = vmax.f32 %v1437, 0.0
  %v1936 = vmax.f32 %v1442, 0.0
  %v1937 = vmax.f32 %v1445, 0.0
  %v1938 = vmax.f32 %v1450, 0.0
  %v1939 = vmax.f32 %v1453, 0.0
  %v1940 = vmax.f32 %v1458, 0.0
  %v1941 = vmax.f32 %v1461, 0.0
  %v1942 = vmax.f32 %v1466, 0.0
  %v1943 = vmax.f32 %v1469, 0.0
  %v1944 = vmax.f32 %v1474, 0.0
  %v1945 = vmax.f32 %v1477, 0.0
  %v1946 = vmax.f32 %v1482, 0.0
  %v1947 = vmax.f32 %v1485, 0.0
  %v1948 = vmax.f32 %v1490, 0.0
  %v1949 = vmax.f32 %v1493, 0.0
  %v1950 = vmax.f32 %v1498, 0.0
  %v1951 = vmax.f32 %v1501, 0.0
  %v1952 = vmax.f32 %v1506, 0.0
  %v1953 = vmax.f32 %v1509, 0.0
  %v1954 = vmax.f32 %v1514, 0.0
  %v1955 = vmax.f32 %v1517, 0.0
  %v1956 = vmax.f32 %v1522, 0.0
  %v1957 = vmax.f32 %v1525, 0.0
  %v1958 = vmax.f32 %v1530, 0.0
  %v1959 = vmax.f32 %v1533, 0.0
  %v1960 = vmax.f32 %v1538, 0.0
  %v1961 = vmax.f32 %v1541, 0.0
  %v1962 = vmax.f32 %v1546, 0.0
  %v1963 = vmax.f32 %v1549, 0.0
  %v1964 = vmax.f32 %v1554, 0.0
  %v1965 = vmax.f32 %v1557, 0.0
  %v1966 = vmax.f32 %v1562, 0.0
  %v1967 = vmax.f32 %v1565, 0.0
  %v1968 = vmax.f32 %v1570, 0.0
  %v1969 = vmax.f32 %v1573, 0.0
  %v1970 = vmax.f32 %v1578, 0.0
  %v1971 = vmax.f32 %v1581, 0.0
  %v1972 = vmax.f32 %v1586, 0.0
  %v1973 = vmax.f32 %v1589, 0.0
  %v1974 = vmax.f32 %v1594, 0.0
  %v1975 = vmax.f32 %v1597, 0.0
  %v1976 = vmax.f32 %v1602, 0.0
  %v1977 = vmax.f32 %v1605, 0.0
  %v1978 = vmax.f32 %v1610, 0.0
  %v1979 = vmax.f32 %v1613, 0.0
  %v1980 = vmax.f32 %v1618, 0.0
  %v1981 = vmax.f32 %v1621, 0.0
  %v1982 = vmax.f32 %v1626, 0.0
  %v1983 = vmax.f32 %v1629, 0.0
  %v1984 = vmax.f32 %v1634, 0.0
  %v1985 = vmax.f32 %v1637, 0.0
  %v1986 = vmax.f32 %v1642, 0.0
  %v1987 = vmax.f32 %v1645, 0.0
  %v1988 = vmax.f32 %v1650, 0.0
  %v1989 = vmax.f32 %v1653, 0.0
  %v1990 = vmax.f32 %v1658, 0.0
  %v1991 = vmax.f32 %v1661, 0.0
  %v1992 = vmax.f32 %v1666, 0.0
  %v1993 = vmax.f32 %v1669, 0.0
  %v1994 = vmax.f32 %v1674, 0.0
  %v1995 = vmax.f32 %v1677, 0.0
  %v1996 = vmax.f32 %v1682, 0.0
  %v1997 = vmax.f32 %v1685, 0.0
  %v1998 = vmax.f32 %v1690, 0.0
  %v1999 = vmax.f32 %v1693, 0.0
  %v2000 = vmax.f32 %v1698, 0.0
  %v2001 = vmax.f32 %v1701, 0.0
  %v2002 = vmax.f32 %v1706, 0.0
  %v2003 = vmax.f32 %v1709, 0.0
  %v2004 = vmax.f32 %v1714, 0.0
  %v2005 = vmax.f32 %v1717, 0.0
  %v2006 = vmax.f32 %v1722, 0.0
  %v2007 = vmax.f32 %v1725, 0.0
  %v2008 = vmax.f32 %v1730, 0.0
  %v2009 = vmax.f32 %v1733, 0.0
  %v2010 = vmax.f32 %v1738, 0.0
  %v2011 = vmax.f32 %v1741, 0.0
  %v2012 = vmax.f32 %v1746, 0.0
  %v2013 = vmax.f32 %v1749, 0.0
  %v2014 = vmax.f32 %v1754, 0.0
  %v2015 = vmax.f32 %v1757, 0.0
  %v2016 = vmax.f32 %v1762, 0.0
  %v2017 = vmax.f32 %v1765, 0.0
  %v2018 = vmax.f32 %v1770, 0.0
  %v2019 = vmax.f32 %v1773, 0.0
  %v2020 = vmax.f32 %v1778, 0.0
  %v2021 = vmax.f32 %v1781, 0.0
  %v2022 = vmax.f32 %v1786, 0.0
  %v2023 = vmax.f32 %v1789, 0.0
  %v2024 = vmax.f32 %v1794, 0.0
  %v2025 = vmax.f32 %v1797, 0.0
  %v2026 = vmax.f32 %v1802, 0.0
  %v2027 = vmax.f32 %v1805, 0.0
  %v2028 = vmax.f32 %v1810, 0.0
  %v2029 = vmax.f32 %v1813, 0.0
  %v2030 = vmax.f32 %v1818, 0.0
  %v2031 = vmax.f32 %v1821, 0.0
  %v2032 = vmax.f32 %v1826, 0.0
  %v2033 = vmax.f32 %v1829, 0.0
  %v2034 = vmax.f32 %v1834, 0.0
  %v2035 = vmax.f32 %v1837, 0.0
  %vm2036 = vcmask 261120
  %2037 = vst.msk [vmem:[#allocation2] sm:$0xff] %vm2036, %v1840
  %2038 = vst.msk [vmem:[#allocation2 + $0x8] sm:$0xff] %vm2036, %v1841
  %2039 = vst.msk [vmem:[#allocation2 + $0x10] sm:$0xff] %vm2036, %v1842
  %2040 = vst.msk [vmem:[#allocation2 + $0x18] sm:$0xff] %vm2036, %v1843
  %2041 = vst.msk [vmem:[#allocation2 + $0x20] sm:$0xff] %vm2036, %v1844
  %2042 = vst.msk [vmem:[#allocation2 + $0x28] sm:$0xff] %vm2036, %v1845
  %2043 = vst.msk [vmem:[#allocation2 + $0x30] sm:$0xff] %vm2036, %v1846
  %2044 = vst.msk [vmem:[#allocation2 + $0x38] sm:$0xff] %vm2036, %v1847
  %2045 = vst.msk [vmem:[#allocation2 + $0x40] sm:$0xff] %vm2036, %v1848
  %2046 = vst.msk [vmem:[#allocation2 + $0x48] sm:$0xff] %vm2036, %v1849
  %2047 = vst.msk [vmem:[#allocation2 + $0x50] sm:$0xff] %vm2036, %v1850
  %2048 = vst.msk [vmem:[#allocation2 + $0x58] sm:$0xff] %vm2036, %v1851
  %2049 = vst.msk [vmem:[#allocation2 + $0x60] sm:$0xff] %vm2036, %v1852
  %2050 = vst.msk [vmem:[#allocation2 + $0x68] sm:$0xff] %vm2036, %v1853
  %2051 = vst.msk [vmem:[#allocation2 + $0x70] sm:$0xff] %vm2036, %v1854
  %2052 = vst.msk [vmem:[#allocation2 + $0x78] sm:$0xff] %vm2036, %v1855
  %2053 = vst.msk [vmem:[#allocation2 + $0x80] sm:$0xff] %vm2036, %v1856
  %2054 = vst.msk [vmem:[#allocation2 + $0x88] sm:$0xff] %vm2036, %v1857
  %2055 = vst.msk [vmem:[#allocation2 + $0x90] sm:$0xff] %vm2036, %v1858
  %2056 = vst.msk [vmem:[#allocation2 + $0x98] sm:$0xff] %vm2036, %v1859
  %2057 = vst.msk [vmem:[#allocation2 + $0xa0] sm:$0xff] %vm2036, %v1860
  %2058 = vst.msk [vmem:[#allocation2 + $0xa8] sm:$0xff] %vm2036, %v1861
  %2059 = vst.msk [vmem:[#allocation2 + $0xb0] sm:$0xff] %vm2036, %v1862
  %2060 = vst.msk [vmem:[#allocation2 + $0xb8] sm:$0xff] %vm2036, %v1863
  %2061 = vst.msk [vmem:[#allocation2 + $0xc0] sm:$0xff] %vm2036, %v1864
  %2062 = vst.msk [vmem:[#allocation2 + $0xc8] sm:$0xff] %vm2036, %v1865
  %2063 = vst.msk [vmem:[#allocation2 + $0xd0] sm:$0xff] %vm2036, %v1866
  %2064 = vst.msk [vmem:[#allocation2 + $0xd8] sm:$0xff] %vm2036, %v1867
  %2065 = vst.msk [vmem:[#allocation2 + $0xe0] sm:$0xff] %vm2036, %v1868
  %2066 = vst.msk [vmem:[#allocation2 + $0xe8] sm:$0xff] %vm2036, %v1869
  %2067 = vst.msk [vmem:[#allocation2 + $0xf0] sm:$0xff] %vm2036, %v1870
  %2068 = vst.msk [vmem:[#allocation2 + $0xf8] sm:$0xff] %vm2036, %v1871
  %2069 = vst.msk [vmem:[#allocation2 + $0x100] sm:$0xff] %vm2036, %v1872
  %2070 = vst.msk [vmem:[#allocation2 + $0x108] sm:$0xff] %vm2036, %v1873
  %2071 = vst.msk [vmem:[#allocation2 + $0x110] sm:$0xff] %vm2036, %v1874
  %2072 = vst.msk [vmem:[#allocation2 + $0x118] sm:$0xff] %vm2036, %v1875
  %2073 = vst.msk [vmem:[#allocation2 + $0x120] sm:$0xff] %vm2036, %v1876
  %2074 = vst.msk [vmem:[#allocation2 + $0x128] sm:$0xff] %vm2036, %v1877
  %2075 = vst.msk [vmem:[#allocation2 + $0x130] sm:$0xff] %vm2036, %v1878
  %2076 = vst.msk [vmem:[#allocation2 + $0x138] sm:$0xff] %vm2036, %v1879
  %2077 = vst.msk [vmem:[#allocation2 + $0x140] sm:$0xff] %vm2036, %v1880
  %2078 = vst.msk [vmem:[#allocation2 + $0x148] sm:$0xff] %vm2036, %v1881
  %2079 = vst.msk [vmem:[#allocation2 + $0x150] sm:$0xff] %vm2036, %v1882
  %2080 = vst.msk [vmem:[#allocation2 + $0x158] sm:$0xff] %vm2036, %v1883
  %2081 = vst.msk [vmem:[#allocation2 + $0x160] sm:$0xff] %vm2036, %v1884
  %2082 = vst.msk [vmem:[#allocation2 + $0x168] sm:$0xff] %vm2036, %v1885
  %2083 = vst.msk [vmem:[#allocation2 + $0x170] sm:$0xff] %vm2036, %v1886
  %2084 = vst.msk [vmem:[#allocation2 + $0x178] sm:$0xff] %vm2036, %v1887
  %2085 = vst.msk [vmem:[#allocation2 + $0x180] sm:$0xff] %vm2036, %v1888
  %2086 = vst.msk [vmem:[#allocation2 + $0x188] sm:$0xff] %vm2036, %v1889
  %2087 = vst.msk [vmem:[#allocation2 + $0x190] sm:$0xff] %vm2036, %v1890
  %2088 = vst.msk [vmem:[#allocation2 + $0x198] sm:$0xff] %vm2036, %v1891
  %2089 = vst.msk [vmem:[#allocation2 + $0x1a0] sm:$0xff] %vm2036, %v1892
  %2090 = vst.msk [vmem:[#allocation2 + $0x1a8] sm:$0xff] %vm2036, %v1893
  %2091 = vst.msk [vmem:[#allocation2 + $0x1b0] sm:$0xff] %vm2036, %v1894
  %2092 = vst.msk [vmem:[#allocation2 + $0x1b8] sm:$0xff] %vm2036, %v1895
  %2093 = vst.msk [vmem:[#allocation2 + $0x1c0] sm:$0xff] %vm2036, %v1896
  %2094 = vst.msk [vmem:[#allocation2 + $0x1c8] sm:$0xff] %vm2036, %v1897
  %2095 = vst.msk [vmem:[#allocation2 + $0x1d0] sm:$0xff] %vm2036, %v1898
  %2096 = vst.msk [vmem:[#allocation2 + $0x1d8] sm:$0xff] %vm2036, %v1899
  %2097 = vst.msk [vmem:[#allocation2 + $0x1e0] sm:$0xff] %vm2036, %v1900
  %2098 = vst.msk [vmem:[#allocation2 + $0x1e8] sm:$0xff] %vm2036, %v1901
  %2099 = vst.msk [vmem:[#allocation2 + $0x1f0] sm:$0xff] %vm2036, %v1902
  %2100 = vst.msk [vmem:[#allocation2 + $0x1f8] sm:$0xff] %vm2036, %v1903
  %2101 = vst.msk [vmem:[#allocation2 + $0x200] sm:$0xff] %vm2036, %v1904
  %2102 = vst.msk [vmem:[#allocation2 + $0x208] sm:$0xff] %vm2036, %v1905
  %2103 = vst.msk [vmem:[#allocation2 + $0x210] sm:$0xff] %vm2036, %v1906
  %2104 = vst.msk [vmem:[#allocation2 + $0x218] sm:$0xff] %vm2036, %v1907
  %2105 = vst.msk [vmem:[#allocation2 + $0x220] sm:$0xff] %vm2036, %v1908
  %2106 = vst.msk [vmem:[#allocation2 + $0x228] sm:$0xff] %vm2036, %v1909
  %2107 = vst.msk [vmem:[#allocation2 + $0x230] sm:$0xff] %vm2036, %v1910
  %2108 = vst.msk [vmem:[#allocation2 + $0x238] sm:$0xff] %vm2036, %v1911
  %2109 = vst.msk [vmem:[#allocation2 + $0x240] sm:$0xff] %vm2036, %v1912
  %2110 = vst.msk [vmem:[#allocation2 + $0x248] sm:$0xff] %vm2036, %v1913
  %2111 = vst.msk [vmem:[#allocation2 + $0x250] sm:$0xff] %vm2036, %v1914
  %2112 = vst.msk [vmem:[#allocation2 + $0x258] sm:$0xff] %vm2036, %v1915
  %2113 = vst.msk [vmem:[#allocation2 + $0x260] sm:$0xff] %vm2036, %v1916
  %2114 = vst.msk [vmem:[#allocation2 + $0x268] sm:$0xff] %vm2036, %v1917
  %2115 = vst.msk [vmem:[#allocation2 + $0x270] sm:$0xff] %vm2036, %v1918
  %2116 = vst.msk [vmem:[#allocation2 + $0x278] sm:$0xff] %vm2036, %v1919
  %2117 = vst.msk [vmem:[#allocation2 + $0x280] sm:$0xff] %vm2036, %v1920
  %2118 = vst.msk [vmem:[#allocation2 + $0x288] sm:$0xff] %vm2036, %v1921
  %2119 = vst.msk [vmem:[#allocation2 + $0x290] sm:$0xff] %vm2036, %v1922
  %2120 = vst.msk [vmem:[#allocation2 + $0x298] sm:$0xff] %vm2036, %v1923
  %2121 = vst.msk [vmem:[#allocation2 + $0x2a0] sm:$0xff] %vm2036, %v1924
  %2122 = vst.msk [vmem:[#allocation2 + $0x2a8] sm:$0xff] %vm2036, %v1925
  %2123 = vst.msk [vmem:[#allocation2 + $0x2b0] sm:$0xff] %vm2036, %v1926
  %2124 = vst.msk [vmem:[#allocation2 + $0x2b8] sm:$0xff] %vm2036, %v1927
  %2125 = vst.msk [vmem:[#allocation2 + $0x2c0] sm:$0xff] %vm2036, %v1928
  %2126 = vst.msk [vmem:[#allocation2 + $0x2c8] sm:$0xff] %vm2036, %v1929
  %2127 = vst.msk [vmem:[#allocation2 + $0x2d0] sm:$0xff] %vm2036, %v1930
  %2128 = vst.msk [vmem:[#allocation2 + $0x2d8] sm:$0xff] %vm2036, %v1931
  %2129 = vst.msk [vmem:[#allocation2 + $0x2e0] sm:$0xff] %vm2036, %v1932
  %2130 = vst.msk [vmem:[#allocation2 + $0x2e8] sm:$0xff] %vm2036, %v1933
  %2131 = vst.msk [vmem:[#allocation2 + $0x2f0] sm:$0xff] %vm2036, %v1934
  %2132 = vst.msk [vmem:[#allocation2 + $0x2f8] sm:$0xff] %vm2036, %v1935
  %2133 = vst.msk [vmem:[#allocation2 + $0x300] sm:$0xff] %vm2036, %v1936
  %2134 = vst.msk [vmem:[#allocation2 + $0x308] sm:$0xff] %vm2036, %v1937
  %2135 = vst.msk [vmem:[#allocation2 + $0x310] sm:$0xff] %vm2036, %v1938
  %2136 = vst.msk [vmem:[#allocation2 + $0x318] sm:$0xff] %vm2036, %v1939
  %2137 = vst.msk [vmem:[#allocation2 + $0x320] sm:$0xff] %vm2036, %v1940
  %2138 = vst.msk [vmem:[#allocation2 + $0x328] sm:$0xff] %vm2036, %v1941
  %2139 = vst.msk [vmem:[#allocation2 + $0x330] sm:$0xff] %vm2036, %v1942
  %2140 = vst.msk [vmem:[#allocation2 + $0x338] sm:$0xff] %vm2036, %v1943
  %2141 = vst.msk [vmem:[#allocation2 + $0x340] sm:$0xff] %vm2036, %v1944
  %2142 = vst.msk [vmem:[#allocation2 + $0x348] sm:$0xff] %vm2036, %v1945
  %2143 = vst.msk [vmem:[#allocation2 + $0x350] sm:$0xff] %vm2036, %v1946
  %2144 = vst.msk [vmem:[#allocation2 + $0x358] sm:$0xff] %vm2036, %v1947
  %2145 = vst.msk [vmem:[#allocation2 + $0x360] sm:$0xff] %vm2036, %v1948
  %2146 = vst.msk [vmem:[#allocation2 + $0x368] sm:$0xff] %vm2036, %v1949
  %2147 = vst.msk [vmem:[#allocation2 + $0x370] sm:$0xff] %vm2036, %v1950
  %2148 = vst.msk [vmem:[#allocation2 + $0x378] sm:$0xff] %vm2036, %v1951
  %2149 = vst.msk [vmem:[#allocation2 + $0x380] sm:$0xff] %vm2036, %v1952
  %2150 = vst.msk [vmem:[#allocation2 + $0x388] sm:$0xff] %vm2036, %v1953
  %2151 = vst.msk [vmem:[#allocation2 + $0x390] sm:$0xff] %vm2036, %v1954
  %2152 = vst.msk [vmem:[#allocation2 + $0x398] sm:$0xff] %vm2036, %v1955
  %2153 = vst.msk [vmem:[#allocation2 + $0x3a0] sm:$0xff] %vm2036, %v1956
  %2154 = vst.msk [vmem:[#allocation2 + $0x3a8] sm:$0xff] %vm2036, %v1957
  %2155 = vst.msk [vmem:[#allocation2 + $0x3b0] sm:$0xff] %vm2036, %v1958
  %2156 = vst.msk [vmem:[#allocation2 + $0x3b8] sm:$0xff] %vm2036, %v1959
  %2157 = vst.msk [vmem:[#allocation2 + $0x3c0] sm:$0xff] %vm2036, %v1960
  %2158 = vst.msk [vmem:[#allocation2 + $0x3c8] sm:$0xff] %vm2036, %v1961
  %2159 = vst.msk [vmem:[#allocation2 + $0x3d0] sm:$0xff] %vm2036, %v1962
  %2160 = vst.msk [vmem:[#allocation2 + $0x3d8] sm:$0xff] %vm2036, %v1963
  %2161 = vst.msk [vmem:[#allocation2 + $0x3e0] sm:$0xff] %vm2036, %v1964
  %2162 = vst.msk [vmem:[#allocation2 + $0x3e8] sm:$0xff] %vm2036, %v1965
  %2163 = vst.msk [vmem:[#allocation2 + $0x3f0] sm:$0xff] %vm2036, %v1966
  %2164 = vst.msk [vmem:[#allocation2 + $0x3f8] sm:$0xff] %vm2036, %v1967
  %2165 = vst.msk [vmem:[#allocation2 + $0x400] sm:$0xff] %vm2036, %v1968
  %2166 = vst.msk [vmem:[#allocation2 + $0x408] sm:$0xff] %vm2036, %v1969
  %2167 = vst.msk [vmem:[#allocation2 + $0x410] sm:$0xff] %vm2036, %v1970
  %2168 = vst.msk [vmem:[#allocation2 + $0x418] sm:$0xff] %vm2036, %v1971
  %2169 = vst.msk [vmem:[#allocation2 + $0x420] sm:$0xff] %vm2036, %v1972
  %2170 = vst.msk [vmem:[#allocation2 + $0x428] sm:$0xff] %vm2036, %v1973
  %2171 = vst.msk [vmem:[#allocation2 + $0x430] sm:$0xff] %vm2036, %v1974
  %2172 = vst.msk [vmem:[#allocation2 + $0x438] sm:$0xff] %vm2036, %v1975
  %2173 = vst.msk [vmem:[#allocation2 + $0x440] sm:$0xff] %vm2036, %v1976
  %2174 = vst.msk [vmem:[#allocation2 + $0x448] sm:$0xff] %vm2036, %v1977
  %2175 = vst.msk [vmem:[#allocation2 + $0x450] sm:$0xff] %vm2036, %v1978
  %2176 = vst.msk [vmem:[#allocation2 + $0x458] sm:$0xff] %vm2036, %v1979
  %2177 = vst.msk [vmem:[#allocation2 + $0x460] sm:$0xff] %vm2036, %v1980
  %2178 = vst.msk [vmem:[#allocation2 + $0x468] sm:$0xff] %vm2036, %v1981
  %2179 = vst.msk [vmem:[#allocation2 + $0x470] sm:$0xff] %vm2036, %v1982
  %2180 = vst.msk [vmem:[#allocation2 + $0x478] sm:$0xff] %vm2036, %v1983
  %2181 = vst.msk [vmem:[#allocation2 + $0x480] sm:$0xff] %vm2036, %v1984
  %2182 = vst.msk [vmem:[#allocation2 + $0x488] sm:$0xff] %vm2036, %v1985
  %2183 = vst.msk [vmem:[#allocation2 + $0x490] sm:$0xff] %vm2036, %v1986
  %2184 = vst.msk [vmem:[#allocation2 + $0x498] sm:$0xff] %vm2036, %v1987
  %2185 = vst.msk [vmem:[#allocation2 + $0x4a0] sm:$0xff] %vm2036, %v1988
  %2186 = vst.msk [vmem:[#allocation2 + $0x4a8] sm:$0xff] %vm2036, %v1989
  %2187 = vst.msk [vmem:[#allocation2 + $0x4b0] sm:$0xff] %vm2036, %v1990
  %2188 = vst.msk [vmem:[#allocation2 + $0x4b8] sm:$0xff] %vm2036, %v1991
  %2189 = vst.msk [vmem:[#allocation2 + $0x4c0] sm:$0xff] %vm2036, %v1992
  %2190 = vst.msk [vmem:[#allocation2 + $0x4c8] sm:$0xff] %vm2036, %v1993
  %2191 = vst.msk [vmem:[#allocation2 + $0x4d0] sm:$0xff] %vm2036, %v1994
  %2192 = vst.msk [vmem:[#allocation2 + $0x4d8] sm:$0xff] %vm2036, %v1995
  %2193 = vst.msk [vmem:[#allocation2 + $0x4e0] sm:$0xff] %vm2036, %v1996
  %2194 = vst.msk [vmem:[#allocation2 + $0x4e8] sm:$0xff] %vm2036, %v1997
  %2195 = vst.msk [vmem:[#allocation2 + $0x4f0] sm:$0xff] %vm2036, %v1998
  %2196 = vst.msk [vmem:[#allocation2 + $0x4f8] sm:$0xff] %vm2036, %v1999
  %2197 = vst.msk [vmem:[#allocation2 + $0x500] sm:$0xff] %vm2036, %v2000
  %2198 = vst.msk [vmem:[#allocation2 + $0x508] sm:$0xff] %vm2036, %v2001
  %2199 = vst.msk [vmem:[#allocation2 + $0x510] sm:$0xff] %vm2036, %v2002
  %2200 = vst.msk [vmem:[#allocation2 + $0x518] sm:$0xff] %vm2036, %v2003
  %2201 = vst.msk [vmem:[#allocation2 + $0x520] sm:$0xff] %vm2036, %v2004
  %2202 = vst.msk [vmem:[#allocation2 + $0x528] sm:$0xff] %vm2036, %v2005
  %2203 = vst.msk [vmem:[#allocation2 + $0x530] sm:$0xff] %vm2036, %v2006
  %2204 = vst.msk [vmem:[#allocation2 + $0x538] sm:$0xff] %vm2036, %v2007
  %2205 = vst.msk [vmem:[#allocation2 + $0x540] sm:$0xff] %vm2036, %v2008
  %2206 = vst.msk [vmem:[#allocation2 + $0x548] sm:$0xff] %vm2036, %v2009
  %2207 = vst.msk [vmem:[#allocation2 + $0x550] sm:$0xff] %vm2036, %v2010
  %2208 = vst.msk [vmem:[#allocation2 + $0x558] sm:$0xff] %vm2036, %v2011
  %2209 = vst.msk [vmem:[#allocation2 + $0x560] sm:$0xff] %vm2036, %v2012
  %2210 = vst.msk [vmem:[#allocation2 + $0x568] sm:$0xff] %vm2036, %v2013
  %2211 = vst.msk [vmem:[#allocation2 + $0x570] sm:$0xff] %vm2036, %v2014
  %2212 = vst.msk [vmem:[#allocation2 + $0x578] sm:$0xff] %vm2036, %v2015
  %2213 = vst.msk [vmem:[#allocation2 + $0x580] sm:$0xff] %vm2036, %v2016
  %2214 = vst.msk [vmem:[#allocation2 + $0x588] sm:$0xff] %vm2036, %v2017
  %2215 = vst.msk [vmem:[#allocation2 + $0x590] sm:$0xff] %vm2036, %v2018
  %2216 = vst.msk [vmem:[#allocation2 + $0x598] sm:$0xff] %vm2036, %v2019
  %2217 = vst.msk [vmem:[#allocation2 + $0x5a0] sm:$0xff] %vm2036, %v2020
  %2218 = vst.msk [vmem:[#allocation2 + $0x5a8] sm:$0xff] %vm2036, %v2021
  %2219 = vst.msk [vmem:[#allocation2 + $0x5b0] sm:$0xff] %vm2036, %v2022
  %2220 = vst.msk [vmem:[#allocation2 + $0x5b8] sm:$0xff] %vm2036, %v2023
  %2221 = vst.msk [vmem:[#allocation2 + $0x5c0] sm:$0xff] %vm2036, %v2024
  %2222 = vst.msk [vmem:[#allocation2 + $0x5c8] sm:$0xff] %vm2036, %v2025
  %2223 = vst.msk [vmem:[#allocation2 + $0x5d0] sm:$0xff] %vm2036, %v2026
  %2224 = vst.msk [vmem:[#allocation2 + $0x5d8] sm:$0xff] %vm2036, %v2027
  %2225 = vst.msk [vmem:[#allocation2 + $0x5e0] sm:$0xff] %vm2036, %v2028
  %2226 = vst.msk [vmem:[#allocation2 + $0x5e8] sm:$0xff] %vm2036, %v2029
  %2227 = vst.msk [vmem:[#allocation2 + $0x5f0] sm:$0xff] %vm2036, %v2030
  %2228 = vst.msk [vmem:[#allocation2 + $0x5f8] sm:$0xff] %vm2036, %v2031
  %2229 = vst.msk [vmem:[#allocation2 + $0x600] sm:$0xff] %vm2036, %v2032
  %2230 = vst.msk [vmem:[#allocation2 + $0x608] sm:$0xff] %vm2036, %v2033
  %2231 = vst.msk [vmem:[#allocation2 + $0x610] sm:$0xff] %vm2036, %v2034
  %2232 = vst.msk [vmem:[#allocation2 + $0x618] sm:$0xff] %vm2036, %v2035
  %vm2233 = vcmask 257024
  %2234 = vst.msk [vmem:[#allocation3] sm:$0xf] %vm2233, 0
  %2235 = vst.msk [vmem:[#allocation3 + $0x4] sm:$0xf] %vm2233, 0
  %2236 = vst.msk [vmem:[#allocation3 + $0x8] sm:$0xf] %vm2233, 0
  %2237 = vst.msk [vmem:[#allocation3 + $0xc] sm:$0xf] %vm2233, 0
  %2238 = vst.msk [vmem:[#allocation3 + $0x10] sm:$0xf] %vm2233, 0
  %2239 = vst.msk [vmem:[#allocation3 + $0x14] sm:$0xf] %vm2233, 0
  %2240 = vst.msk [vmem:[#allocation3 + $0x18] sm:$0xf] %vm2233, 0
  %2241 = vst.msk [vmem:[#allocation3 + $0x1c] sm:$0xf] %vm2233, 0
  %2242 = vst.msk [vmem:[#allocation3 + $0x20] sm:$0xf] %vm2233, 0
  %2243 = vst.msk [vmem:[#allocation3 + $0x24] sm:$0xf] %vm2233, 0
  %2244 = vst.msk [vmem:[#allocation3 + $0x28] sm:$0xf] %vm2233, 0
  %2245 = vst.msk [vmem:[#allocation3 + $0x2c] sm:$0xf] %vm2233, 0
  %2246 = vst.msk [vmem:[#allocation3 + $0x30] sm:$0xf] %vm2233, 0
  %2247 = vst.msk [vmem:[#allocation3 + $0x34] sm:$0xf] %vm2233, 0
  %2248 = vst.msk [vmem:[#allocation3 + $0x38] sm:$0xf] %vm2233, 0
  %2249 = vst.msk [vmem:[#allocation3 + $0x3c] sm:$0xf] %vm2233, 0
  %2250 = vst.msk [vmem:[#allocation3 + $0x40] sm:$0xf] %vm2233, 0
  %2251 = vst.msk [vmem:[#allocation3 + $0x44] sm:$0xf] %vm2233, 0
  %2252 = vst.msk [vmem:[#allocation3 + $0x48] sm:$0xf] %vm2233, 0
  %2253 = vst.msk [vmem:[#allocation3 + $0x4c] sm:$0xf] %vm2233, 0
  %2254 = vst.msk [vmem:[#allocation3 + $0x50] sm:$0xf] %vm2233, 0
  %2255 = vst.msk [vmem:[#allocation3 + $0x54] sm:$0xf] %vm2233, 0
  %2256 = vst.msk [vmem:[#allocation3 + $0x58] sm:$0xf] %vm2233, 0
  %2257 = vst.msk [vmem:[#allocation3 + $0x5c] sm:$0xf] %vm2233, 0
  %2258 = vst.msk [vmem:[#allocation3 + $0x60] sm:$0xf] %vm2233, 0
  %2259 = vst.msk [vmem:[#allocation3 + $0x64] sm:$0xf] %vm2233, 0
  %2260 = vst.msk [vmem:[#allocation3 + $0x68] sm:$0xf] %vm2233, 0
  %2261 = vst.msk [vmem:[#allocation3 + $0x6c] sm:$0xf] %vm2233, 0
  %2262 = vst.msk [vmem:[#allocation3 + $0x70] sm:$0xf] %vm2233, 0
  %2263 = vst.msk [vmem:[#allocation3 + $0x74] sm:$0xf] %vm2233, 0
  %2264 = vst.msk [vmem:[#allocation3 + $0x78] sm:$0xf] %vm2233, 0
  %2265 = vst.msk [vmem:[#allocation3 + $0x7c] sm:$0xf] %vm2233, 0
  %2266 = vst.msk [vmem:[#allocation3 + $0x80] sm:$0xf] %vm2233, 0
  %2267 = vst.msk [vmem:[#allocation3 + $0x84] sm:$0xf] %vm2233, 0
  %2268 = vst.msk [vmem:[#allocation3 + $0x88] sm:$0xf] %vm2233, 0
  %2269 = vst.msk [vmem:[#allocation3 + $0x8c] sm:$0xf] %vm2233, 0
  %2270 = vst.msk [vmem:[#allocation3 + $0x90] sm:$0xf] %vm2233, 0
  %2271 = vst.msk [vmem:[#allocation3 + $0x94] sm:$0xf] %vm2233, 0
  %2272 = vst.msk [vmem:[#allocation3 + $0x98] sm:$0xf] %vm2233, 0
  %2273 = vst.msk [vmem:[#allocation3 + $0x9c] sm:$0xf] %vm2233, 0
  %2274 = vst.msk [vmem:[#allocation3 + $0xa0] sm:$0xf] %vm2233, 0
  %2275 = vst.msk [vmem:[#allocation3 + $0xa4] sm:$0xf] %vm2233, 0
  %2276 = vst.msk [vmem:[#allocation3 + $0xa8] sm:$0xf] %vm2233, 0
  %2277 = vst.msk [vmem:[#allocation3 + $0xac] sm:$0xf] %vm2233, 0
  %2278 = vst.msk [vmem:[#allocation3 + $0xb0] sm:$0xf] %vm2233, 0
  %2279 = vst.msk [vmem:[#allocation3 + $0xb4] sm:$0xf] %vm2233, 0
  %2280 = vst.msk [vmem:[#allocation3 + $0xb8] sm:$0xf] %vm2233, 0
  %2281 = vst.msk [vmem:[#allocation3 + $0xbc] sm:$0xf] %vm2233, 0
  %2282 = vst.msk [vmem:[#allocation3 + $0xc0] sm:$0xf] %vm2233, 0
  %2283 = vst.msk [vmem:[#allocation3 + $0xc4] sm:$0xf] %vm2233, 0
  %2284 = vst.msk [vmem:[#allocation3 + $0xc8] sm:$0xf] %vm2233, 0
  %2285 = vst.msk [vmem:[#allocation3 + $0xcc] sm:$0xf] %vm2233, 0
  %2286 = vst.msk [vmem:[#allocation3 + $0xd0] sm:$0xf] %vm2233, 0
  %2287 = vst.msk [vmem:[#allocation3 + $0xd4] sm:$0xf] %vm2233, 0
  %2288 = vst.msk [vmem:[#allocation3 + $0xd8] sm:$0xf] %vm2233, 0
  %2289 = vst.msk [vmem:[#allocation3 + $0xdc] sm:$0xf] %vm2233, 0
  %2290 = vst.msk [vmem:[#allocation3 + $0xe0] sm:$0xf] %vm2233, 0
  %2291 = vst.msk [vmem:[#allocation3 + $0xe4] sm:$0xf] %vm2233, 0
  %2292 = vst.msk [vmem:[#allocation3 + $0xe8] sm:$0xf] %vm2233, 0
  %2293 = vst.msk [vmem:[#allocation3 + $0xec] sm:$0xf] %vm2233, 0
  %2294 = vst.msk [vmem:[#allocation3 + $0xf0] sm:$0xf] %vm2233, 0
  %2295 = vst.msk [vmem:[#allocation3 + $0xf4] sm:$0xf] %vm2233, 0
  %2296 = vst.msk [vmem:[#allocation3 + $0xf8] sm:$0xf] %vm2233, 0
  %2297 = vst.msk [vmem:[#allocation3 + $0xfc] sm:$0xf] %vm2233, 0
  %2298 = vst.msk [vmem:[#allocation3 + $0x100] sm:$0xf] %vm2233, 0
  %2299 = vst.msk [vmem:[#allocation3 + $0x104] sm:$0xf] %vm2233, 0
  %2300 = vst.msk [vmem:[#allocation3 + $0x108] sm:$0xf] %vm2233, 0
  %2301 = vst.msk [vmem:[#allocation3 + $0x10c] sm:$0xf] %vm2233, 0
  %2302 = vst.msk [vmem:[#allocation3 + $0x110] sm:$0xf] %vm2233, 0
  %2303 = vst.msk [vmem:[#allocation3 + $0x114] sm:$0xf] %vm2233, 0
  %2304 = vst.msk [vmem:[#allocation3 + $0x118] sm:$0xf] %vm2233, 0
  %2305 = vst.msk [vmem:[#allocation3 + $0x11c] sm:$0xf] %vm2233, 0
  %v2306 = vld [vmem:[#allocation2] ss:$2 sm:$0xff]
  %s2307 = scalar_lea.vmem [#allocation2], 16
  %v2308 = vld [vmem:[%s2307] ss:$2 sm:$0xff]
  %s2309 = scalar_lea.vmem [#allocation2], 32
  %v2310 = vld [vmem:[%s2309] ss:$2 sm:$0xff]
  %s2311 = scalar_lea.vmem [#allocation2], 48
  %v2312 = vld [vmem:[%s2311] ss:$2 sm:$0xff]
  %s2313 = scalar_lea.vmem [#allocation2], 64
  %v2314 = vld [vmem:[%s2313] ss:$2 sm:$0xff]
  %s2315 = scalar_lea.vmem [#allocation2], 80
  %v2316 = vld [vmem:[%s2315] ss:$2 sm:$0xff]
  %s2317 = scalar_lea.vmem [#allocation2], 96
  %v2318 = vld [vmem:[%s2317] ss:$2 sm:$0xff]
  %s2319 = scalar_lea.vmem [#allocation2], 112
  %v2320 = vld [vmem:[%s2319] ss:$2 sm:$0xff]
  %s2321 = scalar_lea.vmem [#allocation2], 128
  %v2322 = vld [vmem:[%s2321] ss:$2 sm:$0xff]
  %s2323 = scalar_lea.vmem [#allocation2], 144
  %v2324 = vld [vmem:[%s2323] ss:$2 sm:$0xff]
  %s2325 = scalar_lea.vmem [#allocation2], 160
  %v2326 = vld [vmem:[%s2325] ss:$2 sm:$0xff]
  %s2327 = scalar_lea.vmem [#allocation2], 176
  %v2328 = vld [vmem:[%s2327] ss:$2 sm:$0xff]
  %s2329 = scalar_lea.vmem [#allocation2], 192
  %v2330 = vld [vmem:[%s2329] ss:$2 sm:$0xff]
  %s2331 = scalar_lea.vmem [#allocation2], 208
  %v2332 = vld [vmem:[%s2331] ss:$2 sm:$0xff]
  %s2333 = scalar_lea.vmem [#allocation2], 224
  %v2334 = vld [vmem:[%s2333] ss:$2 sm:$0xff]
  %s2335 = scalar_lea.vmem [#allocation2], 240
  %v2336 = vld [vmem:[%s2335] ss:$2 sm:$0xff]
  %s2337 = scalar_lea.vmem [#allocation2], 256
  %v2338 = vld [vmem:[%s2337] ss:$2 sm:$0xff]
  %s2339 = scalar_lea.vmem [#allocation2], 272
  %v2340 = vld [vmem:[%s2339] ss:$2 sm:$0xff]
  %s2341 = scalar_lea.vmem [#allocation2], 288
  %v2342 = vld [vmem:[%s2341] ss:$2 sm:$0xff]
  %s2343 = scalar_lea.vmem [#allocation2], 304
  %v2344 = vld [vmem:[%s2343] ss:$2 sm:$0xff]
  %s2345 = scalar_lea.vmem [#allocation2], 320
  %v2346 = vld [vmem:[%s2345] ss:$2 sm:$0xff]
  %s2347 = scalar_lea.vmem [#allocation2], 336
  %v2348 = vld [vmem:[%s2347] ss:$2 sm:$0xff]
  %s2349 = scalar_lea.vmem [#allocation2], 352
  %v2350 = vld [vmem:[%s2349] ss:$2 sm:$0xff]
  %s2351 = scalar_lea.vmem [#allocation2], 368
  %v2352 = vld [vmem:[%s2351] ss:$2 sm:$0xff]
  %s2353 = scalar_lea.vmem [#allocation2], 384
  %v2354 = vld [vmem:[%s2353] ss:$2 sm:$0xff]
  %s2355 = scalar_lea.vmem [#allocation2], 400
  %v2356 = vld [vmem:[%s2355] ss:$2 sm:$0xff]
  %s2357 = scalar_lea.vmem [#allocation2], 416
  %v2358 = vld [vmem:[%s2357] ss:$2 sm:$0xff]
  %s2359 = scalar_lea.vmem [#allocation2], 432
  %v2360 = vld [vmem:[%s2359] ss:$2 sm:$0xff]
  %s2361 = scalar_lea.vmem [#allocation2], 448
  %v2362 = vld [vmem:[%s2361] ss:$2 sm:$0xff]
  %s2363 = scalar_lea.vmem [#allocation2], 464
  %v2364 = vld [vmem:[%s2363] ss:$2 sm:$0xff]
  %s2365 = scalar_lea.vmem [#allocation2], 480
  %v2366 = vld [vmem:[%s2365] ss:$2 sm:$0xff]
  %s2367 = scalar_lea.vmem [#allocation2], 496
  %v2368 = vld [vmem:[%s2367] ss:$2 sm:$0xff]
  %s2369 = scalar_lea.vmem [#allocation2], 512
  %v2370 = vld [vmem:[%s2369] ss:$2 sm:$0xff]
  %s2371 = scalar_lea.vmem [#allocation2], 528
  %v2372 = vld [vmem:[%s2371] ss:$2 sm:$0xff]
  %s2373 = scalar_lea.vmem [#allocation2], 544
  %v2374 = vld [vmem:[%s2373] ss:$2 sm:$0xff]
  %s2375 = scalar_lea.vmem [#allocation2], 560
  %v2376 = vld [vmem:[%s2375] ss:$2 sm:$0xff]
  %s2377 = scalar_lea.vmem [#allocation2], 576
  %v2378 = vld [vmem:[%s2377] ss:$2 sm:$0xff]
  %s2379 = scalar_lea.vmem [#allocation2], 592
  %v2380 = vld [vmem:[%s2379] ss:$2 sm:$0xff]
  %s2381 = scalar_lea.vmem [#allocation2], 608
  %v2382 = vld [vmem:[%s2381] ss:$2 sm:$0xff]
  %s2383 = scalar_lea.vmem [#allocation2], 624
  %v2384 = vld [vmem:[%s2383] ss:$2 sm:$0xff]
  %s2385 = scalar_lea.vmem [#allocation2], 640
  %v2386 = vld [vmem:[%s2385] ss:$2 sm:$0xff]
  %s2387 = scalar_lea.vmem [#allocation2], 656
  %v2388 = vld [vmem:[%s2387] ss:$2 sm:$0xff]
  %s2389 = scalar_lea.vmem [#allocation2], 672
  %v2390 = vld [vmem:[%s2389] ss:$2 sm:$0xff]
  %s2391 = scalar_lea.vmem [#allocation2], 688
  %v2392 = vld [vmem:[%s2391] ss:$2 sm:$0xff]
  %s2393 = scalar_lea.vmem [#allocation2], 704
  %v2394 = vld [vmem:[%s2393] ss:$2 sm:$0xff]
  %s2395 = scalar_lea.vmem [#allocation2], 720
  %v2396 = vld [vmem:[%s2395] ss:$2 sm:$0xff]
  %s2397 = scalar_lea.vmem [#allocation2], 736
  %v2398 = vld [vmem:[%s2397] ss:$2 sm:$0xff]
  %s2399 = scalar_lea.vmem [#allocation2], 752
  %v2400 = vld [vmem:[%s2399] ss:$2 sm:$0xff]
  %s2401 = scalar_lea.vmem [#allocation2], 768
  %v2402 = vld [vmem:[%s2401] ss:$2 sm:$0xff]
  %s2403 = scalar_lea.vmem [#allocation2], 1
  %v2404 = vld [vmem:[%s2403] ss:$2 sm:$0xff]
  %s2405 = scalar_lea.vmem [#allocation2], 17
  %v2406 = vld [vmem:[%s2405] ss:$2 sm:$0xff]
  %s2407 = scalar_lea.vmem [#allocation2], 33
  %v2408 = vld [vmem:[%s2407] ss:$2 sm:$0xff]
  %s2409 = scalar_lea.vmem [#allocation2], 49
  %v2410 = vld [vmem:[%s2409] ss:$2 sm:$0xff]
  %s2411 = scalar_lea.vmem [#allocation2], 65
  %v2412 = vld [vmem:[%s2411] ss:$2 sm:$0xff]
  %s2413 = scalar_lea.vmem [#allocation2], 81
  %v2414 = vld [vmem:[%s2413] ss:$2 sm:$0xff]
  %s2415 = scalar_lea.vmem [#allocation2], 97
  %v2416 = vld [vmem:[%s2415] ss:$2 sm:$0xff]
  %s2417 = scalar_lea.vmem [#allocation2], 113
  %v2418 = vld [vmem:[%s2417] ss:$2 sm:$0xff]
  %s2419 = scalar_lea.vmem [#allocation2], 129
  %v2420 = vld [vmem:[%s2419] ss:$2 sm:$0xff]
  %s2421 = scalar_lea.vmem [#allocation2], 145
  %v2422 = vld [vmem:[%s2421] ss:$2 sm:$0xff]
  %s2423 = scalar_lea.vmem [#allocation2], 161
  %v2424 = vld [vmem:[%s2423] ss:$2 sm:$0xff]
  %s2425 = scalar_lea.vmem [#allocation2], 177
  %v2426 = vld [vmem:[%s2425] ss:$2 sm:$0xff]
  %s2427 = scalar_lea.vmem [#allocation2], 193
  %v2428 = vld [vmem:[%s2427] ss:$2 sm:$0xff]
  %s2429 = scalar_lea.vmem [#allocation2], 209
  %v2430 = vld [vmem:[%s2429] ss:$2 sm:$0xff]
  %s2431 = scalar_lea.vmem [#allocation2], 225
  %v2432 = vld [vmem:[%s2431] ss:$2 sm:$0xff]
  %s2433 = scalar_lea.vmem [#allocation2], 241
  %v2434 = vld [vmem:[%s2433] ss:$2 sm:$0xff]
  %s2435 = scalar_lea.vmem [#allocation2], 257
  %v2436 = vld [vmem:[%s2435] ss:$2 sm:$0xff]
  %s2437 = scalar_lea.vmem [#allocation2], 273
  %v2438 = vld [vmem:[%s2437] ss:$2 sm:$0xff]
  %s2439 = scalar_lea.vmem [#allocation2], 289
  %v2440 = vld [vmem:[%s2439] ss:$2 sm:$0xff]
  %s2441 = scalar_lea.vmem [#allocation2], 305
  %v2442 = vld [vmem:[%s2441] ss:$2 sm:$0xff]
  %s2443 = scalar_lea.vmem [#allocation2], 321
  %v2444 = vld [vmem:[%s2443] ss:$2 sm:$0xff]
  %s2445 = scalar_lea.vmem [#allocation2], 337
  %v2446 = vld [vmem:[%s2445] ss:$2 sm:$0xff]
  %s2447 = scalar_lea.vmem [#allocation2], 353
  %v2448 = vld [vmem:[%s2447] ss:$2 sm:$0xff]
  %s2449 = scalar_lea.vmem [#allocation2], 369
  %v2450 = vld [vmem:[%s2449] ss:$2 sm:$0xff]
  %s2451 = scalar_lea.vmem [#allocation2], 385
  %v2452 = vld [vmem:[%s2451] ss:$2 sm:$0xff]
  %s2453 = scalar_lea.vmem [#allocation2], 401
  %v2454 = vld [vmem:[%s2453] ss:$2 sm:$0xff]
  %s2455 = scalar_lea.vmem [#allocation2], 417
  %v2456 = vld [vmem:[%s2455] ss:$2 sm:$0xff]
  %s2457 = scalar_lea.vmem [#allocation2], 433
  %v2458 = vld [vmem:[%s2457] ss:$2 sm:$0xff]
  %s2459 = scalar_lea.vmem [#allocation2], 449
  %v2460 = vld [vmem:[%s2459] ss:$2 sm:$0xff]
  %s2461 = scalar_lea.vmem [#allocation2], 465
  %v2462 = vld [vmem:[%s2461] ss:$2 sm:$0xff]
  %s2463 = scalar_lea.vmem [#allocation2], 481
  %v2464 = vld [vmem:[%s2463] ss:$2 sm:$0xff]
  %s2465 = scalar_lea.vmem [#allocation2], 497
  %v2466 = vld [vmem:[%s2465] ss:$2 sm:$0xff]
  %s2467 = scalar_lea.vmem [#allocation2], 513
  %v2468 = vld [vmem:[%s2467] ss:$2 sm:$0xff]
  %s2469 = scalar_lea.vmem [#allocation2], 529
  %v2470 = vld [vmem:[%s2469] ss:$2 sm:$0xff]
  %s2471 = scalar_lea.vmem [#allocation2], 545
  %v2472 = vld [vmem:[%s2471] ss:$2 sm:$0xff]
  %s2473 = scalar_lea.vmem [#allocation2], 561
  %v2474 = vld [vmem:[%s2473] ss:$2 sm:$0xff]
  %s2475 = scalar_lea.vmem [#allocation2], 577
  %v2476 = vld [vmem:[%s2475] ss:$2 sm:$0xff]
  %s2477 = scalar_lea.vmem [#allocation2], 593
  %v2478 = vld [vmem:[%s2477] ss:$2 sm:$0xff]
  %s2479 = scalar_lea.vmem [#allocation2], 609
  %v2480 = vld [vmem:[%s2479] ss:$2 sm:$0xff]
  %s2481 = scalar_lea.vmem [#allocation2], 625
  %v2482 = vld [vmem:[%s2481] ss:$2 sm:$0xff]
  %s2483 = scalar_lea.vmem [#allocation2], 641
  %v2484 = vld [vmem:[%s2483] ss:$2 sm:$0xff]
  %s2485 = scalar_lea.vmem [#allocation2], 657
  %v2486 = vld [vmem:[%s2485] ss:$2 sm:$0xff]
  %s2487 = scalar_lea.vmem [#allocation2], 673
  %v2488 = vld [vmem:[%s2487] ss:$2 sm:$0xff]
  %s2489 = scalar_lea.vmem [#allocation2], 689
  %v2490 = vld [vmem:[%s2489] ss:$2 sm:$0xff]
  %s2491 = scalar_lea.vmem [#allocation2], 705
  %v2492 = vld [vmem:[%s2491] ss:$2 sm:$0xff]
  %s2493 = scalar_lea.vmem [#allocation2], 721
  %v2494 = vld [vmem:[%s2493] ss:$2 sm:$0xff]
  %s2495 = scalar_lea.vmem [#allocation2], 737
  %v2496 = vld [vmem:[%s2495] ss:$2 sm:$0xff]
  %s2497 = scalar_lea.vmem [#allocation2], 753
  %v2498 = vld [vmem:[%s2497] ss:$2 sm:$0xff]
  %s2499 = scalar_lea.vmem [#allocation2], 769
  %v2500 = vld [vmem:[%s2499] ss:$2 sm:$0xff]
  %v2501 = vmax.f32 %v2306, %v2404
  %v2502 = vmax.f32 %v2308, %v2406
  %v2503 = vmax.f32 %v2310, %v2408
  %v2504 = vmax.f32 %v2312, %v2410
  %v2505 = vmax.f32 %v2314, %v2412
  %v2506 = vmax.f32 %v2316, %v2414
  %v2507 = vmax.f32 %v2318, %v2416
  %v2508 = vmax.f32 %v2320, %v2418
  %v2509 = vmax.f32 %v2322, %v2420
  %v2510 = vmax.f32 %v2324, %v2422
  %v2511 = vmax.f32 %v2326, %v2424
  %v2512 = vmax.f32 %v2328, %v2426
  %v2513 = vmax.f32 %v2330, %v2428
  %v2514 = vmax.f32 %v2332, %v2430
  %v2515 = vmax.f32 %v2334, %v2432
  %v2516 = vmax.f32 %v2336, %v2434
  %v2517 = vmax.f32 %v2338, %v2436
  %v2518 = vmax.f32 %v2340, %v2438
  %v2519 = vmax.f32 %v2342, %v2440
  %v2520 = vmax.f32 %v2344, %v2442
  %v2521 = vmax.f32 %v2346, %v2444
  %v2522 = vmax.f32 %v2348, %v2446
  %v2523 = vmax.f32 %v2350, %v2448
  %v2524 = vmax.f32 %v2352, %v2450
  %v2525 = vmax.f32 %v2354, %v2452
  %v2526 = vmax.f32 %v2356, %v2454
  %v2527 = vmax.f32 %v2358, %v2456
  %v2528 = vmax.f32 %v2360, %v2458
  %v2529 = vmax.f32 %v2362, %v2460
  %v2530 = vmax.f32 %v2364, %v2462
  %v2531 = vmax.f32 %v2366, %v2464
  %v2532 = vmax.f32 %v2368, %v2466
  %v2533 = vmax.f32 %v2370, %v2468
  %v2534 = vmax.f32 %v2372, %v2470
  %v2535 = vmax.f32 %v2374, %v2472
  %v2536 = vmax.f32 %v2376, %v2474
  %v2537 = vmax.f32 %v2378, %v2476
  %v2538 = vmax.f32 %v2380, %v2478
  %v2539 = vmax.f32 %v2382, %v2480
  %v2540 = vmax.f32 %v2384, %v2482
  %v2541 = vmax.f32 %v2386, %v2484
  %v2542 = vmax.f32 %v2388, %v2486
  %v2543 = vmax.f32 %v2390, %v2488
  %v2544 = vmax.f32 %v2392, %v2490
  %v2545 = vmax.f32 %v2394, %v2492
  %v2546 = vmax.f32 %v2396, %v2494
  %v2547 = vmax.f32 %v2398, %v2496
  %v2548 = vmax.f32 %v2400, %v2498
  %v2549 = vmax.f32 %v2402, %v2500
  %vm2598 = vcmask 1041408
  %v2599 = vrot.slane %v2502, 6
  %v2600 = vrot.slane %v2503, 6
  %v2601 = vsel %vm2598, %v2599, %v2600
  %v2602 = vrot.slane %v2504, 6
  %v2603 = vsel %vm2598, %v2600, %v2602
  %v2604 = vrot.slane %v2505, 6
  %v2605 = vrot.slane %v2506, 6
  %v2606 = vsel %vm2598, %v2604, %v2605
  %v2607 = vrot.slane %v2507, 6
  %v2608 = vsel %vm2598, %v2605, %v2607
  %v2609 = vrot.slane %v2508, 6
  %v2610 = vsel %vm2598, %v2607, %v2609
  %v2611 = vrot.slane %v2509, 6
  %v2612 = vrot.slane %v2510, 6
  %v2613 = vsel %vm2598, %v2611, %v2612
  %v2614 = vrot.slane %v2511, 6
  %v2615 = vsel %vm2598, %v2612, %v2614
  %v2616 = vrot.slane %v2512, 6
  %v2617 = vrot.slane %v2513, 6
  %v2618 = vsel %vm2598, %v2616, %v2617
  %v2619 = vrot.slane %v2514, 6
  %v2620 = vsel %vm2598, %v2617, %v2619
  %v2621 = vrot.slane %v2515, 6
  %v2622 = vsel %vm2598, %v2619, %v2621
  %v2623 = vrot.slane %v2516, 6
  %v2624 = vrot.slane %v2517, 6
  %v2625 = vsel %vm2598, %v2623, %v2624
  %v2626 = vrot.slane %v2518, 6
  %v2627 = vsel %vm2598, %v2624, %v2626
  %v2628 = vrot.slane %v2519, 6
  %v2629 = vrot.slane %v2520, 6
  %v2630 = vsel %vm2598, %v2628, %v2629
  %v2631 = vrot.slane %v2521, 6
  %v2632 = vsel %vm2598, %v2629, %v2631
  %v2633 = vrot.slane %v2522, 6
  %v2634 = vsel %vm2598, %v2631, %v2633
  %v2635 = vrot.slane %v2523, 6
  %v2636 = vrot.slane %v2524, 6
  %v2637 = vsel %vm2598, %v2635, %v2636
  %v2638 = vrot.slane %v2525, 6
  %v2639 = vsel %vm2598, %v2636, %v2638
  %v2640 = vrot.slane %v2526, 6
  %v2641 = vrot.slane %v2527, 6
  %v2642 = vsel %vm2598, %v2640, %v2641
  %v2643 = vrot.slane %v2528, 6
  %v2644 = vsel %vm2598, %v2641, %v2643
  %v2645 = vrot.slane %v2529, 6
  %v2646 = vsel %vm2598, %v2643, %v2645
  %v2647 = vrot.slane %v2530, 6
  %v2648 = vrot.slane %v2531, 6
  %v2649 = vsel %vm2598, %v2647, %v2648
  %v2650 = vrot.slane %v2532, 6
  %v2651 = vsel %vm2598, %v2648, %v2650
  %v2652 = vrot.slane %v2533, 6
  %v2653 = vrot.slane %v2534, 6
  %v2654 = vsel %vm2598, %v2652, %v2653
  %v2655 = vrot.slane %v2535, 6
  %v2656 = vsel %vm2598, %v2653, %v2655
  %v2657 = vrot.slane %v2536, 6
  %v2658 = vsel %vm2598, %v2655, %v2657
  %v2659 = vrot.slane %v2537, 6
  %v2660 = vrot.slane %v2538, 6
  %v2661 = vsel %vm2598, %v2659, %v2660
  %v2662 = vrot.slane %v2539, 6
  %v2663 = vsel %vm2598, %v2660, %v2662
  %v2664 = vrot.slane %v2540, 6
  %v2665 = vrot.slane %v2541, 6
  %v2666 = vsel %vm2598, %v2664, %v2665
  %v2667 = vrot.slane %v2542, 6
  %v2668 = vsel %vm2598, %v2665, %v2667
  %v2669 = vrot.slane %v2543, 6
  %v2670 = vsel %vm2598, %v2667, %v2669
  %v2671 = vrot.slane %v2544, 6
  %v2672 = vrot.slane %v2545, 6
  %v2673 = vsel %vm2598, %v2671, %v2672
  %v2674 = vrot.slane %v2546, 6
  %v2675 = vsel %vm2598, %v2672, %v2674
  %v2676 = vrot.slane %v2547, 6
  %v2677 = vrot.slane %v2548, 6
  %v2678 = vsel %vm2598, %v2676, %v2677
  %v2679 = vrot.slane %v2549, 6
  %v2680 = vsel %vm2598, %v2677, %v2679
  %v2716 = vmax.f32 %v2501, %v2601
  %v2717 = vmax.f32 %v2502, %v2603
  %v2718 = vmax.f32 %v2504, %v2606
  %v2719 = vmax.f32 %v2505, %v2608
  %v2720 = vmax.f32 %v2506, %v2610
  %v2721 = vmax.f32 %v2508, %v2613
  %v2722 = vmax.f32 %v2509, %v2615
  %v2723 = vmax.f32 %v2511, %v2618
  %v2724 = vmax.f32 %v2512, %v2620
  %v2725 = vmax.f32 %v2513, %v2622
  %v2726 = vmax.f32 %v2515, %v2625
  %v2727 = vmax.f32 %v2516, %v2627
  %v2728 = vmax.f32 %v2518, %v2630
  %v2729 = vmax.f32 %v2519, %v2632
  %v2730 = vmax.f32 %v2520, %v2634
  %v2731 = vmax.f32 %v2522, %v2637
  %v2732 = vmax.f32 %v2523, %v2639
  %v2733 = vmax.f32 %v2525, %v2642
  %v2734 = vmax.f32 %v2526, %v2644
  %v2735 = vmax.f32 %v2527, %v2646
  %v2736 = vmax.f32 %v2529, %v2649
  %v2737 = vmax.f32 %v2530, %v2651
  %v2738 = vmax.f32 %v2532, %v2654
  %v2739 = vmax.f32 %v2533, %v2656
  %v2740 = vmax.f32 %v2534, %v2658
  %v2741 = vmax.f32 %v2536, %v2661
  %v2742 = vmax.f32 %v2537, %v2663
  %v2743 = vmax.f32 %v2539, %v2666
  %v2744 = vmax.f32 %v2540, %v2668
  %v2745 = vmax.f32 %v2541, %v2670
  %v2746 = vmax.f32 %v2543, %v2673
  %v2747 = vmax.f32 %v2544, %v2675
  %v2748 = vmax.f32 %v2546, %v2678
  %v2749 = vmax.f32 %v2547, %v2680
  %v2750 = vmax.f32 %v2548, %v2679
  %v2751 = vpack.c.bf16 %v2717, %v2716
  %v2753 = vunpack.c.l.b16 %v2751
  %v2754 = vunpack.c.h.b16 %v2751
  %v2755 = vpack.c.b16 %v2753, %v2753
  %v2756 = vpack.c.b16 %v2754, %v2754
  %2759 = vst.msk [vmem:[#allocation3 + $0x10] sm:$0xf] %vm2233, %v2755
  %vm2760 = vcmask 256000
  %2761 = vst.msk [vmem:[#allocation3 + $0x14] sm:$0x7] %vm2760, %v2756
  %v2762 = vpack.c.bf16 %v2719, %v2718
  %v2763 = vpack.c.bf16 %v2720, %v2720
  %v2766 = vunpack.c.l.b16 %v2762
  %v2767 = vunpack.c.h.b16 %v2762
  %v2768 = vunpack.c.l.b16 %v2763
  %v2769 = vpack.c.b16 %v2766, %v2766
  %v2770 = vpack.c.b16 %v2767, %v2767
  %v2771 = vpack.c.b16 %v2768, %v2768
  %vm2772 = vcmask 1041408
  %vm2773 = vcmask 1045508
  %vm2774 = vmor %vm2772, %vm2773
  %v2775 = vrot.slane %v2769, 6
  %v2776 = vrot.slane %v2775, 4
  %v2777 = vrot.slane %v2770, 6
  %v2778 = vsel %vm2774, %v2776, %v2777
  %v2779 = vrot.slane %v2777, 4
  %v2780 = vrot.slane %v2771, 6
  %v2781 = vsel %vm2774, %v2779, %v2780
  %2784 = vst.msk [vmem:[#allocation3 + $0x18] sm:$0xf] %vm2233, %v2778
  %2785 = vst.msk [vmem:[#allocation3 + $0x1c] sm:$0x7] %vm2760, %v2781
  %v2786 = vpack.c.bf16 %v2722, %v2721
  %v2788 = vunpack.c.l.b16 %v2786
  %v2789 = vunpack.c.h.b16 %v2786
  %v2790 = vpack.c.b16 %v2788, %v2788
  %v2791 = vpack.c.b16 %v2789, %v2789
  %2794 = vst.msk [vmem:[#allocation3 + $0x20] sm:$0xf] %vm2233, %v2790
  %2795 = vst.msk [vmem:[#allocation3 + $0x24] sm:$0x7] %vm2760, %v2791
  %v2796 = vpack.c.bf16 %v2724, %v2723
  %v2797 = vpack.c.bf16 %v2725, %v2725
  %v2800 = vunpack.c.l.b16 %v2796
  %v2801 = vunpack.c.h.b16 %v2796
  %v2802 = vunpack.c.l.b16 %v2797
  %v2803 = vpack.c.b16 %v2800, %v2800
  %v2804 = vpack.c.b16 %v2801, %v2801
  %v2805 = vpack.c.b16 %v2802, %v2802
  %v2806 = vrot.slane %v2803, 6
  %v2807 = vrot.slane %v2806, 4
  %v2808 = vrot.slane %v2804, 6
  %v2809 = vsel %vm2774, %v2807, %v2808
  %v2810 = vrot.slane %v2808, 4
  %v2811 = vrot.slane %v2805, 6
  %v2812 = vsel %vm2774, %v2810, %v2811
  %2815 = vst.msk [vmem:[#allocation3 + $0x28] sm:$0xf] %vm2233, %v2809
  %2816 = vst.msk [vmem:[#allocation3 + $0x2c] sm:$0x7] %vm2760, %v2812
  %v2817 = vpack.c.bf16 %v2727, %v2726
  %v2819 = vunpack.c.l.b16 %v2817
  %v2820 = vunpack.c.h.b16 %v2817
  %v2821 = vpack.c.b16 %v2819, %v2819
  %v2822 = vpack.c.b16 %v2820, %v2820
  %2825 = vst.msk [vmem:[#allocation3 + $0x30] sm:$0xf] %vm2233, %v2821
  %2826 = vst.msk [vmem:[#allocation3 + $0x34] sm:$0x7] %vm2760, %v2822
  %v2827 = vpack.c.bf16 %v2729, %v2728
  %v2828 = vpack.c.bf16 %v2730, %v2730
  %v2831 = vunpack.c.l.b16 %v2827
  %v2832 = vunpack.c.h.b16 %v2827
  %v2833 = vunpack.c.l.b16 %v2828
  %v2834 = vpack.c.b16 %v2831, %v2831
  %v2835 = vpack.c.b16 %v2832, %v2832
  %v2836 = vpack.c.b16 %v2833, %v2833
  %v2837 = vrot.slane %v2834, 6
  %v2838 = vrot.slane %v2837, 4
  %v2839 = vrot.slane %v2835, 6
  %v2840 = vsel %vm2774, %v2838, %v2839
  %v2841 = vrot.slane %v2839, 4
  %v2842 = vrot.slane %v2836, 6
  %v2843 = vsel %vm2774, %v2841, %v2842
  %2846 = vst.msk [vmem:[#allocation3 + $0x38] sm:$0xf] %vm2233, %v2840
  %2847 = vst.msk [vmem:[#allocation3 + $0x3c] sm:$0x7] %vm2760, %v2843
  %v2848 = vpack.c.bf16 %v2732, %v2731
  %v2850 = vunpack.c.l.b16 %v2848
  %v2851 = vunpack.c.h.b16 %v2848
  %v2852 = vpack.c.b16 %v2850, %v2850
  %v2853 = vpack.c.b16 %v2851, %v2851
  %2856 = vst.msk [vmem:[#allocation3 + $0x40] sm:$0xf] %vm2233, %v2852
  %2857 = vst.msk [vmem:[#allocation3 + $0x44] sm:$0x7] %vm2760, %v2853
  %v2858 = vpack.c.bf16 %v2734, %v2733
  %v2859 = vpack.c.bf16 %v2735, %v2735
  %v2862 = vunpack.c.l.b16 %v2858
  %v2863 = vunpack.c.h.b16 %v2858
  %v2864 = vunpack.c.l.b16 %v2859
  %v2865 = vpack.c.b16 %v2862, %v2862
  %v2866 = vpack.c.b16 %v2863, %v2863
  %v2867 = vpack.c.b16 %v2864, %v2864
  %v2868 = vrot.slane %v2865, 6
  %v2869 = vrot.slane %v2868, 4
  %v2870 = vrot.slane %v2866, 6
  %v2871 = vsel %vm2774, %v2869, %v2870
  %v2872 = vrot.slane %v2870, 4
  %v2873 = vrot.slane %v2867, 6
  %v2874 = vsel %vm2774, %v2872, %v2873
  %2877 = vst.msk [vmem:[#allocation3 + $0x48] sm:$0xf] %vm2233, %v2871
  %2878 = vst.msk [vmem:[#allocation3 + $0x4c] sm:$0x7] %vm2760, %v2874
  %v2879 = vpack.c.bf16 %v2737, %v2736
  %v2881 = vunpack.c.l.b16 %v2879
  %v2882 = vunpack.c.h.b16 %v2879
  %v2883 = vpack.c.b16 %v2881, %v2881
  %v2884 = vpack.c.b16 %v2882, %v2882
  %2887 = vst.msk [vmem:[#allocation3 + $0x50] sm:$0xf] %vm2233, %v2883
  %2888 = vst.msk [vmem:[#allocation3 + $0x54] sm:$0x7] %vm2760, %v2884
  %v2889 = vpack.c.bf16 %v2739, %v2738
  %v2890 = vpack.c.bf16 %v2740, %v2740
  %v2893 = vunpack.c.l.b16 %v2889
  %v2894 = vunpack.c.h.b16 %v2889
  %v2895 = vunpack.c.l.b16 %v2890
  %v2896 = vpack.c.b16 %v2893, %v2893
  %v2897 = vpack.c.b16 %v2894, %v2894
  %v2898 = vpack.c.b16 %v2895, %v2895
  %v2899 = vrot.slane %v2896, 6
  %v2900 = vrot.slane %v2899, 4
  %v2901 = vrot.slane %v2897, 6
  %v2902 = vsel %vm2774, %v2900, %v2901
  %v2903 = vrot.slane %v2901, 4
  %v2904 = vrot.slane %v2898, 6
  %v2905 = vsel %vm2774, %v2903, %v2904
  %2908 = vst.msk [vmem:[#allocation3 + $0x58] sm:$0xf] %vm2233, %v2902
  %2909 = vst.msk [vmem:[#allocation3 + $0x5c] sm:$0x7] %vm2760, %v2905
  %v2910 = vpack.c.bf16 %v2742, %v2741
  %v2912 = vunpack.c.l.b16 %v2910
  %v2913 = vunpack.c.h.b16 %v2910
  %v2914 = vpack.c.b16 %v2912, %v2912
  %v2915 = vpack.c.b16 %v2913, %v2913
  %2918 = vst.msk [vmem:[#allocation3 + $0x60] sm:$0xf] %vm2233, %v2914
  %2919 = vst.msk [vmem:[#allocation3 + $0x64] sm:$0x7] %vm2760, %v2915
  %v2920 = vpack.c.bf16 %v2744, %v2743
  %v2921 = vpack.c.bf16 %v2745, %v2745
  %v2924 = vunpack.c.l.b16 %v2920
  %v2925 = vunpack.c.h.b16 %v2920
  %v2926 = vunpack.c.l.b16 %v2921
  %v2927 = vpack.c.b16 %v2924, %v2924
  %v2928 = vpack.c.b16 %v2925, %v2925
  %v2929 = vpack.c.b16 %v2926, %v2926
  %v2930 = vrot.slane %v2927, 6
  %v2931 = vrot.slane %v2930, 4
  %v2932 = vrot.slane %v2928, 6
  %v2933 = vsel %vm2774, %v2931, %v2932
  %v2934 = vrot.slane %v2932, 4
  %v2935 = vrot.slane %v2929, 6
  %v2936 = vsel %vm2774, %v2934, %v2935
  %2939 = vst.msk [vmem:[#allocation3 + $0x68] sm:$0xf] %vm2233, %v2933
  %2940 = vst.msk [vmem:[#allocation3 + $0x6c] sm:$0x7] %vm2760, %v2936
  %v2941 = vpack.c.bf16 %v2747, %v2746
  %v2943 = vunpack.c.l.b16 %v2941
  %v2944 = vunpack.c.h.b16 %v2941
  %v2945 = vpack.c.b16 %v2943, %v2943
  %v2946 = vpack.c.b16 %v2944, %v2944
  %2949 = vst.msk [vmem:[#allocation3 + $0x70] sm:$0xf] %vm2233, %v2945
  %2950 = vst.msk [vmem:[#allocation3 + $0x74] sm:$0x7] %vm2760, %v2946
  %v2951 = vpack.c.bf16 %v2749, %v2748
  %v2952 = vpack.c.bf16 %v2750, %v2750
  %v2955 = vunpack.c.l.b16 %v2951
  %v2956 = vunpack.c.h.b16 %v2951
  %v2957 = vunpack.c.l.b16 %v2952
  %v2958 = vpack.c.b16 %v2955, %v2955
  %v2959 = vpack.c.b16 %v2956, %v2956
  %v2960 = vpack.c.b16 %v2957, %v2957
  %v2961 = vrot.slane %v2958, 6
  %v2962 = vrot.slane %v2961, 4
  %v2963 = vrot.slane %v2959, 6
  %v2964 = vsel %vm2774, %v2962, %v2963
  %v2965 = vrot.slane %v2963, 4
  %v2966 = vrot.slane %v2960, 6
  %v2967 = vsel %vm2774, %v2965, %v2966
  %2970 = vst.msk [vmem:[#allocation3 + $0x78] sm:$0xf] %vm2233, %v2964
  %2971 = vst.msk [vmem:[#allocation3 + $0x7c] sm:$0x7] %vm2760, %v2967
  %s2972 = scalar_lea.vmem [#allocation2], 784
  %v2973 = vld [vmem:[%s2972] ss:$2 sm:$0xff]
  %s2974 = scalar_lea.vmem [#allocation2], 800
  %v2975 = vld [vmem:[%s2974] ss:$2 sm:$0xff]
  %s2976 = scalar_lea.vmem [#allocation2], 816
  %v2977 = vld [vmem:[%s2976] ss:$2 sm:$0xff]
  %s2978 = scalar_lea.vmem [#allocation2], 832
  %v2979 = vld [vmem:[%s2978] ss:$2 sm:$0xff]
  %s2980 = scalar_lea.vmem [#allocation2], 848
  %v2981 = vld [vmem:[%s2980] ss:$2 sm:$0xff]
  %s2982 = scalar_lea.vmem [#allocation2], 864
  %v2983 = vld [vmem:[%s2982] ss:$2 sm:$0xff]
  %s2984 = scalar_lea.vmem [#allocation2], 880
  %v2985 = vld [vmem:[%s2984] ss:$2 sm:$0xff]
  %s2986 = scalar_lea.vmem [#allocation2], 896
  %v2987 = vld [vmem:[%s2986] ss:$2 sm:$0xff]
  %s2988 = scalar_lea.vmem [#allocation2], 912
  %v2989 = vld [vmem:[%s2988] ss:$2 sm:$0xff]
  %s2990 = scalar_lea.vmem [#allocation2], 928
  %v2991 = vld [vmem:[%s2990] ss:$2 sm:$0xff]
  %s2992 = scalar_lea.vmem [#allocation2], 944
  %v2993 = vld [vmem:[%s2992] ss:$2 sm:$0xff]
  %s2994 = scalar_lea.vmem [#allocation2], 960
  %v2995 = vld [vmem:[%s2994] ss:$2 sm:$0xff]
  %s2996 = scalar_lea.vmem [#allocation2], 976
  %v2997 = vld [vmem:[%s2996] ss:$2 sm:$0xff]
  %s2998 = scalar_lea.vmem [#allocation2], 992
  %v2999 = vld [vmem:[%s2998] ss:$2 sm:$0xff]
  %s3000 = scalar_lea.vmem [#allocation2], 1008
  %v3001 = vld [vmem:[%s3000] ss:$2 sm:$0xff]
  %s3002 = scalar_lea.vmem [#allocation2], 1024
  %v3003 = vld [vmem:[%s3002] ss:$2 sm:$0xff]
  %s3004 = scalar_lea.vmem [#allocation2], 1040
  %v3005 = vld [vmem:[%s3004] ss:$2 sm:$0xff]
  %s3006 = scalar_lea.vmem [#allocation2], 1056
  %v3007 = vld [vmem:[%s3006] ss:$2 sm:$0xff]
  %s3008 = scalar_lea.vmem [#allocation2], 1072
  %v3009 = vld [vmem:[%s3008] ss:$2 sm:$0xff]
  %s3010 = scalar_lea.vmem [#allocation2], 1088
  %v3011 = vld [vmem:[%s3010] ss:$2 sm:$0xff]
  %s3012 = scalar_lea.vmem [#allocation2], 1104
  %v3013 = vld [vmem:[%s3012] ss:$2 sm:$0xff]
  %s3014 = scalar_lea.vmem [#allocation2], 1120
  %v3015 = vld [vmem:[%s3014] ss:$2 sm:$0xff]
  %s3016 = scalar_lea.vmem [#allocation2], 1136
  %v3017 = vld [vmem:[%s3016] ss:$2 sm:$0xff]
  %s3018 = scalar_lea.vmem [#allocation2], 1152
  %v3019 = vld [vmem:[%s3018] ss:$2 sm:$0xff]
  %s3020 = scalar_lea.vmem [#allocation2], 1168
  %v3021 = vld [vmem:[%s3020] ss:$2 sm:$0xff]
  %s3022 = scalar_lea.vmem [#allocation2], 1184
  %v3023 = vld [vmem:[%s3022] ss:$2 sm:$0xff]
  %s3024 = scalar_lea.vmem [#allocation2], 1200
  %v3025 = vld [vmem:[%s3024] ss:$2 sm:$0xff]
  %s3026 = scalar_lea.vmem [#allocation2], 1216
  %v3027 = vld [vmem:[%s3026] ss:$2 sm:$0xff]
  %s3028 = scalar_lea.vmem [#allocation2], 1232
  %v3029 = vld [vmem:[%s3028] ss:$2 sm:$0xff]
  %s3030 = scalar_lea.vmem [#allocation2], 1248
  %v3031 = vld [vmem:[%s3030] ss:$2 sm:$0xff]
  %s3032 = scalar_lea.vmem [#allocation2], 1264
  %v3033 = vld [vmem:[%s3032] ss:$2 sm:$0xff]
  %s3034 = scalar_lea.vmem [#allocation2], 1280
  %v3035 = vld [vmem:[%s3034] ss:$2 sm:$0xff]
  %s3036 = scalar_lea.vmem [#allocation2], 1296
  %v3037 = vld [vmem:[%s3036] ss:$2 sm:$0xff]
  %s3038 = scalar_lea.vmem [#allocation2], 1312
  %v3039 = vld [vmem:[%s3038] ss:$2 sm:$0xff]
  %s3040 = scalar_lea.vmem [#allocation2], 1328
  %v3041 = vld [vmem:[%s3040] ss:$2 sm:$0xff]
  %s3042 = scalar_lea.vmem [#allocation2], 1344
  %v3043 = vld [vmem:[%s3042] ss:$2 sm:$0xff]
  %s3044 = scalar_lea.vmem [#allocation2], 1360
  %v3045 = vld [vmem:[%s3044] ss:$2 sm:$0xff]
  %s3046 = scalar_lea.vmem [#allocation2], 1376
  %v3047 = vld [vmem:[%s3046] ss:$2 sm:$0xff]
  %s3048 = scalar_lea.vmem [#allocation2], 1392
  %v3049 = vld [vmem:[%s3048] ss:$2 sm:$0xff]
  %s3050 = scalar_lea.vmem [#allocation2], 1408
  %v3051 = vld [vmem:[%s3050] ss:$2 sm:$0xff]
  %s3052 = scalar_lea.vmem [#allocation2], 1424
  %v3053 = vld [vmem:[%s3052] ss:$2 sm:$0xff]
  %s3054 = scalar_lea.vmem [#allocation2], 1440
  %v3055 = vld [vmem:[%s3054] ss:$2 sm:$0xff]
  %s3056 = scalar_lea.vmem [#allocation2], 1456
  %v3057 = vld [vmem:[%s3056] ss:$2 sm:$0xff]
  %s3058 = scalar_lea.vmem [#allocation2], 1472
  %v3059 = vld [vmem:[%s3058] ss:$2 sm:$0xff]
  %s3060 = scalar_lea.vmem [#allocation2], 1488
  %v3061 = vld [vmem:[%s3060] ss:$2 sm:$0xff]
  %s3062 = scalar_lea.vmem [#allocation2], 1504
  %v3063 = vld [vmem:[%s3062] ss:$2 sm:$0xff]
  %s3064 = scalar_lea.vmem [#allocation2], 1520
  %v3065 = vld [vmem:[%s3064] ss:$2 sm:$0xff]
  %s3066 = scalar_lea.vmem [#allocation2], 1536
  %v3067 = vld [vmem:[%s3066] ss:$2 sm:$0xff]
  %s3068 = scalar_lea.vmem [#allocation2], 1552
  %v3069 = vld [vmem:[%s3068] ss:$2 sm:$0xff]
  %s3070 = scalar_lea.vmem [#allocation2], 785
  %v3071 = vld [vmem:[%s3070] ss:$2 sm:$0xff]
  %s3072 = scalar_lea.vmem [#allocation2], 801
  %v3073 = vld [vmem:[%s3072] ss:$2 sm:$0xff]
  %s3074 = scalar_lea.vmem [#allocation2], 817
  %v3075 = vld [vmem:[%s3074] ss:$2 sm:$0xff]
  %s3076 = scalar_lea.vmem [#allocation2], 833
  %v3077 = vld [vmem:[%s3076] ss:$2 sm:$0xff]
  %s3078 = scalar_lea.vmem [#allocation2], 849
  %v3079 = vld [vmem:[%s3078] ss:$2 sm:$0xff]
  %s3080 = scalar_lea.vmem [#allocation2], 865
  %v3081 = vld [vmem:[%s3080] ss:$2 sm:$0xff]
  %s3082 = scalar_lea.vmem [#allocation2], 881
  %v3083 = vld [vmem:[%s3082] ss:$2 sm:$0xff]
  %s3084 = scalar_lea.vmem [#allocation2], 897
  %v3085 = vld [vmem:[%s3084] ss:$2 sm:$0xff]
  %s3086 = scalar_lea.vmem [#allocation2], 913
  %v3087 = vld [vmem:[%s3086] ss:$2 sm:$0xff]
  %s3088 = scalar_lea.vmem [#allocation2], 929
  %v3089 = vld [vmem:[%s3088] ss:$2 sm:$0xff]
  %s3090 = scalar_lea.vmem [#allocation2], 945
  %v3091 = vld [vmem:[%s3090] ss:$2 sm:$0xff]
  %s3092 = scalar_lea.vmem [#allocation2], 961
  %v3093 = vld [vmem:[%s3092] ss:$2 sm:$0xff]
  %s3094 = scalar_lea.vmem [#allocation2], 977
  %v3095 = vld [vmem:[%s3094] ss:$2 sm:$0xff]
  %s3096 = scalar_lea.vmem [#allocation2], 993
  %v3097 = vld [vmem:[%s3096] ss:$2 sm:$0xff]
  %s3098 = scalar_lea.vmem [#allocation2], 1009
  %v3099 = vld [vmem:[%s3098] ss:$2 sm:$0xff]
  %s3100 = scalar_lea.vmem [#allocation2], 1025
  %v3101 = vld [vmem:[%s3100] ss:$2 sm:$0xff]
  %s3102 = scalar_lea.vmem [#allocation2], 1041
  %v3103 = vld [vmem:[%s3102] ss:$2 sm:$0xff]
  %s3104 = scalar_lea.vmem [#allocation2], 1057
  %v3105 = vld [vmem:[%s3104] ss:$2 sm:$0xff]
  %s3106 = scalar_lea.vmem [#allocation2], 1073
  %v3107 = vld [vmem:[%s3106] ss:$2 sm:$0xff]
  %s3108 = scalar_lea.vmem [#allocation2], 1089
  %v3109 = vld [vmem:[%s3108] ss:$2 sm:$0xff]
  %s3110 = scalar_lea.vmem [#allocation2], 1105
  %v3111 = vld [vmem:[%s3110] ss:$2 sm:$0xff]
  %s3112 = scalar_lea.vmem [#allocation2], 1121
  %v3113 = vld [vmem:[%s3112] ss:$2 sm:$0xff]
  %s3114 = scalar_lea.vmem [#allocation2], 1137
  %v3115 = vld [vmem:[%s3114] ss:$2 sm:$0xff]
  %s3116 = scalar_lea.vmem [#allocation2], 1153
  %v3117 = vld [vmem:[%s3116] ss:$2 sm:$0xff]
  %s3118 = scalar_lea.vmem [#allocation2], 1169
  %v3119 = vld [vmem:[%s3118] ss:$2 sm:$0xff]
  %s3120 = scalar_lea.vmem [#allocation2], 1185
  %v3121 = vld [vmem:[%s3120] ss:$2 sm:$0xff]
  %s3122 = scalar_lea.vmem [#allocation2], 1201
  %v3123 = vld [vmem:[%s3122] ss:$2 sm:$0xff]
  %s3124 = scalar_lea.vmem [#allocation2], 1217
  %v3125 = vld [vmem:[%s3124] ss:$2 sm:$0xff]
  %s3126 = scalar_lea.vmem [#allocation2], 1233
  %v3127 = vld [vmem:[%s3126] ss:$2 sm:$0xff]
  %s3128 = scalar_lea.vmem [#allocation2], 1249
  %v3129 = vld [vmem:[%s3128] ss:$2 sm:$0xff]
  %s3130 = scalar_lea.vmem [#allocation2], 1265
  %v3131 = vld [vmem:[%s3130] ss:$2 sm:$0xff]
  %s3132 = scalar_lea.vmem [#allocation2], 1281
  %v3133 = vld [vmem:[%s3132] ss:$2 sm:$0xff]
  %s3134 = scalar_lea.vmem [#allocation2], 1297
  %v3135 = vld [vmem:[%s3134] ss:$2 sm:$0xff]
  %s3136 = scalar_lea.vmem [#allocation2], 1313
  %v3137 = vld [vmem:[%s3136] ss:$2 sm:$0xff]
  %s3138 = scalar_lea.vmem [#allocation2], 1329
  %v3139 = vld [vmem:[%s3138] ss:$2 sm:$0xff]
  %s3140 = scalar_lea.vmem [#allocation2], 1345
  %v3141 = vld [vmem:[%s3140] ss:$2 sm:$0xff]
  %s3142 = scalar_lea.vmem [#allocation2], 1361
  %v3143 = vld [vmem:[%s3142] ss:$2 sm:$0xff]
  %s3144 = scalar_lea.vmem [#allocation2], 1377
  %v3145 = vld [vmem:[%s3144] ss:$2 sm:$0xff]
  %s3146 = scalar_lea.vmem [#allocation2], 1393
  %v3147 = vld [vmem:[%s3146] ss:$2 sm:$0xff]
  %s3148 = scalar_lea.vmem [#allocation2], 1409
  %v3149 = vld [vmem:[%s3148] ss:$2 sm:$0xff]
  %s3150 = scalar_lea.vmem [#allocation2], 1425
  %v3151 = vld [vmem:[%s3150] ss:$2 sm:$0xff]
  %s3152 = scalar_lea.vmem [#allocation2], 1441
  %v3153 = vld [vmem:[%s3152] ss:$2 sm:$0xff]
  %s3154 = scalar_lea.vmem [#allocation2], 1457
  %v3155 = vld [vmem:[%s3154] ss:$2 sm:$0xff]
  %s3156 = scalar_lea.vmem [#allocation2], 1473
  %v3157 = vld [vmem:[%s3156] ss:$2 sm:$0xff]
  %s3158 = scalar_lea.vmem [#allocation2], 1489
  %v3159 = vld [vmem:[%s3158] ss:$2 sm:$0xff]
  %s3160 = scalar_lea.vmem [#allocation2], 1505
  %v3161 = vld [vmem:[%s3160] ss:$2 sm:$0xff]
  %s3162 = scalar_lea.vmem [#allocation2], 1521
  %v3163 = vld [vmem:[%s3162] ss:$2 sm:$0xff]
  %s3164 = scalar_lea.vmem [#allocation2], 1537
  %v3165 = vld [vmem:[%s3164] ss:$2 sm:$0xff]
  %s3166 = scalar_lea.vmem [#allocation2], 1553
  %v3167 = vld [vmem:[%s3166] ss:$2 sm:$0xff]
  %v3168 = vmax.f32 %v2973, %v3071
  %v3169 = vmax.f32 %v2975, %v3073
  %v3170 = vmax.f32 %v2977, %v3075
  %v3171 = vmax.f32 %v2979, %v3077
  %v3172 = vmax.f32 %v2981, %v3079
  %v3173 = vmax.f32 %v2983, %v3081
  %v3174 = vmax.f32 %v2985, %v3083
  %v3175 = vmax.f32 %v2987, %v3085
  %v3176 = vmax.f32 %v2989, %v3087
  %v3177 = vmax.f32 %v2991, %v3089
  %v3178 = vmax.f32 %v2993, %v3091
  %v3179 = vmax.f32 %v2995, %v3093
  %v3180 = vmax.f32 %v2997, %v3095
  %v3181 = vmax.f32 %v2999, %v3097
  %v3182 = vmax.f32 %v3001, %v3099
  %v3183 = vmax.f32 %v3003, %v3101
  %v3184 = vmax.f32 %v3005, %v3103
  %v3185 = vmax.f32 %v3007, %v3105
  %v3186 = vmax.f32 %v3009, %v3107
  %v3187 = vmax.f32 %v3011, %v3109
  %v3188 = vmax.f32 %v3013, %v3111
  %v3189 = vmax.f32 %v3015, %v3113
  %v3190 = vmax.f32 %v3017, %v3115
  %v3191 = vmax.f32 %v3019, %v3117
  %v3192 = vmax.f32 %v3021, %v3119
  %v3193 = vmax.f32 %v3023, %v3121
  %v3194 = vmax.f32 %v3025, %v3123
  %v3195 = vmax.f32 %v3027, %v3125
  %v3196 = vmax.f32 %v3029, %v3127
  %v3197 = vmax.f32 %v3031, %v3129
  %v3198 = vmax.f32 %v3033, %v3131
  %v3199 = vmax.f32 %v3035, %v3133
  %v3200 = vmax.f32 %v3037, %v3135
  %v3201 = vmax.f32 %v3039, %v3137
  %v3202 = vmax.f32 %v3041, %v3139
  %v3203 = vmax.f32 %v3043, %v3141
  %v3204 = vmax.f32 %v3045, %v3143
  %v3205 = vmax.f32 %v3047, %v3145
  %v3206 = vmax.f32 %v3049, %v3147
  %v3207 = vmax.f32 %v3051, %v3149
  %v3208 = vmax.f32 %v3053, %v3151
  %v3209 = vmax.f32 %v3055, %v3153
  %v3210 = vmax.f32 %v3057, %v3155
  %v3211 = vmax.f32 %v3059, %v3157
  %v3212 = vmax.f32 %v3061, %v3159
  %v3213 = vmax.f32 %v3063, %v3161
  %v3214 = vmax.f32 %v3065, %v3163
  %v3215 = vmax.f32 %v3067, %v3165
  %v3216 = vmax.f32 %v3069, %v3167
  %v3265 = vrot.slane %v3169, 6
  %v3266 = vrot.slane %v3170, 6
  %v3267 = vsel %vm2598, %v3265, %v3266
  %v3268 = vrot.slane %v3171, 6
  %v3269 = vsel %vm2598, %v3266, %v3268
  %v3270 = vrot.slane %v3172, 6
  %v3271 = vrot.slane %v3173, 6
  %v3272 = vsel %vm2598, %v3270, %v3271
  %v3273 = vrot.slane %v3174, 6
  %v3274 = vsel %vm2598, %v3271, %v3273
  %v3275 = vrot.slane %v3175, 6
  %v3276 = vsel %vm2598, %v3273, %v3275
  %v3277 = vrot.slane %v3176, 6
  %v3278 = vrot.slane %v3177, 6
  %v3279 = vsel %vm2598, %v3277, %v3278
  %v3280 = vrot.slane %v3178, 6
  %v3281 = vsel %vm2598, %v3278, %v3280
  %v3282 = vrot.slane %v3179, 6
  %v3283 = vrot.slane %v3180, 6
  %v3284 = vsel %vm2598, %v3282, %v3283
  %v3285 = vrot.slane %v3181, 6
  %v3286 = vsel %vm2598, %v3283, %v3285
  %v3287 = vrot.slane %v3182, 6
  %v3288 = vsel %vm2598, %v3285, %v3287
  %v3289 = vrot.slane %v3183, 6
  %v3290 = vrot.slane %v3184, 6
  %v3291 = vsel %vm2598, %v3289, %v3290
  %v3292 = vrot.slane %v3185, 6
  %v3293 = vsel %vm2598, %v3290, %v3292
  %v3294 = vrot.slane %v3186, 6
  %v3295 = vrot.slane %v3187, 6
  %v3296 = vsel %vm2598, %v3294, %v3295
  %v3297 = vrot.slane %v3188, 6
  %v3298 = vsel %vm2598, %v3295, %v3297
  %v3299 = vrot.slane %v3189, 6
  %v3300 = vsel %vm2598, %v3297, %v3299
  %v3301 = vrot.slane %v3190, 6
  %v3302 = vrot.slane %v3191, 6
  %v3303 = vsel %vm2598, %v3301, %v3302
  %v3304 = vrot.slane %v3192, 6
  %v3305 = vsel %vm2598, %v3302, %v3304
  %v3306 = vrot.slane %v3193, 6
  %v3307 = vrot.slane %v3194, 6
  %v3308 = vsel %vm2598, %v3306, %v3307
  %v3309 = vrot.slane %v3195, 6
  %v3310 = vsel %vm2598, %v3307, %v3309
  %v3311 = vrot.slane %v3196, 6
  %v3312 = vsel %vm2598, %v3309, %v3311
  %v3313 = vrot.slane %v3197, 6
  %v3314 = vrot.slane %v3198, 6
  %v3315 = vsel %vm2598, %v3313, %v3314
  %v3316 = vrot.slane %v3199, 6
  %v3317 = vsel %vm2598, %v3314, %v3316
  %v3318 = vrot.slane %v3200, 6
  %v3319 = vrot.slane %v3201, 6
  %v3320 = vsel %vm2598, %v3318, %v3319
  %v3321 = vrot.slane %v3202, 6
  %v3322 = vsel %vm2598, %v3319, %v3321
  %v3323 = vrot.slane %v3203, 6
  %v3324 = vsel %vm2598, %v3321, %v3323
  %v3325 = vrot.slane %v3204, 6
  %v3326 = vrot.slane %v3205, 6
  %v3327 = vsel %vm2598, %v3325, %v3326
  %v3328 = vrot.slane %v3206, 6
  %v3329 = vsel %vm2598, %v3326, %v3328
  %v3330 = vrot.slane %v3207, 6
  %v3331 = vrot.slane %v3208, 6
  %v3332 = vsel %vm2598, %v3330, %v3331
  %v3333 = vrot.slane %v3209, 6
  %v3334 = vsel %vm2598, %v3331, %v3333
  %v3335 = vrot.slane %v3210, 6
  %v3336 = vsel %vm2598, %v3333, %v3335
  %v3337 = vrot.slane %v3211, 6
  %v3338 = vrot.slane %v3212, 6
  %v3339 = vsel %vm2598, %v3337, %v3338
  %v3340 = vrot.slane %v3213, 6
  %v3341 = vsel %vm2598, %v3338, %v3340
  %v3342 = vrot.slane %v3214, 6
  %v3343 = vrot.slane %v3215, 6
  %v3344 = vsel %vm2598, %v3342, %v3343
  %v3345 = vrot.slane %v3216, 6
  %v3346 = vsel %vm2598, %v3343, %v3345
  %v3382 = vmax.f32 %v3168, %v3267
  %v3383 = vmax.f32 %v3169, %v3269
  %v3384 = vmax.f32 %v3171, %v3272
  %v3385 = vmax.f32 %v3172, %v3274
  %v3386 = vmax.f32 %v3173, %v3276
  %v3387 = vmax.f32 %v3175, %v3279
  %v3388 = vmax.f32 %v3176, %v3281
  %v3389 = vmax.f32 %v3178, %v3284
  %v3390 = vmax.f32 %v3179, %v3286
  %v3391 = vmax.f32 %v3180, %v3288
  %v3392 = vmax.f32 %v3182, %v3291
  %v3393 = vmax.f32 %v3183, %v3293
  %v3394 = vmax.f32 %v3185, %v3296
  %v3395 = vmax.f32 %v3186, %v3298
  %v3396 = vmax.f32 %v3187, %v3300
  %v3397 = vmax.f32 %v3189, %v3303
  %v3398 = vmax.f32 %v3190, %v3305
  %v3399 = vmax.f32 %v3192, %v3308
  %v3400 = vmax.f32 %v3193, %v3310
  %v3401 = vmax.f32 %v3194, %v3312
  %v3402 = vmax.f32 %v3196, %v3315
  %v3403 = vmax.f32 %v3197, %v3317
  %v3404 = vmax.f32 %v3199, %v3320
  %v3405 = vmax.f32 %v3200, %v3322
  %v3406 = vmax.f32 %v3201, %v3324
  %v3407 = vmax.f32 %v3203, %v3327
  %v3408 = vmax.f32 %v3204, %v3329
  %v3409 = vmax.f32 %v3206, %v3332
  %v3410 = vmax.f32 %v3207, %v3334
  %v3411 = vmax.f32 %v3208, %v3336
  %v3412 = vmax.f32 %v3210, %v3339
  %v3413 = vmax.f32 %v3211, %v3341
  %v3414 = vmax.f32 %v3213, %v3344
  %v3415 = vmax.f32 %v3214, %v3346
  %v3416 = vmax.f32 %v3215, %v3345
  %v3417 = vpack.c.bf16 %v3383, %v3382
  %v3419 = vunpack.c.l.b16 %v3417
  %v3420 = vunpack.c.h.b16 %v3417
  %v3421 = vpack.c.b16 %v3419, %v3419
  %v3422 = vpack.c.b16 %v3420, %v3420
  %s3425 = scalar_lea.vmem [#allocation3], 144
  %3426 = vst.msk [vmem:[%s3425 + $0x10] sm:$0xf] %vm2233, %v3421
  %3427 = vst.msk [vmem:[%s3425 + $0x14] sm:$0x7] %vm2760, %v3422
  %v3428 = vpack.c.bf16 %v3385, %v3384
  %v3429 = vpack.c.bf16 %v3386, %v3386
  %v3432 = vunpack.c.l.b16 %v3428
  %v3433 = vunpack.c.h.b16 %v3428
  %v3434 = vunpack.c.l.b16 %v3429
  %v3435 = vpack.c.b16 %v3432, %v3432
  %v3436 = vpack.c.b16 %v3433, %v3433
  %v3437 = vpack.c.b16 %v3434, %v3434
  %v3438 = vrot.slane %v3435, 6
  %v3439 = vrot.slane %v3438, 4
  %v3440 = vrot.slane %v3436, 6
  %v3441 = vsel %vm2774, %v3439, %v3440
  %v3442 = vrot.slane %v3440, 4
  %v3443 = vrot.slane %v3437, 6
  %v3444 = vsel %vm2774, %v3442, %v3443
  %3447 = vst.msk [vmem:[%s3425 + $0x18] sm:$0xf] %vm2233, %v3441
  %3448 = vst.msk [vmem:[%s3425 + $0x1c] sm:$0x7] %vm2760, %v3444
  %v3449 = vpack.c.bf16 %v3388, %v3387
  %v3451 = vunpack.c.l.b16 %v3449
  %v3452 = vunpack.c.h.b16 %v3449
  %v3453 = vpack.c.b16 %v3451, %v3451
  %v3454 = vpack.c.b16 %v3452, %v3452
  %3457 = vst.msk [vmem:[%s3425 + $0x20] sm:$0xf] %vm2233, %v3453
  %3458 = vst.msk [vmem:[%s3425 + $0x24] sm:$0x7] %vm2760, %v3454
  %v3459 = vpack.c.bf16 %v3390, %v3389
  %v3460 = vpack.c.bf16 %v3391, %v3391
  %v3463 = vunpack.c.l.b16 %v3459
  %v3464 = vunpack.c.h.b16 %v3459
  %v3465 = vunpack.c.l.b16 %v3460
  %v3466 = vpack.c.b16 %v3463, %v3463
  %v3467 = vpack.c.b16 %v3464, %v3464
  %v3468 = vpack.c.b16 %v3465, %v3465
  %v3469 = vrot.slane %v3466, 6
  %v3470 = vrot.slane %v3469, 4
  %v3471 = vrot.slane %v3467, 6
  %v3472 = vsel %vm2774, %v3470, %v3471
  %v3473 = vrot.slane %v3471, 4
  %v3474 = vrot.slane %v3468, 6
  %v3475 = vsel %vm2774, %v3473, %v3474
  %3478 = vst.msk [vmem:[%s3425 + $0x28] sm:$0xf] %vm2233, %v3472
  %3479 = vst.msk [vmem:[%s3425 + $0x2c] sm:$0x7] %vm2760, %v3475
  %v3480 = vpack.c.bf16 %v3393, %v3392
  %v3482 = vunpack.c.l.b16 %v3480
  %v3483 = vunpack.c.h.b16 %v3480
  %v3484 = vpack.c.b16 %v3482, %v3482
  %v3485 = vpack.c.b16 %v3483, %v3483
  %3488 = vst.msk [vmem:[%s3425 + $0x30] sm:$0xf] %vm2233, %v3484
  %3489 = vst.msk [vmem:[%s3425 + $0x34] sm:$0x7] %vm2760, %v3485
  %v3490 = vpack.c.bf16 %v3395, %v3394
  %v3491 = vpack.c.bf16 %v3396, %v3396
  %v3494 = vunpack.c.l.b16 %v3490
  %v3495 = vunpack.c.h.b16 %v3490
  %v3496 = vunpack.c.l.b16 %v3491
  %v3497 = vpack.c.b16 %v3494, %v3494
  %v3498 = vpack.c.b16 %v3495, %v3495
  %v3499 = vpack.c.b16 %v3496, %v3496
  %v3500 = vrot.slane %v3497, 6
  %v3501 = vrot.slane %v3500, 4
  %v3502 = vrot.slane %v3498, 6
  %v3503 = vsel %vm2774, %v3501, %v3502
  %v3504 = vrot.slane %v3502, 4
  %v3505 = vrot.slane %v3499, 6
  %v3506 = vsel %vm2774, %v3504, %v3505
  %3509 = vst.msk [vmem:[%s3425 + $0x38] sm:$0xf] %vm2233, %v3503
  %3510 = vst.msk [vmem:[%s3425 + $0x3c] sm:$0x7] %vm2760, %v3506
  %v3511 = vpack.c.bf16 %v3398, %v3397
  %v3513 = vunpack.c.l.b16 %v3511
  %v3514 = vunpack.c.h.b16 %v3511
  %v3515 = vpack.c.b16 %v3513, %v3513
  %v3516 = vpack.c.b16 %v3514, %v3514
  %3519 = vst.msk [vmem:[%s3425 + $0x40] sm:$0xf] %vm2233, %v3515
  %3520 = vst.msk [vmem:[%s3425 + $0x44] sm:$0x7] %vm2760, %v3516
  %v3521 = vpack.c.bf16 %v3400, %v3399
  %v3522 = vpack.c.bf16 %v3401, %v3401
  %v3525 = vunpack.c.l.b16 %v3521
  %v3526 = vunpack.c.h.b16 %v3521
  %v3527 = vunpack.c.l.b16 %v3522
  %v3528 = vpack.c.b16 %v3525, %v3525
  %v3529 = vpack.c.b16 %v3526, %v3526
  %v3530 = vpack.c.b16 %v3527, %v3527
  %v3531 = vrot.slane %v3528, 6
  %v3532 = vrot.slane %v3531, 4
  %v3533 = vrot.slane %v3529, 6
  %v3534 = vsel %vm2774, %v3532, %v3533
  %v3535 = vrot.slane %v3533, 4
  %v3536 = vrot.slane %v3530, 6
  %v3537 = vsel %vm2774, %v3535, %v3536
  %3540 = vst.msk [vmem:[%s3425 + $0x48] sm:$0xf] %vm2233, %v3534
  %3541 = vst.msk [vmem:[%s3425 + $0x4c] sm:$0x7] %vm2760, %v3537
  %v3542 = vpack.c.bf16 %v3403, %v3402
  %v3544 = vunpack.c.l.b16 %v3542
  %v3545 = vunpack.c.h.b16 %v3542
  %v3546 = vpack.c.b16 %v3544, %v3544
  %v3547 = vpack.c.b16 %v3545, %v3545
  %3550 = vst.msk [vmem:[%s3425 + $0x50] sm:$0xf] %vm2233, %v3546
  %3551 = vst.msk [vmem:[%s3425 + $0x54] sm:$0x7] %vm2760, %v3547
  %v3552 = vpack.c.bf16 %v3405, %v3404
  %v3553 = vpack.c.bf16 %v3406, %v3406
  %v3556 = vunpack.c.l.b16 %v3552
  %v3557 = vunpack.c.h.b16 %v3552
  %v3558 = vunpack.c.l.b16 %v3553
  %v3559 = vpack.c.b16 %v3556, %v3556
  %v3560 = vpack.c.b16 %v3557, %v3557
  %v3561 = vpack.c.b16 %v3558, %v3558
  %v3562 = vrot.slane %v3559, 6
  %v3563 = vrot.slane %v3562, 4
  %v3564 = vrot.slane %v3560, 6
  %v3565 = vsel %vm2774, %v3563, %v3564
  %v3566 = vrot.slane %v3564, 4
  %v3567 = vrot.slane %v3561, 6
  %v3568 = vsel %vm2774, %v3566, %v3567
  %3571 = vst.msk [vmem:[%s3425 + $0x58] sm:$0xf] %vm2233, %v3565
  %3572 = vst.msk [vmem:[%s3425 + $0x5c] sm:$0x7] %vm2760, %v3568
  %v3573 = vpack.c.bf16 %v3408, %v3407
  %v3575 = vunpack.c.l.b16 %v3573
  %v3576 = vunpack.c.h.b16 %v3573
  %v3577 = vpack.c.b16 %v3575, %v3575
  %v3578 = vpack.c.b16 %v3576, %v3576
  %3581 = vst.msk [vmem:[%s3425 + $0x60] sm:$0xf] %vm2233, %v3577
  %3582 = vst.msk [vmem:[%s3425 + $0x64] sm:$0x7] %vm2760, %v3578
  %v3583 = vpack.c.bf16 %v3410, %v3409
  %v3584 = vpack.c.bf16 %v3411, %v3411
  %v3587 = vunpack.c.l.b16 %v3583
  %v3588 = vunpack.c.h.b16 %v3583
  %v3589 = vunpack.c.l.b16 %v3584
  %v3590 = vpack.c.b16 %v3587, %v3587
  %v3591 = vpack.c.b16 %v3588, %v3588
  %v3592 = vpack.c.b16 %v3589, %v3589
  %v3593 = vrot.slane %v3590, 6
  %v3594 = vrot.slane %v3593, 4
  %v3595 = vrot.slane %v3591, 6
  %v3596 = vsel %vm2774, %v3594, %v3595
  %v3597 = vrot.slane %v3595, 4
  %v3598 = vrot.slane %v3592, 6
  %v3599 = vsel %vm2774, %v3597, %v3598
  %3602 = vst.msk [vmem:[%s3425 + $0x68] sm:$0xf] %vm2233, %v3596
  %3603 = vst.msk [vmem:[%s3425 + $0x6c] sm:$0x7] %vm2760, %v3599
  %v3604 = vpack.c.bf16 %v3413, %v3412
  %v3606 = vunpack.c.l.b16 %v3604
  %v3607 = vunpack.c.h.b16 %v3604
  %v3608 = vpack.c.b16 %v3606, %v3606
  %v3609 = vpack.c.b16 %v3607, %v3607
  %3612 = vst.msk [vmem:[%s3425 + $0x70] sm:$0xf] %vm2233, %v3608
  %3613 = vst.msk [vmem:[%s3425 + $0x74] sm:$0x7] %vm2760, %v3609
  %v3614 = vpack.c.bf16 %v3415, %v3414
  %v3615 = vpack.c.bf16 %v3416, %v3416
  %v3618 = vunpack.c.l.b16 %v3614
  %v3619 = vunpack.c.h.b16 %v3614
  %v3620 = vunpack.c.l.b16 %v3615
  %v3621 = vpack.c.b16 %v3618, %v3618
  %v3622 = vpack.c.b16 %v3619, %v3619
  %v3623 = vpack.c.b16 %v3620, %v3620
  %v3624 = vrot.slane %v3621, 6
  %v3625 = vrot.slane %v3624, 4
  %v3626 = vrot.slane %v3622, 6
  %v3627 = vsel %vm2774, %v3625, %v3626
  %v3628 = vrot.slane %v3626, 4
  %v3629 = vrot.slane %v3623, 6
  %v3630 = vsel %vm2774, %v3628, %v3629
  %3633 = vst.msk [vmem:[%s3425 + $0x78] sm:$0xf] %vm2233, %v3627
  %3634 = vst.msk [vmem:[%s3425 + $0x7c] sm:$0x7] %vm2760, %v3630
  %v3635 = vld [vmem:[#allocation3 + $0x4] sm:$0x8]
  %v3636 = vld [vmem:[#allocation3 + $0x8] sm:$0xf]
  %v3637 = vld [vmem:[#allocation3 + $0xc] sm:$0xf]
  %v3638 = vld [vmem:[#allocation3 + $0x10] sm:$0xf]
  %v3639 = vld [vmem:[#allocation3 + $0x14] sm:$0xf]
  %v3640 = vld [vmem:[#allocation3 + $0x18] sm:$0xf]
  %v3641 = vld [vmem:[#allocation3 + $0x1c] sm:$0xf]
  %v3642 = vld [vmem:[#allocation3 + $0x20] sm:$0xf]
  %v3643 = vld [vmem:[#allocation3 + $0x24] sm:$0xf]
  %v3644 = vld [vmem:[#allocation3 + $0x28] sm:$0xf]
  %v3645 = vld [vmem:[#allocation3 + $0x2c] sm:$0xf]
  %v3646 = vld [vmem:[#allocation3 + $0x30] sm:$0xf]
  %v3647 = vld [vmem:[#allocation3 + $0x34] sm:$0xf]
  %v3648 = vld [vmem:[#allocation3 + $0x38] sm:$0xf]
  %v3649 = vld [vmem:[#allocation3 + $0x3c] sm:$0xf]
  %v3650 = vld [vmem:[#allocation3 + $0x40] sm:$0xf]
  %v3651 = vld [vmem:[#allocation3 + $0x44] sm:$0xf]
  %v3652 = vld [vmem:[#allocation3 + $0x48] sm:$0xf]
  %v3653 = vld [vmem:[#allocation3 + $0x4c] sm:$0xf]
  %v3654 = vld [vmem:[#allocation3 + $0x50] sm:$0xf]
  %v3655 = vld [vmem:[#allocation3 + $0x54] sm:$0xf]
  %v3656 = vld [vmem:[#allocation3 + $0x58] sm:$0xf]
  %v3657 = vld [vmem:[#allocation3 + $0x5c] sm:$0xf]
  %v3658 = vld [vmem:[#allocation3 + $0x60] sm:$0xf]
  %v3659 = vld [vmem:[#allocation3 + $0x64] sm:$0xf]
  %v3660 = vld [vmem:[#allocation3 + $0x68] sm:$0xf]
  %v3661 = vld [vmem:[#allocation3 + $0x6c] sm:$0xf]
  %v3662 = vld [vmem:[#allocation3 + $0x70] sm:$0xf]
  %v3663 = vld [vmem:[#allocation3 + $0x74] sm:$0xf]
  %vm3664 = vsmask.f32 256
  %vm3665 = vsmask.f32 4368
  %vm3666 = vmor %vm3664, %vm3665
  %v3668 = vshrl.u32 %v3635, 16
  %v3670 = vrot.slane %v3668, 7
  %v3671 = vrot.slane %v3670, 4
  %v3673 = vshrl.u32 %v3636, 16
  %v3675 = vrot.slane %v3673, 7
  %v3676 = vshll.u32 %v3636, 16
  %v3678 = vor.u32 %v3675, %v3676
  %v3679 = vsel %vm3666, %v3671, %v3678
  %v3680 = vrot.slane %v3675, 4
  %v3682 = vshrl.u32 %v3637, 16
  %v3684 = vrot.slane %v3682, 7
  %v3685 = vshll.u32 %v3637, 16
  %v3687 = vor.u32 %v3684, %v3685
  %v3688 = vsel %vm3666, %v3680, %v3687
  %v3689 = vrot.slane %v3684, 4
  %v3691 = vshrl.u32 %v3638, 16
  %v3693 = vrot.slane %v3691, 7
  %v3694 = vshll.u32 %v3638, 16
  %v3696 = vor.u32 %v3693, %v3694
  %v3697 = vsel %vm3666, %v3689, %v3696
  %v3698 = vrot.slane %v3693, 4
  %v3700 = vshrl.u32 %v3639, 16
  %v3702 = vrot.slane %v3700, 7
  %v3703 = vshll.u32 %v3639, 16
  %v3705 = vor.u32 %v3702, %v3703
  %v3706 = vsel %vm3666, %v3698, %v3705
  %v3707 = vrot.slane %v3702, 4
  %v3709 = vshrl.u32 %v3640, 16
  %v3711 = vrot.slane %v3709, 7
  %v3712 = vshll.u32 %v3640, 16
  %v3714 = vor.u32 %v3711, %v3712
  %v3715 = vsel %vm3666, %v3707, %v3714
  %v3716 = vrot.slane %v3711, 4
  %v3718 = vshrl.u32 %v3641, 16
  %v3720 = vrot.slane %v3718, 7
  %v3721 = vshll.u32 %v3641, 16
  %v3723 = vor.u32 %v3720, %v3721
  %v3724 = vsel %vm3666, %v3716, %v3723
  %v3725 = vrot.slane %v3720, 4
  %v3727 = vshrl.u32 %v3642, 16
  %v3729 = vrot.slane %v3727, 7
  %v3730 = vshll.u32 %v3642, 16
  %v3732 = vor.u32 %v3729, %v3730
  %v3733 = vsel %vm3666, %v3725, %v3732
  %v3734 = vrot.slane %v3729, 4
  %v3736 = vshrl.u32 %v3643, 16
  %v3738 = vrot.slane %v3736, 7
  %v3739 = vshll.u32 %v3643, 16
  %v3741 = vor.u32 %v3738, %v3739
  %v3742 = vsel %vm3666, %v3734, %v3741
  %v3743 = vrot.slane %v3738, 4
  %v3745 = vshrl.u32 %v3644, 16
  %v3747 = vrot.slane %v3745, 7
  %v3748 = vshll.u32 %v3644, 16
  %v3750 = vor.u32 %v3747, %v3748
  %v3751 = vsel %vm3666, %v3743, %v3750
  %v3752 = vrot.slane %v3747, 4
  %v3754 = vshrl.u32 %v3645, 16
  %v3756 = vrot.slane %v3754, 7
  %v3757 = vshll.u32 %v3645, 16
  %v3759 = vor.u32 %v3756, %v3757
  %v3760 = vsel %vm3666, %v3752, %v3759
  %v3761 = vrot.slane %v3756, 4
  %v3763 = vshrl.u32 %v3646, 16
  %v3765 = vrot.slane %v3763, 7
  %v3766 = vshll.u32 %v3646, 16
  %v3768 = vor.u32 %v3765, %v3766
  %v3769 = vsel %vm3666, %v3761, %v3768
  %v3770 = vrot.slane %v3765, 4
  %v3772 = vshrl.u32 %v3647, 16
  %v3774 = vrot.slane %v3772, 7
  %v3775 = vshll.u32 %v3647, 16
  %v3777 = vor.u32 %v3774, %v3775
  %v3778 = vsel %vm3666, %v3770, %v3777
  %v3779 = vrot.slane %v3774, 4
  %v3781 = vshrl.u32 %v3648, 16
  %v3783 = vrot.slane %v3781, 7
  %v3784 = vshll.u32 %v3648, 16
  %v3786 = vor.u32 %v3783, %v3784
  %v3787 = vsel %vm3666, %v3779, %v3786
  %v3788 = vrot.slane %v3783, 4
  %v3790 = vshrl.u32 %v3649, 16
  %v3792 = vrot.slane %v3790, 7
  %v3793 = vshll.u32 %v3649, 16
  %v3795 = vor.u32 %v3792, %v3793
  %v3796 = vsel %vm3666, %v3788, %v3795
  %v3797 = vrot.slane %v3792, 4
  %v3799 = vshrl.u32 %v3650, 16
  %v3801 = vrot.slane %v3799, 7
  %v3802 = vshll.u32 %v3650, 16
  %v3804 = vor.u32 %v3801, %v3802
  %v3805 = vsel %vm3666, %v3797, %v3804
  %v3806 = vrot.slane %v3801, 4
  %v3808 = vshrl.u32 %v3651, 16
  %v3810 = vrot.slane %v3808, 7
  %v3811 = vshll.u32 %v3651, 16
  %v3813 = vor.u32 %v3810, %v3811
  %v3814 = vsel %vm3666, %v3806, %v3813
  %v3815 = vrot.slane %v3810, 4
  %v3817 = vshrl.u32 %v3652, 16
  %v3819 = vrot.slane %v3817, 7
  %v3820 = vshll.u32 %v3652, 16
  %v3822 = vor.u32 %v3819, %v3820
  %v3823 = vsel %vm3666, %v3815, %v3822
  %v3824 = vrot.slane %v3819, 4
  %v3826 = vshrl.u32 %v3653, 16
  %v3828 = vrot.slane %v3826, 7
  %v3829 = vshll.u32 %v3653, 16
  %v3831 = vor.u32 %v3828, %v3829
  %v3832 = vsel %vm3666, %v3824, %v3831
  %v3833 = vrot.slane %v3828, 4
  %v3835 = vshrl.u32 %v3654, 16
  %v3837 = vrot.slane %v3835, 7
  %v3838 = vshll.u32 %v3654, 16
  %v3840 = vor.u32 %v3837, %v3838
  %v3841 = vsel %vm3666, %v3833, %v3840
  %v3842 = vrot.slane %v3837, 4
  %v3844 = vshrl.u32 %v3655, 16
  %v3846 = vrot.slane %v3844, 7
  %v3847 = vshll.u32 %v3655, 16
  %v3849 = vor.u32 %v3846, %v3847
  %v3850 = vsel %vm3666, %v3842, %v3849
  %v3851 = vrot.slane %v3846, 4
  %v3853 = vshrl.u32 %v3656, 16
  %v3855 = vrot.slane %v3853, 7
  %v3856 = vshll.u32 %v3656, 16
  %v3858 = vor.u32 %v3855, %v3856
  %v3859 = vsel %vm3666, %v3851, %v3858
  %v3860 = vrot.slane %v3855, 4
  %v3862 = vshrl.u32 %v3657, 16
  %v3864 = vrot.slane %v3862, 7
  %v3865 = vshll.u32 %v3657, 16
  %v3867 = vor.u32 %v3864, %v3865
  %v3868 = vsel %vm3666, %v3860, %v3867
  %v3869 = vrot.slane %v3864, 4
  %v3871 = vshrl.u32 %v3658, 16
  %v3873 = vrot.slane %v3871, 7
  %v3874 = vshll.u32 %v3658, 16
  %v3876 = vor.u32 %v3873, %v3874
  %v3877 = vsel %vm3666, %v3869, %v3876
  %v3878 = vrot.slane %v3873, 4
  %v3880 = vshrl.u32 %v3659, 16
  %v3882 = vrot.slane %v3880, 7
  %v3883 = vshll.u32 %v3659, 16
  %v3885 = vor.u32 %v3882, %v3883
  %v3886 = vsel %vm3666, %v3878, %v3885
  %v3887 = vrot.slane %v3882, 4
  %v3889 = vshrl.u32 %v3660, 16
  %v3891 = vrot.slane %v3889, 7
  %v3892 = vshll.u32 %v3660, 16
  %v3894 = vor.u32 %v3891, %v3892
  %v3895 = vsel %vm3666, %v3887, %v3894
  %v3896 = vrot.slane %v3891, 4
  %v3898 = vshrl.u32 %v3661, 16
  %v3900 = vrot.slane %v3898, 7
  %v3901 = vshll.u32 %v3661, 16
  %v3903 = vor.u32 %v3900, %v3901
  %v3904 = vsel %vm3666, %v3896, %v3903
  %v3905 = vrot.slane %v3900, 4
  %v3907 = vshrl.u32 %v3662, 16
  %v3909 = vrot.slane %v3907, 7
  %v3910 = vshll.u32 %v3662, 16
  %v3912 = vor.u32 %v3909, %v3910
  %v3913 = vsel %vm3666, %v3905, %v3912
  %v3914 = vrot.slane %v3909, 4
  %v3916 = vshrl.u32 %v3663, 16
  %v3918 = vrot.slane %v3916, 7
  %v3919 = vshll.u32 %v3663, 16
  %v3921 = vor.u32 %v3918, %v3919
  %v3922 = vsel %vm3666, %v3914, %v3921
  %3951 = vst.msk [vmem:[#allocation4] sm:$0xf] %vm2233, %v3679
  %3952 = vst.msk [vmem:[#allocation4 + $0xc] sm:$0xf] %vm2233, %v3688
  %3953 = vst.msk [vmem:[#allocation4 + $0x18] sm:$0xf] %vm2233, %v3697
  %3954 = vst.msk [vmem:[#allocation4 + $0x24] sm:$0xf] %vm2233, %v3706
  %3955 = vst.msk [vmem:[#allocation4 + $0x30] sm:$0xf] %vm2233, %v3715
  %3956 = vst.msk [vmem:[#allocation4 + $0x3c] sm:$0xf] %vm2233, %v3724
  %3957 = vst.msk [vmem:[#allocation4 + $0x48] sm:$0xf] %vm2233, %v3733
  %3958 = vst.msk [vmem:[#allocation4 + $0x54] sm:$0xf] %vm2233, %v3742
  %3959 = vst.msk [vmem:[#allocation4 + $0x60] sm:$0xf] %vm2233, %v3751
  %3960 = vst.msk [vmem:[#allocation4 + $0x6c] sm:$0xf] %vm2233, %v3760
  %3961 = vst.msk [vmem:[#allocation4 + $0x78] sm:$0xf] %vm2233, %v3769
  %3962 = vst.msk [vmem:[#allocation4 + $0x84] sm:$0xf] %vm2233, %v3778
  %3963 = vst.msk [vmem:[#allocation4 + $0x90] sm:$0xf] %vm2233, %v3787
  %3964 = vst.msk [vmem:[#allocation4 + $0x9c] sm:$0xf] %vm2233, %v3796
  %3965 = vst.msk [vmem:[#allocation4 + $0xa8] sm:$0xf] %vm2233, %v3805
  %3966 = vst.msk [vmem:[#allocation4 + $0xb4] sm:$0xf] %vm2233, %v3814
  %3967 = vst.msk [vmem:[#allocation4 + $0xc0] sm:$0xf] %vm2233, %v3823
  %3968 = vst.msk [vmem:[#allocation4 + $0xcc] sm:$0xf] %vm2233, %v3832
  %3969 = vst.msk [vmem:[#allocation4 + $0xd8] sm:$0xf] %vm2233, %v3841
  %3970 = vst.msk [vmem:[#allocation4 + $0xe4] sm:$0xf] %vm2233, %v3850
  %3971 = vst.msk [vmem:[#allocation4 + $0xf0] sm:$0xf] %vm2233, %v3859
  %3972 = vst.msk [vmem:[#allocation4 + $0xfc] sm:$0xf] %vm2233, %v3868
  %3973 = vst.msk [vmem:[#allocation4 + $0x108] sm:$0xf] %vm2233, %v3877
  %3974 = vst.msk [vmem:[#allocation4 + $0x114] sm:$0xf] %vm2233, %v3886
  %3975 = vst.msk [vmem:[#allocation4 + $0x120] sm:$0xf] %vm2233, %v3895
  %3976 = vst.msk [vmem:[#allocation4 + $0x12c] sm:$0xf] %vm2233, %v3904
  %3977 = vst.msk [vmem:[#allocation4 + $0x138] sm:$0xf] %vm2233, %v3913
  %3978 = vst.msk [vmem:[#allocation4 + $0x144] sm:$0xf] %vm2233, %v3922
  %v3979 = vld [vmem:[#allocation3 + $0x8] sm:$0xf]
  %v3980 = vld [vmem:[#allocation3 + $0xc] sm:$0xf]
  %v3981 = vld [vmem:[#allocation3 + $0x10] sm:$0xf]
  %v3982 = vld [vmem:[#allocation3 + $0x14] sm:$0xf]
  %v3983 = vld [vmem:[#allocation3 + $0x18] sm:$0xf]
  %v3984 = vld [vmem:[#allocation3 + $0x1c] sm:$0xf]
  %v3985 = vld [vmem:[#allocation3 + $0x20] sm:$0xf]
  %v3986 = vld [vmem:[#allocation3 + $0x24] sm:$0xf]
  %v3987 = vld [vmem:[#allocation3 + $0x28] sm:$0xf]
  %v3988 = vld [vmem:[#allocation3 + $0x2c] sm:$0xf]
  %v3989 = vld [vmem:[#allocation3 + $0x30] sm:$0xf]
  %v3990 = vld [vmem:[#allocation3 + $0x34] sm:$0xf]
  %v3991 = vld [vmem:[#allocation3 + $0x38] sm:$0xf]
  %v3992 = vld [vmem:[#allocation3 + $0x3c] sm:$0xf]
  %v3993 = vld [vmem:[#allocation3 + $0x40] sm:$0xf]
  %v3994 = vld [vmem:[#allocation3 + $0x44] sm:$0xf]
  %v3995 = vld [vmem:[#allocation3 + $0x48] sm:$0xf]
  %v3996 = vld [vmem:[#allocation3 + $0x4c] sm:$0xf]
  %v3997 = vld [vmem:[#allocation3 + $0x50] sm:$0xf]
  %v3998 = vld [vmem:[#allocation3 + $0x54] sm:$0xf]
  %v3999 = vld [vmem:[#allocation3 + $0x58] sm:$0xf]
  %v4000 = vld [vmem:[#allocation3 + $0x5c] sm:$0xf]
  %v4001 = vld [vmem:[#allocation3 + $0x60] sm:$0xf]
  %v4002 = vld [vmem:[#allocation3 + $0x64] sm:$0xf]
  %v4003 = vld [vmem:[#allocation3 + $0x68] sm:$0xf]
  %v4004 = vld [vmem:[#allocation3 + $0x6c] sm:$0xf]
  %v4005 = vld [vmem:[#allocation3 + $0x70] sm:$0xf]
  %v4006 = vld [vmem:[#allocation3 + $0x74] sm:$0xf]
  %4035 = vrot.lane.b32.xlu0 %v3979, 32
  %v4036 = vpop.permute.xlu0 %4035
  %4037 = vrot.lane.b32.xlu0 %v3980, 32
  %v4038 = vpop.permute.xlu0 %4037
  %4039 = vrot.lane.b32.xlu0 %v3981, 32
  %v4040 = vpop.permute.xlu0 %4039
  %4041 = vrot.lane.b32.xlu0 %v3982, 32
  %v4042 = vpop.permute.xlu0 %4041
  %4043 = vrot.lane.b32.xlu0 %v3983, 32
  %v4044 = vpop.permute.xlu0 %4043
  %4045 = vrot.lane.b32.xlu0 %v3984, 32
  %v4046 = vpop.permute.xlu0 %4045
  %4047 = vrot.lane.b32.xlu0 %v3985, 32
  %v4048 = vpop.permute.xlu0 %4047
  %4049 = vrot.lane.b32.xlu0 %v3986, 32
  %v4050 = vpop.permute.xlu0 %4049
  %4051 = vrot.lane.b32.xlu0 %v3987, 32
  %v4052 = vpop.permute.xlu0 %4051
  %4053 = vrot.lane.b32.xlu0 %v3988, 32
  %v4054 = vpop.permute.xlu0 %4053
  %4055 = vrot.lane.b32.xlu0 %v3989, 32
  %v4056 = vpop.permute.xlu0 %4055
  %4057 = vrot.lane.b32.xlu0 %v3990, 32
  %v4058 = vpop.permute.xlu0 %4057
  %4059 = vrot.lane.b32.xlu0 %v3991, 32
  %v4060 = vpop.permute.xlu0 %4059
  %4061 = vrot.lane.b32.xlu0 %v3992, 32
  %v4062 = vpop.permute.xlu0 %4061
  %4063 = vrot.lane.b32.xlu0 %v3993, 32
  %v4064 = vpop.permute.xlu0 %4063
  %4065 = vrot.lane.b32.xlu0 %v3994, 32
  %v4066 = vpop.permute.xlu0 %4065
  %4067 = vrot.lane.b32.xlu0 %v3995, 32
  %v4068 = vpop.permute.xlu0 %4067
  %4069 = vrot.lane.b32.xlu0 %v3996, 32
  %v4070 = vpop.permute.xlu0 %4069
  %4071 = vrot.lane.b32.xlu0 %v3997, 32
  %v4072 = vpop.permute.xlu0 %4071
  %4073 = vrot.lane.b32.xlu0 %v3998, 32
  %v4074 = vpop.permute.xlu0 %4073
  %4075 = vrot.lane.b32.xlu0 %v3999, 32
  %v4076 = vpop.permute.xlu0 %4075
  %4077 = vrot.lane.b32.xlu0 %v4000, 32
  %v4078 = vpop.permute.xlu0 %4077
  %4079 = vrot.lane.b32.xlu0 %v4001, 32
  %v4080 = vpop.permute.xlu0 %4079
  %4081 = vrot.lane.b32.xlu0 %v4002, 32
  %v4082 = vpop.permute.xlu0 %4081
  %4083 = vrot.lane.b32.xlu0 %v4003, 32
  %v4084 = vpop.permute.xlu0 %4083
  %4085 = vrot.lane.b32.xlu0 %v4004, 32
  %v4086 = vpop.permute.xlu0 %4085
  %4087 = vrot.lane.b32.xlu0 %v4005, 32
  %v4088 = vpop.permute.xlu0 %4087
  %4089 = vrot.lane.b32.xlu0 %v4006, 32
  %v4090 = vpop.permute.xlu0 %4089
  %vm4119 = vcmask 519424
  %4120 = vst.msk [vmem:[#allocation4] sm:$0xf] %vm4119, %v4036
  %4121 = vst.msk [vmem:[#allocation4 + $0xc] sm:$0xf] %vm4119, %v4038
  %4122 = vst.msk [vmem:[#allocation4 + $0x18] sm:$0xf] %vm4119, %v4040
  %4123 = vst.msk [vmem:[#allocation4 + $0x24] sm:$0xf] %vm4119, %v4042
  %4124 = vst.msk [vmem:[#allocation4 + $0x30] sm:$0xf] %vm4119, %v4044
  %4125 = vst.msk [vmem:[#allocation4 + $0x3c] sm:$0xf] %vm4119, %v4046
  %4126 = vst.msk [vmem:[#allocation4 + $0x48] sm:$0xf] %vm4119, %v4048
  %4127 = vst.msk [vmem:[#allocation4 + $0x54] sm:$0xf] %vm4119, %v4050
  %4128 = vst.msk [vmem:[#allocation4 + $0x60] sm:$0xf] %vm4119, %v4052
  %4129 = vst.msk [vmem:[#allocation4 + $0x6c] sm:$0xf] %vm4119, %v4054
  %4130 = vst.msk [vmem:[#allocation4 + $0x78] sm:$0xf] %vm4119, %v4056
  %4131 = vst.msk [vmem:[#allocation4 + $0x84] sm:$0xf] %vm4119, %v4058
  %4132 = vst.msk [vmem:[#allocation4 + $0x90] sm:$0xf] %vm4119, %v4060
  %4133 = vst.msk [vmem:[#allocation4 + $0x9c] sm:$0xf] %vm4119, %v4062
  %4134 = vst.msk [vmem:[#allocation4 + $0xa8] sm:$0xf] %vm4119, %v4064
  %4135 = vst.msk [vmem:[#allocation4 + $0xb4] sm:$0xf] %vm4119, %v4066
  %4136 = vst.msk [vmem:[#allocation4 + $0xc0] sm:$0xf] %vm4119, %v4068
  %4137 = vst.msk [vmem:[#allocation4 + $0xcc] sm:$0xf] %vm4119, %v4070
  %4138 = vst.msk [vmem:[#allocation4 + $0xd8] sm:$0xf] %vm4119, %v4072
  %4139 = vst.msk [vmem:[#allocation4 + $0xe4] sm:$0xf] %vm4119, %v4074
  %4140 = vst.msk [vmem:[#allocation4 + $0xf0] sm:$0xf] %vm4119, %v4076
  %4141 = vst.msk [vmem:[#allocation4 + $0xfc] sm:$0xf] %vm4119, %v4078
  %4142 = vst.msk [vmem:[#allocation4 + $0x108] sm:$0xf] %vm4119, %v4080
  %4143 = vst.msk [vmem:[#allocation4 + $0x114] sm:$0xf] %vm4119, %v4082
  %4144 = vst.msk [vmem:[#allocation4 + $0x120] sm:$0xf] %vm4119, %v4084
  %4145 = vst.msk [vmem:[#allocation4 + $0x12c] sm:$0xf] %vm4119, %v4086
  %4146 = vst.msk [vmem:[#allocation4 + $0x138] sm:$0xf] %vm4119, %v4088
  %4147 = vst.msk [vmem:[#allocation4 + $0x144] sm:$0xf] %vm4119, %v4090
  %v4148 = vld [vmem:[#allocation3 + $0x8] sm:$0xf]
  %v4149 = vld [vmem:[#allocation3 + $0xc] sm:$0xf]
  %v4150 = vld [vmem:[#allocation3 + $0x10] sm:$0xf]
  %v4151 = vld [vmem:[#allocation3 + $0x14] sm:$0xf]
  %v4152 = vld [vmem:[#allocation3 + $0x18] sm:$0xf]
  %v4153 = vld [vmem:[#allocation3 + $0x1c] sm:$0xf]
  %v4154 = vld [vmem:[#allocation3 + $0x20] sm:$0xf]
  %v4155 = vld [vmem:[#allocation3 + $0x24] sm:$0xf]
  %v4156 = vld [vmem:[#allocation3 + $0x28] sm:$0xf]
  %v4157 = vld [vmem:[#allocation3 + $0x2c] sm:$0xf]
  %v4158 = vld [vmem:[#allocation3 + $0x30] sm:$0xf]
  %v4159 = vld [vmem:[#allocation3 + $0x34] sm:$0xf]
  %v4160 = vld [vmem:[#allocation3 + $0x38] sm:$0xf]
  %v4161 = vld [vmem:[#allocation3 + $0x3c] sm:$0xf]
  %v4162 = vld [vmem:[#allocation3 + $0x40] sm:$0xf]
  %v4163 = vld [vmem:[#allocation3 + $0x44] sm:$0xf]
  %v4164 = vld [vmem:[#allocation3 + $0x48] sm:$0xf]
  %v4165 = vld [vmem:[#allocation3 + $0x4c] sm:$0xf]
  %v4166 = vld [vmem:[#allocation3 + $0x50] sm:$0xf]
  %v4167 = vld [vmem:[#allocation3 + $0x54] sm:$0xf]
  %v4168 = vld [vmem:[#allocation3 + $0x58] sm:$0xf]
  %v4169 = vld [vmem:[#allocation3 + $0x5c] sm:$0xf]
  %v4170 = vld [vmem:[#allocation3 + $0x60] sm:$0xf]
  %v4171 = vld [vmem:[#allocation3 + $0x64] sm:$0xf]
  %v4172 = vld [vmem:[#allocation3 + $0x68] sm:$0xf]
  %v4173 = vld [vmem:[#allocation3 + $0x6c] sm:$0xf]
  %v4174 = vld [vmem:[#allocation3 + $0x70] sm:$0xf]
  %v4175 = vld [vmem:[#allocation3 + $0x74] sm:$0xf]
  %v4176 = vld [vmem:[#allocation3 + $0x78] sm:$0x1]
  %vm4177 = vsmask.f32 3328
  %vm4178 = vsmask.f32 7440
  %vm4179 = vmor %vm4177, %vm4178
  %v4181 = vshrl.u32 %v4148, 16
  %v4183 = vrot.slane %v4181, 4
  %v4184 = vshll.u32 %v4148, 16
  %v4186 = vrot.slane %v4184, 5
  %v4187 = vor.u32 %v4183, %v4186
  %v4188 = vrot.slane %v4187, 4
  %v4190 = vshll.u32 %v4149, 16
  %v4192 = vrot.slane %v4190, 5
  %v4193 = vsel %vm4179, %v4188, %v4192
  %v4194 = vshrl.u32 %v4149, 16
  %v4196 = vrot.slane %v4194, 4
  %v4197 = vor.u32 %v4196, %v4192
  %v4198 = vrot.slane %v4197, 4
  %v4200 = vshll.u32 %v4150, 16
  %v4202 = vrot.slane %v4200, 5
  %v4203 = vsel %vm4179, %v4198, %v4202
  %v4204 = vshrl.u32 %v4150, 16
  %v4206 = vrot.slane %v4204, 4
  %v4207 = vor.u32 %v4206, %v4202
  %v4208 = vrot.slane %v4207, 4
  %v4210 = vshll.u32 %v4151, 16
  %v4212 = vrot.slane %v4210, 5
  %v4213 = vsel %vm4179, %v4208, %v4212
  %v4214 = vshrl.u32 %v4151, 16
  %v4216 = vrot.slane %v4214, 4
  %v4217 = vor.u32 %v4216, %v4212
  %v4218 = vrot.slane %v4217, 4
  %v4220 = vshll.u32 %v4152, 16
  %v4222 = vrot.slane %v4220, 5
  %v4223 = vsel %vm4179, %v4218, %v4222
  %v4224 = vshrl.u32 %v4152, 16
  %v4226 = vrot.slane %v4224, 4
  %v4227 = vor.u32 %v4226, %v4222
  %v4228 = vrot.slane %v4227, 4
  %v4230 = vshll.u32 %v4153, 16
  %v4232 = vrot.slane %v4230, 5
  %v4233 = vsel %vm4179, %v4228, %v4232
  %v4234 = vshrl.u32 %v4153, 16
  %v4236 = vrot.slane %v4234, 4
  %v4237 = vor.u32 %v4236, %v4232
  %v4238 = vrot.slane %v4237, 4
  %v4240 = vshll.u32 %v4154, 16
  %v4242 = vrot.slane %v4240, 5
  %v4243 = vsel %vm4179, %v4238, %v4242
  %v4244 = vshrl.u32 %v4154, 16
  %v4246 = vrot.slane %v4244, 4
  %v4247 = vor.u32 %v4246, %v4242
  %v4248 = vrot.slane %v4247, 4
  %v4250 = vshll.u32 %v4155, 16
  %v4252 = vrot.slane %v4250, 5
  %v4253 = vsel %vm4179, %v4248, %v4252
  %v4254 = vshrl.u32 %v4155, 16
  %v4256 = vrot.slane %v4254, 4
  %v4257 = vor.u32 %v4256, %v4252
  %v4258 = vrot.slane %v4257, 4
  %v4260 = vshll.u32 %v4156, 16
  %v4262 = vrot.slane %v4260, 5
  %v4263 = vsel %vm4179, %v4258, %v4262
  %v4264 = vshrl.u32 %v4156, 16
  %v4266 = vrot.slane %v4264, 4
  %v4267 = vor.u32 %v4266, %v4262
  %v4268 = vrot.slane %v4267, 4
  %v4270 = vshll.u32 %v4157, 16
  %v4272 = vrot.slane %v4270, 5
  %v4273 = vsel %vm4179, %v4268, %v4272
  %v4274 = vshrl.u32 %v4157, 16
  %v4276 = vrot.slane %v4274, 4
  %v4277 = vor.u32 %v4276, %v4272
  %v4278 = vrot.slane %v4277, 4
  %v4280 = vshll.u32 %v4158, 16
  %v4282 = vrot.slane %v4280, 5
  %v4283 = vsel %vm4179, %v4278, %v4282
  %v4284 = vshrl.u32 %v4158, 16
  %v4286 = vrot.slane %v4284, 4
  %v4287 = vor.u32 %v4286, %v4282
  %v4288 = vrot.slane %v4287, 4
  %v4290 = vshll.u32 %v4159, 16
  %v4292 = vrot.slane %v4290, 5
  %v4293 = vsel %vm4179, %v4288, %v4292
  %v4294 = vshrl.u32 %v4159, 16
  %v4296 = vrot.slane %v4294, 4
  %v4297 = vor.u32 %v4296, %v4292
  %v4298 = vrot.slane %v4297, 4
  %v4300 = vshll.u32 %v4160, 16
  %v4302 = vrot.slane %v4300, 5
  %v4303 = vsel %vm4179, %v4298, %v4302
  %v4304 = vshrl.u32 %v4160, 16
  %v4306 = vrot.slane %v4304, 4
  %v4307 = vor.u32 %v4306, %v4302
  %v4308 = vrot.slane %v4307, 4
  %v4310 = vshll.u32 %v4161, 16
  %v4312 = vrot.slane %v4310, 5
  %v4313 = vsel %vm4179, %v4308, %v4312
  %v4314 = vshrl.u32 %v4161, 16
  %v4316 = vrot.slane %v4314, 4
  %v4317 = vor.u32 %v4316, %v4312
  %v4318 = vrot.slane %v4317, 4
  %v4320 = vshll.u32 %v4162, 16
  %v4322 = vrot.slane %v4320, 5
  %v4323 = vsel %vm4179, %v4318, %v4322
  %v4324 = vshrl.u32 %v4162, 16
  %v4326 = vrot.slane %v4324, 4
  %v4327 = vor.u32 %v4326, %v4322
  %v4328 = vrot.slane %v4327, 4
  %v4330 = vshll.u32 %v4163, 16
  %v4332 = vrot.slane %v4330, 5
  %v4333 = vsel %vm4179, %v4328, %v4332
  %v4334 = vshrl.u32 %v4163, 16
  %v4336 = vrot.slane %v4334, 4
  %v4337 = vor.u32 %v4336, %v4332
  %v4338 = vrot.slane %v4337, 4
  %v4340 = vshll.u32 %v4164, 16
  %v4342 = vrot.slane %v4340, 5
  %v4343 = vsel %vm4179, %v4338, %v4342
  %v4344 = vshrl.u32 %v4164, 16
  %v4346 = vrot.slane %v4344, 4
  %v4347 = vor.u32 %v4346, %v4342
  %v4348 = vrot.slane %v4347, 4
  %v4350 = vshll.u32 %v4165, 16
  %v4352 = vrot.slane %v4350, 5
  %v4353 = vsel %vm4179, %v4348, %v4352
  %v4354 = vshrl.u32 %v4165, 16
  %v4356 = vrot.slane %v4354, 4
  %v4357 = vor.u32 %v4356, %v4352
  %v4358 = vrot.slane %v4357, 4
  %v4360 = vshll.u32 %v4166, 16
  %v4362 = vrot.slane %v4360, 5
  %v4363 = vsel %vm4179, %v4358, %v4362
  %v4364 = vshrl.u32 %v4166, 16
  %v4366 = vrot.slane %v4364, 4
  %v4367 = vor.u32 %v4366, %v4362
  %v4368 = vrot.slane %v4367, 4
  %v4370 = vshll.u32 %v4167, 16
  %v4372 = vrot.slane %v4370, 5
  %v4373 = vsel %vm4179, %v4368, %v4372
  %v4374 = vshrl.u32 %v4167, 16
  %v4376 = vrot.slane %v4374, 4
  %v4377 = vor.u32 %v4376, %v4372
  %v4378 = vrot.slane %v4377, 4
  %v4380 = vshll.u32 %v4168, 16
  %v4382 = vrot.slane %v4380, 5
  %v4383 = vsel %vm4179, %v4378, %v4382
  %v4384 = vshrl.u32 %v4168, 16
  %v4386 = vrot.slane %v4384, 4
  %v4387 = vor.u32 %v4386, %v4382
  %v4388 = vrot.slane %v4387, 4
  %v4390 = vshll.u32 %v4169, 16
  %v4392 = vrot.slane %v4390, 5
  %v4393 = vsel %vm4179, %v4388, %v4392
  %v4394 = vshrl.u32 %v4169, 16
  %v4396 = vrot.slane %v4394, 4
  %v4397 = vor.u32 %v4396, %v4392
  %v4398 = vrot.slane %v4397, 4
  %v4400 = vshll.u32 %v4170, 16
  %v4402 = vrot.slane %v4400, 5
  %v4403 = vsel %vm4179, %v4398, %v4402
  %v4404 = vshrl.u32 %v4170, 16
  %v4406 = vrot.slane %v4404, 4
  %v4407 = vor.u32 %v4406, %v4402
  %v4408 = vrot.slane %v4407, 4
  %v4410 = vshll.u32 %v4171, 16
  %v4412 = vrot.slane %v4410, 5
  %v4413 = vsel %vm4179, %v4408, %v4412
  %v4414 = vshrl.u32 %v4171, 16
  %v4416 = vrot.slane %v4414, 4
  %v4417 = vor.u32 %v4416, %v4412
  %v4418 = vrot.slane %v4417, 4
  %v4420 = vshll.u32 %v4172, 16
  %v4422 = vrot.slane %v4420, 5
  %v4423 = vsel %vm4179, %v4418, %v4422
  %v4424 = vshrl.u32 %v4172, 16
  %v4426 = vrot.slane %v4424, 4
  %v4427 = vor.u32 %v4426, %v4422
  %v4428 = vrot.slane %v4427, 4
  %v4430 = vshll.u32 %v4173, 16
  %v4432 = vrot.slane %v4430, 5
  %v4433 = vsel %vm4179, %v4428, %v4432
  %v4434 = vshrl.u32 %v4173, 16
  %v4436 = vrot.slane %v4434, 4
  %v4437 = vor.u32 %v4436, %v4432
  %v4438 = vrot.slane %v4437, 4
  %v4440 = vshll.u32 %v4174, 16
  %v4442 = vrot.slane %v4440, 5
  %v4443 = vsel %vm4179, %v4438, %v4442
  %v4444 = vshrl.u32 %v4174, 16
  %v4446 = vrot.slane %v4444, 4
  %v4447 = vor.u32 %v4446, %v4442
  %v4448 = vrot.slane %v4447, 4
  %v4450 = vshll.u32 %v4175, 16
  %v4452 = vrot.slane %v4450, 5
  %v4453 = vsel %vm4179, %v4448, %v4452
  %v4454 = vshrl.u32 %v4175, 16
  %v4456 = vrot.slane %v4454, 4
  %v4457 = vor.u32 %v4456, %v4452
  %v4458 = vrot.slane %v4457, 4
  %v4460 = vshll.u32 %v4176, 16
  %v4462 = vrot.slane %v4460, 5
  %v4463 = vsel %vm4179, %v4458, %v4462
  %4464 = vrot.lane.b32.xlu0 %v4193, 64
  %v4465 = vpop.permute.xlu0 %4464
  %4466 = vrot.lane.b32.xlu0 %v4203, 64
  %v4467 = vpop.permute.xlu0 %4466
  %4468 = vrot.lane.b32.xlu0 %v4213, 64
  %v4469 = vpop.permute.xlu0 %4468
  %4470 = vrot.lane.b32.xlu0 %v4223, 64
  %v4471 = vpop.permute.xlu0 %4470
  %4472 = vrot.lane.b32.xlu0 %v4233, 64
  %v4473 = vpop.permute.xlu0 %4472
  %4474 = vrot.lane.b32.xlu0 %v4243, 64
  %v4475 = vpop.permute.xlu0 %4474
  %4476 = vrot.lane.b32.xlu0 %v4253, 64
  %v4477 = vpop.permute.xlu0 %4476
  %4478 = vrot.lane.b32.xlu0 %v4263, 64
  %v4479 = vpop.permute.xlu0 %4478
  %4480 = vrot.lane.b32.xlu0 %v4273, 64
  %v4481 = vpop.permute.xlu0 %4480
  %4482 = vrot.lane.b32.xlu0 %v4283, 64
  %v4483 = vpop.permute.xlu0 %4482
  %4484 = vrot.lane.b32.xlu0 %v4293, 64
  %v4485 = vpop.permute.xlu0 %4484
  %4486 = vrot.lane.b32.xlu0 %v4303, 64
  %v4487 = vpop.permute.xlu0 %4486
  %4488 = vrot.lane.b32.xlu0 %v4313, 64
  %v4489 = vpop.permute.xlu0 %4488
  %4490 = vrot.lane.b32.xlu0 %v4323, 64
  %v4491 = vpop.permute.xlu0 %4490
  %4492 = vrot.lane.b32.xlu0 %v4333, 64
  %v4493 = vpop.permute.xlu0 %4492
  %4494 = vrot.lane.b32.xlu0 %v4343, 64
  %v4495 = vpop.permute.xlu0 %4494
  %4496 = vrot.lane.b32.xlu0 %v4353, 64
  %v4497 = vpop.permute.xlu0 %4496
  %4498 = vrot.lane.b32.xlu0 %v4363, 64
  %v4499 = vpop.permute.xlu0 %4498
  %4500 = vrot.lane.b32.xlu0 %v4373, 64
  %v4501 = vpop.permute.xlu0 %4500
  %4502 = vrot.lane.b32.xlu0 %v4383, 64
  %v4503 = vpop.permute.xlu0 %4502
  %4504 = vrot.lane.b32.xlu0 %v4393, 64
  %v4505 = vpop.permute.xlu0 %4504
  %4506 = vrot.lane.b32.xlu0 %v4403, 64
  %v4507 = vpop.permute.xlu0 %4506
  %4508 = vrot.lane.b32.xlu0 %v4413, 64
  %v4509 = vpop.permute.xlu0 %4508
  %4510 = vrot.lane.b32.xlu0 %v4423, 64
  %v4511 = vpop.permute.xlu0 %4510
  %4512 = vrot.lane.b32.xlu0 %v4433, 64
  %v4513 = vpop.permute.xlu0 %4512
  %4514 = vrot.lane.b32.xlu0 %v4443, 64
  %v4515 = vpop.permute.xlu0 %4514
  %4516 = vrot.lane.b32.xlu0 %v4453, 64
  %v4517 = vpop.permute.xlu0 %4516
  %4518 = vrot.lane.b32.xlu0 %v4463, 64
  %v4519 = vpop.permute.xlu0 %4518
  %vm4548 = vcmask 781824
  %4549 = vst.msk [vmem:[#allocation4] sm:$0xf] %vm4548, %v4465
  %4550 = vst.msk [vmem:[#allocation4 + $0xc] sm:$0xf] %vm4548, %v4467
  %4551 = vst.msk [vmem:[#allocation4 + $0x18] sm:$0xf] %vm4548, %v4469
  %4552 = vst.msk [vmem:[#allocation4 + $0x24] sm:$0xf] %vm4548, %v4471
  %4553 = vst.msk [vmem:[#allocation4 + $0x30] sm:$0xf] %vm4548, %v4473
  %4554 = vst.msk [vmem:[#allocation4 + $0x3c] sm:$0xf] %vm4548, %v4475
  %4555 = vst.msk [vmem:[#allocation4 + $0x48] sm:$0xf] %vm4548, %v4477
  %4556 = vst.msk [vmem:[#allocation4 + $0x54] sm:$0xf] %vm4548, %v4479
  %4557 = vst.msk [vmem:[#allocation4 + $0x60] sm:$0xf] %vm4548, %v4481
  %4558 = vst.msk [vmem:[#allocation4 + $0x6c] sm:$0xf] %vm4548, %v4483
  %4559 = vst.msk [vmem:[#allocation4 + $0x78] sm:$0xf] %vm4548, %v4485
  %4560 = vst.msk [vmem:[#allocation4 + $0x84] sm:$0xf] %vm4548, %v4487
  %4561 = vst.msk [vmem:[#allocation4 + $0x90] sm:$0xf] %vm4548, %v4489
  %4562 = vst.msk [vmem:[#allocation4 + $0x9c] sm:$0xf] %vm4548, %v4491
  %4563 = vst.msk [vmem:[#allocation4 + $0xa8] sm:$0xf] %vm4548, %v4493
  %4564 = vst.msk [vmem:[#allocation4 + $0xb4] sm:$0xf] %vm4548, %v4495
  %4565 = vst.msk [vmem:[#allocation4 + $0xc0] sm:$0xf] %vm4548, %v4497
  %4566 = vst.msk [vmem:[#allocation4 + $0xcc] sm:$0xf] %vm4548, %v4499
  %4567 = vst.msk [vmem:[#allocation4 + $0xd8] sm:$0xf] %vm4548, %v4501
  %4568 = vst.msk [vmem:[#allocation4 + $0xe4] sm:$0xf] %vm4548, %v4503
  %4569 = vst.msk [vmem:[#allocation4 + $0xf0] sm:$0xf] %vm4548, %v4505
  %4570 = vst.msk [vmem:[#allocation4 + $0xfc] sm:$0xf] %vm4548, %v4507
  %4571 = vst.msk [vmem:[#allocation4 + $0x108] sm:$0xf] %vm4548, %v4509
  %4572 = vst.msk [vmem:[#allocation4 + $0x114] sm:$0xf] %vm4548, %v4511
  %4573 = vst.msk [vmem:[#allocation4 + $0x120] sm:$0xf] %vm4548, %v4513
  %4574 = vst.msk [vmem:[#allocation4 + $0x12c] sm:$0xf] %vm4548, %v4515
  %4575 = vst.msk [vmem:[#allocation4 + $0x138] sm:$0xf] %vm4548, %v4517
  %4576 = vst.msk [vmem:[#allocation4 + $0x144] sm:$0xf] %vm4548, %v4519
  %v4577 = vld [vmem:[#allocation3 + $0xc] sm:$0x8]
  %v4578 = vld [vmem:[#allocation3 + $0x10] sm:$0xf]
  %v4579 = vld [vmem:[#allocation3 + $0x14] sm:$0xf]
  %v4580 = vld [vmem:[#allocation3 + $0x18] sm:$0xf]
  %v4581 = vld [vmem:[#allocation3 + $0x1c] sm:$0xf]
  %v4582 = vld [vmem:[#allocation3 + $0x20] sm:$0xf]
  %v4583 = vld [vmem:[#allocation3 + $0x24] sm:$0xf]
  %v4584 = vld [vmem:[#allocation3 + $0x28] sm:$0xf]
  %v4585 = vld [vmem:[#allocation3 + $0x2c] sm:$0xf]
  %v4586 = vld [vmem:[#allocation3 + $0x30] sm:$0xf]
  %v4587 = vld [vmem:[#allocation3 + $0x34] sm:$0xf]
  %v4588 = vld [vmem:[#allocation3 + $0x38] sm:$0xf]
  %v4589 = vld [vmem:[#allocation3 + $0x3c] sm:$0xf]
  %v4590 = vld [vmem:[#allocation3 + $0x40] sm:$0xf]
  %v4591 = vld [vmem:[#allocation3 + $0x44] sm:$0xf]
  %v4592 = vld [vmem:[#allocation3 + $0x48] sm:$0xf]
  %v4593 = vld [vmem:[#allocation3 + $0x4c] sm:$0xf]
  %v4594 = vld [vmem:[#allocation3 + $0x50] sm:$0xf]
  %v4595 = vld [vmem:[#allocation3 + $0x54] sm:$0xf]
  %v4596 = vld [vmem:[#allocation3 + $0x58] sm:$0xf]
  %v4597 = vld [vmem:[#allocation3 + $0x5c] sm:$0xf]
  %v4598 = vld [vmem:[#allocation3 + $0x60] sm:$0xf]
  %v4599 = vld [vmem:[#allocation3 + $0x64] sm:$0xf]
  %v4600 = vld [vmem:[#allocation3 + $0x68] sm:$0xf]
  %v4601 = vld [vmem:[#allocation3 + $0x6c] sm:$0xf]
  %v4602 = vld [vmem:[#allocation3 + $0x70] sm:$0xf]
  %v4603 = vld [vmem:[#allocation3 + $0x74] sm:$0xf]
  %v4604 = vld [vmem:[#allocation3 + $0x78] sm:$0xf]
  %v4605 = vld [vmem:[#allocation3 + $0x7c] sm:$0xf]
  %v4607 = vshrl.u32 %v4577, 16
  %v4609 = vrot.slane %v4607, 7
  %v4610 = vrot.slane %v4609, 4
  %v4612 = vshrl.u32 %v4578, 16
  %v4614 = vrot.slane %v4612, 7
  %v4615 = vshll.u32 %v4578, 16
  %v4617 = vor.u32 %v4614, %v4615
  %v4618 = vsel %vm3666, %v4610, %v4617
  %v4619 = vrot.slane %v4614, 4
  %v4621 = vshrl.u32 %v4579, 16
  %v4623 = vrot.slane %v4621, 7
  %v4624 = vshll.u32 %v4579, 16
  %v4626 = vor.u32 %v4623, %v4624
  %v4627 = vsel %vm3666, %v4619, %v4626
  %v4628 = vrot.slane %v4623, 4
  %v4630 = vshrl.u32 %v4580, 16
  %v4632 = vrot.slane %v4630, 7
  %v4633 = vshll.u32 %v4580, 16
  %v4635 = vor.u32 %v4632, %v4633
  %v4636 = vsel %vm3666, %v4628, %v4635
  %v4637 = vrot.slane %v4632, 4
  %v4639 = vshrl.u32 %v4581, 16
  %v4641 = vrot.slane %v4639, 7
  %v4642 = vshll.u32 %v4581, 16
  %v4644 = vor.u32 %v4641, %v4642
  %v4645 = vsel %vm3666, %v4637, %v4644
  %v4646 = vrot.slane %v4641, 4
  %v4648 = vshrl.u32 %v4582, 16
  %v4650 = vrot.slane %v4648, 7
  %v4651 = vshll.u32 %v4582, 16
  %v4653 = vor.u32 %v4650, %v4651
  %v4654 = vsel %vm3666, %v4646, %v4653
  %v4655 = vrot.slane %v4650, 4
  %v4657 = vshrl.u32 %v4583, 16
  %v4659 = vrot.slane %v4657, 7
  %v4660 = vshll.u32 %v4583, 16
  %v4662 = vor.u32 %v4659, %v4660
  %v4663 = vsel %vm3666, %v4655, %v4662
  %v4664 = vrot.slane %v4659, 4
  %v4666 = vshrl.u32 %v4584, 16
  %v4668 = vrot.slane %v4666, 7
  %v4669 = vshll.u32 %v4584, 16
  %v4671 = vor.u32 %v4668, %v4669
  %v4672 = vsel %vm3666, %v4664, %v4671
  %v4673 = vrot.slane %v4668, 4
  %v4675 = vshrl.u32 %v4585, 16
  %v4677 = vrot.slane %v4675, 7
  %v4678 = vshll.u32 %v4585, 16
  %v4680 = vor.u32 %v4677, %v4678
  %v4681 = vsel %vm3666, %v4673, %v4680
  %v4682 = vrot.slane %v4677, 4
  %v4684 = vshrl.u32 %v4586, 16
  %v4686 = vrot.slane %v4684, 7
  %v4687 = vshll.u32 %v4586, 16
  %v4689 = vor.u32 %v4686, %v4687
  %v4690 = vsel %vm3666, %v4682, %v4689
  %v4691 = vrot.slane %v4686, 4
  %v4693 = vshrl.u32 %v4587, 16
  %v4695 = vrot.slane %v4693, 7
  %v4696 = vshll.u32 %v4587, 16
  %v4698 = vor.u32 %v4695, %v4696
  %v4699 = vsel %vm3666, %v4691, %v4698
  %v4700 = vrot.slane %v4695, 4
  %v4702 = vshrl.u32 %v4588, 16
  %v4704 = vrot.slane %v4702, 7
  %v4705 = vshll.u32 %v4588, 16
  %v4707 = vor.u32 %v4704, %v4705
  %v4708 = vsel %vm3666, %v4700, %v4707
  %v4709 = vrot.slane %v4704, 4
  %v4711 = vshrl.u32 %v4589, 16
  %v4713 = vrot.slane %v4711, 7
  %v4714 = vshll.u32 %v4589, 16
  %v4716 = vor.u32 %v4713, %v4714
  %v4717 = vsel %vm3666, %v4709, %v4716
  %v4718 = vrot.slane %v4713, 4
  %v4720 = vshrl.u32 %v4590, 16
  %v4722 = vrot.slane %v4720, 7
  %v4723 = vshll.u32 %v4590, 16
  %v4725 = vor.u32 %v4722, %v4723
  %v4726 = vsel %vm3666, %v4718, %v4725
  %v4727 = vrot.slane %v4722, 4
  %v4729 = vshrl.u32 %v4591, 16
  %v4731 = vrot.slane %v4729, 7
  %v4732 = vshll.u32 %v4591, 16
  %v4734 = vor.u32 %v4731, %v4732
  %v4735 = vsel %vm3666, %v4727, %v4734
  %v4736 = vrot.slane %v4731, 4
  %v4738 = vshrl.u32 %v4592, 16
  %v4740 = vrot.slane %v4738, 7
  %v4741 = vshll.u32 %v4592, 16
  %v4743 = vor.u32 %v4740, %v4741
  %v4744 = vsel %vm3666, %v4736, %v4743
  %v4745 = vrot.slane %v4740, 4
  %v4747 = vshrl.u32 %v4593, 16
  %v4749 = vrot.slane %v4747, 7
  %v4750 = vshll.u32 %v4593, 16
  %v4752 = vor.u32 %v4749, %v4750
  %v4753 = vsel %vm3666, %v4745, %v4752
  %v4754 = vrot.slane %v4749, 4
  %v4756 = vshrl.u32 %v4594, 16
  %v4758 = vrot.slane %v4756, 7
  %v4759 = vshll.u32 %v4594, 16
  %v4761 = vor.u32 %v4758, %v4759
  %v4762 = vsel %vm3666, %v4754, %v4761
  %v4763 = vrot.slane %v4758, 4
  %v4765 = vshrl.u32 %v4595, 16
  %v4767 = vrot.slane %v4765, 7
  %v4768 = vshll.u32 %v4595, 16
  %v4770 = vor.u32 %v4767, %v4768
  %v4771 = vsel %vm3666, %v4763, %v4770
  %v4772 = vrot.slane %v4767, 4
  %v4774 = vshrl.u32 %v4596, 16
  %v4776 = vrot.slane %v4774, 7
  %v4777 = vshll.u32 %v4596, 16
  %v4779 = vor.u32 %v4776, %v4777
  %v4780 = vsel %vm3666, %v4772, %v4779
  %v4781 = vrot.slane %v4776, 4
  %v4783 = vshrl.u32 %v4597, 16
  %v4785 = vrot.slane %v4783, 7
  %v4786 = vshll.u32 %v4597, 16
  %v4788 = vor.u32 %v4785, %v4786
  %v4789 = vsel %vm3666, %v4781, %v4788
  %v4790 = vrot.slane %v4785, 4
  %v4792 = vshrl.u32 %v4598, 16
  %v4794 = vrot.slane %v4792, 7
  %v4795 = vshll.u32 %v4598, 16
  %v4797 = vor.u32 %v4794, %v4795
  %v4798 = vsel %vm3666, %v4790, %v4797
  %v4799 = vrot.slane %v4794, 4
  %v4801 = vshrl.u32 %v4599, 16
  %v4803 = vrot.slane %v4801, 7
  %v4804 = vshll.u32 %v4599, 16
  %v4806 = vor.u32 %v4803, %v4804
  %v4807 = vsel %vm3666, %v4799, %v4806
  %v4808 = vrot.slane %v4803, 4
  %v4810 = vshrl.u32 %v4600, 16
  %v4812 = vrot.slane %v4810, 7
  %v4813 = vshll.u32 %v4600, 16
  %v4815 = vor.u32 %v4812, %v4813
  %v4816 = vsel %vm3666, %v4808, %v4815
  %v4817 = vrot.slane %v4812, 4
  %v4819 = vshrl.u32 %v4601, 16
  %v4821 = vrot.slane %v4819, 7
  %v4822 = vshll.u32 %v4601, 16
  %v4824 = vor.u32 %v4821, %v4822
  %v4825 = vsel %vm3666, %v4817, %v4824
  %v4826 = vrot.slane %v4821, 4
  %v4828 = vshrl.u32 %v4602, 16
  %v4830 = vrot.slane %v4828, 7
  %v4831 = vshll.u32 %v4602, 16
  %v4833 = vor.u32 %v4830, %v4831
  %v4834 = vsel %vm3666, %v4826, %v4833
  %v4835 = vrot.slane %v4830, 4
  %v4837 = vshrl.u32 %v4603, 16
  %v4839 = vrot.slane %v4837, 7
  %v4840 = vshll.u32 %v4603, 16
  %v4842 = vor.u32 %v4839, %v4840
  %v4843 = vsel %vm3666, %v4835, %v4842
  %v4844 = vrot.slane %v4839, 4
  %v4846 = vshrl.u32 %v4604, 16
  %v4848 = vrot.slane %v4846, 7
  %v4849 = vshll.u32 %v4604, 16
  %v4851 = vor.u32 %v4848, %v4849
  %v4852 = vsel %vm3666, %v4844, %v4851
  %v4853 = vrot.slane %v4848, 4
  %v4855 = vshrl.u32 %v4605, 16
  %v4857 = vrot.slane %v4855, 7
  %v4858 = vshll.u32 %v4605, 16
  %v4860 = vor.u32 %v4857, %v4858
  %v4861 = vsel %vm3666, %v4853, %v4860
  %4862 = vrot.lane.b32.xlu0 %v4618, 96
  %v4863 = vpop.permute.xlu0 %4862
  %4864 = vrot.lane.b32.xlu0 %v4627, 96
  %v4865 = vpop.permute.xlu0 %4864
  %4866 = vrot.lane.b32.xlu0 %v4636, 96
  %v4867 = vpop.permute.xlu0 %4866
  %4868 = vrot.lane.b32.xlu0 %v4645, 96
  %v4869 = vpop.permute.xlu0 %4868
  %4870 = vrot.lane.b32.xlu0 %v4654, 96
  %v4871 = vpop.permute.xlu0 %4870
  %4872 = vrot.lane.b32.xlu0 %v4663, 96
  %v4873 = vpop.permute.xlu0 %4872
  %4874 = vrot.lane.b32.xlu0 %v4672, 96
  %v4875 = vpop.permute.xlu0 %4874
  %4876 = vrot.lane.b32.xlu0 %v4681, 96
  %v4877 = vpop.permute.xlu0 %4876
  %4878 = vrot.lane.b32.xlu0 %v4690, 96
  %v4879 = vpop.permute.xlu0 %4878
  %4880 = vrot.lane.b32.xlu0 %v4699, 96
  %v4881 = vpop.permute.xlu0 %4880
  %4882 = vrot.lane.b32.xlu0 %v4708, 96
  %v4883 = vpop.permute.xlu0 %4882
  %4884 = vrot.lane.b32.xlu0 %v4717, 96
  %v4885 = vpop.permute.xlu0 %4884
  %4886 = vrot.lane.b32.xlu0 %v4726, 96
  %v4887 = vpop.permute.xlu0 %4886
  %4888 = vrot.lane.b32.xlu0 %v4735, 96
  %v4889 = vpop.permute.xlu0 %4888
  %4890 = vrot.lane.b32.xlu0 %v4744, 96
  %v4891 = vpop.permute.xlu0 %4890
  %4892 = vrot.lane.b32.xlu0 %v4753, 96
  %v4893 = vpop.permute.xlu0 %4892
  %4894 = vrot.lane.b32.xlu0 %v4762, 96
  %v4895 = vpop.permute.xlu0 %4894
  %4896 = vrot.lane.b32.xlu0 %v4771, 96
  %v4897 = vpop.permute.xlu0 %4896
  %4898 = vrot.lane.b32.xlu0 %v4780, 96
  %v4899 = vpop.permute.xlu0 %4898
  %4900 = vrot.lane.b32.xlu0 %v4789, 96
  %v4901 = vpop.permute.xlu0 %4900
  %4902 = vrot.lane.b32.xlu0 %v4798, 96
  %v4903 = vpop.permute.xlu0 %4902
  %4904 = vrot.lane.b32.xlu0 %v4807, 96
  %v4905 = vpop.permute.xlu0 %4904
  %4906 = vrot.lane.b32.xlu0 %v4816, 96
  %v4907 = vpop.permute.xlu0 %4906
  %4908 = vrot.lane.b32.xlu0 %v4825, 96
  %v4909 = vpop.permute.xlu0 %4908
  %4910 = vrot.lane.b32.xlu0 %v4834, 96
  %v4911 = vpop.permute.xlu0 %4910
  %4912 = vrot.lane.b32.xlu0 %v4843, 96
  %v4913 = vpop.permute.xlu0 %4912
  %4914 = vrot.lane.b32.xlu0 %v4852, 96
  %v4915 = vpop.permute.xlu0 %4914
  %4916 = vrot.lane.b32.xlu0 %v4861, 96
  %v4917 = vpop.permute.xlu0 %4916
  %vm4946 = vcmask 1044224
  %4947 = vst.msk [vmem:[#allocation4] sm:$0xf] %vm4946, %v4863
  %4948 = vst.msk [vmem:[#allocation4 + $0xc] sm:$0xf] %vm4946, %v4865
  %4949 = vst.msk [vmem:[#allocation4 + $0x18] sm:$0xf] %vm4946, %v4867
  %4950 = vst.msk [vmem:[#allocation4 + $0x24] sm:$0xf] %vm4946, %v4869
  %4951 = vst.msk [vmem:[#allocation4 + $0x30] sm:$0xf] %vm4946, %v4871
  %4952 = vst.msk [vmem:[#allocation4 + $0x3c] sm:$0xf] %vm4946, %v4873
  %4953 = vst.msk [vmem:[#allocation4 + $0x48] sm:$0xf] %vm4946, %v4875
  %4954 = vst.msk [vmem:[#allocation4 + $0x54] sm:$0xf] %vm4946, %v4877
  %4955 = vst.msk [vmem:[#allocation4 + $0x60] sm:$0xf] %vm4946, %v4879
  %4956 = vst.msk [vmem:[#allocation4 + $0x6c] sm:$0xf] %vm4946, %v4881
  %4957 = vst.msk [vmem:[#allocation4 + $0x78] sm:$0xf] %vm4946, %v4883
  %4958 = vst.msk [vmem:[#allocation4 + $0x84] sm:$0xf] %vm4946, %v4885
  %4959 = vst.msk [vmem:[#allocation4 + $0x90] sm:$0xf] %vm4946, %v4887
  %4960 = vst.msk [vmem:[#allocation4 + $0x9c] sm:$0xf] %vm4946, %v4889
  %4961 = vst.msk [vmem:[#allocation4 + $0xa8] sm:$0xf] %vm4946, %v4891
  %4962 = vst.msk [vmem:[#allocation4 + $0xb4] sm:$0xf] %vm4946, %v4893
  %4963 = vst.msk [vmem:[#allocation4 + $0xc0] sm:$0xf] %vm4946, %v4895
  %4964 = vst.msk [vmem:[#allocation4 + $0xcc] sm:$0xf] %vm4946, %v4897
  %4965 = vst.msk [vmem:[#allocation4 + $0xd8] sm:$0xf] %vm4946, %v4899
  %4966 = vst.msk [vmem:[#allocation4 + $0xe4] sm:$0xf] %vm4946, %v4901
  %4967 = vst.msk [vmem:[#allocation4 + $0xf0] sm:$0xf] %vm4946, %v4903
  %4968 = vst.msk [vmem:[#allocation4 + $0xfc] sm:$0xf] %vm4946, %v4905
  %4969 = vst.msk [vmem:[#allocation4 + $0x108] sm:$0xf] %vm4946, %v4907
  %4970 = vst.msk [vmem:[#allocation4 + $0x114] sm:$0xf] %vm4946, %v4909
  %4971 = vst.msk [vmem:[#allocation4 + $0x120] sm:$0xf] %vm4946, %v4911
  %4972 = vst.msk [vmem:[#allocation4 + $0x12c] sm:$0xf] %vm4946, %v4913
  %4973 = vst.msk [vmem:[#allocation4 + $0x138] sm:$0xf] %vm4946, %v4915
  %4974 = vst.msk [vmem:[#allocation4 + $0x144] sm:$0xf] %vm4946, %v4917
  %v4975 = vld [vmem:[#allocation3 + $0x10] sm:$0xf]
  %v4976 = vld [vmem:[#allocation3 + $0x14] sm:$0xf]
  %v4977 = vld [vmem:[#allocation3 + $0x18] sm:$0xf]
  %v4978 = vld [vmem:[#allocation3 + $0x1c] sm:$0xf]
  %v4979 = vld [vmem:[#allocation3 + $0x20] sm:$0xf]
  %v4980 = vld [vmem:[#allocation3 + $0x24] sm:$0xf]
  %v4981 = vld [vmem:[#allocation3 + $0x28] sm:$0xf]
  %v4982 = vld [vmem:[#allocation3 + $0x2c] sm:$0xf]
  %v4983 = vld [vmem:[#allocation3 + $0x30] sm:$0xf]
  %v4984 = vld [vmem:[#allocation3 + $0x34] sm:$0xf]
  %v4985 = vld [vmem:[#allocation3 + $0x38] sm:$0xf]
  %v4986 = vld [vmem:[#allocation3 + $0x3c] sm:$0xf]
  %v4987 = vld [vmem:[#allocation3 + $0x40] sm:$0xf]
  %v4988 = vld [vmem:[#allocation3 + $0x44] sm:$0xf]
  %v4989 = vld [vmem:[#allocation3 + $0x48] sm:$0xf]
  %v4990 = vld [vmem:[#allocation3 + $0x4c] sm:$0xf]
  %v4991 = vld [vmem:[#allocation3 + $0x50] sm:$0xf]
  %v4992 = vld [vmem:[#allocation3 + $0x54] sm:$0xf]
  %v4993 = vld [vmem:[#allocation3 + $0x58] sm:$0xf]
  %v4994 = vld [vmem:[#allocation3 + $0x5c] sm:$0xf]
  %v4995 = vld [vmem:[#allocation3 + $0x60] sm:$0xf]
  %v4996 = vld [vmem:[#allocation3 + $0x64] sm:$0xf]
  %v4997 = vld [vmem:[#allocation3 + $0x68] sm:$0xf]
  %v4998 = vld [vmem:[#allocation3 + $0x6c] sm:$0xf]
  %v4999 = vld [vmem:[#allocation3 + $0x70] sm:$0xf]
  %v5000 = vld [vmem:[#allocation3 + $0x74] sm:$0xf]
  %v5001 = vld [vmem:[#allocation3 + $0x78] sm:$0xf]
  %v5002 = vld [vmem:[#allocation3 + $0x7c] sm:$0xf]
  %5003 = vst.msk [vmem:[#allocation4 + $0x4] sm:$0xf] %vm2233, %v4975
  %5004 = vst.msk [vmem:[#allocation4 + $0x10] sm:$0xf] %vm2233, %v4976
  %5005 = vst.msk [vmem:[#allocation4 + $0x1c] sm:$0xf] %vm2233, %v4977
  %5006 = vst.msk [vmem:[#allocation4 + $0x28] sm:$0xf] %vm2233, %v4978
  %5007 = vst.msk [vmem:[#allocation4 + $0x34] sm:$0xf] %vm2233, %v4979
  %5008 = vst.msk [vmem:[#allocation4 + $0x40] sm:$0xf] %vm2233, %v4980
  %5009 = vst.msk [vmem:[#allocation4 + $0x4c] sm:$0xf] %vm2233, %v4981
  %5010 = vst.msk [vmem:[#allocation4 + $0x58] sm:$0xf] %vm2233, %v4982
  %5011 = vst.msk [vmem:[#allocation4 + $0x64] sm:$0xf] %vm2233, %v4983
  %5012 = vst.msk [vmem:[#allocation4 + $0x70] sm:$0xf] %vm2233, %v4984
  %5013 = vst.msk [vmem:[#allocation4 + $0x7c] sm:$0xf] %vm2233, %v4985
  %5014 = vst.msk [vmem:[#allocation4 + $0x88] sm:$0xf] %vm2233, %v4986
  %5015 = vst.msk [vmem:[#allocation4 + $0x94] sm:$0xf] %vm2233, %v4987
  %5016 = vst.msk [vmem:[#allocation4 + $0xa0] sm:$0xf] %vm2233, %v4988
  %5017 = vst.msk [vmem:[#allocation4 + $0xac] sm:$0xf] %vm2233, %v4989
  %5018 = vst.msk [vmem:[#allocation4 + $0xb8] sm:$0xf] %vm2233, %v4990
  %5019 = vst.msk [vmem:[#allocation4 + $0xc4] sm:$0xf] %vm2233, %v4991
  %5020 = vst.msk [vmem:[#allocation4 + $0xd0] sm:$0xf] %vm2233, %v4992
  %5021 = vst.msk [vmem:[#allocation4 + $0xdc] sm:$0xf] %vm2233, %v4993
  %5022 = vst.msk [vmem:[#allocation4 + $0xe8] sm:$0xf] %vm2233, %v4994
  %5023 = vst.msk [vmem:[#allocation4 + $0xf4] sm:$0xf] %vm2233, %v4995
  %5024 = vst.msk [vmem:[#allocation4 + $0x100] sm:$0xf] %vm2233, %v4996
  %5025 = vst.msk [vmem:[#allocation4 + $0x10c] sm:$0xf] %vm2233, %v4997
  %5026 = vst.msk [vmem:[#allocation4 + $0x118] sm:$0xf] %vm2233, %v4998
  %5027 = vst.msk [vmem:[#allocation4 + $0x124] sm:$0xf] %vm2233, %v4999
  %5028 = vst.msk [vmem:[#allocation4 + $0x130] sm:$0xf] %vm2233, %v5000
  %5029 = vst.msk [vmem:[#allocation4 + $0x13c] sm:$0xf] %vm2233, %v5001
  %5030 = vst.msk [vmem:[#allocation4 + $0x148] sm:$0xf] %vm2233, %v5002
  %v5031 = vld [vmem:[#allocation3 + $0x10] sm:$0xf]
  %v5032 = vld [vmem:[#allocation3 + $0x14] sm:$0xf]
  %v5033 = vld [vmem:[#allocation3 + $0x18] sm:$0xf]
  %v5034 = vld [vmem:[#allocation3 + $0x1c] sm:$0xf]
  %v5035 = vld [vmem:[#allocation3 + $0x20] sm:$0xf]
  %v5036 = vld [vmem:[#allocation3 + $0x24] sm:$0xf]
  %v5037 = vld [vmem:[#allocation3 + $0x28] sm:$0xf]
  %v5038 = vld [vmem:[#allocation3 + $0x2c] sm:$0xf]
  %v5039 = vld [vmem:[#allocation3 + $0x30] sm:$0xf]
  %v5040 = vld [vmem:[#allocation3 + $0x34] sm:$0xf]
  %v5041 = vld [vmem:[#allocation3 + $0x38] sm:$0xf]
  %v5042 = vld [vmem:[#allocation3 + $0x3c] sm:$0xf]
  %v5043 = vld [vmem:[#allocation3 + $0x40] sm:$0xf]
  %v5044 = vld [vmem:[#allocation3 + $0x44] sm:$0xf]
  %v5045 = vld [vmem:[#allocation3 + $0x48] sm:$0xf]
  %v5046 = vld [vmem:[#allocation3 + $0x4c] sm:$0xf]
  %v5047 = vld [vmem:[#allocation3 + $0x50] sm:$0xf]
  %v5048 = vld [vmem:[#allocation3 + $0x54] sm:$0xf]
  %v5049 = vld [vmem:[#allocation3 + $0x58] sm:$0xf]
  %v5050 = vld [vmem:[#allocation3 + $0x5c] sm:$0xf]
  %v5051 = vld [vmem:[#allocation3 + $0x60] sm:$0xf]
  %v5052 = vld [vmem:[#allocation3 + $0x64] sm:$0xf]
  %v5053 = vld [vmem:[#allocation3 + $0x68] sm:$0xf]
  %v5054 = vld [vmem:[#allocation3 + $0x6c] sm:$0xf]
  %v5055 = vld [vmem:[#allocation3 + $0x70] sm:$0xf]
  %v5056 = vld [vmem:[#allocation3 + $0x74] sm:$0xf]
  %v5057 = vld [vmem:[#allocation3 + $0x78] sm:$0xf]
  %v5058 = vld [vmem:[#allocation3 + $0x7c] sm:$0xf]
  %v5059 = vld [vmem:[#allocation3 + $0x80] sm:$0x1]
  %v5061 = vshrl.u32 %v5031, 16
  %v5063 = vrot.slane %v5061, 4
  %v5064 = vshll.u32 %v5031, 16
  %v5066 = vrot.slane %v5064, 5
  %v5067 = vor.u32 %v5063, %v5066
  %v5068 = vrot.slane %v5067, 4
  %v5070 = vshll.u32 %v5032, 16
  %v5072 = vrot.slane %v5070, 5
  %v5073 = vsel %vm4179, %v5068, %v5072
  %v5074 = vshrl.u32 %v5032, 16
  %v5076 = vrot.slane %v5074, 4
  %v5077 = vor.u32 %v5076, %v5072
  %v5078 = vrot.slane %v5077, 4
  %v5080 = vshll.u32 %v5033, 16
  %v5082 = vrot.slane %v5080, 5
  %v5083 = vsel %vm4179, %v5078, %v5082
  %v5084 = vshrl.u32 %v5033, 16
  %v5086 = vrot.slane %v5084, 4
  %v5087 = vor.u32 %v5086, %v5082
  %v5088 = vrot.slane %v5087, 4
  %v5090 = vshll.u32 %v5034, 16
  %v5092 = vrot.slane %v5090, 5
  %v5093 = vsel %vm4179, %v5088, %v5092
  %v5094 = vshrl.u32 %v5034, 16
  %v5096 = vrot.slane %v5094, 4
  %v5097 = vor.u32 %v5096, %v5092
  %v5098 = vrot.slane %v5097, 4
  %v5100 = vshll.u32 %v5035, 16
  %v5102 = vrot.slane %v5100, 5
  %v5103 = vsel %vm4179, %v5098, %v5102
  %v5104 = vshrl.u32 %v5035, 16
  %v5106 = vrot.slane %v5104, 4
  %v5107 = vor.u32 %v5106, %v5102
  %v5108 = vrot.slane %v5107, 4
  %v5110 = vshll.u32 %v5036, 16
  %v5112 = vrot.slane %v5110, 5
  %v5113 = vsel %vm4179, %v5108, %v5112
  %v5114 = vshrl.u32 %v5036, 16
  %v5116 = vrot.slane %v5114, 4
  %v5117 = vor.u32 %v5116, %v5112
  %v5118 = vrot.slane %v5117, 4
  %v5120 = vshll.u32 %v5037, 16
  %v5122 = vrot.slane %v5120, 5
  %v5123 = vsel %vm4179, %v5118, %v5122
  %v5124 = vshrl.u32 %v5037, 16
  %v5126 = vrot.slane %v5124, 4
  %v5127 = vor.u32 %v5126, %v5122
  %v5128 = vrot.slane %v5127, 4
  %v5130 = vshll.u32 %v5038, 16
  %v5132 = vrot.slane %v5130, 5
  %v5133 = vsel %vm4179, %v5128, %v5132
  %v5134 = vshrl.u32 %v5038, 16
  %v5136 = vrot.slane %v5134, 4
  %v5137 = vor.u32 %v5136, %v5132
  %v5138 = vrot.slane %v5137, 4
  %v5140 = vshll.u32 %v5039, 16
  %v5142 = vrot.slane %v5140, 5
  %v5143 = vsel %vm4179, %v5138, %v5142
  %v5144 = vshrl.u32 %v5039, 16
  %v5146 = vrot.slane %v5144, 4
  %v5147 = vor.u32 %v5146, %v5142
  %v5148 = vrot.slane %v5147, 4
  %v5150 = vshll.u32 %v5040, 16
  %v5152 = vrot.slane %v5150, 5
  %v5153 = vsel %vm4179, %v5148, %v5152
  %v5154 = vshrl.u32 %v5040, 16
  %v5156 = vrot.slane %v5154, 4
  %v5157 = vor.u32 %v5156, %v5152
  %v5158 = vrot.slane %v5157, 4
  %v5160 = vshll.u32 %v5041, 16
  %v5162 = vrot.slane %v5160, 5
  %v5163 = vsel %vm4179, %v5158, %v5162
  %v5164 = vshrl.u32 %v5041, 16
  %v5166 = vrot.slane %v5164, 4
  %v5167 = vor.u32 %v5166, %v5162
  %v5168 = vrot.slane %v5167, 4
  %v5170 = vshll.u32 %v5042, 16
  %v5172 = vrot.slane %v5170, 5
  %v5173 = vsel %vm4179, %v5168, %v5172
  %v5174 = vshrl.u32 %v5042, 16
  %v5176 = vrot.slane %v5174, 4
  %v5177 = vor.u32 %v5176, %v5172
  %v5178 = vrot.slane %v5177, 4
  %v5180 = vshll.u32 %v5043, 16
  %v5182 = vrot.slane %v5180, 5
  %v5183 = vsel %vm4179, %v5178, %v5182
  %v5184 = vshrl.u32 %v5043, 16
  %v5186 = vrot.slane %v5184, 4
  %v5187 = vor.u32 %v5186, %v5182
  %v5188 = vrot.slane %v5187, 4
  %v5190 = vshll.u32 %v5044, 16
  %v5192 = vrot.slane %v5190, 5
  %v5193 = vsel %vm4179, %v5188, %v5192
  %v5194 = vshrl.u32 %v5044, 16
  %v5196 = vrot.slane %v5194, 4
  %v5197 = vor.u32 %v5196, %v5192
  %v5198 = vrot.slane %v5197, 4
  %v5200 = vshll.u32 %v5045, 16
  %v5202 = vrot.slane %v5200, 5
  %v5203 = vsel %vm4179, %v5198, %v5202
  %v5204 = vshrl.u32 %v5045, 16
  %v5206 = vrot.slane %v5204, 4
  %v5207 = vor.u32 %v5206, %v5202
  %v5208 = vrot.slane %v5207, 4
  %v5210 = vshll.u32 %v5046, 16
  %v5212 = vrot.slane %v5210, 5
  %v5213 = vsel %vm4179, %v5208, %v5212
  %v5214 = vshrl.u32 %v5046, 16
  %v5216 = vrot.slane %v5214, 4
  %v5217 = vor.u32 %v5216, %v5212
  %v5218 = vrot.slane %v5217, 4
  %v5220 = vshll.u32 %v5047, 16
  %v5222 = vrot.slane %v5220, 5
  %v5223 = vsel %vm4179, %v5218, %v5222
  %v5224 = vshrl.u32 %v5047, 16
  %v5226 = vrot.slane %v5224, 4
  %v5227 = vor.u32 %v5226, %v5222
  %v5228 = vrot.slane %v5227, 4
  %v5230 = vshll.u32 %v5048, 16
  %v5232 = vrot.slane %v5230, 5
  %v5233 = vsel %vm4179, %v5228, %v5232
  %v5234 = vshrl.u32 %v5048, 16
  %v5236 = vrot.slane %v5234, 4
  %v5237 = vor.u32 %v5236, %v5232
  %v5238 = vrot.slane %v5237, 4
  %v5240 = vshll.u32 %v5049, 16
  %v5242 = vrot.slane %v5240, 5
  %v5243 = vsel %vm4179, %v5238, %v5242
  %v5244 = vshrl.u32 %v5049, 16
  %v5246 = vrot.slane %v5244, 4
  %v5247 = vor.u32 %v5246, %v5242
  %v5248 = vrot.slane %v5247, 4
  %v5250 = vshll.u32 %v5050, 16
  %v5252 = vrot.slane %v5250, 5
  %v5253 = vsel %vm4179, %v5248, %v5252
  %v5254 = vshrl.u32 %v5050, 16
  %v5256 = vrot.slane %v5254, 4
  %v5257 = vor.u32 %v5256, %v5252
  %v5258 = vrot.slane %v5257, 4
  %v5260 = vshll.u32 %v5051, 16
  %v5262 = vrot.slane %v5260, 5
  %v5263 = vsel %vm4179, %v5258, %v5262
  %v5264 = vshrl.u32 %v5051, 16
  %v5266 = vrot.slane %v5264, 4
  %v5267 = vor.u32 %v5266, %v5262
  %v5268 = vrot.slane %v5267, 4
  %v5270 = vshll.u32 %v5052, 16
  %v5272 = vrot.slane %v5270, 5
  %v5273 = vsel %vm4179, %v5268, %v5272
  %v5274 = vshrl.u32 %v5052, 16
  %v5276 = vrot.slane %v5274, 4
  %v5277 = vor.u32 %v5276, %v5272
  %v5278 = vrot.slane %v5277, 4
  %v5280 = vshll.u32 %v5053, 16
  %v5282 = vrot.slane %v5280, 5
  %v5283 = vsel %vm4179, %v5278, %v5282
  %v5284 = vshrl.u32 %v5053, 16
  %v5286 = vrot.slane %v5284, 4
  %v5287 = vor.u32 %v5286, %v5282
  %v5288 = vrot.slane %v5287, 4
  %v5290 = vshll.u32 %v5054, 16
  %v5292 = vrot.slane %v5290, 5
  %v5293 = vsel %vm4179, %v5288, %v5292
  %v5294 = vshrl.u32 %v5054, 16
  %v5296 = vrot.slane %v5294, 4
  %v5297 = vor.u32 %v5296, %v5292
  %v5298 = vrot.slane %v5297, 4
  %v5300 = vshll.u32 %v5055, 16
  %v5302 = vrot.slane %v5300, 5
  %v5303 = vsel %vm4179, %v5298, %v5302
  %v5304 = vshrl.u32 %v5055, 16
  %v5306 = vrot.slane %v5304, 4
  %v5307 = vor.u32 %v5306, %v5302
  %v5308 = vrot.slane %v5307, 4
  %v5310 = vshll.u32 %v5056, 16
  %v5312 = vrot.slane %v5310, 5
  %v5313 = vsel %vm4179, %v5308, %v5312
  %v5314 = vshrl.u32 %v5056, 16
  %v5316 = vrot.slane %v5314, 4
  %v5317 = vor.u32 %v5316, %v5312
  %v5318 = vrot.slane %v5317, 4
  %v5320 = vshll.u32 %v5057, 16
  %v5322 = vrot.slane %v5320, 5
  %v5323 = vsel %vm4179, %v5318, %v5322
  %v5324 = vshrl.u32 %v5057, 16
  %v5326 = vrot.slane %v5324, 4
  %v5327 = vor.u32 %v5326, %v5322
  %v5328 = vrot.slane %v5327, 4
  %v5330 = vshll.u32 %v5058, 16
  %v5332 = vrot.slane %v5330, 5
  %v5333 = vsel %vm4179, %v5328, %v5332
  %v5334 = vshrl.u32 %v5058, 16
  %v5336 = vrot.slane %v5334, 4
  %v5337 = vor.u32 %v5336, %v5332
  %v5338 = vrot.slane %v5337, 4
  %v5340 = vshll.u32 %v5059, 16
  %v5342 = vrot.slane %v5340, 5
  %v5343 = vsel %vm4179, %v5338, %v5342
  %5344 = vrot.lane.b32.xlu0 %v5073, 32
  %v5345 = vpop.permute.xlu0 %5344
  %5346 = vrot.lane.b32.xlu0 %v5083, 32
  %v5347 = vpop.permute.xlu0 %5346
  %5348 = vrot.lane.b32.xlu0 %v5093, 32
  %v5349 = vpop.permute.xlu0 %5348
  %5350 = vrot.lane.b32.xlu0 %v5103, 32
  %v5351 = vpop.permute.xlu0 %5350
  %5352 = vrot.lane.b32.xlu0 %v5113, 32
  %v5353 = vpop.permute.xlu0 %5352
  %5354 = vrot.lane.b32.xlu0 %v5123, 32
  %v5355 = vpop.permute.xlu0 %5354
  %5356 = vrot.lane.b32.xlu0 %v5133, 32
  %v5357 = vpop.permute.xlu0 %5356
  %5358 = vrot.lane.b32.xlu0 %v5143, 32
  %v5359 = vpop.permute.xlu0 %5358
  %5360 = vrot.lane.b32.xlu0 %v5153, 32
  %v5361 = vpop.permute.xlu0 %5360
  %5362 = vrot.lane.b32.xlu0 %v5163, 32
  %v5363 = vpop.permute.xlu0 %5362
  %5364 = vrot.lane.b32.xlu0 %v5173, 32
  %v5365 = vpop.permute.xlu0 %5364
  %5366 = vrot.lane.b32.xlu0 %v5183, 32
  %v5367 = vpop.permute.xlu0 %5366
  %5368 = vrot.lane.b32.xlu0 %v5193, 32
  %v5369 = vpop.permute.xlu0 %5368
  %5370 = vrot.lane.b32.xlu0 %v5203, 32
  %v5371 = vpop.permute.xlu0 %5370
  %5372 = vrot.lane.b32.xlu0 %v5213, 32
  %v5373 = vpop.permute.xlu0 %5372
  %5374 = vrot.lane.b32.xlu0 %v5223, 32
  %v5375 = vpop.permute.xlu0 %5374
  %5376 = vrot.lane.b32.xlu0 %v5233, 32
  %v5377 = vpop.permute.xlu0 %5376
  %5378 = vrot.lane.b32.xlu0 %v5243, 32
  %v5379 = vpop.permute.xlu0 %5378
  %5380 = vrot.lane.b32.xlu0 %v5253, 32
  %v5381 = vpop.permute.xlu0 %5380
  %5382 = vrot.lane.b32.xlu0 %v5263, 32
  %v5383 = vpop.permute.xlu0 %5382
  %5384 = vrot.lane.b32.xlu0 %v5273, 32
  %v5385 = vpop.permute.xlu0 %5384
  %5386 = vrot.lane.b32.xlu0 %v5283, 32
  %v5387 = vpop.permute.xlu0 %5386
  %5388 = vrot.lane.b32.xlu0 %v5293, 32
  %v5389 = vpop.permute.xlu0 %5388
  %5390 = vrot.lane.b32.xlu0 %v5303, 32
  %v5391 = vpop.permute.xlu0 %5390
  %5392 = vrot.lane.b32.xlu0 %v5313, 32
  %v5393 = vpop.permute.xlu0 %5392
  %5394 = vrot.lane.b32.xlu0 %v5323, 32
  %v5395 = vpop.permute.xlu0 %5394
  %5396 = vrot.lane.b32.xlu0 %v5333, 32
  %v5397 = vpop.permute.xlu0 %5396
  %5398 = vrot.lane.b32.xlu0 %v5343, 32
  %v5399 = vpop.permute.xlu0 %5398
  %5428 = vst.msk [vmem:[#allocation4 + $0x4] sm:$0xf] %vm4119, %v5345
  %5429 = vst.msk [vmem:[#allocation4 + $0x10] sm:$0xf] %vm4119, %v5347
  %5430 = vst.msk [vmem:[#allocation4 + $0x1c] sm:$0xf] %vm4119, %v5349
  %5431 = vst.msk [vmem:[#allocation4 + $0x28] sm:$0xf] %vm4119, %v5351
  %5432 = vst.msk [vmem:[#allocation4 + $0x34] sm:$0xf] %vm4119, %v5353
  %5433 = vst.msk [vmem:[#allocation4 + $0x40] sm:$0xf] %vm4119, %v5355
  %5434 = vst.msk [vmem:[#allocation4 + $0x4c] sm:$0xf] %vm4119, %v5357
  %5435 = vst.msk [vmem:[#allocation4 + $0x58] sm:$0xf] %vm4119, %v5359
  %5436 = vst.msk [vmem:[#allocation4 + $0x64] sm:$0xf] %vm4119, %v5361
  %5437 = vst.msk [vmem:[#allocation4 + $0x70] sm:$0xf] %vm4119, %v5363
  %5438 = vst.msk [vmem:[#allocation4 + $0x7c] sm:$0xf] %vm4119, %v5365
  %5439 = vst.msk [vmem:[#allocation4 + $0x88] sm:$0xf] %vm4119, %v5367
  %5440 = vst.msk [vmem:[#allocation4 + $0x94] sm:$0xf] %vm4119, %v5369
  %5441 = vst.msk [vmem:[#allocation4 + $0xa0] sm:$0xf] %vm4119, %v5371
  %5442 = vst.msk [vmem:[#allocation4 + $0xac] sm:$0xf] %vm4119, %v5373
  %5443 = vst.msk [vmem:[#allocation4 + $0xb8] sm:$0xf] %vm4119, %v5375
  %5444 = vst.msk [vmem:[#allocation4 + $0xc4] sm:$0xf] %vm4119, %v5377
  %5445 = vst.msk [vmem:[#allocation4 + $0xd0] sm:$0xf] %vm4119, %v5379
  %5446 = vst.msk [vmem:[#allocation4 + $0xdc] sm:$0xf] %vm4119, %v5381
  %5447 = vst.msk [vmem:[#allocation4 + $0xe8] sm:$0xf] %vm4119, %v5383
  %5448 = vst.msk [vmem:[#allocation4 + $0xf4] sm:$0xf] %vm4119, %v5385
  %5449 = vst.msk [vmem:[#allocation4 + $0x100] sm:$0xf] %vm4119, %v5387
  %5450 = vst.msk [vmem:[#allocation4 + $0x10c] sm:$0xf] %vm4119, %v5389
  %5451 = vst.msk [vmem:[#allocation4 + $0x118] sm:$0xf] %vm4119, %v5391
  %5452 = vst.msk [vmem:[#allocation4 + $0x124] sm:$0xf] %vm4119, %v5393
  %5453 = vst.msk [vmem:[#allocation4 + $0x130] sm:$0xf] %vm4119, %v5395
  %5454 = vst.msk [vmem:[#allocation4 + $0x13c] sm:$0xf] %vm4119, %v5397
  %5455 = vst.msk [vmem:[#allocation4 + $0x148] sm:$0xf] %vm4119, %v5399
  %v5456 = vld [vmem:[#allocation3 + $0x14] sm:$0x8]
  %v5457 = vld [vmem:[#allocation3 + $0x18] sm:$0xf]
  %v5458 = vld [vmem:[#allocation3 + $0x1c] sm:$0xf]
  %v5459 = vld [vmem:[#allocation3 + $0x20] sm:$0xf]
  %v5460 = vld [vmem:[#allocation3 + $0x24] sm:$0xf]
  %v5461 = vld [vmem:[#allocation3 + $0x28] sm:$0xf]
  %v5462 = vld [vmem:[#allocation3 + $0x2c] sm:$0xf]
  %v5463 = vld [vmem:[#allocation3 + $0x30] sm:$0xf]
  %v5464 = vld [vmem:[#allocation3 + $0x34] sm:$0xf]
  %v5465 = vld [vmem:[#allocation3 + $0x38] sm:$0xf]
  %v5466 = vld [vmem:[#allocation3 + $0x3c] sm:$0xf]
  %v5467 = vld [vmem:[#allocation3 + $0x40] sm:$0xf]
  %v5468 = vld [vmem:[#allocation3 + $0x44] sm:$0xf]
  %v5469 = vld [vmem:[#allocation3 + $0x48] sm:$0xf]
  %v5470 = vld [vmem:[#allocation3 + $0x4c] sm:$0xf]
  %v5471 = vld [vmem:[#allocation3 + $0x50] sm:$0xf]
  %v5472 = vld [vmem:[#allocation3 + $0x54] sm:$0xf]
  %v5473 = vld [vmem:[#allocation3 + $0x58] sm:$0xf]
  %v5474 = vld [vmem:[#allocation3 + $0x5c] sm:$0xf]
  %v5475 = vld [vmem:[#allocation3 + $0x60] sm:$0xf]
  %v5476 = vld [vmem:[#allocation3 + $0x64] sm:$0xf]
  %v5477 = vld [vmem:[#allocation3 + $0x68] sm:$0xf]
  %v5478 = vld [vmem:[#allocation3 + $0x6c] sm:$0xf]
  %v5479 = vld [vmem:[#allocation3 + $0x70] sm:$0xf]
  %v5480 = vld [vmem:[#allocation3 + $0x74] sm:$0xf]
  %v5481 = vld [vmem:[#allocation3 + $0x78] sm:$0xf]
  %v5482 = vld [vmem:[#allocation3 + $0x7c] sm:$0xf]
  %v5483 = vld [vmem:[#allocation3 + $0x80] sm:$0xf]
  %v5484 = vld [vmem:[#allocation3 + $0x84] sm:$0xf]
  %v5486 = vshrl.u32 %v5456, 16
  %v5488 = vrot.slane %v5486, 7
  %v5489 = vrot.slane %v5488, 4
  %v5491 = vshrl.u32 %v5457, 16
  %v5493 = vrot.slane %v5491, 7
  %v5494 = vshll.u32 %v5457, 16
  %v5496 = vor.u32 %v5493, %v5494
  %v5497 = vsel %vm3666, %v5489, %v5496
  %v5498 = vrot.slane %v5493, 4
  %v5500 = vshrl.u32 %v5458, 16
  %v5502 = vrot.slane %v5500, 7
  %v5503 = vshll.u32 %v5458, 16
  %v5505 = vor.u32 %v5502, %v5503
  %v5506 = vsel %vm3666, %v5498, %v5505
  %v5507 = vrot.slane %v5502, 4
  %v5509 = vshrl.u32 %v5459, 16
  %v5511 = vrot.slane %v5509, 7
  %v5512 = vshll.u32 %v5459, 16
  %v5514 = vor.u32 %v5511, %v5512
  %v5515 = vsel %vm3666, %v5507, %v5514
  %v5516 = vrot.slane %v5511, 4
  %v5518 = vshrl.u32 %v5460, 16
  %v5520 = vrot.slane %v5518, 7
  %v5521 = vshll.u32 %v5460, 16
  %v5523 = vor.u32 %v5520, %v5521
  %v5524 = vsel %vm3666, %v5516, %v5523
  %v5525 = vrot.slane %v5520, 4
  %v5527 = vshrl.u32 %v5461, 16
  %v5529 = vrot.slane %v5527, 7
  %v5530 = vshll.u32 %v5461, 16
  %v5532 = vor.u32 %v5529, %v5530
  %v5533 = vsel %vm3666, %v5525, %v5532
  %v5534 = vrot.slane %v5529, 4
  %v5536 = vshrl.u32 %v5462, 16
  %v5538 = vrot.slane %v5536, 7
  %v5539 = vshll.u32 %v5462, 16
  %v5541 = vor.u32 %v5538, %v5539
  %v5542 = vsel %vm3666, %v5534, %v5541
  %v5543 = vrot.slane %v5538, 4
  %v5545 = vshrl.u32 %v5463, 16
  %v5547 = vrot.slane %v5545, 7
  %v5548 = vshll.u32 %v5463, 16
  %v5550 = vor.u32 %v5547, %v5548
  %v5551 = vsel %vm3666, %v5543, %v5550
  %v5552 = vrot.slane %v5547, 4
  %v5554 = vshrl.u32 %v5464, 16
  %v5556 = vrot.slane %v5554, 7
  %v5557 = vshll.u32 %v5464, 16
  %v5559 = vor.u32 %v5556, %v5557
  %v5560 = vsel %vm3666, %v5552, %v5559
  %v5561 = vrot.slane %v5556, 4
  %v5563 = vshrl.u32 %v5465, 16
  %v5565 = vrot.slane %v5563, 7
  %v5566 = vshll.u32 %v5465, 16
  %v5568 = vor.u32 %v5565, %v5566
  %v5569 = vsel %vm3666, %v5561, %v5568
  %v5570 = vrot.slane %v5565, 4
  %v5572 = vshrl.u32 %v5466, 16
  %v5574 = vrot.slane %v5572, 7
  %v5575 = vshll.u32 %v5466, 16
  %v5577 = vor.u32 %v5574, %v5575
  %v5578 = vsel %vm3666, %v5570, %v5577
  %v5579 = vrot.slane %v5574, 4
  %v5581 = vshrl.u32 %v5467, 16
  %v5583 = vrot.slane %v5581, 7
  %v5584 = vshll.u32 %v5467, 16
  %v5586 = vor.u32 %v5583, %v5584
  %v5587 = vsel %vm3666, %v5579, %v5586
  %v5588 = vrot.slane %v5583, 4
  %v5590 = vshrl.u32 %v5468, 16
  %v5592 = vrot.slane %v5590, 7
  %v5593 = vshll.u32 %v5468, 16
  %v5595 = vor.u32 %v5592, %v5593
  %v5596 = vsel %vm3666, %v5588, %v5595
  %v5597 = vrot.slane %v5592, 4
  %v5599 = vshrl.u32 %v5469, 16
  %v5601 = vrot.slane %v5599, 7
  %v5602 = vshll.u32 %v5469, 16
  %v5604 = vor.u32 %v5601, %v5602
  %v5605 = vsel %vm3666, %v5597, %v5604
  %v5606 = vrot.slane %v5601, 4
  %v5608 = vshrl.u32 %v5470, 16
  %v5610 = vrot.slane %v5608, 7
  %v5611 = vshll.u32 %v5470, 16
  %v5613 = vor.u32 %v5610, %v5611
  %v5614 = vsel %vm3666, %v5606, %v5613
  %v5615 = vrot.slane %v5610, 4
  %v5617 = vshrl.u32 %v5471, 16
  %v5619 = vrot.slane %v5617, 7
  %v5620 = vshll.u32 %v5471, 16
  %v5622 = vor.u32 %v5619, %v5620
  %v5623 = vsel %vm3666, %v5615, %v5622
  %v5624 = vrot.slane %v5619, 4
  %v5626 = vshrl.u32 %v5472, 16
  %v5628 = vrot.slane %v5626, 7
  %v5629 = vshll.u32 %v5472, 16
  %v5631 = vor.u32 %v5628, %v5629
  %v5632 = vsel %vm3666, %v5624, %v5631
  %v5633 = vrot.slane %v5628, 4
  %v5635 = vshrl.u32 %v5473, 16
  %v5637 = vrot.slane %v5635, 7
  %v5638 = vshll.u32 %v5473, 16
  %v5640 = vor.u32 %v5637, %v5638
  %v5641 = vsel %vm3666, %v5633, %v5640
  %v5642 = vrot.slane %v5637, 4
  %v5644 = vshrl.u32 %v5474, 16
  %v5646 = vrot.slane %v5644, 7
  %v5647 = vshll.u32 %v5474, 16
  %v5649 = vor.u32 %v5646, %v5647
  %v5650 = vsel %vm3666, %v5642, %v5649
  %v5651 = vrot.slane %v5646, 4
  %v5653 = vshrl.u32 %v5475, 16
  %v5655 = vrot.slane %v5653, 7
  %v5656 = vshll.u32 %v5475, 16
  %v5658 = vor.u32 %v5655, %v5656
  %v5659 = vsel %vm3666, %v5651, %v5658
  %v5660 = vrot.slane %v5655, 4
  %v5662 = vshrl.u32 %v5476, 16
  %v5664 = vrot.slane %v5662, 7
  %v5665 = vshll.u32 %v5476, 16
  %v5667 = vor.u32 %v5664, %v5665
  %v5668 = vsel %vm3666, %v5660, %v5667
  %v5669 = vrot.slane %v5664, 4
  %v5671 = vshrl.u32 %v5477, 16
  %v5673 = vrot.slane %v5671, 7
  %v5674 = vshll.u32 %v5477, 16
  %v5676 = vor.u32 %v5673, %v5674
  %v5677 = vsel %vm3666, %v5669, %v5676
  %v5678 = vrot.slane %v5673, 4
  %v5680 = vshrl.u32 %v5478, 16
  %v5682 = vrot.slane %v5680, 7
  %v5683 = vshll.u32 %v5478, 16
  %v5685 = vor.u32 %v5682, %v5683
  %v5686 = vsel %vm3666, %v5678, %v5685
  %v5687 = vrot.slane %v5682, 4
  %v5689 = vshrl.u32 %v5479, 16
  %v5691 = vrot.slane %v5689, 7
  %v5692 = vshll.u32 %v5479, 16
  %v5694 = vor.u32 %v5691, %v5692
  %v5695 = vsel %vm3666, %v5687, %v5694
  %v5696 = vrot.slane %v5691, 4
  %v5698 = vshrl.u32 %v5480, 16
  %v5700 = vrot.slane %v5698, 7
  %v5701 = vshll.u32 %v5480, 16
  %v5703 = vor.u32 %v5700, %v5701
  %v5704 = vsel %vm3666, %v5696, %v5703
  %v5705 = vrot.slane %v5700, 4
  %v5707 = vshrl.u32 %v5481, 16
  %v5709 = vrot.slane %v5707, 7
  %v5710 = vshll.u32 %v5481, 16
  %v5712 = vor.u32 %v5709, %v5710
  %v5713 = vsel %vm3666, %v5705, %v5712
  %v5714 = vrot.slane %v5709, 4
  %v5716 = vshrl.u32 %v5482, 16
  %v5718 = vrot.slane %v5716, 7
  %v5719 = vshll.u32 %v5482, 16
  %v5721 = vor.u32 %v5718, %v5719
  %v5722 = vsel %vm3666, %v5714, %v5721
  %v5723 = vrot.slane %v5718, 4
  %v5725 = vshrl.u32 %v5483, 16
  %v5727 = vrot.slane %v5725, 7
  %v5728 = vshll.u32 %v5483, 16
  %v5730 = vor.u32 %v5727, %v5728
  %v5731 = vsel %vm3666, %v5723, %v5730
  %v5732 = vrot.slane %v5727, 4
  %v5734 = vshrl.u32 %v5484, 16
  %v5736 = vrot.slane %v5734, 7
  %v5737 = vshll.u32 %v5484, 16
  %v5739 = vor.u32 %v5736, %v5737
  %v5740 = vsel %vm3666, %v5732, %v5739
  %5741 = vrot.lane.b32.xlu0 %v5497, 64
  %v5742 = vpop.permute.xlu0 %5741
  %5743 = vrot.lane.b32.xlu0 %v5506, 64
  %v5744 = vpop.permute.xlu0 %5743
  %5745 = vrot.lane.b32.xlu0 %v5515, 64
  %v5746 = vpop.permute.xlu0 %5745
  %5747 = vrot.lane.b32.xlu0 %v5524, 64
  %v5748 = vpop.permute.xlu0 %5747
  %5749 = vrot.lane.b32.xlu0 %v5533, 64
  %v5750 = vpop.permute.xlu0 %5749
  %5751 = vrot.lane.b32.xlu0 %v5542, 64
  %v5752 = vpop.permute.xlu0 %5751
  %5753 = vrot.lane.b32.xlu0 %v5551, 64
  %v5754 = vpop.permute.xlu0 %5753
  %5755 = vrot.lane.b32.xlu0 %v5560, 64
  %v5756 = vpop.permute.xlu0 %5755
  %5757 = vrot.lane.b32.xlu0 %v5569, 64
  %v5758 = vpop.permute.xlu0 %5757
  %5759 = vrot.lane.b32.xlu0 %v5578, 64
  %v5760 = vpop.permute.xlu0 %5759
  %5761 = vrot.lane.b32.xlu0 %v5587, 64
  %v5762 = vpop.permute.xlu0 %5761
  %5763 = vrot.lane.b32.xlu0 %v5596, 64
  %v5764 = vpop.permute.xlu0 %5763
  %5765 = vrot.lane.b32.xlu0 %v5605, 64
  %v5766 = vpop.permute.xlu0 %5765
  %5767 = vrot.lane.b32.xlu0 %v5614, 64
  %v5768 = vpop.permute.xlu0 %5767
  %5769 = vrot.lane.b32.xlu0 %v5623, 64
  %v5770 = vpop.permute.xlu0 %5769
  %5771 = vrot.lane.b32.xlu0 %v5632, 64
  %v5772 = vpop.permute.xlu0 %5771
  %5773 = vrot.lane.b32.xlu0 %v5641, 64
  %v5774 = vpop.permute.xlu0 %5773
  %5775 = vrot.lane.b32.xlu0 %v5650, 64
  %v5776 = vpop.permute.xlu0 %5775
  %5777 = vrot.lane.b32.xlu0 %v5659, 64
  %v5778 = vpop.permute.xlu0 %5777
  %5779 = vrot.lane.b32.xlu0 %v5668, 64
  %v5780 = vpop.permute.xlu0 %5779
  %5781 = vrot.lane.b32.xlu0 %v5677, 64
  %v5782 = vpop.permute.xlu0 %5781
  %5783 = vrot.lane.b32.xlu0 %v5686, 64
  %v5784 = vpop.permute.xlu0 %5783
  %5785 = vrot.lane.b32.xlu0 %v5695, 64
  %v5786 = vpop.permute.xlu0 %5785
  %5787 = vrot.lane.b32.xlu0 %v5704, 64
  %v5788 = vpop.permute.xlu0 %5787
  %5789 = vrot.lane.b32.xlu0 %v5713, 64
  %v5790 = vpop.permute.xlu0 %5789
  %5791 = vrot.lane.b32.xlu0 %v5722, 64
  %v5792 = vpop.permute.xlu0 %5791
  %5793 = vrot.lane.b32.xlu0 %v5731, 64
  %v5794 = vpop.permute.xlu0 %5793
  %5795 = vrot.lane.b32.xlu0 %v5740, 64
  %v5796 = vpop.permute.xlu0 %5795
  %5825 = vst.msk [vmem:[#allocation4 + $0x4] sm:$0xf] %vm4548, %v5742
  %5826 = vst.msk [vmem:[#allocation4 + $0x10] sm:$0xf] %vm4548, %v5744
  %5827 = vst.msk [vmem:[#allocation4 + $0x1c] sm:$0xf] %vm4548, %v5746
  %5828 = vst.msk [vmem:[#allocation4 + $0x28] sm:$0xf] %vm4548, %v5748
  %5829 = vst.msk [vmem:[#allocation4 + $0x34] sm:$0xf] %vm4548, %v5750
  %5830 = vst.msk [vmem:[#allocation4 + $0x40] sm:$0xf] %vm4548, %v5752
  %5831 = vst.msk [vmem:[#allocation4 + $0x4c] sm:$0xf] %vm4548, %v5754
  %5832 = vst.msk [vmem:[#allocation4 + $0x58] sm:$0xf] %vm4548, %v5756
  %5833 = vst.msk [vmem:[#allocation4 + $0x64] sm:$0xf] %vm4548, %v5758
  %5834 = vst.msk [vmem:[#allocation4 + $0x70] sm:$0xf] %vm4548, %v5760
  %5835 = vst.msk [vmem:[#allocation4 + $0x7c] sm:$0xf] %vm4548, %v5762
  %5836 = vst.msk [vmem:[#allocation4 + $0x88] sm:$0xf] %vm4548, %v5764
  %5837 = vst.msk [vmem:[#allocation4 + $0x94] sm:$0xf] %vm4548, %v5766
  %5838 = vst.msk [vmem:[#allocation4 + $0xa0] sm:$0xf] %vm4548, %v5768
  %5839 = vst.msk [vmem:[#allocation4 + $0xac] sm:$0xf] %vm4548, %v5770
  %5840 = vst.msk [vmem:[#allocation4 + $0xb8] sm:$0xf] %vm4548, %v5772
  %5841 = vst.msk [vmem:[#allocation4 + $0xc4] sm:$0xf] %vm4548, %v5774
  %5842 = vst.msk [vmem:[#allocation4 + $0xd0] sm:$0xf] %vm4548, %v5776
  %5843 = vst.msk [vmem:[#allocation4 + $0xdc] sm:$0xf] %vm4548, %v5778
  %5844 = vst.msk [vmem:[#allocation4 + $0xe8] sm:$0xf] %vm4548, %v5780
  %5845 = vst.msk [vmem:[#allocation4 + $0xf4] sm:$0xf] %vm4548, %v5782
  %5846 = vst.msk [vmem:[#allocation4 + $0x100] sm:$0xf] %vm4548, %v5784
  %5847 = vst.msk [vmem:[#allocation4 + $0x10c] sm:$0xf] %vm4548, %v5786
  %5848 = vst.msk [vmem:[#allocation4 + $0x118] sm:$0xf] %vm4548, %v5788
  %5849 = vst.msk [vmem:[#allocation4 + $0x124] sm:$0xf] %vm4548, %v5790
  %5850 = vst.msk [vmem:[#allocation4 + $0x130] sm:$0xf] %vm4548, %v5792
  %5851 = vst.msk [vmem:[#allocation4 + $0x13c] sm:$0xf] %vm4548, %v5794
  %5852 = vst.msk [vmem:[#allocation4 + $0x148] sm:$0xf] %vm4548, %v5796
  %v5853 = vld [vmem:[#allocation3 + $0x18] sm:$0xf]
  %v5854 = vld [vmem:[#allocation3 + $0x1c] sm:$0xf]
  %v5855 = vld [vmem:[#allocation3 + $0x20] sm:$0xf]
  %v5856 = vld [vmem:[#allocation3 + $0x24] sm:$0xf]
  %v5857 = vld [vmem:[#allocation3 + $0x28] sm:$0xf]
  %v5858 = vld [vmem:[#allocation3 + $0x2c] sm:$0xf]
  %v5859 = vld [vmem:[#allocation3 + $0x30] sm:$0xf]
  %v5860 = vld [vmem:[#allocation3 + $0x34] sm:$0xf]
  %v5861 = vld [vmem:[#allocation3 + $0x38] sm:$0xf]
  %v5862 = vld [vmem:[#allocation3 + $0x3c] sm:$0xf]
  %v5863 = vld [vmem:[#allocation3 + $0x40] sm:$0xf]
  %v5864 = vld [vmem:[#allocation3 + $0x44] sm:$0xf]
  %v5865 = vld [vmem:[#allocation3 + $0x48] sm:$0xf]
  %v5866 = vld [vmem:[#allocation3 + $0x4c] sm:$0xf]
  %v5867 = vld [vmem:[#allocation3 + $0x50] sm:$0xf]
  %v5868 = vld [vmem:[#allocation3 + $0x54] sm:$0xf]
  %v5869 = vld [vmem:[#allocation3 + $0x58] sm:$0xf]
  %v5870 = vld [vmem:[#allocation3 + $0x5c] sm:$0xf]
  %v5871 = vld [vmem:[#allocation3 + $0x60] sm:$0xf]
  %v5872 = vld [vmem:[#allocation3 + $0x64] sm:$0xf]
  %v5873 = vld [vmem:[#allocation3 + $0x68] sm:$0xf]
  %v5874 = vld [vmem:[#allocation3 + $0x6c] sm:$0xf]
  %v5875 = vld [vmem:[#allocation3 + $0x70] sm:$0xf]
  %v5876 = vld [vmem:[#allocation3 + $0x74] sm:$0xf]
  %v5877 = vld [vmem:[#allocation3 + $0x78] sm:$0xf]
  %v5878 = vld [vmem:[#allocation3 + $0x7c] sm:$0xf]
  %v5879 = vld [vmem:[#allocation3 + $0x80] sm:$0xf]
  %v5880 = vld [vmem:[#allocation3 + $0x84] sm:$0xf]
  %5909 = vrot.lane.b32.xlu0 %v5853, 96
  %v5910 = vpop.permute.xlu0 %5909
  %5911 = vrot.lane.b32.xlu0 %v5854, 96
  %v5912 = vpop.permute.xlu0 %5911
  %5913 = vrot.lane.b32.xlu0 %v5855, 96
  %v5914 = vpop.permute.xlu0 %5913
  %5915 = vrot.lane.b32.xlu0 %v5856, 96
  %v5916 = vpop.permute.xlu0 %5915
  %5917 = vrot.lane.b32.xlu0 %v5857, 96
  %v5918 = vpop.permute.xlu0 %5917
  %5919 = vrot.lane.b32.xlu0 %v5858, 96
  %v5920 = vpop.permute.xlu0 %5919
  %5921 = vrot.lane.b32.xlu0 %v5859, 96
  %v5922 = vpop.permute.xlu0 %5921
  %5923 = vrot.lane.b32.xlu0 %v5860, 96
  %v5924 = vpop.permute.xlu0 %5923
  %5925 = vrot.lane.b32.xlu0 %v5861, 96
  %v5926 = vpop.permute.xlu0 %5925
  %5927 = vrot.lane.b32.xlu0 %v5862, 96
  %v5928 = vpop.permute.xlu0 %5927
  %5929 = vrot.lane.b32.xlu0 %v5863, 96
  %v5930 = vpop.permute.xlu0 %5929
  %5931 = vrot.lane.b32.xlu0 %v5864, 96
  %v5932 = vpop.permute.xlu0 %5931
  %5933 = vrot.lane.b32.xlu0 %v5865, 96
  %v5934 = vpop.permute.xlu0 %5933
  %5935 = vrot.lane.b32.xlu0 %v5866, 96
  %v5936 = vpop.permute.xlu0 %5935
  %5937 = vrot.lane.b32.xlu0 %v5867, 96
  %v5938 = vpop.permute.xlu0 %5937
  %5939 = vrot.lane.b32.xlu0 %v5868, 96
  %v5940 = vpop.permute.xlu0 %5939
  %5941 = vrot.lane.b32.xlu0 %v5869, 96
  %v5942 = vpop.permute.xlu0 %5941
  %5943 = vrot.lane.b32.xlu0 %v5870, 96
  %v5944 = vpop.permute.xlu0 %5943
  %5945 = vrot.lane.b32.xlu0 %v5871, 96
  %v5946 = vpop.permute.xlu0 %5945
  %5947 = vrot.lane.b32.xlu0 %v5872, 96
  %v5948 = vpop.permute.xlu0 %5947
  %5949 = vrot.lane.b32.xlu0 %v5873, 96
  %v5950 = vpop.permute.xlu0 %5949
  %5951 = vrot.lane.b32.xlu0 %v5874, 96
  %v5952 = vpop.permute.xlu0 %5951
  %5953 = vrot.lane.b32.xlu0 %v5875, 96
  %v5954 = vpop.permute.xlu0 %5953
  %5955 = vrot.lane.b32.xlu0 %v5876, 96
  %v5956 = vpop.permute.xlu0 %5955
  %5957 = vrot.lane.b32.xlu0 %v5877, 96
  %v5958 = vpop.permute.xlu0 %5957
  %5959 = vrot.lane.b32.xlu0 %v5878, 96
  %v5960 = vpop.permute.xlu0 %5959
  %5961 = vrot.lane.b32.xlu0 %v5879, 96
  %v5962 = vpop.permute.xlu0 %5961
  %5963 = vrot.lane.b32.xlu0 %v5880, 96
  %v5964 = vpop.permute.xlu0 %5963
  %5993 = vst.msk [vmem:[#allocation4 + $0x4] sm:$0xf] %vm4946, %v5910
  %5994 = vst.msk [vmem:[#allocation4 + $0x10] sm:$0xf] %vm4946, %v5912
  %5995 = vst.msk [vmem:[#allocation4 + $0x1c] sm:$0xf] %vm4946, %v5914
  %5996 = vst.msk [vmem:[#allocation4 + $0x28] sm:$0xf] %vm4946, %v5916
  %5997 = vst.msk [vmem:[#allocation4 + $0x34] sm:$0xf] %vm4946, %v5918
  %5998 = vst.msk [vmem:[#allocation4 + $0x40] sm:$0xf] %vm4946, %v5920
  %5999 = vst.msk [vmem:[#allocation4 + $0x4c] sm:$0xf] %vm4946, %v5922
  %6000 = vst.msk [vmem:[#allocation4 + $0x58] sm:$0xf] %vm4946, %v5924
  %6001 = vst.msk [vmem:[#allocation4 + $0x64] sm:$0xf] %vm4946, %v5926
  %6002 = vst.msk [vmem:[#allocation4 + $0x70] sm:$0xf] %vm4946, %v5928
  %6003 = vst.msk [vmem:[#allocation4 + $0x7c] sm:$0xf] %vm4946, %v5930
  %6004 = vst.msk [vmem:[#allocation4 + $0x88] sm:$0xf] %vm4946, %v5932
  %6005 = vst.msk [vmem:[#allocation4 + $0x94] sm:$0xf] %vm4946, %v5934
  %6006 = vst.msk [vmem:[#allocation4 + $0xa0] sm:$0xf] %vm4946, %v5936
  %6007 = vst.msk [vmem:[#allocation4 + $0xac] sm:$0xf] %vm4946, %v5938
  %6008 = vst.msk [vmem:[#allocation4 + $0xb8] sm:$0xf] %vm4946, %v5940
  %6009 = vst.msk [vmem:[#allocation4 + $0xc4] sm:$0xf] %vm4946, %v5942
  %6010 = vst.msk [vmem:[#allocation4 + $0xd0] sm:$0xf] %vm4946, %v5944
  %6011 = vst.msk [vmem:[#allocation4 + $0xdc] sm:$0xf] %vm4946, %v5946
  %6012 = vst.msk [vmem:[#allocation4 + $0xe8] sm:$0xf] %vm4946, %v5948
  %6013 = vst.msk [vmem:[#allocation4 + $0xf4] sm:$0xf] %vm4946, %v5950
  %6014 = vst.msk [vmem:[#allocation4 + $0x100] sm:$0xf] %vm4946, %v5952
  %6015 = vst.msk [vmem:[#allocation4 + $0x10c] sm:$0xf] %vm4946, %v5954
  %6016 = vst.msk [vmem:[#allocation4 + $0x118] sm:$0xf] %vm4946, %v5956
  %6017 = vst.msk [vmem:[#allocation4 + $0x124] sm:$0xf] %vm4946, %v5958
  %6018 = vst.msk [vmem:[#allocation4 + $0x130] sm:$0xf] %vm4946, %v5960
  %6019 = vst.msk [vmem:[#allocation4 + $0x13c] sm:$0xf] %vm4946, %v5962
  %6020 = vst.msk [vmem:[#allocation4 + $0x148] sm:$0xf] %vm4946, %v5964
  %v6021 = vld [vmem:[#allocation3 + $0x18] sm:$0xf]
  %v6022 = vld [vmem:[#allocation3 + $0x1c] sm:$0xf]
  %v6023 = vld [vmem:[#allocation3 + $0x20] sm:$0xf]
  %v6024 = vld [vmem:[#allocation3 + $0x24] sm:$0xf]
  %v6025 = vld [vmem:[#allocation3 + $0x28] sm:$0xf]
  %v6026 = vld [vmem:[#allocation3 + $0x2c] sm:$0xf]
  %v6027 = vld [vmem:[#allocation3 + $0x30] sm:$0xf]
  %v6028 = vld [vmem:[#allocation3 + $0x34] sm:$0xf]
  %v6029 = vld [vmem:[#allocation3 + $0x38] sm:$0xf]
  %v6030 = vld [vmem:[#allocation3 + $0x3c] sm:$0xf]
  %v6031 = vld [vmem:[#allocation3 + $0x40] sm:$0xf]
  %v6032 = vld [vmem:[#allocation3 + $0x44] sm:$0xf]
  %v6033 = vld [vmem:[#allocation3 + $0x48] sm:$0xf]
  %v6034 = vld [vmem:[#allocation3 + $0x4c] sm:$0xf]
  %v6035 = vld [vmem:[#allocation3 + $0x50] sm:$0xf]
  %v6036 = vld [vmem:[#allocation3 + $0x54] sm:$0xf]
  %v6037 = vld [vmem:[#allocation3 + $0x58] sm:$0xf]
  %v6038 = vld [vmem:[#allocation3 + $0x5c] sm:$0xf]
  %v6039 = vld [vmem:[#allocation3 + $0x60] sm:$0xf]
  %v6040 = vld [vmem:[#allocation3 + $0x64] sm:$0xf]
  %v6041 = vld [vmem:[#allocation3 + $0x68] sm:$0xf]
  %v6042 = vld [vmem:[#allocation3 + $0x6c] sm:$0xf]
  %v6043 = vld [vmem:[#allocation3 + $0x70] sm:$0xf]
  %v6044 = vld [vmem:[#allocation3 + $0x74] sm:$0xf]
  %v6045 = vld [vmem:[#allocation3 + $0x78] sm:$0xf]
  %v6046 = vld [vmem:[#allocation3 + $0x7c] sm:$0xf]
  %v6047 = vld [vmem:[#allocation3 + $0x80] sm:$0xf]
  %v6048 = vld [vmem:[#allocation3 + $0x84] sm:$0xf]
  %v6049 = vld [vmem:[#allocation3 + $0x88] sm:$0x1]
  %v6051 = vshrl.u32 %v6021, 16
  %v6053 = vrot.slane %v6051, 4
  %v6054 = vshll.u32 %v6021, 16
  %v6056 = vrot.slane %v6054, 5
  %v6057 = vor.u32 %v6053, %v6056
  %v6058 = vrot.slane %v6057, 4
  %v6060 = vshll.u32 %v6022, 16
  %v6062 = vrot.slane %v6060, 5
  %v6063 = vsel %vm4179, %v6058, %v6062
  %v6064 = vshrl.u32 %v6022, 16
  %v6066 = vrot.slane %v6064, 4
  %v6067 = vor.u32 %v6066, %v6062
  %v6068 = vrot.slane %v6067, 4
  %v6070 = vshll.u32 %v6023, 16
  %v6072 = vrot.slane %v6070, 5
  %v6073 = vsel %vm4179, %v6068, %v6072
  %v6074 = vshrl.u32 %v6023, 16
  %v6076 = vrot.slane %v6074, 4
  %v6077 = vor.u32 %v6076, %v6072
  %v6078 = vrot.slane %v6077, 4
  %v6080 = vshll.u32 %v6024, 16
  %v6082 = vrot.slane %v6080, 5
  %v6083 = vsel %vm4179, %v6078, %v6082
  %v6084 = vshrl.u32 %v6024, 16
  %v6086 = vrot.slane %v6084, 4
  %v6087 = vor.u32 %v6086, %v6082
  %v6088 = vrot.slane %v6087, 4
  %v6090 = vshll.u32 %v6025, 16
  %v6092 = vrot.slane %v6090, 5
  %v6093 = vsel %vm4179, %v6088, %v6092
  %v6094 = vshrl.u32 %v6025, 16
  %v6096 = vrot.slane %v6094, 4
  %v6097 = vor.u32 %v6096, %v6092
  %v6098 = vrot.slane %v6097, 4
  %v6100 = vshll.u32 %v6026, 16
  %v6102 = vrot.slane %v6100, 5
  %v6103 = vsel %vm4179, %v6098, %v6102
  %v6104 = vshrl.u32 %v6026, 16
  %v6106 = vrot.slane %v6104, 4
  %v6107 = vor.u32 %v6106, %v6102
  %v6108 = vrot.slane %v6107, 4
  %v6110 = vshll.u32 %v6027, 16
  %v6112 = vrot.slane %v6110, 5
  %v6113 = vsel %vm4179, %v6108, %v6112
  %v6114 = vshrl.u32 %v6027, 16
  %v6116 = vrot.slane %v6114, 4
  %v6117 = vor.u32 %v6116, %v6112
  %v6118 = vrot.slane %v6117, 4
  %v6120 = vshll.u32 %v6028, 16
  %v6122 = vrot.slane %v6120, 5
  %v6123 = vsel %vm4179, %v6118, %v6122
  %v6124 = vshrl.u32 %v6028, 16
  %v6126 = vrot.slane %v6124, 4
  %v6127 = vor.u32 %v6126, %v6122
  %v6128 = vrot.slane %v6127, 4
  %v6130 = vshll.u32 %v6029, 16
  %v6132 = vrot.slane %v6130, 5
  %v6133 = vsel %vm4179, %v6128, %v6132
  %v6134 = vshrl.u32 %v6029, 16
  %v6136 = vrot.slane %v6134, 4
  %v6137 = vor.u32 %v6136, %v6132
  %v6138 = vrot.slane %v6137, 4
  %v6140 = vshll.u32 %v6030, 16
  %v6142 = vrot.slane %v6140, 5
  %v6143 = vsel %vm4179, %v6138, %v6142
  %v6144 = vshrl.u32 %v6030, 16
  %v6146 = vrot.slane %v6144, 4
  %v6147 = vor.u32 %v6146, %v6142
  %v6148 = vrot.slane %v6147, 4
  %v6150 = vshll.u32 %v6031, 16
  %v6152 = vrot.slane %v6150, 5
  %v6153 = vsel %vm4179, %v6148, %v6152
  %v6154 = vshrl.u32 %v6031, 16
  %v6156 = vrot.slane %v6154, 4
  %v6157 = vor.u32 %v6156, %v6152
  %v6158 = vrot.slane %v6157, 4
  %v6160 = vshll.u32 %v6032, 16
  %v6162 = vrot.slane %v6160, 5
  %v6163 = vsel %vm4179, %v6158, %v6162
  %v6164 = vshrl.u32 %v6032, 16
  %v6166 = vrot.slane %v6164, 4
  %v6167 = vor.u32 %v6166, %v6162
  %v6168 = vrot.slane %v6167, 4
  %v6170 = vshll.u32 %v6033, 16
  %v6172 = vrot.slane %v6170, 5
  %v6173 = vsel %vm4179, %v6168, %v6172
  %v6174 = vshrl.u32 %v6033, 16
  %v6176 = vrot.slane %v6174, 4
  %v6177 = vor.u32 %v6176, %v6172
  %v6178 = vrot.slane %v6177, 4
  %v6180 = vshll.u32 %v6034, 16
  %v6182 = vrot.slane %v6180, 5
  %v6183 = vsel %vm4179, %v6178, %v6182
  %v6184 = vshrl.u32 %v6034, 16
  %v6186 = vrot.slane %v6184, 4
  %v6187 = vor.u32 %v6186, %v6182
  %v6188 = vrot.slane %v6187, 4
  %v6190 = vshll.u32 %v6035, 16
  %v6192 = vrot.slane %v6190, 5
  %v6193 = vsel %vm4179, %v6188, %v6192
  %v6194 = vshrl.u32 %v6035, 16
  %v6196 = vrot.slane %v6194, 4
  %v6197 = vor.u32 %v6196, %v6192
  %v6198 = vrot.slane %v6197, 4
  %v6200 = vshll.u32 %v6036, 16
  %v6202 = vrot.slane %v6200, 5
  %v6203 = vsel %vm4179, %v6198, %v6202
  %v6204 = vshrl.u32 %v6036, 16
  %v6206 = vrot.slane %v6204, 4
  %v6207 = vor.u32 %v6206, %v6202
  %v6208 = vrot.slane %v6207, 4
  %v6210 = vshll.u32 %v6037, 16
  %v6212 = vrot.slane %v6210, 5
  %v6213 = vsel %vm4179, %v6208, %v6212
  %v6214 = vshrl.u32 %v6037, 16
  %v6216 = vrot.slane %v6214, 4
  %v6217 = vor.u32 %v6216, %v6212
  %v6218 = vrot.slane %v6217, 4
  %v6220 = vshll.u32 %v6038, 16
  %v6222 = vrot.slane %v6220, 5
  %v6223 = vsel %vm4179, %v6218, %v6222
  %v6224 = vshrl.u32 %v6038, 16
  %v6226 = vrot.slane %v6224, 4
  %v6227 = vor.u32 %v6226, %v6222
  %v6228 = vrot.slane %v6227, 4
  %v6230 = vshll.u32 %v6039, 16
  %v6232 = vrot.slane %v6230, 5
  %v6233 = vsel %vm4179, %v6228, %v6232
  %v6234 = vshrl.u32 %v6039, 16
  %v6236 = vrot.slane %v6234, 4
  %v6237 = vor.u32 %v6236, %v6232
  %v6238 = vrot.slane %v6237, 4
  %v6240 = vshll.u32 %v6040, 16
  %v6242 = vrot.slane %v6240, 5
  %v6243 = vsel %vm4179, %v6238, %v6242
  %v6244 = vshrl.u32 %v6040, 16
  %v6246 = vrot.slane %v6244, 4
  %v6247 = vor.u32 %v6246, %v6242
  %v6248 = vrot.slane %v6247, 4
  %v6250 = vshll.u32 %v6041, 16
  %v6252 = vrot.slane %v6250, 5
  %v6253 = vsel %vm4179, %v6248, %v6252
  %v6254 = vshrl.u32 %v6041, 16
  %v6256 = vrot.slane %v6254, 4
  %v6257 = vor.u32 %v6256, %v6252
  %v6258 = vrot.slane %v6257, 4
  %v6260 = vshll.u32 %v6042, 16
  %v6262 = vrot.slane %v6260, 5
  %v6263 = vsel %vm4179, %v6258, %v6262
  %v6264 = vshrl.u32 %v6042, 16
  %v6266 = vrot.slane %v6264, 4
  %v6267 = vor.u32 %v6266, %v6262
  %v6268 = vrot.slane %v6267, 4
  %v6270 = vshll.u32 %v6043, 16
  %v6272 = vrot.slane %v6270, 5
  %v6273 = vsel %vm4179, %v6268, %v6272
  %v6274 = vshrl.u32 %v6043, 16
  %v6276 = vrot.slane %v6274, 4
  %v6277 = vor.u32 %v6276, %v6272
  %v6278 = vrot.slane %v6277, 4
  %v6280 = vshll.u32 %v6044, 16
  %v6282 = vrot.slane %v6280, 5
  %v6283 = vsel %vm4179, %v6278, %v6282
  %v6284 = vshrl.u32 %v6044, 16
  %v6286 = vrot.slane %v6284, 4
  %v6287 = vor.u32 %v6286, %v6282
  %v6288 = vrot.slane %v6287, 4
  %v6290 = vshll.u32 %v6045, 16
  %v6292 = vrot.slane %v6290, 5
  %v6293 = vsel %vm4179, %v6288, %v6292
  %v6294 = vshrl.u32 %v6045, 16
  %v6296 = vrot.slane %v6294, 4
  %v6297 = vor.u32 %v6296, %v6292
  %v6298 = vrot.slane %v6297, 4
  %v6300 = vshll.u32 %v6046, 16
  %v6302 = vrot.slane %v6300, 5
  %v6303 = vsel %vm4179, %v6298, %v6302
  %v6304 = vshrl.u32 %v6046, 16
  %v6306 = vrot.slane %v6304, 4
  %v6307 = vor.u32 %v6306, %v6302
  %v6308 = vrot.slane %v6307, 4
  %v6310 = vshll.u32 %v6047, 16
  %v6312 = vrot.slane %v6310, 5
  %v6313 = vsel %vm4179, %v6308, %v6312
  %v6314 = vshrl.u32 %v6047, 16
  %v6316 = vrot.slane %v6314, 4
  %v6317 = vor.u32 %v6316, %v6312
  %v6318 = vrot.slane %v6317, 4
  %v6320 = vshll.u32 %v6048, 16
  %v6322 = vrot.slane %v6320, 5
  %v6323 = vsel %vm4179, %v6318, %v6322
  %v6324 = vshrl.u32 %v6048, 16
  %v6326 = vrot.slane %v6324, 4
  %v6327 = vor.u32 %v6326, %v6322
  %v6328 = vrot.slane %v6327, 4
  %v6330 = vshll.u32 %v6049, 16
  %v6332 = vrot.slane %v6330, 5
  %v6333 = vsel %vm4179, %v6328, %v6332
  %6362 = vst.msk [vmem:[#allocation4 + $0x8] sm:$0xf] %vm2233, %v6063
  %6363 = vst.msk [vmem:[#allocation4 + $0x14] sm:$0xf] %vm2233, %v6073
  %6364 = vst.msk [vmem:[#allocation4 + $0x20] sm:$0xf] %vm2233, %v6083
  %6365 = vst.msk [vmem:[#allocation4 + $0x2c] sm:$0xf] %vm2233, %v6093
  %6366 = vst.msk [vmem:[#allocation4 + $0x38] sm:$0xf] %vm2233, %v6103
  %6367 = vst.msk [vmem:[#allocation4 + $0x44] sm:$0xf] %vm2233, %v6113
  %6368 = vst.msk [vmem:[#allocation4 + $0x50] sm:$0xf] %vm2233, %v6123
  %6369 = vst.msk [vmem:[#allocation4 + $0x5c] sm:$0xf] %vm2233, %v6133
  %6370 = vst.msk [vmem:[#allocation4 + $0x68] sm:$0xf] %vm2233, %v6143
  %6371 = vst.msk [vmem:[#allocation4 + $0x74] sm:$0xf] %vm2233, %v6153
  %6372 = vst.msk [vmem:[#allocation4 + $0x80] sm:$0xf] %vm2233, %v6163
  %6373 = vst.msk [vmem:[#allocation4 + $0x8c] sm:$0xf] %vm2233, %v6173
  %6374 = vst.msk [vmem:[#allocation4 + $0x98] sm:$0xf] %vm2233, %v6183
  %6375 = vst.msk [vmem:[#allocation4 + $0xa4] sm:$0xf] %vm2233, %v6193
  %6376 = vst.msk [vmem:[#allocation4 + $0xb0] sm:$0xf] %vm2233, %v6203
  %6377 = vst.msk [vmem:[#allocation4 + $0xbc] sm:$0xf] %vm2233, %v6213
  %6378 = vst.msk [vmem:[#allocation4 + $0xc8] sm:$0xf] %vm2233, %v6223
  %6379 = vst.msk [vmem:[#allocation4 + $0xd4] sm:$0xf] %vm2233, %v6233
  %6380 = vst.msk [vmem:[#allocation4 + $0xe0] sm:$0xf] %vm2233, %v6243
  %6381 = vst.msk [vmem:[#allocation4 + $0xec] sm:$0xf] %vm2233, %v6253
  %6382 = vst.msk [vmem:[#allocation4 + $0xf8] sm:$0xf] %vm2233, %v6263
  %6383 = vst.msk [vmem:[#allocation4 + $0x104] sm:$0xf] %vm2233, %v6273
  %6384 = vst.msk [vmem:[#allocation4 + $0x110] sm:$0xf] %vm2233, %v6283
  %6385 = vst.msk [vmem:[#allocation4 + $0x11c] sm:$0xf] %vm2233, %v6293
  %6386 = vst.msk [vmem:[#allocation4 + $0x128] sm:$0xf] %vm2233, %v6303
  %6387 = vst.msk [vmem:[#allocation4 + $0x134] sm:$0xf] %vm2233, %v6313
  %6388 = vst.msk [vmem:[#allocation4 + $0x140] sm:$0xf] %vm2233, %v6323
  %6389 = vst.msk [vmem:[#allocation4 + $0x14c] sm:$0xf] %vm2233, %v6333
  %v6390 = vld [vmem:[%s3425 + $0x4] sm:$0x8]
  %v6391 = vld [vmem:[%s3425 + $0x8] sm:$0xf]
  %v6392 = vld [vmem:[%s3425 + $0xc] sm:$0xf]
  %v6393 = vld [vmem:[%s3425 + $0x10] sm:$0xf]
  %v6394 = vld [vmem:[%s3425 + $0x14] sm:$0xf]
  %v6395 = vld [vmem:[%s3425 + $0x18] sm:$0xf]
  %v6396 = vld [vmem:[%s3425 + $0x1c] sm:$0xf]
  %v6397 = vld [vmem:[%s3425 + $0x20] sm:$0xf]
  %v6398 = vld [vmem:[%s3425 + $0x24] sm:$0xf]
  %v6399 = vld [vmem:[%s3425 + $0x28] sm:$0xf]
  %v6400 = vld [vmem:[%s3425 + $0x2c] sm:$0xf]
  %v6401 = vld [vmem:[%s3425 + $0x30] sm:$0xf]
  %v6402 = vld [vmem:[%s3425 + $0x34] sm:$0xf]
  %v6403 = vld [vmem:[%s3425 + $0x38] sm:$0xf]
  %v6404 = vld [vmem:[%s3425 + $0x3c] sm:$0xf]
  %v6405 = vld [vmem:[%s3425 + $0x40] sm:$0xf]
  %v6406 = vld [vmem:[%s3425 + $0x44] sm:$0xf]
  %v6407 = vld [vmem:[%s3425 + $0x48] sm:$0xf]
  %v6408 = vld [vmem:[%s3425 + $0x4c] sm:$0xf]
  %v6409 = vld [vmem:[%s3425 + $0x50] sm:$0xf]
  %v6410 = vld [vmem:[%s3425 + $0x54] sm:$0xf]
  %v6411 = vld [vmem:[%s3425 + $0x58] sm:$0xf]
  %v6412 = vld [vmem:[%s3425 + $0x5c] sm:$0xf]
  %v6413 = vld [vmem:[%s3425 + $0x60] sm:$0xf]
  %v6414 = vld [vmem:[%s3425 + $0x64] sm:$0xf]
  %v6415 = vld [vmem:[%s3425 + $0x68] sm:$0xf]
  %v6416 = vld [vmem:[%s3425 + $0x6c] sm:$0xf]
  %v6417 = vld [vmem:[%s3425 + $0x70] sm:$0xf]
  %v6418 = vld [vmem:[%s3425 + $0x74] sm:$0xf]
  %v6420 = vshrl.u32 %v6390, 16
  %v6422 = vrot.slane %v6420, 7
  %v6423 = vrot.slane %v6422, 4
  %v6425 = vshrl.u32 %v6391, 16
  %v6427 = vrot.slane %v6425, 7
  %v6428 = vshll.u32 %v6391, 16
  %v6430 = vor.u32 %v6427, %v6428
  %v6431 = vsel %vm3666, %v6423, %v6430
  %v6432 = vrot.slane %v6427, 4
  %v6434 = vshrl.u32 %v6392, 16
  %v6436 = vrot.slane %v6434, 7
  %v6437 = vshll.u32 %v6392, 16
  %v6439 = vor.u32 %v6436, %v6437
  %v6440 = vsel %vm3666, %v6432, %v6439
  %v6441 = vrot.slane %v6436, 4
  %v6443 = vshrl.u32 %v6393, 16
  %v6445 = vrot.slane %v6443, 7
  %v6446 = vshll.u32 %v6393, 16
  %v6448 = vor.u32 %v6445, %v6446
  %v6449 = vsel %vm3666, %v6441, %v6448
  %v6450 = vrot.slane %v6445, 4
  %v6452 = vshrl.u32 %v6394, 16
  %v6454 = vrot.slane %v6452, 7
  %v6455 = vshll.u32 %v6394, 16
  %v6457 = vor.u32 %v6454, %v6455
  %v6458 = vsel %vm3666, %v6450, %v6457
  %v6459 = vrot.slane %v6454, 4
  %v6461 = vshrl.u32 %v6395, 16
  %v6463 = vrot.slane %v6461, 7
  %v6464 = vshll.u32 %v6395, 16
  %v6466 = vor.u32 %v6463, %v6464
  %v6467 = vsel %vm3666, %v6459, %v6466
  %v6468 = vrot.slane %v6463, 4
  %v6470 = vshrl.u32 %v6396, 16
  %v6472 = vrot.slane %v6470, 7
  %v6473 = vshll.u32 %v6396, 16
  %v6475 = vor.u32 %v6472, %v6473
  %v6476 = vsel %vm3666, %v6468, %v6475
  %v6477 = vrot.slane %v6472, 4
  %v6479 = vshrl.u32 %v6397, 16
  %v6481 = vrot.slane %v6479, 7
  %v6482 = vshll.u32 %v6397, 16
  %v6484 = vor.u32 %v6481, %v6482
  %v6485 = vsel %vm3666, %v6477, %v6484
  %v6486 = vrot.slane %v6481, 4
  %v6488 = vshrl.u32 %v6398, 16
  %v6490 = vrot.slane %v6488, 7
  %v6491 = vshll.u32 %v6398, 16
  %v6493 = vor.u32 %v6490, %v6491
  %v6494 = vsel %vm3666, %v6486, %v6493
  %v6495 = vrot.slane %v6490, 4
  %v6497 = vshrl.u32 %v6399, 16
  %v6499 = vrot.slane %v6497, 7
  %v6500 = vshll.u32 %v6399, 16
  %v6502 = vor.u32 %v6499, %v6500
  %v6503 = vsel %vm3666, %v6495, %v6502
  %v6504 = vrot.slane %v6499, 4
  %v6506 = vshrl.u32 %v6400, 16
  %v6508 = vrot.slane %v6506, 7
  %v6509 = vshll.u32 %v6400, 16
  %v6511 = vor.u32 %v6508, %v6509
  %v6512 = vsel %vm3666, %v6504, %v6511
  %v6513 = vrot.slane %v6508, 4
  %v6515 = vshrl.u32 %v6401, 16
  %v6517 = vrot.slane %v6515, 7
  %v6518 = vshll.u32 %v6401, 16
  %v6520 = vor.u32 %v6517, %v6518
  %v6521 = vsel %vm3666, %v6513, %v6520
  %v6522 = vrot.slane %v6517, 4
  %v6524 = vshrl.u32 %v6402, 16
  %v6526 = vrot.slane %v6524, 7
  %v6527 = vshll.u32 %v6402, 16
  %v6529 = vor.u32 %v6526, %v6527
  %v6530 = vsel %vm3666, %v6522, %v6529
  %v6531 = vrot.slane %v6526, 4
  %v6533 = vshrl.u32 %v6403, 16
  %v6535 = vrot.slane %v6533, 7
  %v6536 = vshll.u32 %v6403, 16
  %v6538 = vor.u32 %v6535, %v6536
  %v6539 = vsel %vm3666, %v6531, %v6538
  %v6540 = vrot.slane %v6535, 4
  %v6542 = vshrl.u32 %v6404, 16
  %v6544 = vrot.slane %v6542, 7
  %v6545 = vshll.u32 %v6404, 16
  %v6547 = vor.u32 %v6544, %v6545
  %v6548 = vsel %vm3666, %v6540, %v6547
  %v6549 = vrot.slane %v6544, 4
  %v6551 = vshrl.u32 %v6405, 16
  %v6553 = vrot.slane %v6551, 7
  %v6554 = vshll.u32 %v6405, 16
  %v6556 = vor.u32 %v6553, %v6554
  %v6557 = vsel %vm3666, %v6549, %v6556
  %v6558 = vrot.slane %v6553, 4
  %v6560 = vshrl.u32 %v6406, 16
  %v6562 = vrot.slane %v6560, 7
  %v6563 = vshll.u32 %v6406, 16
  %v6565 = vor.u32 %v6562, %v6563
  %v6566 = vsel %vm3666, %v6558, %v6565
  %v6567 = vrot.slane %v6562, 4
  %v6569 = vshrl.u32 %v6407, 16
  %v6571 = vrot.slane %v6569, 7
  %v6572 = vshll.u32 %v6407, 16
  %v6574 = vor.u32 %v6571, %v6572
  %v6575 = vsel %vm3666, %v6567, %v6574
  %v6576 = vrot.slane %v6571, 4
  %v6578 = vshrl.u32 %v6408, 16
  %v6580 = vrot.slane %v6578, 7
  %v6581 = vshll.u32 %v6408, 16
  %v6583 = vor.u32 %v6580, %v6581
  %v6584 = vsel %vm3666, %v6576, %v6583
  %v6585 = vrot.slane %v6580, 4
  %v6587 = vshrl.u32 %v6409, 16
  %v6589 = vrot.slane %v6587, 7
  %v6590 = vshll.u32 %v6409, 16
  %v6592 = vor.u32 %v6589, %v6590
  %v6593 = vsel %vm3666, %v6585, %v6592
  %v6594 = vrot.slane %v6589, 4
  %v6596 = vshrl.u32 %v6410, 16
  %v6598 = vrot.slane %v6596, 7
  %v6599 = vshll.u32 %v6410, 16
  %v6601 = vor.u32 %v6598, %v6599
  %v6602 = vsel %vm3666, %v6594, %v6601
  %v6603 = vrot.slane %v6598, 4
  %v6605 = vshrl.u32 %v6411, 16
  %v6607 = vrot.slane %v6605, 7
  %v6608 = vshll.u32 %v6411, 16
  %v6610 = vor.u32 %v6607, %v6608
  %v6611 = vsel %vm3666, %v6603, %v6610
  %v6612 = vrot.slane %v6607, 4
  %v6614 = vshrl.u32 %v6412, 16
  %v6616 = vrot.slane %v6614, 7
  %v6617 = vshll.u32 %v6412, 16
  %v6619 = vor.u32 %v6616, %v6617
  %v6620 = vsel %vm3666, %v6612, %v6619
  %v6621 = vrot.slane %v6616, 4
  %v6623 = vshrl.u32 %v6413, 16
  %v6625 = vrot.slane %v6623, 7
  %v6626 = vshll.u32 %v6413, 16
  %v6628 = vor.u32 %v6625, %v6626
  %v6629 = vsel %vm3666, %v6621, %v6628
  %v6630 = vrot.slane %v6625, 4
  %v6632 = vshrl.u32 %v6414, 16
  %v6634 = vrot.slane %v6632, 7
  %v6635 = vshll.u32 %v6414, 16
  %v6637 = vor.u32 %v6634, %v6635
  %v6638 = vsel %vm3666, %v6630, %v6637
  %v6639 = vrot.slane %v6634, 4
  %v6641 = vshrl.u32 %v6415, 16
  %v6643 = vrot.slane %v6641, 7
  %v6644 = vshll.u32 %v6415, 16
  %v6646 = vor.u32 %v6643, %v6644
  %v6647 = vsel %vm3666, %v6639, %v6646
  %v6648 = vrot.slane %v6643, 4
  %v6650 = vshrl.u32 %v6416, 16
  %v6652 = vrot.slane %v6650, 7
  %v6653 = vshll.u32 %v6416, 16
  %v6655 = vor.u32 %v6652, %v6653
  %v6656 = vsel %vm3666, %v6648, %v6655
  %v6657 = vrot.slane %v6652, 4
  %v6659 = vshrl.u32 %v6417, 16
  %v6661 = vrot.slane %v6659, 7
  %v6662 = vshll.u32 %v6417, 16
  %v6664 = vor.u32 %v6661, %v6662
  %v6665 = vsel %vm3666, %v6657, %v6664
  %v6666 = vrot.slane %v6661, 4
  %v6668 = vshrl.u32 %v6418, 16
  %v6670 = vrot.slane %v6668, 7
  %v6671 = vshll.u32 %v6418, 16
  %v6673 = vor.u32 %v6670, %v6671
  %v6674 = vsel %vm3666, %v6666, %v6673
  %6703 = vst.msk [vmem:[#allocation4 + $0x150] sm:$0xf] %vm2233, %v6431
  %6704 = vst.msk [vmem:[#allocation4 + $0x15c] sm:$0xf] %vm2233, %v6440
  %6705 = vst.msk [vmem:[#allocation4 + $0x168] sm:$0xf] %vm2233, %v6449
  %6706 = vst.msk [vmem:[#allocation4 + $0x174] sm:$0xf] %vm2233, %v6458
  %6707 = vst.msk [vmem:[#allocation4 + $0x180] sm:$0xf] %vm2233, %v6467
  %6708 = vst.msk [vmem:[#allocation4 + $0x18c] sm:$0xf] %vm2233, %v6476
  %6709 = vst.msk [vmem:[#allocation4 + $0x198] sm:$0xf] %vm2233, %v6485
  %6710 = vst.msk [vmem:[#allocation4 + $0x1a4] sm:$0xf] %vm2233, %v6494
  %6711 = vst.msk [vmem:[#allocation4 + $0x1b0] sm:$0xf] %vm2233, %v6503
  %6712 = vst.msk [vmem:[#allocation4 + $0x1bc] sm:$0xf] %vm2233, %v6512
  %6713 = vst.msk [vmem:[#allocation4 + $0x1c8] sm:$0xf] %vm2233, %v6521
  %6714 = vst.msk [vmem:[#allocation4 + $0x1d4] sm:$0xf] %vm2233, %v6530
  %6715 = vst.msk [vmem:[#allocation4 + $0x1e0] sm:$0xf] %vm2233, %v6539
  %6716 = vst.msk [vmem:[#allocation4 + $0x1ec] sm:$0xf] %vm2233, %v6548
  %6717 = vst.msk [vmem:[#allocation4 + $0x1f8] sm:$0xf] %vm2233, %v6557
  %6718 = vst.msk [vmem:[#allocation4 + $0x204] sm:$0xf] %vm2233, %v6566
  %6719 = vst.msk [vmem:[#allocation4 + $0x210] sm:$0xf] %vm2233, %v6575
  %6720 = vst.msk [vmem:[#allocation4 + $0x21c] sm:$0xf] %vm2233, %v6584
  %6721 = vst.msk [vmem:[#allocation4 + $0x228] sm:$0xf] %vm2233, %v6593
  %6722 = vst.msk [vmem:[#allocation4 + $0x234] sm:$0xf] %vm2233, %v6602
  %6723 = vst.msk [vmem:[#allocation4 + $0x240] sm:$0xf] %vm2233, %v6611
  %6724 = vst.msk [vmem:[#allocation4 + $0x24c] sm:$0xf] %vm2233, %v6620
  %6725 = vst.msk [vmem:[#allocation4 + $0x258] sm:$0xf] %vm2233, %v6629
  %6726 = vst.msk [vmem:[#allocation4 + $0x264] sm:$0xf] %vm2233, %v6638
  %6727 = vst.msk [vmem:[#allocation4 + $0x270] sm:$0xf] %vm2233, %v6647
  %6728 = vst.msk [vmem:[#allocation4 + $0x27c] sm:$0xf] %vm2233, %v6656
  %6729 = vst.msk [vmem:[#allocation4 + $0x288] sm:$0xf] %vm2233, %v6665
  %6730 = vst.msk [vmem:[#allocation4 + $0x294] sm:$0xf] %vm2233, %v6674
  %v6731 = vld [vmem:[%s3425 + $0x8] sm:$0xf]
  %v6732 = vld [vmem:[%s3425 + $0xc] sm:$0xf]
  %v6733 = vld [vmem:[%s3425 + $0x10] sm:$0xf]
  %v6734 = vld [vmem:[%s3425 + $0x14] sm:$0xf]
  %v6735 = vld [vmem:[%s3425 + $0x18] sm:$0xf]
  %v6736 = vld [vmem:[%s3425 + $0x1c] sm:$0xf]
  %v6737 = vld [vmem:[%s3425 + $0x20] sm:$0xf]
  %v6738 = vld [vmem:[%s3425 + $0x24] sm:$0xf]
  %v6739 = vld [vmem:[%s3425 + $0x28] sm:$0xf]
  %v6740 = vld [vmem:[%s3425 + $0x2c] sm:$0xf]
  %v6741 = vld [vmem:[%s3425 + $0x30] sm:$0xf]
  %v6742 = vld [vmem:[%s3425 + $0x34] sm:$0xf]
  %v6743 = vld [vmem:[%s3425 + $0x38] sm:$0xf]
  %v6744 = vld [vmem:[%s3425 + $0x3c] sm:$0xf]
  %v6745 = vld [vmem:[%s3425 + $0x40] sm:$0xf]
  %v6746 = vld [vmem:[%s3425 + $0x44] sm:$0xf]
  %v6747 = vld [vmem:[%s3425 + $0x48] sm:$0xf]
  %v6748 = vld [vmem:[%s3425 + $0x4c] sm:$0xf]
  %v6749 = vld [vmem:[%s3425 + $0x50] sm:$0xf]
  %v6750 = vld [vmem:[%s3425 + $0x54] sm:$0xf]
  %v6751 = vld [vmem:[%s3425 + $0x58] sm:$0xf]
  %v6752 = vld [vmem:[%s3425 + $0x5c] sm:$0xf]
  %v6753 = vld [vmem:[%s3425 + $0x60] sm:$0xf]
  %v6754 = vld [vmem:[%s3425 + $0x64] sm:$0xf]
  %v6755 = vld [vmem:[%s3425 + $0x68] sm:$0xf]
  %v6756 = vld [vmem:[%s3425 + $0x6c] sm:$0xf]
  %v6757 = vld [vmem:[%s3425 + $0x70] sm:$0xf]
  %v6758 = vld [vmem:[%s3425 + $0x74] sm:$0xf]
  %6787 = vrot.lane.b32.xlu0 %v6731, 32
  %v6788 = vpop.permute.xlu0 %6787
  %6789 = vrot.lane.b32.xlu0 %v6732, 32
  %v6790 = vpop.permute.xlu0 %6789
  %6791 = vrot.lane.b32.xlu0 %v6733, 32
  %v6792 = vpop.permute.xlu0 %6791
  %6793 = vrot.lane.b32.xlu0 %v6734, 32
  %v6794 = vpop.permute.xlu0 %6793
  %6795 = vrot.lane.b32.xlu0 %v6735, 32
  %v6796 = vpop.permute.xlu0 %6795
  %6797 = vrot.lane.b32.xlu0 %v6736, 32
  %v6798 = vpop.permute.xlu0 %6797
  %6799 = vrot.lane.b32.xlu0 %v6737, 32
  %v6800 = vpop.permute.xlu0 %6799
  %6801 = vrot.lane.b32.xlu0 %v6738, 32
  %v6802 = vpop.permute.xlu0 %6801
  %6803 = vrot.lane.b32.xlu0 %v6739, 32
  %v6804 = vpop.permute.xlu0 %6803
  %6805 = vrot.lane.b32.xlu0 %v6740, 32
  %v6806 = vpop.permute.xlu0 %6805
  %6807 = vrot.lane.b32.xlu0 %v6741, 32
  %v6808 = vpop.permute.xlu0 %6807
  %6809 = vrot.lane.b32.xlu0 %v6742, 32
  %v6810 = vpop.permute.xlu0 %6809
  %6811 = vrot.lane.b32.xlu0 %v6743, 32
  %v6812 = vpop.permute.xlu0 %6811
  %6813 = vrot.lane.b32.xlu0 %v6744, 32
  %v6814 = vpop.permute.xlu0 %6813
  %6815 = vrot.lane.b32.xlu0 %v6745, 32
  %v6816 = vpop.permute.xlu0 %6815
  %6817 = vrot.lane.b32.xlu0 %v6746, 32
  %v6818 = vpop.permute.xlu0 %6817
  %6819 = vrot.lane.b32.xlu0 %v6747, 32
  %v6820 = vpop.permute.xlu0 %6819
  %6821 = vrot.lane.b32.xlu0 %v6748, 32
  %v6822 = vpop.permute.xlu0 %6821
  %6823 = vrot.lane.b32.xlu0 %v6749, 32
  %v6824 = vpop.permute.xlu0 %6823
  %6825 = vrot.lane.b32.xlu0 %v6750, 32
  %v6826 = vpop.permute.xlu0 %6825
  %6827 = vrot.lane.b32.xlu0 %v6751, 32
  %v6828 = vpop.permute.xlu0 %6827
  %6829 = vrot.lane.b32.xlu0 %v6752, 32
  %v6830 = vpop.permute.xlu0 %6829
  %6831 = vrot.lane.b32.xlu0 %v6753, 32
  %v6832 = vpop.permute.xlu0 %6831
  %6833 = vrot.lane.b32.xlu0 %v6754, 32
  %v6834 = vpop.permute.xlu0 %6833
  %6835 = vrot.lane.b32.xlu0 %v6755, 32
  %v6836 = vpop.permute.xlu0 %6835
  %6837 = vrot.lane.b32.xlu0 %v6756, 32
  %v6838 = vpop.permute.xlu0 %6837
  %6839 = vrot.lane.b32.xlu0 %v6757, 32
  %v6840 = vpop.permute.xlu0 %6839
  %6841 = vrot.lane.b32.xlu0 %v6758, 32
  %v6842 = vpop.permute.xlu0 %6841
  %6871 = vst.msk [vmem:[#allocation4 + $0x150] sm:$0xf] %vm4119, %v6788
  %6872 = vst.msk [vmem:[#allocation4 + $0x15c] sm:$0xf] %vm4119, %v6790
  %6873 = vst.msk [vmem:[#allocation4 + $0x168] sm:$0xf] %vm4119, %v6792
  %6874 = vst.msk [vmem:[#allocation4 + $0x174] sm:$0xf] %vm4119, %v6794
  %6875 = vst.msk [vmem:[#allocation4 + $0x180] sm:$0xf] %vm4119, %v6796
  %6876 = vst.msk [vmem:[#allocation4 + $0x18c] sm:$0xf] %vm4119, %v6798
  %6877 = vst.msk [vmem:[#allocation4 + $0x198] sm:$0xf] %vm4119, %v6800
  %6878 = vst.msk [vmem:[#allocation4 + $0x1a4] sm:$0xf] %vm4119, %v6802
  %6879 = vst.msk [vmem:[#allocation4 + $0x1b0] sm:$0xf] %vm4119, %v6804
  %6880 = vst.msk [vmem:[#allocation4 + $0x1bc] sm:$0xf] %vm4119, %v6806
  %6881 = vst.msk [vmem:[#allocation4 + $0x1c8] sm:$0xf] %vm4119, %v6808
  %6882 = vst.msk [vmem:[#allocation4 + $0x1d4] sm:$0xf] %vm4119, %v6810
  %6883 = vst.msk [vmem:[#allocation4 + $0x1e0] sm:$0xf] %vm4119, %v6812
  %6884 = vst.msk [vmem:[#allocation4 + $0x1ec] sm:$0xf] %vm4119, %v6814
  %6885 = vst.msk [vmem:[#allocation4 + $0x1f8] sm:$0xf] %vm4119, %v6816
  %6886 = vst.msk [vmem:[#allocation4 + $0x204] sm:$0xf] %vm4119, %v6818
  %6887 = vst.msk [vmem:[#allocation4 + $0x210] sm:$0xf] %vm4119, %v6820
  %6888 = vst.msk [vmem:[#allocation4 + $0x21c] sm:$0xf] %vm4119, %v6822
  %6889 = vst.msk [vmem:[#allocation4 + $0x228] sm:$0xf] %vm4119, %v6824
  %6890 = vst.msk [vmem:[#allocation4 + $0x234] sm:$0xf] %vm4119, %v6826
  %6891 = vst.msk [vmem:[#allocation4 + $0x240] sm:$0xf] %vm4119, %v6828
  %6892 = vst.msk [vmem:[#allocation4 + $0x24c] sm:$0xf] %vm4119, %v6830
  %6893 = vst.msk [vmem:[#allocation4 + $0x258] sm:$0xf] %vm4119, %v6832
  %6894 = vst.msk [vmem:[#allocation4 + $0x264] sm:$0xf] %vm4119, %v6834
  %6895 = vst.msk [vmem:[#allocation4 + $0x270] sm:$0xf] %vm4119, %v6836
  %6896 = vst.msk [vmem:[#allocation4 + $0x27c] sm:$0xf] %vm4119, %v6838
  %6897 = vst.msk [vmem:[#allocation4 + $0x288] sm:$0xf] %vm4119, %v6840
  %6898 = vst.msk [vmem:[#allocation4 + $0x294] sm:$0xf] %vm4119, %v6842
  %v6899 = vld [vmem:[%s3425 + $0x8] sm:$0xf]
  %v6900 = vld [vmem:[%s3425 + $0xc] sm:$0xf]
  %v6901 = vld [vmem:[%s3425 + $0x10] sm:$0xf]
  %v6902 = vld [vmem:[%s3425 + $0x14] sm:$0xf]
  %v6903 = vld [vmem:[%s3425 + $0x18] sm:$0xf]
  %v6904 = vld [vmem:[%s3425 + $0x1c] sm:$0xf]
  %v6905 = vld [vmem:[%s3425 + $0x20] sm:$0xf]
  %v6906 = vld [vmem:[%s3425 + $0x24] sm:$0xf]
  %v6907 = vld [vmem:[%s3425 + $0x28] sm:$0xf]
  %v6908 = vld [vmem:[%s3425 + $0x2c] sm:$0xf]
  %v6909 = vld [vmem:[%s3425 + $0x30] sm:$0xf]
  %v6910 = vld [vmem:[%s3425 + $0x34] sm:$0xf]
  %v6911 = vld [vmem:[%s3425 + $0x38] sm:$0xf]
  %v6912 = vld [vmem:[%s3425 + $0x3c] sm:$0xf]
  %v6913 = vld [vmem:[%s3425 + $0x40] sm:$0xf]
  %v6914 = vld [vmem:[%s3425 + $0x44] sm:$0xf]
  %v6915 = vld [vmem:[%s3425 + $0x48] sm:$0xf]
  %v6916 = vld [vmem:[%s3425 + $0x4c] sm:$0xf]
  %v6917 = vld [vmem:[%s3425 + $0x50] sm:$0xf]
  %v6918 = vld [vmem:[%s3425 + $0x54] sm:$0xf]
  %v6919 = vld [vmem:[%s3425 + $0x58] sm:$0xf]
  %v6920 = vld [vmem:[%s3425 + $0x5c] sm:$0xf]
  %v6921 = vld [vmem:[%s3425 + $0x60] sm:$0xf]
  %v6922 = vld [vmem:[%s3425 + $0x64] sm:$0xf]
  %v6923 = vld [vmem:[%s3425 + $0x68] sm:$0xf]
  %v6924 = vld [vmem:[%s3425 + $0x6c] sm:$0xf]
  %v6925 = vld [vmem:[%s3425 + $0x70] sm:$0xf]
  %v6926 = vld [vmem:[%s3425 + $0x74] sm:$0xf]
  %v6927 = vld [vmem:[%s3425 + $0x78] sm:$0x1]
  %v6929 = vshrl.u32 %v6899, 16
  %v6931 = vrot.slane %v6929, 4
  %v6932 = vshll.u32 %v6899, 16
  %v6934 = vrot.slane %v6932, 5
  %v6935 = vor.u32 %v6931, %v6934
  %v6936 = vrot.slane %v6935, 4
  %v6938 = vshll.u32 %v6900, 16
  %v6940 = vrot.slane %v6938, 5
  %v6941 = vsel %vm4179, %v6936, %v6940
  %v6942 = vshrl.u32 %v6900, 16
  %v6944 = vrot.slane %v6942, 4
  %v6945 = vor.u32 %v6944, %v6940
  %v6946 = vrot.slane %v6945, 4
  %v6948 = vshll.u32 %v6901, 16
  %v6950 = vrot.slane %v6948, 5
  %v6951 = vsel %vm4179, %v6946, %v6950
  %v6952 = vshrl.u32 %v6901, 16
  %v6954 = vrot.slane %v6952, 4
  %v6955 = vor.u32 %v6954, %v6950
  %v6956 = vrot.slane %v6955, 4
  %v6958 = vshll.u32 %v6902, 16
  %v6960 = vrot.slane %v6958, 5
  %v6961 = vsel %vm4179, %v6956, %v6960
  %v6962 = vshrl.u32 %v6902, 16
  %v6964 = vrot.slane %v6962, 4
  %v6965 = vor.u32 %v6964, %v6960
  %v6966 = vrot.slane %v6965, 4
  %v6968 = vshll.u32 %v6903, 16
  %v6970 = vrot.slane %v6968, 5
  %v6971 = vsel %vm4179, %v6966, %v6970
  %v6972 = vshrl.u32 %v6903, 16
  %v6974 = vrot.slane %v6972, 4
  %v6975 = vor.u32 %v6974, %v6970
  %v6976 = vrot.slane %v6975, 4
  %v6978 = vshll.u32 %v6904, 16
  %v6980 = vrot.slane %v6978, 5
  %v6981 = vsel %vm4179, %v6976, %v6980
  %v6982 = vshrl.u32 %v6904, 16
  %v6984 = vrot.slane %v6982, 4
  %v6985 = vor.u32 %v6984, %v6980
  %v6986 = vrot.slane %v6985, 4
  %v6988 = vshll.u32 %v6905, 16
  %v6990 = vrot.slane %v6988, 5
  %v6991 = vsel %vm4179, %v6986, %v6990
  %v6992 = vshrl.u32 %v6905, 16
  %v6994 = vrot.slane %v6992, 4
  %v6995 = vor.u32 %v6994, %v6990
  %v6996 = vrot.slane %v6995, 4
  %v6998 = vshll.u32 %v6906, 16
  %v7000 = vrot.slane %v6998, 5
  %v7001 = vsel %vm4179, %v6996, %v7000
  %v7002 = vshrl.u32 %v6906, 16
  %v7004 = vrot.slane %v7002, 4
  %v7005 = vor.u32 %v7004, %v7000
  %v7006 = vrot.slane %v7005, 4
  %v7008 = vshll.u32 %v6907, 16
  %v7010 = vrot.slane %v7008, 5
  %v7011 = vsel %vm4179, %v7006, %v7010
  %v7012 = vshrl.u32 %v6907, 16
  %v7014 = vrot.slane %v7012, 4
  %v7015 = vor.u32 %v7014, %v7010
  %v7016 = vrot.slane %v7015, 4
  %v7018 = vshll.u32 %v6908, 16
  %v7020 = vrot.slane %v7018, 5
  %v7021 = vsel %vm4179, %v7016, %v7020
  %v7022 = vshrl.u32 %v6908, 16
  %v7024 = vrot.slane %v7022, 4
  %v7025 = vor.u32 %v7024, %v7020
  %v7026 = vrot.slane %v7025, 4
  %v7028 = vshll.u32 %v6909, 16
  %v7030 = vrot.slane %v7028, 5
  %v7031 = vsel %vm4179, %v7026, %v7030
  %v7032 = vshrl.u32 %v6909, 16
  %v7034 = vrot.slane %v7032, 4
  %v7035 = vor.u32 %v7034, %v7030
  %v7036 = vrot.slane %v7035, 4
  %v7038 = vshll.u32 %v6910, 16
  %v7040 = vrot.slane %v7038, 5
  %v7041 = vsel %vm4179, %v7036, %v7040
  %v7042 = vshrl.u32 %v6910, 16
  %v7044 = vrot.slane %v7042, 4
  %v7045 = vor.u32 %v7044, %v7040
  %v7046 = vrot.slane %v7045, 4
  %v7048 = vshll.u32 %v6911, 16
  %v7050 = vrot.slane %v7048, 5
  %v7051 = vsel %vm4179, %v7046, %v7050
  %v7052 = vshrl.u32 %v6911, 16
  %v7054 = vrot.slane %v7052, 4
  %v7055 = vor.u32 %v7054, %v7050
  %v7056 = vrot.slane %v7055, 4
  %v7058 = vshll.u32 %v6912, 16
  %v7060 = vrot.slane %v7058, 5
  %v7061 = vsel %vm4179, %v7056, %v7060
  %v7062 = vshrl.u32 %v6912, 16
  %v7064 = vrot.slane %v7062, 4
  %v7065 = vor.u32 %v7064, %v7060
  %v7066 = vrot.slane %v7065, 4
  %v7068 = vshll.u32 %v6913, 16
  %v7070 = vrot.slane %v7068, 5
  %v7071 = vsel %vm4179, %v7066, %v7070
  %v7072 = vshrl.u32 %v6913, 16
  %v7074 = vrot.slane %v7072, 4
  %v7075 = vor.u32 %v7074, %v7070
  %v7076 = vrot.slane %v7075, 4
  %v7078 = vshll.u32 %v6914, 16
  %v7080 = vrot.slane %v7078, 5
  %v7081 = vsel %vm4179, %v7076, %v7080
  %v7082 = vshrl.u32 %v6914, 16
  %v7084 = vrot.slane %v7082, 4
  %v7085 = vor.u32 %v7084, %v7080
  %v7086 = vrot.slane %v7085, 4
  %v7088 = vshll.u32 %v6915, 16
  %v7090 = vrot.slane %v7088, 5
  %v7091 = vsel %vm4179, %v7086, %v7090
  %v7092 = vshrl.u32 %v6915, 16
  %v7094 = vrot.slane %v7092, 4
  %v7095 = vor.u32 %v7094, %v7090
  %v7096 = vrot.slane %v7095, 4
  %v7098 = vshll.u32 %v6916, 16
  %v7100 = vrot.slane %v7098, 5
  %v7101 = vsel %vm4179, %v7096, %v7100
  %v7102 = vshrl.u32 %v6916, 16
  %v7104 = vrot.slane %v7102, 4
  %v7105 = vor.u32 %v7104, %v7100
  %v7106 = vrot.slane %v7105, 4
  %v7108 = vshll.u32 %v6917, 16
  %v7110 = vrot.slane %v7108, 5
  %v7111 = vsel %vm4179, %v7106, %v7110
  %v7112 = vshrl.u32 %v6917, 16
  %v7114 = vrot.slane %v7112, 4
  %v7115 = vor.u32 %v7114, %v7110
  %v7116 = vrot.slane %v7115, 4
  %v7118 = vshll.u32 %v6918, 16
  %v7120 = vrot.slane %v7118, 5
  %v7121 = vsel %vm4179, %v7116, %v7120
  %v7122 = vshrl.u32 %v6918, 16
  %v7124 = vrot.slane %v7122, 4
  %v7125 = vor.u32 %v7124, %v7120
  %v7126 = vrot.slane %v7125, 4
  %v7128 = vshll.u32 %v6919, 16
  %v7130 = vrot.slane %v7128, 5
  %v7131 = vsel %vm4179, %v7126, %v7130
  %v7132 = vshrl.u32 %v6919, 16
  %v7134 = vrot.slane %v7132, 4
  %v7135 = vor.u32 %v7134, %v7130
  %v7136 = vrot.slane %v7135, 4
  %v7138 = vshll.u32 %v6920, 16
  %v7140 = vrot.slane %v7138, 5
  %v7141 = vsel %vm4179, %v7136, %v7140
  %v7142 = vshrl.u32 %v6920, 16
  %v7144 = vrot.slane %v7142, 4
  %v7145 = vor.u32 %v7144, %v7140
  %v7146 = vrot.slane %v7145, 4
  %v7148 = vshll.u32 %v6921, 16
  %v7150 = vrot.slane %v7148, 5
  %v7151 = vsel %vm4179, %v7146, %v7150
  %v7152 = vshrl.u32 %v6921, 16
  %v7154 = vrot.slane %v7152, 4
  %v7155 = vor.u32 %v7154, %v7150
  %v7156 = vrot.slane %v7155, 4
  %v7158 = vshll.u32 %v6922, 16
  %v7160 = vrot.slane %v7158, 5
  %v7161 = vsel %vm4179, %v7156, %v7160
  %v7162 = vshrl.u32 %v6922, 16
  %v7164 = vrot.slane %v7162, 4
  %v7165 = vor.u32 %v7164, %v7160
  %v7166 = vrot.slane %v7165, 4
  %v7168 = vshll.u32 %v6923, 16
  %v7170 = vrot.slane %v7168, 5
  %v7171 = vsel %vm4179, %v7166, %v7170
  %v7172 = vshrl.u32 %v6923, 16
  %v7174 = vrot.slane %v7172, 4
  %v7175 = vor.u32 %v7174, %v7170
  %v7176 = vrot.slane %v7175, 4
  %v7178 = vshll.u32 %v6924, 16
  %v7180 = vrot.slane %v7178, 5
  %v7181 = vsel %vm4179, %v7176, %v7180
  %v7182 = vshrl.u32 %v6924, 16
  %v7184 = vrot.slane %v7182, 4
  %v7185 = vor.u32 %v7184, %v7180
  %v7186 = vrot.slane %v7185, 4
  %v7188 = vshll.u32 %v6925, 16
  %v7190 = vrot.slane %v7188, 5
  %v7191 = vsel %vm4179, %v7186, %v7190
  %v7192 = vshrl.u32 %v6925, 16
  %v7194 = vrot.slane %v7192, 4
  %v7195 = vor.u32 %v7194, %v7190
  %v7196 = vrot.slane %v7195, 4
  %v7198 = vshll.u32 %v6926, 16
  %v7200 = vrot.slane %v7198, 5
  %v7201 = vsel %vm4179, %v7196, %v7200
  %v7202 = vshrl.u32 %v6926, 16
  %v7204 = vrot.slane %v7202, 4
  %v7205 = vor.u32 %v7204, %v7200
  %v7206 = vrot.slane %v7205, 4
  %v7208 = vshll.u32 %v6927, 16
  %v7210 = vrot.slane %v7208, 5
  %v7211 = vsel %vm4179, %v7206, %v7210
  %7212 = vrot.lane.b32.xlu0 %v6941, 64
  %v7213 = vpop.permute.xlu0 %7212
  %7214 = vrot.lane.b32.xlu0 %v6951, 64
  %v7215 = vpop.permute.xlu0 %7214
  %7216 = vrot.lane.b32.xlu0 %v6961, 64
  %v7217 = vpop.permute.xlu0 %7216
  %7218 = vrot.lane.b32.xlu0 %v6971, 64
  %v7219 = vpop.permute.xlu0 %7218
  %7220 = vrot.lane.b32.xlu0 %v6981, 64
  %v7221 = vpop.permute.xlu0 %7220
  %7222 = vrot.lane.b32.xlu0 %v6991, 64
  %v7223 = vpop.permute.xlu0 %7222
  %7224 = vrot.lane.b32.xlu0 %v7001, 64
  %v7225 = vpop.permute.xlu0 %7224
  %7226 = vrot.lane.b32.xlu0 %v7011, 64
  %v7227 = vpop.permute.xlu0 %7226
  %7228 = vrot.lane.b32.xlu0 %v7021, 64
  %v7229 = vpop.permute.xlu0 %7228
  %7230 = vrot.lane.b32.xlu0 %v7031, 64
  %v7231 = vpop.permute.xlu0 %7230
  %7232 = vrot.lane.b32.xlu0 %v7041, 64
  %v7233 = vpop.permute.xlu0 %7232
  %7234 = vrot.lane.b32.xlu0 %v7051, 64
  %v7235 = vpop.permute.xlu0 %7234
  %7236 = vrot.lane.b32.xlu0 %v7061, 64
  %v7237 = vpop.permute.xlu0 %7236
  %7238 = vrot.lane.b32.xlu0 %v7071, 64
  %v7239 = vpop.permute.xlu0 %7238
  %7240 = vrot.lane.b32.xlu0 %v7081, 64
  %v7241 = vpop.permute.xlu0 %7240
  %7242 = vrot.lane.b32.xlu0 %v7091, 64
  %v7243 = vpop.permute.xlu0 %7242
  %7244 = vrot.lane.b32.xlu0 %v7101, 64
  %v7245 = vpop.permute.xlu0 %7244
  %7246 = vrot.lane.b32.xlu0 %v7111, 64
  %v7247 = vpop.permute.xlu0 %7246
  %7248 = vrot.lane.b32.xlu0 %v7121, 64
  %v7249 = vpop.permute.xlu0 %7248
  %7250 = vrot.lane.b32.xlu0 %v7131, 64
  %v7251 = vpop.permute.xlu0 %7250
  %7252 = vrot.lane.b32.xlu0 %v7141, 64
  %v7253 = vpop.permute.xlu0 %7252
  %7254 = vrot.lane.b32.xlu0 %v7151, 64
  %v7255 = vpop.permute.xlu0 %7254
  %7256 = vrot.lane.b32.xlu0 %v7161, 64
  %v7257 = vpop.permute.xlu0 %7256
  %7258 = vrot.lane.b32.xlu0 %v7171, 64
  %v7259 = vpop.permute.xlu0 %7258
  %7260 = vrot.lane.b32.xlu0 %v7181, 64
  %v7261 = vpop.permute.xlu0 %7260
  %7262 = vrot.lane.b32.xlu0 %v7191, 64
  %v7263 = vpop.permute.xlu0 %7262
  %7264 = vrot.lane.b32.xlu0 %v7201, 64
  %v7265 = vpop.permute.xlu0 %7264
  %7266 = vrot.lane.b32.xlu0 %v7211, 64
  %v7267 = vpop.permute.xlu0 %7266
  %7296 = vst.msk [vmem:[#allocation4 + $0x150] sm:$0xf] %vm4548, %v7213
  %7297 = vst.msk [vmem:[#allocation4 + $0x15c] sm:$0xf] %vm4548, %v7215
  %7298 = vst.msk [vmem:[#allocation4 + $0x168] sm:$0xf] %vm4548, %v7217
  %7299 = vst.msk [vmem:[#allocation4 + $0x174] sm:$0xf] %vm4548, %v7219
  %7300 = vst.msk [vmem:[#allocation4 + $0x180] sm:$0xf] %vm4548, %v7221
  %7301 = vst.msk [vmem:[#allocation4 + $0x18c] sm:$0xf] %vm4548, %v7223
  %7302 = vst.msk [vmem:[#allocation4 + $0x198] sm:$0xf] %vm4548, %v7225
  %7303 = vst.msk [vmem:[#allocation4 + $0x1a4] sm:$0xf] %vm4548, %v7227
  %7304 = vst.msk [vmem:[#allocation4 + $0x1b0] sm:$0xf] %vm4548, %v7229
  %7305 = vst.msk [vmem:[#allocation4 + $0x1bc] sm:$0xf] %vm4548, %v7231
  %7306 = vst.msk [vmem:[#allocation4 + $0x1c8] sm:$0xf] %vm4548, %v7233
  %7307 = vst.msk [vmem:[#allocation4 + $0x1d4] sm:$0xf] %vm4548, %v7235
  %7308 = vst.msk [vmem:[#allocation4 + $0x1e0] sm:$0xf] %vm4548, %v7237
  %7309 = vst.msk [vmem:[#allocation4 + $0x1ec] sm:$0xf] %vm4548, %v7239
  %7310 = vst.msk [vmem:[#allocation4 + $0x1f8] sm:$0xf] %vm4548, %v7241
  %7311 = vst.msk [vmem:[#allocation4 + $0x204] sm:$0xf] %vm4548, %v7243
  %7312 = vst.msk [vmem:[#allocation4 + $0x210] sm:$0xf] %vm4548, %v7245
  %7313 = vst.msk [vmem:[#allocation4 + $0x21c] sm:$0xf] %vm4548, %v7247
  %7314 = vst.msk [vmem:[#allocation4 + $0x228] sm:$0xf] %vm4548, %v7249
  %7315 = vst.msk [vmem:[#allocation4 + $0x234] sm:$0xf] %vm4548, %v7251
  %7316 = vst.msk [vmem:[#allocation4 + $0x240] sm:$0xf] %vm4548, %v7253
  %7317 = vst.msk [vmem:[#allocation4 + $0x24c] sm:$0xf] %vm4548, %v7255
  %7318 = vst.msk [vmem:[#allocation4 + $0x258] sm:$0xf] %vm4548, %v7257
  %7319 = vst.msk [vmem:[#allocation4 + $0x264] sm:$0xf] %vm4548, %v7259
  %7320 = vst.msk [vmem:[#allocation4 + $0x270] sm:$0xf] %vm4548, %v7261
  %7321 = vst.msk [vmem:[#allocation4 + $0x27c] sm:$0xf] %vm4548, %v7263
  %7322 = vst.msk [vmem:[#allocation4 + $0x288] sm:$0xf] %vm4548, %v7265
  %7323 = vst.msk [vmem:[#allocation4 + $0x294] sm:$0xf] %vm4548, %v7267
  %v7324 = vld [vmem:[%s3425 + $0xc] sm:$0x8]
  %v7325 = vld [vmem:[%s3425 + $0x10] sm:$0xf]
  %v7326 = vld [vmem:[%s3425 + $0x14] sm:$0xf]
  %v7327 = vld [vmem:[%s3425 + $0x18] sm:$0xf]
  %v7328 = vld [vmem:[%s3425 + $0x1c] sm:$0xf]
  %v7329 = vld [vmem:[%s3425 + $0x20] sm:$0xf]
  %v7330 = vld [vmem:[%s3425 + $0x24] sm:$0xf]
  %v7331 = vld [vmem:[%s3425 + $0x28] sm:$0xf]
  %v7332 = vld [vmem:[%s3425 + $0x2c] sm:$0xf]
  %v7333 = vld [vmem:[%s3425 + $0x30] sm:$0xf]
  %v7334 = vld [vmem:[%s3425 + $0x34] sm:$0xf]
  %v7335 = vld [vmem:[%s3425 + $0x38] sm:$0xf]
  %v7336 = vld [vmem:[%s3425 + $0x3c] sm:$0xf]
  %v7337 = vld [vmem:[%s3425 + $0x40] sm:$0xf]
  %v7338 = vld [vmem:[%s3425 + $0x44] sm:$0xf]
  %v7339 = vld [vmem:[%s3425 + $0x48] sm:$0xf]
  %v7340 = vld [vmem:[%s3425 + $0x4c] sm:$0xf]
  %v7341 = vld [vmem:[%s3425 + $0x50] sm:$0xf]
  %v7342 = vld [vmem:[%s3425 + $0x54] sm:$0xf]
  %v7343 = vld [vmem:[%s3425 + $0x58] sm:$0xf]
  %v7344 = vld [vmem:[%s3425 + $0x5c] sm:$0xf]
  %v7345 = vld [vmem:[%s3425 + $0x60] sm:$0xf]
  %v7346 = vld [vmem:[%s3425 + $0x64] sm:$0xf]
  %v7347 = vld [vmem:[%s3425 + $0x68] sm:$0xf]
  %v7348 = vld [vmem:[%s3425 + $0x6c] sm:$0xf]
  %v7349 = vld [vmem:[%s3425 + $0x70] sm:$0xf]
  %v7350 = vld [vmem:[%s3425 + $0x74] sm:$0xf]
  %v7351 = vld [vmem:[%s3425 + $0x78] sm:$0xf]
  %v7352 = vld [vmem:[%s3425 + $0x7c] sm:$0xf]
  %v7354 = vshrl.u32 %v7324, 16
  %v7356 = vrot.slane %v7354, 7
  %v7357 = vrot.slane %v7356, 4
  %v7359 = vshrl.u32 %v7325, 16
  %v7361 = vrot.slane %v7359, 7
  %v7362 = vshll.u32 %v7325, 16
  %v7364 = vor.u32 %v7361, %v7362
  %v7365 = vsel %vm3666, %v7357, %v7364
  %v7366 = vrot.slane %v7361, 4
  %v7368 = vshrl.u32 %v7326, 16
  %v7370 = vrot.slane %v7368, 7
  %v7371 = vshll.u32 %v7326, 16
  %v7373 = vor.u32 %v7370, %v7371
  %v7374 = vsel %vm3666, %v7366, %v7373
  %v7375 = vrot.slane %v7370, 4
  %v7377 = vshrl.u32 %v7327, 16
  %v7379 = vrot.slane %v7377, 7
  %v7380 = vshll.u32 %v7327, 16
  %v7382 = vor.u32 %v7379, %v7380
  %v7383 = vsel %vm3666, %v7375, %v7382
  %v7384 = vrot.slane %v7379, 4
  %v7386 = vshrl.u32 %v7328, 16
  %v7388 = vrot.slane %v7386, 7
  %v7389 = vshll.u32 %v7328, 16
  %v7391 = vor.u32 %v7388, %v7389
  %v7392 = vsel %vm3666, %v7384, %v7391
  %v7393 = vrot.slane %v7388, 4
  %v7395 = vshrl.u32 %v7329, 16
  %v7397 = vrot.slane %v7395, 7
  %v7398 = vshll.u32 %v7329, 16
  %v7400 = vor.u32 %v7397, %v7398
  %v7401 = vsel %vm3666, %v7393, %v7400
  %v7402 = vrot.slane %v7397, 4
  %v7404 = vshrl.u32 %v7330, 16
  %v7406 = vrot.slane %v7404, 7
  %v7407 = vshll.u32 %v7330, 16
  %v7409 = vor.u32 %v7406, %v7407
  %v7410 = vsel %vm3666, %v7402, %v7409
  %v7411 = vrot.slane %v7406, 4
  %v7413 = vshrl.u32 %v7331, 16
  %v7415 = vrot.slane %v7413, 7
  %v7416 = vshll.u32 %v7331, 16
  %v7418 = vor.u32 %v7415, %v7416
  %v7419 = vsel %vm3666, %v7411, %v7418
  %v7420 = vrot.slane %v7415, 4
  %v7422 = vshrl.u32 %v7332, 16
  %v7424 = vrot.slane %v7422, 7
  %v7425 = vshll.u32 %v7332, 16
  %v7427 = vor.u32 %v7424, %v7425
  %v7428 = vsel %vm3666, %v7420, %v7427
  %v7429 = vrot.slane %v7424, 4
  %v7431 = vshrl.u32 %v7333, 16
  %v7433 = vrot.slane %v7431, 7
  %v7434 = vshll.u32 %v7333, 16
  %v7436 = vor.u32 %v7433, %v7434
  %v7437 = vsel %vm3666, %v7429, %v7436
  %v7438 = vrot.slane %v7433, 4
  %v7440 = vshrl.u32 %v7334, 16
  %v7442 = vrot.slane %v7440, 7
  %v7443 = vshll.u32 %v7334, 16
  %v7445 = vor.u32 %v7442, %v7443
  %v7446 = vsel %vm3666, %v7438, %v7445
  %v7447 = vrot.slane %v7442, 4
  %v7449 = vshrl.u32 %v7335, 16
  %v7451 = vrot.slane %v7449, 7
  %v7452 = vshll.u32 %v7335, 16
  %v7454 = vor.u32 %v7451, %v7452
  %v7455 = vsel %vm3666, %v7447, %v7454
  %v7456 = vrot.slane %v7451, 4
  %v7458 = vshrl.u32 %v7336, 16
  %v7460 = vrot.slane %v7458, 7
  %v7461 = vshll.u32 %v7336, 16
  %v7463 = vor.u32 %v7460, %v7461
  %v7464 = vsel %vm3666, %v7456, %v7463
  %v7465 = vrot.slane %v7460, 4
  %v7467 = vshrl.u32 %v7337, 16
  %v7469 = vrot.slane %v7467, 7
  %v7470 = vshll.u32 %v7337, 16
  %v7472 = vor.u32 %v7469, %v7470
  %v7473 = vsel %vm3666, %v7465, %v7472
  %v7474 = vrot.slane %v7469, 4
  %v7476 = vshrl.u32 %v7338, 16
  %v7478 = vrot.slane %v7476, 7
  %v7479 = vshll.u32 %v7338, 16
  %v7481 = vor.u32 %v7478, %v7479
  %v7482 = vsel %vm3666, %v7474, %v7481
  %v7483 = vrot.slane %v7478, 4
  %v7485 = vshrl.u32 %v7339, 16
  %v7487 = vrot.slane %v7485, 7
  %v7488 = vshll.u32 %v7339, 16
  %v7490 = vor.u32 %v7487, %v7488
  %v7491 = vsel %vm3666, %v7483, %v7490
  %v7492 = vrot.slane %v7487, 4
  %v7494 = vshrl.u32 %v7340, 16
  %v7496 = vrot.slane %v7494, 7
  %v7497 = vshll.u32 %v7340, 16
  %v7499 = vor.u32 %v7496, %v7497
  %v7500 = vsel %vm3666, %v7492, %v7499
  %v7501 = vrot.slane %v7496, 4
  %v7503 = vshrl.u32 %v7341, 16
  %v7505 = vrot.slane %v7503, 7
  %v7506 = vshll.u32 %v7341, 16
  %v7508 = vor.u32 %v7505, %v7506
  %v7509 = vsel %vm3666, %v7501, %v7508
  %v7510 = vrot.slane %v7505, 4
  %v7512 = vshrl.u32 %v7342, 16
  %v7514 = vrot.slane %v7512, 7
  %v7515 = vshll.u32 %v7342, 16
  %v7517 = vor.u32 %v7514, %v7515
  %v7518 = vsel %vm3666, %v7510, %v7517
  %v7519 = vrot.slane %v7514, 4
  %v7521 = vshrl.u32 %v7343, 16
  %v7523 = vrot.slane %v7521, 7
  %v7524 = vshll.u32 %v7343, 16
  %v7526 = vor.u32 %v7523, %v7524
  %v7527 = vsel %vm3666, %v7519, %v7526
  %v7528 = vrot.slane %v7523, 4
  %v7530 = vshrl.u32 %v7344, 16
  %v7532 = vrot.slane %v7530, 7
  %v7533 = vshll.u32 %v7344, 16
  %v7535 = vor.u32 %v7532, %v7533
  %v7536 = vsel %vm3666, %v7528, %v7535
  %v7537 = vrot.slane %v7532, 4
  %v7539 = vshrl.u32 %v7345, 16
  %v7541 = vrot.slane %v7539, 7
  %v7542 = vshll.u32 %v7345, 16
  %v7544 = vor.u32 %v7541, %v7542
  %v7545 = vsel %vm3666, %v7537, %v7544
  %v7546 = vrot.slane %v7541, 4
  %v7548 = vshrl.u32 %v7346, 16
  %v7550 = vrot.slane %v7548, 7
  %v7551 = vshll.u32 %v7346, 16
  %v7553 = vor.u32 %v7550, %v7551
  %v7554 = vsel %vm3666, %v7546, %v7553
  %v7555 = vrot.slane %v7550, 4
  %v7557 = vshrl.u32 %v7347, 16
  %v7559 = vrot.slane %v7557, 7
  %v7560 = vshll.u32 %v7347, 16
  %v7562 = vor.u32 %v7559, %v7560
  %v7563 = vsel %vm3666, %v7555, %v7562
  %v7564 = vrot.slane %v7559, 4
  %v7566 = vshrl.u32 %v7348, 16
  %v7568 = vrot.slane %v7566, 7
  %v7569 = vshll.u32 %v7348, 16
  %v7571 = vor.u32 %v7568, %v7569
  %v7572 = vsel %vm3666, %v7564, %v7571
  %v7573 = vrot.slane %v7568, 4
  %v7575 = vshrl.u32 %v7349, 16
  %v7577 = vrot.slane %v7575, 7
  %v7578 = vshll.u32 %v7349, 16
  %v7580 = vor.u32 %v7577, %v7578
  %v7581 = vsel %vm3666, %v7573, %v7580
  %v7582 = vrot.slane %v7577, 4
  %v7584 = vshrl.u32 %v7350, 16
  %v7586 = vrot.slane %v7584, 7
  %v7587 = vshll.u32 %v7350, 16
  %v7589 = vor.u32 %v7586, %v7587
  %v7590 = vsel %vm3666, %v7582, %v7589
  %v7591 = vrot.slane %v7586, 4
  %v7593 = vshrl.u32 %v7351, 16
  %v7595 = vrot.slane %v7593, 7
  %v7596 = vshll.u32 %v7351, 16
  %v7598 = vor.u32 %v7595, %v7596
  %v7599 = vsel %vm3666, %v7591, %v7598
  %v7600 = vrot.slane %v7595, 4
  %v7602 = vshrl.u32 %v7352, 16
  %v7604 = vrot.slane %v7602, 7
  %v7605 = vshll.u32 %v7352, 16
  %v7607 = vor.u32 %v7604, %v7605
  %v7608 = vsel %vm3666, %v7600, %v7607
  %7609 = vrot.lane.b32.xlu0 %v7365, 96
  %v7610 = vpop.permute.xlu0 %7609
  %7611 = vrot.lane.b32.xlu0 %v7374, 96
  %v7612 = vpop.permute.xlu0 %7611
  %7613 = vrot.lane.b32.xlu0 %v7383, 96
  %v7614 = vpop.permute.xlu0 %7613
  %7615 = vrot.lane.b32.xlu0 %v7392, 96
  %v7616 = vpop.permute.xlu0 %7615
  %7617 = vrot.lane.b32.xlu0 %v7401, 96
  %v7618 = vpop.permute.xlu0 %7617
  %7619 = vrot.lane.b32.xlu0 %v7410, 96
  %v7620 = vpop.permute.xlu0 %7619
  %7621 = vrot.lane.b32.xlu0 %v7419, 96
  %v7622 = vpop.permute.xlu0 %7621
  %7623 = vrot.lane.b32.xlu0 %v7428, 96
  %v7624 = vpop.permute.xlu0 %7623
  %7625 = vrot.lane.b32.xlu0 %v7437, 96
  %v7626 = vpop.permute.xlu0 %7625
  %7627 = vrot.lane.b32.xlu0 %v7446, 96
  %v7628 = vpop.permute.xlu0 %7627
  %7629 = vrot.lane.b32.xlu0 %v7455, 96
  %v7630 = vpop.permute.xlu0 %7629
  %7631 = vrot.lane.b32.xlu0 %v7464, 96
  %v7632 = vpop.permute.xlu0 %7631
  %7633 = vrot.lane.b32.xlu0 %v7473, 96
  %v7634 = vpop.permute.xlu0 %7633
  %7635 = vrot.lane.b32.xlu0 %v7482, 96
  %v7636 = vpop.permute.xlu0 %7635
  %7637 = vrot.lane.b32.xlu0 %v7491, 96
  %v7638 = vpop.permute.xlu0 %7637
  %7639 = vrot.lane.b32.xlu0 %v7500, 96
  %v7640 = vpop.permute.xlu0 %7639
  %7641 = vrot.lane.b32.xlu0 %v7509, 96
  %v7642 = vpop.permute.xlu0 %7641
  %7643 = vrot.lane.b32.xlu0 %v7518, 96
  %v7644 = vpop.permute.xlu0 %7643
  %7645 = vrot.lane.b32.xlu0 %v7527, 96
  %v7646 = vpop.permute.xlu0 %7645
  %7647 = vrot.lane.b32.xlu0 %v7536, 96
  %v7648 = vpop.permute.xlu0 %7647
  %7649 = vrot.lane.b32.xlu0 %v7545, 96
  %v7650 = vpop.permute.xlu0 %7649
  %7651 = vrot.lane.b32.xlu0 %v7554, 96
  %v7652 = vpop.permute.xlu0 %7651
  %7653 = vrot.lane.b32.xlu0 %v7563, 96
  %v7654 = vpop.permute.xlu0 %7653
  %7655 = vrot.lane.b32.xlu0 %v7572, 96
  %v7656 = vpop.permute.xlu0 %7655
  %7657 = vrot.lane.b32.xlu0 %v7581, 96
  %v7658 = vpop.permute.xlu0 %7657
  %7659 = vrot.lane.b32.xlu0 %v7590, 96
  %v7660 = vpop.permute.xlu0 %7659
  %7661 = vrot.lane.b32.xlu0 %v7599, 96
  %v7662 = vpop.permute.xlu0 %7661
  %7663 = vrot.lane.b32.xlu0 %v7608, 96
  %v7664 = vpop.permute.xlu0 %7663
  %7693 = vst.msk [vmem:[#allocation4 + $0x150] sm:$0xf] %vm4946, %v7610
  %7694 = vst.msk [vmem:[#allocation4 + $0x15c] sm:$0xf] %vm4946, %v7612
  %7695 = vst.msk [vmem:[#allocation4 + $0x168] sm:$0xf] %vm4946, %v7614
  %7696 = vst.msk [vmem:[#allocation4 + $0x174] sm:$0xf] %vm4946, %v7616
  %7697 = vst.msk [vmem:[#allocation4 + $0x180] sm:$0xf] %vm4946, %v7618
  %7698 = vst.msk [vmem:[#allocation4 + $0x18c] sm:$0xf] %vm4946, %v7620
  %7699 = vst.msk [vmem:[#allocation4 + $0x198] sm:$0xf] %vm4946, %v7622
  %7700 = vst.msk [vmem:[#allocation4 + $0x1a4] sm:$0xf] %vm4946, %v7624
  %7701 = vst.msk [vmem:[#allocation4 + $0x1b0] sm:$0xf] %vm4946, %v7626
  %7702 = vst.msk [vmem:[#allocation4 + $0x1bc] sm:$0xf] %vm4946, %v7628
  %7703 = vst.msk [vmem:[#allocation4 + $0x1c8] sm:$0xf] %vm4946, %v7630
  %7704 = vst.msk [vmem:[#allocation4 + $0x1d4] sm:$0xf] %vm4946, %v7632
  %7705 = vst.msk [vmem:[#allocation4 + $0x1e0] sm:$0xf] %vm4946, %v7634
  %7706 = vst.msk [vmem:[#allocation4 + $0x1ec] sm:$0xf] %vm4946, %v7636
  %7707 = vst.msk [vmem:[#allocation4 + $0x1f8] sm:$0xf] %vm4946, %v7638
  %7708 = vst.msk [vmem:[#allocation4 + $0x204] sm:$0xf] %vm4946, %v7640
  %7709 = vst.msk [vmem:[#allocation4 + $0x210] sm:$0xf] %vm4946, %v7642
  %7710 = vst.msk [vmem:[#allocation4 + $0x21c] sm:$0xf] %vm4946, %v7644
  %7711 = vst.msk [vmem:[#allocation4 + $0x228] sm:$0xf] %vm4946, %v7646
  %7712 = vst.msk [vmem:[#allocation4 + $0x234] sm:$0xf] %vm4946, %v7648
  %7713 = vst.msk [vmem:[#allocation4 + $0x240] sm:$0xf] %vm4946, %v7650
  %7714 = vst.msk [vmem:[#allocation4 + $0x24c] sm:$0xf] %vm4946, %v7652
  %7715 = vst.msk [vmem:[#allocation4 + $0x258] sm:$0xf] %vm4946, %v7654
  %7716 = vst.msk [vmem:[#allocation4 + $0x264] sm:$0xf] %vm4946, %v7656
  %7717 = vst.msk [vmem:[#allocation4 + $0x270] sm:$0xf] %vm4946, %v7658
  %7718 = vst.msk [vmem:[#allocation4 + $0x27c] sm:$0xf] %vm4946, %v7660
  %7719 = vst.msk [vmem:[#allocation4 + $0x288] sm:$0xf] %vm4946, %v7662
  %7720 = vst.msk [vmem:[#allocation4 + $0x294] sm:$0xf] %vm4946, %v7664
  %v7721 = vld [vmem:[%s3425 + $0x10] sm:$0xf]
  %v7722 = vld [vmem:[%s3425 + $0x14] sm:$0xf]
  %v7723 = vld [vmem:[%s3425 + $0x18] sm:$0xf]
  %v7724 = vld [vmem:[%s3425 + $0x1c] sm:$0xf]
  %v7725 = vld [vmem:[%s3425 + $0x20] sm:$0xf]
  %v7726 = vld [vmem:[%s3425 + $0x24] sm:$0xf]
  %v7727 = vld [vmem:[%s3425 + $0x28] sm:$0xf]
  %v7728 = vld [vmem:[%s3425 + $0x2c] sm:$0xf]
  %v7729 = vld [vmem:[%s3425 + $0x30] sm:$0xf]
  %v7730 = vld [vmem:[%s3425 + $0x34] sm:$0xf]
  %v7731 = vld [vmem:[%s3425 + $0x38] sm:$0xf]
  %v7732 = vld [vmem:[%s3425 + $0x3c] sm:$0xf]
  %v7733 = vld [vmem:[%s3425 + $0x40] sm:$0xf]
  %v7734 = vld [vmem:[%s3425 + $0x44] sm:$0xf]
  %v7735 = vld [vmem:[%s3425 + $0x48] sm:$0xf]
  %v7736 = vld [vmem:[%s3425 + $0x4c] sm:$0xf]
  %v7737 = vld [vmem:[%s3425 + $0x50] sm:$0xf]
  %v7738 = vld [vmem:[%s3425 + $0x54] sm:$0xf]
  %v7739 = vld [vmem:[%s3425 + $0x58] sm:$0xf]
  %v7740 = vld [vmem:[%s3425 + $0x5c] sm:$0xf]
  %v7741 = vld [vmem:[%s3425 + $0x60] sm:$0xf]
  %v7742 = vld [vmem:[%s3425 + $0x64] sm:$0xf]
  %v7743 = vld [vmem:[%s3425 + $0x68] sm:$0xf]
  %v7744 = vld [vmem:[%s3425 + $0x6c] sm:$0xf]
  %v7745 = vld [vmem:[%s3425 + $0x70] sm:$0xf]
  %v7746 = vld [vmem:[%s3425 + $0x74] sm:$0xf]
  %v7747 = vld [vmem:[%s3425 + $0x78] sm:$0xf]
  %v7748 = vld [vmem:[%s3425 + $0x7c] sm:$0xf]
  %7749 = vst.msk [vmem:[#allocation4 + $0x154] sm:$0xf] %vm2233, %v7721
  %7750 = vst.msk [vmem:[#allocation4 + $0x160] sm:$0xf] %vm2233, %v7722
  %7751 = vst.msk [vmem:[#allocation4 + $0x16c] sm:$0xf] %vm2233, %v7723
  %7752 = vst.msk [vmem:[#allocation4 + $0x178] sm:$0xf] %vm2233, %v7724
  %7753 = vst.msk [vmem:[#allocation4 + $0x184] sm:$0xf] %vm2233, %v7725
  %7754 = vst.msk [vmem:[#allocation4 + $0x190] sm:$0xf] %vm2233, %v7726
  %7755 = vst.msk [vmem:[#allocation4 + $0x19c] sm:$0xf] %vm2233, %v7727
  %7756 = vst.msk [vmem:[#allocation4 + $0x1a8] sm:$0xf] %vm2233, %v7728
  %7757 = vst.msk [vmem:[#allocation4 + $0x1b4] sm:$0xf] %vm2233, %v7729
  %7758 = vst.msk [vmem:[#allocation4 + $0x1c0] sm:$0xf] %vm2233, %v7730
  %7759 = vst.msk [vmem:[#allocation4 + $0x1cc] sm:$0xf] %vm2233, %v7731
  %7760 = vst.msk [vmem:[#allocation4 + $0x1d8] sm:$0xf] %vm2233, %v7732
  %7761 = vst.msk [vmem:[#allocation4 + $0x1e4] sm:$0xf] %vm2233, %v7733
  %7762 = vst.msk [vmem:[#allocation4 + $0x1f0] sm:$0xf] %vm2233, %v7734
  %7763 = vst.msk [vmem:[#allocation4 + $0x1fc] sm:$0xf] %vm2233, %v7735
  %7764 = vst.msk [vmem:[#allocation4 + $0x208] sm:$0xf] %vm2233, %v7736
  %7765 = vst.msk [vmem:[#allocation4 + $0x214] sm:$0xf] %vm2233, %v7737
  %7766 = vst.msk [vmem:[#allocation4 + $0x220] sm:$0xf] %vm2233, %v7738
  %7767 = vst.msk [vmem:[#allocation4 + $0x22c] sm:$0xf] %vm2233, %v7739
  %7768 = vst.msk [vmem:[#allocation4 + $0x238] sm:$0xf] %vm2233, %v7740
  %7769 = vst.msk [vmem:[#allocation4 + $0x244] sm:$0xf] %vm2233, %v7741
  %7770 = vst.msk [vmem:[#allocation4 + $0x250] sm:$0xf] %vm2233, %v7742
  %7771 = vst.msk [vmem:[#allocation4 + $0x25c] sm:$0xf] %vm2233, %v7743
  %7772 = vst.msk [vmem:[#allocation4 + $0x268] sm:$0xf] %vm2233, %v7744
  %7773 = vst.msk [vmem:[#allocation4 + $0x274] sm:$0xf] %vm2233, %v7745
  %7774 = vst.msk [vmem:[#allocation4 + $0x280] sm:$0xf] %vm2233, %v7746
  %7775 = vst.msk [vmem:[#allocation4 + $0x28c] sm:$0xf] %vm2233, %v7747
  %7776 = vst.msk [vmem:[#allocation4 + $0x298] sm:$0xf] %vm2233, %v7748
  %v7777 = vld [vmem:[%s3425 + $0x10] sm:$0xf]
  %v7778 = vld [vmem:[%s3425 + $0x14] sm:$0xf]
  %v7779 = vld [vmem:[%s3425 + $0x18] sm:$0xf]
  %v7780 = vld [vmem:[%s3425 + $0x1c] sm:$0xf]
  %v7781 = vld [vmem:[%s3425 + $0x20] sm:$0xf]
  %v7782 = vld [vmem:[%s3425 + $0x24] sm:$0xf]
  %v7783 = vld [vmem:[%s3425 + $0x28] sm:$0xf]
  %v7784 = vld [vmem:[%s3425 + $0x2c] sm:$0xf]
  %v7785 = vld [vmem:[%s3425 + $0x30] sm:$0xf]
  %v7786 = vld [vmem:[%s3425 + $0x34] sm:$0xf]
  %v7787 = vld [vmem:[%s3425 + $0x38] sm:$0xf]
  %v7788 = vld [vmem:[%s3425 + $0x3c] sm:$0xf]
  %v7789 = vld [vmem:[%s3425 + $0x40] sm:$0xf]
  %v7790 = vld [vmem:[%s3425 + $0x44] sm:$0xf]
  %v7791 = vld [vmem:[%s3425 + $0x48] sm:$0xf]
  %v7792 = vld [vmem:[%s3425 + $0x4c] sm:$0xf]
  %v7793 = vld [vmem:[%s3425 + $0x50] sm:$0xf]
  %v7794 = vld [vmem:[%s3425 + $0x54] sm:$0xf]
  %v7795 = vld [vmem:[%s3425 + $0x58] sm:$0xf]
  %v7796 = vld [vmem:[%s3425 + $0x5c] sm:$0xf]
  %v7797 = vld [vmem:[%s3425 + $0x60] sm:$0xf]
  %v7798 = vld [vmem:[%s3425 + $0x64] sm:$0xf]
  %v7799 = vld [vmem:[%s3425 + $0x68] sm:$0xf]
  %v7800 = vld [vmem:[%s3425 + $0x6c] sm:$0xf]
  %v7801 = vld [vmem:[%s3425 + $0x70] sm:$0xf]
  %v7802 = vld [vmem:[%s3425 + $0x74] sm:$0xf]
  %v7803 = vld [vmem:[%s3425 + $0x78] sm:$0xf]
  %v7804 = vld [vmem:[%s3425 + $0x7c] sm:$0xf]
  %v7805 = vld [vmem:[%s3425 + $0x80] sm:$0x1]
  %v7807 = vshrl.u32 %v7777, 16
  %v7809 = vrot.slane %v7807, 4
  %v7810 = vshll.u32 %v7777, 16
  %v7812 = vrot.slane %v7810, 5
  %v7813 = vor.u32 %v7809, %v7812
  %v7814 = vrot.slane %v7813, 4
  %v7816 = vshll.u32 %v7778, 16
  %v7818 = vrot.slane %v7816, 5
  %v7819 = vsel %vm4179, %v7814, %v7818
  %v7820 = vshrl.u32 %v7778, 16
  %v7822 = vrot.slane %v7820, 4
  %v7823 = vor.u32 %v7822, %v7818
  %v7824 = vrot.slane %v7823, 4
  %v7826 = vshll.u32 %v7779, 16
  %v7828 = vrot.slane %v7826, 5
  %v7829 = vsel %vm4179, %v7824, %v7828
  %v7830 = vshrl.u32 %v7779, 16
  %v7832 = vrot.slane %v7830, 4
  %v7833 = vor.u32 %v7832, %v7828
  %v7834 = vrot.slane %v7833, 4
  %v7836 = vshll.u32 %v7780, 16
  %v7838 = vrot.slane %v7836, 5
  %v7839 = vsel %vm4179, %v7834, %v7838
  %v7840 = vshrl.u32 %v7780, 16
  %v7842 = vrot.slane %v7840, 4
  %v7843 = vor.u32 %v7842, %v7838
  %v7844 = vrot.slane %v7843, 4
  %v7846 = vshll.u32 %v7781, 16
  %v7848 = vrot.slane %v7846, 5
  %v7849 = vsel %vm4179, %v7844, %v7848
  %v7850 = vshrl.u32 %v7781, 16
  %v7852 = vrot.slane %v7850, 4
  %v7853 = vor.u32 %v7852, %v7848
  %v7854 = vrot.slane %v7853, 4
  %v7856 = vshll.u32 %v7782, 16
  %v7858 = vrot.slane %v7856, 5
  %v7859 = vsel %vm4179, %v7854, %v7858
  %v7860 = vshrl.u32 %v7782, 16
  %v7862 = vrot.slane %v7860, 4
  %v7863 = vor.u32 %v7862, %v7858
  %v7864 = vrot.slane %v7863, 4
  %v7866 = vshll.u32 %v7783, 16
  %v7868 = vrot.slane %v7866, 5
  %v7869 = vsel %vm4179, %v7864, %v7868
  %v7870 = vshrl.u32 %v7783, 16
  %v7872 = vrot.slane %v7870, 4
  %v7873 = vor.u32 %v7872, %v7868
  %v7874 = vrot.slane %v7873, 4
  %v7876 = vshll.u32 %v7784, 16
  %v7878 = vrot.slane %v7876, 5
  %v7879 = vsel %vm4179, %v7874, %v7878
  %v7880 = vshrl.u32 %v7784, 16
  %v7882 = vrot.slane %v7880, 4
  %v7883 = vor.u32 %v7882, %v7878
  %v7884 = vrot.slane %v7883, 4
  %v7886 = vshll.u32 %v7785, 16
  %v7888 = vrot.slane %v7886, 5
  %v7889 = vsel %vm4179, %v7884, %v7888
  %v7890 = vshrl.u32 %v7785, 16
  %v7892 = vrot.slane %v7890, 4
  %v7893 = vor.u32 %v7892, %v7888
  %v7894 = vrot.slane %v7893, 4
  %v7896 = vshll.u32 %v7786, 16
  %v7898 = vrot.slane %v7896, 5
  %v7899 = vsel %vm4179, %v7894, %v7898
  %v7900 = vshrl.u32 %v7786, 16
  %v7902 = vrot.slane %v7900, 4
  %v7903 = vor.u32 %v7902, %v7898
  %v7904 = vrot.slane %v7903, 4
  %v7906 = vshll.u32 %v7787, 16
  %v7908 = vrot.slane %v7906, 5
  %v7909 = vsel %vm4179, %v7904, %v7908
  %v7910 = vshrl.u32 %v7787, 16
  %v7912 = vrot.slane %v7910, 4
  %v7913 = vor.u32 %v7912, %v7908
  %v7914 = vrot.slane %v7913, 4
  %v7916 = vshll.u32 %v7788, 16
  %v7918 = vrot.slane %v7916, 5
  %v7919 = vsel %vm4179, %v7914, %v7918
  %v7920 = vshrl.u32 %v7788, 16
  %v7922 = vrot.slane %v7920, 4
  %v7923 = vor.u32 %v7922, %v7918
  %v7924 = vrot.slane %v7923, 4
  %v7926 = vshll.u32 %v7789, 16
  %v7928 = vrot.slane %v7926, 5
  %v7929 = vsel %vm4179, %v7924, %v7928
  %v7930 = vshrl.u32 %v7789, 16
  %v7932 = vrot.slane %v7930, 4
  %v7933 = vor.u32 %v7932, %v7928
  %v7934 = vrot.slane %v7933, 4
  %v7936 = vshll.u32 %v7790, 16
  %v7938 = vrot.slane %v7936, 5
  %v7939 = vsel %vm4179, %v7934, %v7938
  %v7940 = vshrl.u32 %v7790, 16
  %v7942 = vrot.slane %v7940, 4
  %v7943 = vor.u32 %v7942, %v7938
  %v7944 = vrot.slane %v7943, 4
  %v7946 = vshll.u32 %v7791, 16
  %v7948 = vrot.slane %v7946, 5
  %v7949 = vsel %vm4179, %v7944, %v7948
  %v7950 = vshrl.u32 %v7791, 16
  %v7952 = vrot.slane %v7950, 4
  %v7953 = vor.u32 %v7952, %v7948
  %v7954 = vrot.slane %v7953, 4
  %v7956 = vshll.u32 %v7792, 16
  %v7958 = vrot.slane %v7956, 5
  %v7959 = vsel %vm4179, %v7954, %v7958
  %v7960 = vshrl.u32 %v7792, 16
  %v7962 = vrot.slane %v7960, 4
  %v7963 = vor.u32 %v7962, %v7958
  %v7964 = vrot.slane %v7963, 4
  %v7966 = vshll.u32 %v7793, 16
  %v7968 = vrot.slane %v7966, 5
  %v7969 = vsel %vm4179, %v7964, %v7968
  %v7970 = vshrl.u32 %v7793, 16
  %v7972 = vrot.slane %v7970, 4
  %v7973 = vor.u32 %v7972, %v7968
  %v7974 = vrot.slane %v7973, 4
  %v7976 = vshll.u32 %v7794, 16
  %v7978 = vrot.slane %v7976, 5
  %v7979 = vsel %vm4179, %v7974, %v7978
  %v7980 = vshrl.u32 %v7794, 16
  %v7982 = vrot.slane %v7980, 4
  %v7983 = vor.u32 %v7982, %v7978
  %v7984 = vrot.slane %v7983, 4
  %v7986 = vshll.u32 %v7795, 16
  %v7988 = vrot.slane %v7986, 5
  %v7989 = vsel %vm4179, %v7984, %v7988
  %v7990 = vshrl.u32 %v7795, 16
  %v7992 = vrot.slane %v7990, 4
  %v7993 = vor.u32 %v7992, %v7988
  %v7994 = vrot.slane %v7993, 4
  %v7996 = vshll.u32 %v7796, 16
  %v7998 = vrot.slane %v7996, 5
  %v7999 = vsel %vm4179, %v7994, %v7998
  %v8000 = vshrl.u32 %v7796, 16
  %v8002 = vrot.slane %v8000, 4
  %v8003 = vor.u32 %v8002, %v7998
  %v8004 = vrot.slane %v8003, 4
  %v8006 = vshll.u32 %v7797, 16
  %v8008 = vrot.slane %v8006, 5
  %v8009 = vsel %vm4179, %v8004, %v8008
  %v8010 = vshrl.u32 %v7797, 16
  %v8012 = vrot.slane %v8010, 4
  %v8013 = vor.u32 %v8012, %v8008
  %v8014 = vrot.slane %v8013, 4
  %v8016 = vshll.u32 %v7798, 16
  %v8018 = vrot.slane %v8016, 5
  %v8019 = vsel %vm4179, %v8014, %v8018
  %v8020 = vshrl.u32 %v7798, 16
  %v8022 = vrot.slane %v8020, 4
  %v8023 = vor.u32 %v8022, %v8018
  %v8024 = vrot.slane %v8023, 4
  %v8026 = vshll.u32 %v7799, 16
  %v8028 = vrot.slane %v8026, 5
  %v8029 = vsel %vm4179, %v8024, %v8028
  %v8030 = vshrl.u32 %v7799, 16
  %v8032 = vrot.slane %v8030, 4
  %v8033 = vor.u32 %v8032, %v8028
  %v8034 = vrot.slane %v8033, 4
  %v8036 = vshll.u32 %v7800, 16
  %v8038 = vrot.slane %v8036, 5
  %v8039 = vsel %vm4179, %v8034, %v8038
  %v8040 = vshrl.u32 %v7800, 16
  %v8042 = vrot.slane %v8040, 4
  %v8043 = vor.u32 %v8042, %v8038
  %v8044 = vrot.slane %v8043, 4
  %v8046 = vshll.u32 %v7801, 16
  %v8048 = vrot.slane %v8046, 5
  %v8049 = vsel %vm4179, %v8044, %v8048
  %v8050 = vshrl.u32 %v7801, 16
  %v8052 = vrot.slane %v8050, 4
  %v8053 = vor.u32 %v8052, %v8048
  %v8054 = vrot.slane %v8053, 4
  %v8056 = vshll.u32 %v7802, 16
  %v8058 = vrot.slane %v8056, 5
  %v8059 = vsel %vm4179, %v8054, %v8058
  %v8060 = vshrl.u32 %v7802, 16
  %v8062 = vrot.slane %v8060, 4
  %v8063 = vor.u32 %v8062, %v8058
  %v8064 = vrot.slane %v8063, 4
  %v8066 = vshll.u32 %v7803, 16
  %v8068 = vrot.slane %v8066, 5
  %v8069 = vsel %vm4179, %v8064, %v8068
  %v8070 = vshrl.u32 %v7803, 16
  %v8072 = vrot.slane %v8070, 4
  %v8073 = vor.u32 %v8072, %v8068
  %v8074 = vrot.slane %v8073, 4
  %v8076 = vshll.u32 %v7804, 16
  %v8078 = vrot.slane %v8076, 5
  %v8079 = vsel %vm4179, %v8074, %v8078
  %v8080 = vshrl.u32 %v7804, 16
  %v8082 = vrot.slane %v8080, 4
  %v8083 = vor.u32 %v8082, %v8078
  %v8084 = vrot.slane %v8083, 4
  %v8086 = vshll.u32 %v7805, 16
  %v8088 = vrot.slane %v8086, 5
  %v8089 = vsel %vm4179, %v8084, %v8088
  %8090 = vrot.lane.b32.xlu0 %v7819, 32
  %v8091 = vpop.permute.xlu0 %8090
  %8092 = vrot.lane.b32.xlu0 %v7829, 32
  %v8093 = vpop.permute.xlu0 %8092
  %8094 = vrot.lane.b32.xlu0 %v7839, 32
  %v8095 = vpop.permute.xlu0 %8094
  %8096 = vrot.lane.b32.xlu0 %v7849, 32
  %v8097 = vpop.permute.xlu0 %8096
  %8098 = vrot.lane.b32.xlu0 %v7859, 32
  %v8099 = vpop.permute.xlu0 %8098
  %8100 = vrot.lane.b32.xlu0 %v7869, 32
  %v8101 = vpop.permute.xlu0 %8100
  %8102 = vrot.lane.b32.xlu0 %v7879, 32
  %v8103 = vpop.permute.xlu0 %8102
  %8104 = vrot.lane.b32.xlu0 %v7889, 32
  %v8105 = vpop.permute.xlu0 %8104
  %8106 = vrot.lane.b32.xlu0 %v7899, 32
  %v8107 = vpop.permute.xlu0 %8106
  %8108 = vrot.lane.b32.xlu0 %v7909, 32
  %v8109 = vpop.permute.xlu0 %8108
  %8110 = vrot.lane.b32.xlu0 %v7919, 32
  %v8111 = vpop.permute.xlu0 %8110
  %8112 = vrot.lane.b32.xlu0 %v7929, 32
  %v8113 = vpop.permute.xlu0 %8112
  %8114 = vrot.lane.b32.xlu0 %v7939, 32
  %v8115 = vpop.permute.xlu0 %8114
  %8116 = vrot.lane.b32.xlu0 %v7949, 32
  %v8117 = vpop.permute.xlu0 %8116
  %8118 = vrot.lane.b32.xlu0 %v7959, 32
  %v8119 = vpop.permute.xlu0 %8118
  %8120 = vrot.lane.b32.xlu0 %v7969, 32
  %v8121 = vpop.permute.xlu0 %8120
  %8122 = vrot.lane.b32.xlu0 %v7979, 32
  %v8123 = vpop.permute.xlu0 %8122
  %8124 = vrot.lane.b32.xlu0 %v7989, 32
  %v8125 = vpop.permute.xlu0 %8124
  %8126 = vrot.lane.b32.xlu0 %v7999, 32
  %v8127 = vpop.permute.xlu0 %8126
  %8128 = vrot.lane.b32.xlu0 %v8009, 32
  %v8129 = vpop.permute.xlu0 %8128
  %8130 = vrot.lane.b32.xlu0 %v8019, 32
  %v8131 = vpop.permute.xlu0 %8130
  %8132 = vrot.lane.b32.xlu0 %v8029, 32
  %v8133 = vpop.permute.xlu0 %8132
  %8134 = vrot.lane.b32.xlu0 %v8039, 32
  %v8135 = vpop.permute.xlu0 %8134
  %8136 = vrot.lane.b32.xlu0 %v8049, 32
  %v8137 = vpop.permute.xlu0 %8136
  %8138 = vrot.lane.b32.xlu0 %v8059, 32
  %v8139 = vpop.permute.xlu0 %8138
  %8140 = vrot.lane.b32.xlu0 %v8069, 32
  %v8141 = vpop.permute.xlu0 %8140
  %8142 = vrot.lane.b32.xlu0 %v8079, 32
  %v8143 = vpop.permute.xlu0 %8142
  %8144 = vrot.lane.b32.xlu0 %v8089, 32
  %v8145 = vpop.permute.xlu0 %8144
  %8174 = vst.msk [vmem:[#allocation4 + $0x154] sm:$0xf] %vm4119, %v8091
  %8175 = vst.msk [vmem:[#allocation4 + $0x160] sm:$0xf] %vm4119, %v8093
  %8176 = vst.msk [vmem:[#allocation4 + $0x16c] sm:$0xf] %vm4119, %v8095
  %8177 = vst.msk [vmem:[#allocation4 + $0x178] sm:$0xf] %vm4119, %v8097
  %8178 = vst.msk [vmem:[#allocation4 + $0x184] sm:$0xf] %vm4119, %v8099
  %8179 = vst.msk [vmem:[#allocation4 + $0x190] sm:$0xf] %vm4119, %v8101
  %8180 = vst.msk [vmem:[#allocation4 + $0x19c] sm:$0xf] %vm4119, %v8103
  %8181 = vst.msk [vmem:[#allocation4 + $0x1a8] sm:$0xf] %vm4119, %v8105
  %8182 = vst.msk [vmem:[#allocation4 + $0x1b4] sm:$0xf] %vm4119, %v8107
  %8183 = vst.msk [vmem:[#allocation4 + $0x1c0] sm:$0xf] %vm4119, %v8109
  %8184 = vst.msk [vmem:[#allocation4 + $0x1cc] sm:$0xf] %vm4119, %v8111
  %8185 = vst.msk [vmem:[#allocation4 + $0x1d8] sm:$0xf] %vm4119, %v8113
  %8186 = vst.msk [vmem:[#allocation4 + $0x1e4] sm:$0xf] %vm4119, %v8115
  %8187 = vst.msk [vmem:[#allocation4 + $0x1f0] sm:$0xf] %vm4119, %v8117
  %8188 = vst.msk [vmem:[#allocation4 + $0x1fc] sm:$0xf] %vm4119, %v8119
  %8189 = vst.msk [vmem:[#allocation4 + $0x208] sm:$0xf] %vm4119, %v8121
  %8190 = vst.msk [vmem:[#allocation4 + $0x214] sm:$0xf] %vm4119, %v8123
  %8191 = vst.msk [vmem:[#allocation4 + $0x220] sm:$0xf] %vm4119, %v8125
  %8192 = vst.msk [vmem:[#allocation4 + $0x22c] sm:$0xf] %vm4119, %v8127
  %8193 = vst.msk [vmem:[#allocation4 + $0x238] sm:$0xf] %vm4119, %v8129
  %8194 = vst.msk [vmem:[#allocation4 + $0x244] sm:$0xf] %vm4119, %v8131
  %8195 = vst.msk [vmem:[#allocation4 + $0x250] sm:$0xf] %vm4119, %v8133
  %8196 = vst.msk [vmem:[#allocation4 + $0x25c] sm:$0xf] %vm4119, %v8135
  %8197 = vst.msk [vmem:[#allocation4 + $0x268] sm:$0xf] %vm4119, %v8137
  %8198 = vst.msk [vmem:[#allocation4 + $0x274] sm:$0xf] %vm4119, %v8139
  %8199 = vst.msk [vmem:[#allocation4 + $0x280] sm:$0xf] %vm4119, %v8141
  %8200 = vst.msk [vmem:[#allocation4 + $0x28c] sm:$0xf] %vm4119, %v8143
  %8201 = vst.msk [vmem:[#allocation4 + $0x298] sm:$0xf] %vm4119, %v8145
  %v8202 = vld [vmem:[%s3425 + $0x14] sm:$0x8]
  %v8203 = vld [vmem:[%s3425 + $0x18] sm:$0xf]
  %v8204 = vld [vmem:[%s3425 + $0x1c] sm:$0xf]
  %v8205 = vld [vmem:[%s3425 + $0x20] sm:$0xf]
  %v8206 = vld [vmem:[%s3425 + $0x24] sm:$0xf]
  %v8207 = vld [vmem:[%s3425 + $0x28] sm:$0xf]
  %v8208 = vld [vmem:[%s3425 + $0x2c] sm:$0xf]
  %v8209 = vld [vmem:[%s3425 + $0x30] sm:$0xf]
  %v8210 = vld [vmem:[%s3425 + $0x34] sm:$0xf]
  %v8211 = vld [vmem:[%s3425 + $0x38] sm:$0xf]
  %v8212 = vld [vmem:[%s3425 + $0x3c] sm:$0xf]
  %v8213 = vld [vmem:[%s3425 + $0x40] sm:$0xf]
  %v8214 = vld [vmem:[%s3425 + $0x44] sm:$0xf]
  %v8215 = vld [vmem:[%s3425 + $0x48] sm:$0xf]
  %v8216 = vld [vmem:[%s3425 + $0x4c] sm:$0xf]
  %v8217 = vld [vmem:[%s3425 + $0x50] sm:$0xf]
  %v8218 = vld [vmem:[%s3425 + $0x54] sm:$0xf]
  %v8219 = vld [vmem:[%s3425 + $0x58] sm:$0xf]
  %v8220 = vld [vmem:[%s3425 + $0x5c] sm:$0xf]
  %v8221 = vld [vmem:[%s3425 + $0x60] sm:$0xf]
  %v8222 = vld [vmem:[%s3425 + $0x64] sm:$0xf]
  %v8223 = vld [vmem:[%s3425 + $0x68] sm:$0xf]
  %v8224 = vld [vmem:[%s3425 + $0x6c] sm:$0xf]
  %v8225 = vld [vmem:[%s3425 + $0x70] sm:$0xf]
  %v8226 = vld [vmem:[%s3425 + $0x74] sm:$0xf]
  %v8227 = vld [vmem:[%s3425 + $0x78] sm:$0xf]
  %v8228 = vld [vmem:[%s3425 + $0x7c] sm:$0xf]
  %v8229 = vld [vmem:[%s3425 + $0x80] sm:$0xf]
  %v8230 = vld [vmem:[%s3425 + $0x84] sm:$0xf]
  %v8232 = vshrl.u32 %v8202, 16
  %v8234 = vrot.slane %v8232, 7
  %v8235 = vrot.slane %v8234, 4
  %v8237 = vshrl.u32 %v8203, 16
  %v8239 = vrot.slane %v8237, 7
  %v8240 = vshll.u32 %v8203, 16
  %v8242 = vor.u32 %v8239, %v8240
  %v8243 = vsel %vm3666, %v8235, %v8242
  %v8244 = vrot.slane %v8239, 4
  %v8246 = vshrl.u32 %v8204, 16
  %v8248 = vrot.slane %v8246, 7
  %v8249 = vshll.u32 %v8204, 16
  %v8251 = vor.u32 %v8248, %v8249
  %v8252 = vsel %vm3666, %v8244, %v8251
  %v8253 = vrot.slane %v8248, 4
  %v8255 = vshrl.u32 %v8205, 16
  %v8257 = vrot.slane %v8255, 7
  %v8258 = vshll.u32 %v8205, 16
  %v8260 = vor.u32 %v8257, %v8258
  %v8261 = vsel %vm3666, %v8253, %v8260
  %v8262 = vrot.slane %v8257, 4
  %v8264 = vshrl.u32 %v8206, 16
  %v8266 = vrot.slane %v8264, 7
  %v8267 = vshll.u32 %v8206, 16
  %v8269 = vor.u32 %v8266, %v8267
  %v8270 = vsel %vm3666, %v8262, %v8269
  %v8271 = vrot.slane %v8266, 4
  %v8273 = vshrl.u32 %v8207, 16
  %v8275 = vrot.slane %v8273, 7
  %v8276 = vshll.u32 %v8207, 16
  %v8278 = vor.u32 %v8275, %v8276
  %v8279 = vsel %vm3666, %v8271, %v8278
  %v8280 = vrot.slane %v8275, 4
  %v8282 = vshrl.u32 %v8208, 16
  %v8284 = vrot.slane %v8282, 7
  %v8285 = vshll.u32 %v8208, 16
  %v8287 = vor.u32 %v8284, %v8285
  %v8288 = vsel %vm3666, %v8280, %v8287
  %v8289 = vrot.slane %v8284, 4
  %v8291 = vshrl.u32 %v8209, 16
  %v8293 = vrot.slane %v8291, 7
  %v8294 = vshll.u32 %v8209, 16
  %v8296 = vor.u32 %v8293, %v8294
  %v8297 = vsel %vm3666, %v8289, %v8296
  %v8298 = vrot.slane %v8293, 4
  %v8300 = vshrl.u32 %v8210, 16
  %v8302 = vrot.slane %v8300, 7
  %v8303 = vshll.u32 %v8210, 16
  %v8305 = vor.u32 %v8302, %v8303
  %v8306 = vsel %vm3666, %v8298, %v8305
  %v8307 = vrot.slane %v8302, 4
  %v8309 = vshrl.u32 %v8211, 16
  %v8311 = vrot.slane %v8309, 7
  %v8312 = vshll.u32 %v8211, 16
  %v8314 = vor.u32 %v8311, %v8312
  %v8315 = vsel %vm3666, %v8307, %v8314
  %v8316 = vrot.slane %v8311, 4
  %v8318 = vshrl.u32 %v8212, 16
  %v8320 = vrot.slane %v8318, 7
  %v8321 = vshll.u32 %v8212, 16
  %v8323 = vor.u32 %v8320, %v8321
  %v8324 = vsel %vm3666, %v8316, %v8323
  %v8325 = vrot.slane %v8320, 4
  %v8327 = vshrl.u32 %v8213, 16
  %v8329 = vrot.slane %v8327, 7
  %v8330 = vshll.u32 %v8213, 16
  %v8332 = vor.u32 %v8329, %v8330
  %v8333 = vsel %vm3666, %v8325, %v8332
  %v8334 = vrot.slane %v8329, 4
  %v8336 = vshrl.u32 %v8214, 16
  %v8338 = vrot.slane %v8336, 7
  %v8339 = vshll.u32 %v8214, 16
  %v8341 = vor.u32 %v8338, %v8339
  %v8342 = vsel %vm3666, %v8334, %v8341
  %v8343 = vrot.slane %v8338, 4
  %v8345 = vshrl.u32 %v8215, 16
  %v8347 = vrot.slane %v8345, 7
  %v8348 = vshll.u32 %v8215, 16
  %v8350 = vor.u32 %v8347, %v8348
  %v8351 = vsel %vm3666, %v8343, %v8350
  %v8352 = vrot.slane %v8347, 4
  %v8354 = vshrl.u32 %v8216, 16
  %v8356 = vrot.slane %v8354, 7
  %v8357 = vshll.u32 %v8216, 16
  %v8359 = vor.u32 %v8356, %v8357
  %v8360 = vsel %vm3666, %v8352, %v8359
  %v8361 = vrot.slane %v8356, 4
  %v8363 = vshrl.u32 %v8217, 16
  %v8365 = vrot.slane %v8363, 7
  %v8366 = vshll.u32 %v8217, 16
  %v8368 = vor.u32 %v8365, %v8366
  %v8369 = vsel %vm3666, %v8361, %v8368
  %v8370 = vrot.slane %v8365, 4
  %v8372 = vshrl.u32 %v8218, 16
  %v8374 = vrot.slane %v8372, 7
  %v8375 = vshll.u32 %v8218, 16
  %v8377 = vor.u32 %v8374, %v8375
  %v8378 = vsel %vm3666, %v8370, %v8377
  %v8379 = vrot.slane %v8374, 4
  %v8381 = vshrl.u32 %v8219, 16
  %v8383 = vrot.slane %v8381, 7
  %v8384 = vshll.u32 %v8219, 16
  %v8386 = vor.u32 %v8383, %v8384
  %v8387 = vsel %vm3666, %v8379, %v8386
  %v8388 = vrot.slane %v8383, 4
  %v8390 = vshrl.u32 %v8220, 16
  %v8392 = vrot.slane %v8390, 7
  %v8393 = vshll.u32 %v8220, 16
  %v8395 = vor.u32 %v8392, %v8393
  %v8396 = vsel %vm3666, %v8388, %v8395
  %v8397 = vrot.slane %v8392, 4
  %v8399 = vshrl.u32 %v8221, 16
  %v8401 = vrot.slane %v8399, 7
  %v8402 = vshll.u32 %v8221, 16
  %v8404 = vor.u32 %v8401, %v8402
  %v8405 = vsel %vm3666, %v8397, %v8404
  %v8406 = vrot.slane %v8401, 4
  %v8408 = vshrl.u32 %v8222, 16
  %v8410 = vrot.slane %v8408, 7
  %v8411 = vshll.u32 %v8222, 16
  %v8413 = vor.u32 %v8410, %v8411
  %v8414 = vsel %vm3666, %v8406, %v8413
  %v8415 = vrot.slane %v8410, 4
  %v8417 = vshrl.u32 %v8223, 16
  %v8419 = vrot.slane %v8417, 7
  %v8420 = vshll.u32 %v8223, 16
  %v8422 = vor.u32 %v8419, %v8420
  %v8423 = vsel %vm3666, %v8415, %v8422
  %v8424 = vrot.slane %v8419, 4
  %v8426 = vshrl.u32 %v8224, 16
  %v8428 = vrot.slane %v8426, 7
  %v8429 = vshll.u32 %v8224, 16
  %v8431 = vor.u32 %v8428, %v8429
  %v8432 = vsel %vm3666, %v8424, %v8431
  %v8433 = vrot.slane %v8428, 4
  %v8435 = vshrl.u32 %v8225, 16
  %v8437 = vrot.slane %v8435, 7
  %v8438 = vshll.u32 %v8225, 16
  %v8440 = vor.u32 %v8437, %v8438
  %v8441 = vsel %vm3666, %v8433, %v8440
  %v8442 = vrot.slane %v8437, 4
  %v8444 = vshrl.u32 %v8226, 16
  %v8446 = vrot.slane %v8444, 7
  %v8447 = vshll.u32 %v8226, 16
  %v8449 = vor.u32 %v8446, %v8447
  %v8450 = vsel %vm3666, %v8442, %v8449
  %v8451 = vrot.slane %v8446, 4
  %v8453 = vshrl.u32 %v8227, 16
  %v8455 = vrot.slane %v8453, 7
  %v8456 = vshll.u32 %v8227, 16
  %v8458 = vor.u32 %v8455, %v8456
  %v8459 = vsel %vm3666, %v8451, %v8458
  %v8460 = vrot.slane %v8455, 4
  %v8462 = vshrl.u32 %v8228, 16
  %v8464 = vrot.slane %v8462, 7
  %v8465 = vshll.u32 %v8228, 16
  %v8467 = vor.u32 %v8464, %v8465
  %v8468 = vsel %vm3666, %v8460, %v8467
  %v8469 = vrot.slane %v8464, 4
  %v8471 = vshrl.u32 %v8229, 16
  %v8473 = vrot.slane %v8471, 7
  %v8474 = vshll.u32 %v8229, 16
  %v8476 = vor.u32 %v8473, %v8474
  %v8477 = vsel %vm3666, %v8469, %v8476
  %v8478 = vrot.slane %v8473, 4
  %v8480 = vshrl.u32 %v8230, 16
  %v8482 = vrot.slane %v8480, 7
  %v8483 = vshll.u32 %v8230, 16
  %v8485 = vor.u32 %v8482, %v8483
  %v8486 = vsel %vm3666, %v8478, %v8485
  %8487 = vrot.lane.b32.xlu0 %v8243, 64
  %v8488 = vpop.permute.xlu0 %8487
  %8489 = vrot.lane.b32.xlu0 %v8252, 64
  %v8490 = vpop.permute.xlu0 %8489
  %8491 = vrot.lane.b32.xlu0 %v8261, 64
  %v8492 = vpop.permute.xlu0 %8491
  %8493 = vrot.lane.b32.xlu0 %v8270, 64
  %v8494 = vpop.permute.xlu0 %8493
  %8495 = vrot.lane.b32.xlu0 %v8279, 64
  %v8496 = vpop.permute.xlu0 %8495
  %8497 = vrot.lane.b32.xlu0 %v8288, 64
  %v8498 = vpop.permute.xlu0 %8497
  %8499 = vrot.lane.b32.xlu0 %v8297, 64
  %v8500 = vpop.permute.xlu0 %8499
  %8501 = vrot.lane.b32.xlu0 %v8306, 64
  %v8502 = vpop.permute.xlu0 %8501
  %8503 = vrot.lane.b32.xlu0 %v8315, 64
  %v8504 = vpop.permute.xlu0 %8503
  %8505 = vrot.lane.b32.xlu0 %v8324, 64
  %v8506 = vpop.permute.xlu0 %8505
  %8507 = vrot.lane.b32.xlu0 %v8333, 64
  %v8508 = vpop.permute.xlu0 %8507
  %8509 = vrot.lane.b32.xlu0 %v8342, 64
  %v8510 = vpop.permute.xlu0 %8509
  %8511 = vrot.lane.b32.xlu0 %v8351, 64
  %v8512 = vpop.permute.xlu0 %8511
  %8513 = vrot.lane.b32.xlu0 %v8360, 64
  %v8514 = vpop.permute.xlu0 %8513
  %8515 = vrot.lane.b32.xlu0 %v8369, 64
  %v8516 = vpop.permute.xlu0 %8515
  %8517 = vrot.lane.b32.xlu0 %v8378, 64
  %v8518 = vpop.permute.xlu0 %8517
  %8519 = vrot.lane.b32.xlu0 %v8387, 64
  %v8520 = vpop.permute.xlu0 %8519
  %8521 = vrot.lane.b32.xlu0 %v8396, 64
  %v8522 = vpop.permute.xlu0 %8521
  %8523 = vrot.lane.b32.xlu0 %v8405, 64
  %v8524 = vpop.permute.xlu0 %8523
  %8525 = vrot.lane.b32.xlu0 %v8414, 64
  %v8526 = vpop.permute.xlu0 %8525
  %8527 = vrot.lane.b32.xlu0 %v8423, 64
  %v8528 = vpop.permute.xlu0 %8527
  %8529 = vrot.lane.b32.xlu0 %v8432, 64
  %v8530 = vpop.permute.xlu0 %8529
  %8531 = vrot.lane.b32.xlu0 %v8441, 64
  %v8532 = vpop.permute.xlu0 %8531
  %8533 = vrot.lane.b32.xlu0 %v8450, 64
  %v8534 = vpop.permute.xlu0 %8533
  %8535 = vrot.lane.b32.xlu0 %v8459, 64
  %v8536 = vpop.permute.xlu0 %8535
  %8537 = vrot.lane.b32.xlu0 %v8468, 64
  %v8538 = vpop.permute.xlu0 %8537
  %8539 = vrot.lane.b32.xlu0 %v8477, 64
  %v8540 = vpop.permute.xlu0 %8539
  %8541 = vrot.lane.b32.xlu0 %v8486, 64
  %v8542 = vpop.permute.xlu0 %8541
  %8571 = vst.msk [vmem:[#allocation4 + $0x154] sm:$0xf] %vm4548, %v8488
  %8572 = vst.msk [vmem:[#allocation4 + $0x160] sm:$0xf] %vm4548, %v8490
  %8573 = vst.msk [vmem:[#allocation4 + $0x16c] sm:$0xf] %vm4548, %v8492
  %8574 = vst.msk [vmem:[#allocation4 + $0x178] sm:$0xf] %vm4548, %v8494
  %8575 = vst.msk [vmem:[#allocation4 + $0x184] sm:$0xf] %vm4548, %v8496
  %8576 = vst.msk [vmem:[#allocation4 + $0x190] sm:$0xf] %vm4548, %v8498
  %8577 = vst.msk [vmem:[#allocation4 + $0x19c] sm:$0xf] %vm4548, %v8500
  %8578 = vst.msk [vmem:[#allocation4 + $0x1a8] sm:$0xf] %vm4548, %v8502
  %8579 = vst.msk [vmem:[#allocation4 + $0x1b4] sm:$0xf] %vm4548, %v8504
  %8580 = vst.msk [vmem:[#allocation4 + $0x1c0] sm:$0xf] %vm4548, %v8506
  %8581 = vst.msk [vmem:[#allocation4 + $0x1cc] sm:$0xf] %vm4548, %v8508
  %8582 = vst.msk [vmem:[#allocation4 + $0x1d8] sm:$0xf] %vm4548, %v8510
  %8583 = vst.msk [vmem:[#allocation4 + $0x1e4] sm:$0xf] %vm4548, %v8512
  %8584 = vst.msk [vmem:[#allocation4 + $0x1f0] sm:$0xf] %vm4548, %v8514
  %8585 = vst.msk [vmem:[#allocation4 + $0x1fc] sm:$0xf] %vm4548, %v8516
  %8586 = vst.msk [vmem:[#allocation4 + $0x208] sm:$0xf] %vm4548, %v8518
  %8587 = vst.msk [vmem:[#allocation4 + $0x214] sm:$0xf] %vm4548, %v8520
  %8588 = vst.msk [vmem:[#allocation4 + $0x220] sm:$0xf] %vm4548, %v8522
  %8589 = vst.msk [vmem:[#allocation4 + $0x22c] sm:$0xf] %vm4548, %v8524
  %8590 = vst.msk [vmem:[#allocation4 + $0x238] sm:$0xf] %vm4548, %v8526
  %8591 = vst.msk [vmem:[#allocation4 + $0x244] sm:$0xf] %vm4548, %v8528
  %8592 = vst.msk [vmem:[#allocation4 + $0x250] sm:$0xf] %vm4548, %v8530
  %8593 = vst.msk [vmem:[#allocation4 + $0x25c] sm:$0xf] %vm4548, %v8532
  %8594 = vst.msk [vmem:[#allocation4 + $0x268] sm:$0xf] %vm4548, %v8534
  %8595 = vst.msk [vmem:[#allocation4 + $0x274] sm:$0xf] %vm4548, %v8536
  %8596 = vst.msk [vmem:[#allocation4 + $0x280] sm:$0xf] %vm4548, %v8538
  %8597 = vst.msk [vmem:[#allocation4 + $0x28c] sm:$0xf] %vm4548, %v8540
  %8598 = vst.msk [vmem:[#allocation4 + $0x298] sm:$0xf] %vm4548, %v8542
  %v8599 = vld [vmem:[%s3425 + $0x18] sm:$0xf]
  %v8600 = vld [vmem:[%s3425 + $0x1c] sm:$0xf]
  %v8601 = vld [vmem:[%s3425 + $0x20] sm:$0xf]
  %v8602 = vld [vmem:[%s3425 + $0x24] sm:$0xf]
  %v8603 = vld [vmem:[%s3425 + $0x28] sm:$0xf]
  %v8604 = vld [vmem:[%s3425 + $0x2c] sm:$0xf]
  %v8605 = vld [vmem:[%s3425 + $0x30] sm:$0xf]
  %v8606 = vld [vmem:[%s3425 + $0x34] sm:$0xf]
  %v8607 = vld [vmem:[%s3425 + $0x38] sm:$0xf]
  %v8608 = vld [vmem:[%s3425 + $0x3c] sm:$0xf]
  %v8609 = vld [vmem:[%s3425 + $0x40] sm:$0xf]
  %v8610 = vld [vmem:[%s3425 + $0x44] sm:$0xf]
  %v8611 = vld [vmem:[%s3425 + $0x48] sm:$0xf]
  %v8612 = vld [vmem:[%s3425 + $0x4c] sm:$0xf]
  %v8613 = vld [vmem:[%s3425 + $0x50] sm:$0xf]
  %v8614 = vld [vmem:[%s3425 + $0x54] sm:$0xf]
  %v8615 = vld [vmem:[%s3425 + $0x58] sm:$0xf]
  %v8616 = vld [vmem:[%s3425 + $0x5c] sm:$0xf]
  %v8617 = vld [vmem:[%s3425 + $0x60] sm:$0xf]
  %v8618 = vld [vmem:[%s3425 + $0x64] sm:$0xf]
  %v8619 = vld [vmem:[%s3425 + $0x68] sm:$0xf]
  %v8620 = vld [vmem:[%s3425 + $0x6c] sm:$0xf]
  %v8621 = vld [vmem:[%s3425 + $0x70] sm:$0xf]
  %v8622 = vld [vmem:[%s3425 + $0x74] sm:$0xf]
  %v8623 = vld [vmem:[%s3425 + $0x78] sm:$0xf]
  %v8624 = vld [vmem:[%s3425 + $0x7c] sm:$0xf]
  %v8625 = vld [vmem:[%s3425 + $0x80] sm:$0xf]
  %v8626 = vld [vmem:[%s3425 + $0x84] sm:$0xf]
  %8655 = vrot.lane.b32.xlu0 %v8599, 96
  %v8656 = vpop.permute.xlu0 %8655
  %8657 = vrot.lane.b32.xlu0 %v8600, 96
  %v8658 = vpop.permute.xlu0 %8657
  %8659 = vrot.lane.b32.xlu0 %v8601, 96
  %v8660 = vpop.permute.xlu0 %8659
  %8661 = vrot.lane.b32.xlu0 %v8602, 96
  %v8662 = vpop.permute.xlu0 %8661
  %8663 = vrot.lane.b32.xlu0 %v8603, 96
  %v8664 = vpop.permute.xlu0 %8663
  %8665 = vrot.lane.b32.xlu0 %v8604, 96
  %v8666 = vpop.permute.xlu0 %8665
  %8667 = vrot.lane.b32.xlu0 %v8605, 96
  %v8668 = vpop.permute.xlu0 %8667
  %8669 = vrot.lane.b32.xlu0 %v8606, 96
  %v8670 = vpop.permute.xlu0 %8669
  %8671 = vrot.lane.b32.xlu0 %v8607, 96
  %v8672 = vpop.permute.xlu0 %8671
  %8673 = vrot.lane.b32.xlu0 %v8608, 96
  %v8674 = vpop.permute.xlu0 %8673
  %8675 = vrot.lane.b32.xlu0 %v8609, 96
  %v8676 = vpop.permute.xlu0 %8675
  %8677 = vrot.lane.b32.xlu0 %v8610, 96
  %v8678 = vpop.permute.xlu0 %8677
  %8679 = vrot.lane.b32.xlu0 %v8611, 96
  %v8680 = vpop.permute.xlu0 %8679
  %8681 = vrot.lane.b32.xlu0 %v8612, 96
  %v8682 = vpop.permute.xlu0 %8681
  %8683 = vrot.lane.b32.xlu0 %v8613, 96
  %v8684 = vpop.permute.xlu0 %8683
  %8685 = vrot.lane.b32.xlu0 %v8614, 96
  %v8686 = vpop.permute.xlu0 %8685
  %8687 = vrot.lane.b32.xlu0 %v8615, 96
  %v8688 = vpop.permute.xlu0 %8687
  %8689 = vrot.lane.b32.xlu0 %v8616, 96
  %v8690 = vpop.permute.xlu0 %8689
  %8691 = vrot.lane.b32.xlu0 %v8617, 96
  %v8692 = vpop.permute.xlu0 %8691
  %8693 = vrot.lane.b32.xlu0 %v8618, 96
  %v8694 = vpop.permute.xlu0 %8693
  %8695 = vrot.lane.b32.xlu0 %v8619, 96
  %v8696 = vpop.permute.xlu0 %8695
  %8697 = vrot.lane.b32.xlu0 %v8620, 96
  %v8698 = vpop.permute.xlu0 %8697
  %8699 = vrot.lane.b32.xlu0 %v8621, 96
  %v8700 = vpop.permute.xlu0 %8699
  %8701 = vrot.lane.b32.xlu0 %v8622, 96
  %v8702 = vpop.permute.xlu0 %8701
  %8703 = vrot.lane.b32.xlu0 %v8623, 96
  %v8704 = vpop.permute.xlu0 %8703
  %8705 = vrot.lane.b32.xlu0 %v8624, 96
  %v8706 = vpop.permute.xlu0 %8705
  %8707 = vrot.lane.b32.xlu0 %v8625, 96
  %v8708 = vpop.permute.xlu0 %8707
  %8709 = vrot.lane.b32.xlu0 %v8626, 96
  %v8710 = vpop.permute.xlu0 %8709
  %8739 = vst.msk [vmem:[#allocation4 + $0x154] sm:$0xf] %vm4946, %v8656
  %8740 = vst.msk [vmem:[#allocation4 + $0x160] sm:$0xf] %vm4946, %v8658
  %8741 = vst.msk [vmem:[#allocation4 + $0x16c] sm:$0xf] %vm4946, %v8660
  %8742 = vst.msk [vmem:[#allocation4 + $0x178] sm:$0xf] %vm4946, %v8662
  %8743 = vst.msk [vmem:[#allocation4 + $0x184] sm:$0xf] %vm4946, %v8664
  %8744 = vst.msk [vmem:[#allocation4 + $0x190] sm:$0xf] %vm4946, %v8666
  %8745 = vst.msk [vmem:[#allocation4 + $0x19c] sm:$0xf] %vm4946, %v8668
  %8746 = vst.msk [vmem:[#allocation4 + $0x1a8] sm:$0xf] %vm4946, %v8670
  %8747 = vst.msk [vmem:[#allocation4 + $0x1b4] sm:$0xf] %vm4946, %v8672
  %8748 = vst.msk [vmem:[#allocation4 + $0x1c0] sm:$0xf] %vm4946, %v8674
  %8749 = vst.msk [vmem:[#allocation4 + $0x1cc] sm:$0xf] %vm4946, %v8676
  %8750 = vst.msk [vmem:[#allocation4 + $0x1d8] sm:$0xf] %vm4946, %v8678
  %8751 = vst.msk [vmem:[#allocation4 + $0x1e4] sm:$0xf] %vm4946, %v8680
  %8752 = vst.msk [vmem:[#allocation4 + $0x1f0] sm:$0xf] %vm4946, %v8682
  %8753 = vst.msk [vmem:[#allocation4 + $0x1fc] sm:$0xf] %vm4946, %v8684
  %8754 = vst.msk [vmem:[#allocation4 + $0x208] sm:$0xf] %vm4946, %v8686
  %8755 = vst.msk [vmem:[#allocation4 + $0x214] sm:$0xf] %vm4946, %v8688
  %8756 = vst.msk [vmem:[#allocation4 + $0x220] sm:$0xf] %vm4946, %v8690
  %8757 = vst.msk [vmem:[#allocation4 + $0x22c] sm:$0xf] %vm4946, %v8692
  %8758 = vst.msk [vmem:[#allocation4 + $0x238] sm:$0xf] %vm4946, %v8694
  %8759 = vst.msk [vmem:[#allocation4 + $0x244] sm:$0xf] %vm4946, %v8696
  %8760 = vst.msk [vmem:[#allocation4 + $0x250] sm:$0xf] %vm4946, %v8698
  %8761 = vst.msk [vmem:[#allocation4 + $0x25c] sm:$0xf] %vm4946, %v8700
  %8762 = vst.msk [vmem:[#allocation4 + $0x268] sm:$0xf] %vm4946, %v8702
  %8763 = vst.msk [vmem:[#allocation4 + $0x274] sm:$0xf] %vm4946, %v8704
  %8764 = vst.msk [vmem:[#allocation4 + $0x280] sm:$0xf] %vm4946, %v8706
  %8765 = vst.msk [vmem:[#allocation4 + $0x28c] sm:$0xf] %vm4946, %v8708
  %8766 = vst.msk [vmem:[#allocation4 + $0x298] sm:$0xf] %vm4946, %v8710
  %v8767 = vld [vmem:[%s3425 + $0x18] sm:$0xf]
  %v8768 = vld [vmem:[%s3425 + $0x1c] sm:$0xf]
  %v8769 = vld [vmem:[%s3425 + $0x20] sm:$0xf]
  %v8770 = vld [vmem:[%s3425 + $0x24] sm:$0xf]
  %v8771 = vld [vmem:[%s3425 + $0x28] sm:$0xf]
  %v8772 = vld [vmem:[%s3425 + $0x2c] sm:$0xf]
  %v8773 = vld [vmem:[%s3425 + $0x30] sm:$0xf]
  %v8774 = vld [vmem:[%s3425 + $0x34] sm:$0xf]
  %v8775 = vld [vmem:[%s3425 + $0x38] sm:$0xf]
  %v8776 = vld [vmem:[%s3425 + $0x3c] sm:$0xf]
  %v8777 = vld [vmem:[%s3425 + $0x40] sm:$0xf]
  %v8778 = vld [vmem:[%s3425 + $0x44] sm:$0xf]
  %v8779 = vld [vmem:[%s3425 + $0x48] sm:$0xf]
  %v8780 = vld [vmem:[%s3425 + $0x4c] sm:$0xf]
  %v8781 = vld [vmem:[%s3425 + $0x50] sm:$0xf]
  %v8782 = vld [vmem:[%s3425 + $0x54] sm:$0xf]
  %v8783 = vld [vmem:[%s3425 + $0x58] sm:$0xf]
  %v8784 = vld [vmem:[%s3425 + $0x5c] sm:$0xf]
  %v8785 = vld [vmem:[%s3425 + $0x60] sm:$0xf]
  %v8786 = vld [vmem:[%s3425 + $0x64] sm:$0xf]
  %v8787 = vld [vmem:[%s3425 + $0x68] sm:$0xf]
  %v8788 = vld [vmem:[%s3425 + $0x6c] sm:$0xf]
  %v8789 = vld [vmem:[%s3425 + $0x70] sm:$0xf]
  %v8790 = vld [vmem:[%s3425 + $0x74] sm:$0xf]
  %v8791 = vld [vmem:[%s3425 + $0x78] sm:$0xf]
  %v8792 = vld [vmem:[%s3425 + $0x7c] sm:$0xf]
  %v8793 = vld [vmem:[%s3425 + $0x80] sm:$0xf]
  %v8794 = vld [vmem:[%s3425 + $0x84] sm:$0xf]
  %v8795 = vld [vmem:[%s3425 + $0x88] sm:$0x1]
  %v8797 = vshrl.u32 %v8767, 16
  %v8799 = vrot.slane %v8797, 4
  %v8800 = vshll.u32 %v8767, 16
  %v8802 = vrot.slane %v8800, 5
  %v8803 = vor.u32 %v8799, %v8802
  %v8804 = vrot.slane %v8803, 4
  %v8806 = vshll.u32 %v8768, 16
  %v8808 = vrot.slane %v8806, 5
  %v8809 = vsel %vm4179, %v8804, %v8808
  %v8810 = vshrl.u32 %v8768, 16
  %v8812 = vrot.slane %v8810, 4
  %v8813 = vor.u32 %v8812, %v8808
  %v8814 = vrot.slane %v8813, 4
  %v8816 = vshll.u32 %v8769, 16
  %v8818 = vrot.slane %v8816, 5
  %v8819 = vsel %vm4179, %v8814, %v8818
  %v8820 = vshrl.u32 %v8769, 16
  %v8822 = vrot.slane %v8820, 4
  %v8823 = vor.u32 %v8822, %v8818
  %v8824 = vrot.slane %v8823, 4
  %v8826 = vshll.u32 %v8770, 16
  %v8828 = vrot.slane %v8826, 5
  %v8829 = vsel %vm4179, %v8824, %v8828
  %v8830 = vshrl.u32 %v8770, 16
  %v8832 = vrot.slane %v8830, 4
  %v8833 = vor.u32 %v8832, %v8828
  %v8834 = vrot.slane %v8833, 4
  %v8836 = vshll.u32 %v8771, 16
  %v8838 = vrot.slane %v8836, 5
  %v8839 = vsel %vm4179, %v8834, %v8838
  %v8840 = vshrl.u32 %v8771, 16
  %v8842 = vrot.slane %v8840, 4
  %v8843 = vor.u32 %v8842, %v8838
  %v8844 = vrot.slane %v8843, 4
  %v8846 = vshll.u32 %v8772, 16
  %v8848 = vrot.slane %v8846, 5
  %v8849 = vsel %vm4179, %v8844, %v8848
  %v8850 = vshrl.u32 %v8772, 16
  %v8852 = vrot.slane %v8850, 4
  %v8853 = vor.u32 %v8852, %v8848
  %v8854 = vrot.slane %v8853, 4
  %v8856 = vshll.u32 %v8773, 16
  %v8858 = vrot.slane %v8856, 5
  %v8859 = vsel %vm4179, %v8854, %v8858
  %v8860 = vshrl.u32 %v8773, 16
  %v8862 = vrot.slane %v8860, 4
  %v8863 = vor.u32 %v8862, %v8858
  %v8864 = vrot.slane %v8863, 4
  %v8866 = vshll.u32 %v8774, 16
  %v8868 = vrot.slane %v8866, 5
  %v8869 = vsel %vm4179, %v8864, %v8868
  %v8870 = vshrl.u32 %v8774, 16
  %v8872 = vrot.slane %v8870, 4
  %v8873 = vor.u32 %v8872, %v8868
  %v8874 = vrot.slane %v8873, 4
  %v8876 = vshll.u32 %v8775, 16
  %v8878 = vrot.slane %v8876, 5
  %v8879 = vsel %vm4179, %v8874, %v8878
  %v8880 = vshrl.u32 %v8775, 16
  %v8882 = vrot.slane %v8880, 4
  %v8883 = vor.u32 %v8882, %v8878
  %v8884 = vrot.slane %v8883, 4
  %v8886 = vshll.u32 %v8776, 16
  %v8888 = vrot.slane %v8886, 5
  %v8889 = vsel %vm4179, %v8884, %v8888
  %v8890 = vshrl.u32 %v8776, 16
  %v8892 = vrot.slane %v8890, 4
  %v8893 = vor.u32 %v8892, %v8888
  %v8894 = vrot.slane %v8893, 4
  %v8896 = vshll.u32 %v8777, 16
  %v8898 = vrot.slane %v8896, 5
  %v8899 = vsel %vm4179, %v8894, %v8898
  %v8900 = vshrl.u32 %v8777, 16
  %v8902 = vrot.slane %v8900, 4
  %v8903 = vor.u32 %v8902, %v8898
  %v8904 = vrot.slane %v8903, 4
  %v8906 = vshll.u32 %v8778, 16
  %v8908 = vrot.slane %v8906, 5
  %v8909 = vsel %vm4179, %v8904, %v8908
  %v8910 = vshrl.u32 %v8778, 16
  %v8912 = vrot.slane %v8910, 4
  %v8913 = vor.u32 %v8912, %v8908
  %v8914 = vrot.slane %v8913, 4
  %v8916 = vshll.u32 %v8779, 16
  %v8918 = vrot.slane %v8916, 5
  %v8919 = vsel %vm4179, %v8914, %v8918
  %v8920 = vshrl.u32 %v8779, 16
  %v8922 = vrot.slane %v8920, 4
  %v8923 = vor.u32 %v8922, %v8918
  %v8924 = vrot.slane %v8923, 4
  %v8926 = vshll.u32 %v8780, 16
  %v8928 = vrot.slane %v8926, 5
  %v8929 = vsel %vm4179, %v8924, %v8928
  %v8930 = vshrl.u32 %v8780, 16
  %v8932 = vrot.slane %v8930, 4
  %v8933 = vor.u32 %v8932, %v8928
  %v8934 = vrot.slane %v8933, 4
  %v8936 = vshll.u32 %v8781, 16
  %v8938 = vrot.slane %v8936, 5
  %v8939 = vsel %vm4179, %v8934, %v8938
  %v8940 = vshrl.u32 %v8781, 16
  %v8942 = vrot.slane %v8940, 4
  %v8943 = vor.u32 %v8942, %v8938
  %v8944 = vrot.slane %v8943, 4
  %v8946 = vshll.u32 %v8782, 16
  %v8948 = vrot.slane %v8946, 5
  %v8949 = vsel %vm4179, %v8944, %v8948
  %v8950 = vshrl.u32 %v8782, 16
  %v8952 = vrot.slane %v8950, 4
  %v8953 = vor.u32 %v8952, %v8948
  %v8954 = vrot.slane %v8953, 4
  %v8956 = vshll.u32 %v8783, 16
  %v8958 = vrot.slane %v8956, 5
  %v8959 = vsel %vm4179, %v8954, %v8958
  %v8960 = vshrl.u32 %v8783, 16
  %v8962 = vrot.slane %v8960, 4
  %v8963 = vor.u32 %v8962, %v8958
  %v8964 = vrot.slane %v8963, 4
  %v8966 = vshll.u32 %v8784, 16
  %v8968 = vrot.slane %v8966, 5
  %v8969 = vsel %vm4179, %v8964, %v8968
  %v8970 = vshrl.u32 %v8784, 16
  %v8972 = vrot.slane %v8970, 4
  %v8973 = vor.u32 %v8972, %v8968
  %v8974 = vrot.slane %v8973, 4
  %v8976 = vshll.u32 %v8785, 16
  %v8978 = vrot.slane %v8976, 5
  %v8979 = vsel %vm4179, %v8974, %v8978
  %v8980 = vshrl.u32 %v8785, 16
  %v8982 = vrot.slane %v8980, 4
  %v8983 = vor.u32 %v8982, %v8978
  %v8984 = vrot.slane %v8983, 4
  %v8986 = vshll.u32 %v8786, 16
  %v8988 = vrot.slane %v8986, 5
  %v8989 = vsel %vm4179, %v8984, %v8988
  %v8990 = vshrl.u32 %v8786, 16
  %v8992 = vrot.slane %v8990, 4
  %v8993 = vor.u32 %v8992, %v8988
  %v8994 = vrot.slane %v8993, 4
  %v8996 = vshll.u32 %v8787, 16
  %v8998 = vrot.slane %v8996, 5
  %v8999 = vsel %vm4179, %v8994, %v8998
  %v9000 = vshrl.u32 %v8787, 16
  %v9002 = vrot.slane %v9000, 4
  %v9003 = vor.u32 %v9002, %v8998
  %v9004 = vrot.slane %v9003, 4
  %v9006 = vshll.u32 %v8788, 16
  %v9008 = vrot.slane %v9006, 5
  %v9009 = vsel %vm4179, %v9004, %v9008
  %v9010 = vshrl.u32 %v8788, 16
  %v9012 = vrot.slane %v9010, 4
  %v9013 = vor.u32 %v9012, %v9008
  %v9014 = vrot.slane %v9013, 4
  %v9016 = vshll.u32 %v8789, 16
  %v9018 = vrot.slane %v9016, 5
  %v9019 = vsel %vm4179, %v9014, %v9018
  %v9020 = vshrl.u32 %v8789, 16
  %v9022 = vrot.slane %v9020, 4
  %v9023 = vor.u32 %v9022, %v9018
  %v9024 = vrot.slane %v9023, 4
  %v9026 = vshll.u32 %v8790, 16
  %v9028 = vrot.slane %v9026, 5
  %v9029 = vsel %vm4179, %v9024, %v9028
  %v9030 = vshrl.u32 %v8790, 16
  %v9032 = vrot.slane %v9030, 4
  %v9033 = vor.u32 %v9032, %v9028
  %v9034 = vrot.slane %v9033, 4
  %v9036 = vshll.u32 %v8791, 16
  %v9038 = vrot.slane %v9036, 5
  %v9039 = vsel %vm4179, %v9034, %v9038
  %v9040 = vshrl.u32 %v8791, 16
  %v9042 = vrot.slane %v9040, 4
  %v9043 = vor.u32 %v9042, %v9038
  %v9044 = vrot.slane %v9043, 4
  %v9046 = vshll.u32 %v8792, 16
  %v9048 = vrot.slane %v9046, 5
  %v9049 = vsel %vm4179, %v9044, %v9048
  %v9050 = vshrl.u32 %v8792, 16
  %v9052 = vrot.slane %v9050, 4
  %v9053 = vor.u32 %v9052, %v9048
  %v9054 = vrot.slane %v9053, 4
  %v9056 = vshll.u32 %v8793, 16
  %v9058 = vrot.slane %v9056, 5
  %v9059 = vsel %vm4179, %v9054, %v9058
  %v9060 = vshrl.u32 %v8793, 16
  %v9062 = vrot.slane %v9060, 4
  %v9063 = vor.u32 %v9062, %v9058
  %v9064 = vrot.slane %v9063, 4
  %v9066 = vshll.u32 %v8794, 16
  %v9068 = vrot.slane %v9066, 5
  %v9069 = vsel %vm4179, %v9064, %v9068
  %v9070 = vshrl.u32 %v8794, 16
  %v9072 = vrot.slane %v9070, 4
  %v9073 = vor.u32 %v9072, %v9068
  %v9074 = vrot.slane %v9073, 4
  %v9076 = vshll.u32 %v8795, 16
  %v9078 = vrot.slane %v9076, 5
  %v9079 = vsel %vm4179, %v9074, %v9078
  %9108 = vst.msk [vmem:[#allocation4 + $0x158] sm:$0xf] %vm2233, %v8809
  %9109 = vst.msk [vmem:[#allocation4 + $0x164] sm:$0xf] %vm2233, %v8819
  %9110 = vst.msk [vmem:[#allocation4 + $0x170] sm:$0xf] %vm2233, %v8829
  %9111 = vst.msk [vmem:[#allocation4 + $0x17c] sm:$0xf] %vm2233, %v8839
  %9112 = vst.msk [vmem:[#allocation4 + $0x188] sm:$0xf] %vm2233, %v8849
  %9113 = vst.msk [vmem:[#allocation4 + $0x194] sm:$0xf] %vm2233, %v8859
  %9114 = vst.msk [vmem:[#allocation4 + $0x1a0] sm:$0xf] %vm2233, %v8869
  %9115 = vst.msk [vmem:[#allocation4 + $0x1ac] sm:$0xf] %vm2233, %v8879
  %9116 = vst.msk [vmem:[#allocation4 + $0x1b8] sm:$0xf] %vm2233, %v8889
  %9117 = vst.msk [vmem:[#allocation4 + $0x1c4] sm:$0xf] %vm2233, %v8899
  %9118 = vst.msk [vmem:[#allocation4 + $0x1d0] sm:$0xf] %vm2233, %v8909
  %9119 = vst.msk [vmem:[#allocation4 + $0x1dc] sm:$0xf] %vm2233, %v8919
  %9120 = vst.msk [vmem:[#allocation4 + $0x1e8] sm:$0xf] %vm2233, %v8929
  %9121 = vst.msk [vmem:[#allocation4 + $0x1f4] sm:$0xf] %vm2233, %v8939
  %9122 = vst.msk [vmem:[#allocation4 + $0x200] sm:$0xf] %vm2233, %v8949
  %9123 = vst.msk [vmem:[#allocation4 + $0x20c] sm:$0xf] %vm2233, %v8959
  %9124 = vst.msk [vmem:[#allocation4 + $0x218] sm:$0xf] %vm2233, %v8969
  %9125 = vst.msk [vmem:[#allocation4 + $0x224] sm:$0xf] %vm2233, %v8979
  %9126 = vst.msk [vmem:[#allocation4 + $0x230] sm:$0xf] %vm2233, %v8989
  %9127 = vst.msk [vmem:[#allocation4 + $0x23c] sm:$0xf] %vm2233, %v8999
  %9128 = vst.msk [vmem:[#allocation4 + $0x248] sm:$0xf] %vm2233, %v9009
  %9129 = vst.msk [vmem:[#allocation4 + $0x254] sm:$0xf] %vm2233, %v9019
  %9130 = vst.msk [vmem:[#allocation4 + $0x260] sm:$0xf] %vm2233, %v9029
  %9131 = vst.msk [vmem:[#allocation4 + $0x26c] sm:$0xf] %vm2233, %v9039
  %9132 = vst.msk [vmem:[#allocation4 + $0x278] sm:$0xf] %vm2233, %v9049
  %9133 = vst.msk [vmem:[#allocation4 + $0x284] sm:$0xf] %vm2233, %v9059
  %9134 = vst.msk [vmem:[#allocation4 + $0x290] sm:$0xf] %vm2233, %v9069
  %9135 = vst.msk [vmem:[#allocation4 + $0x29c] sm:$0xf] %vm2233, %v9079
  %v9136 = vld [vmem:[#allocation4] sm:$0xff]
  %v9137 = vld [vmem:[#allocation4 + $0x8] sm:$0xf]
  %v9138 = vld [vmem:[#allocation4 + $0xc] sm:$0xff]
  %v9139 = vld [vmem:[#allocation4 + $0x14] sm:$0xf]
  %v9140 = vld [vmem:[#allocation4 + $0x18] sm:$0xff]
  %v9141 = vld [vmem:[#allocation4 + $0x20] sm:$0xf]
  %v9142 = vld [vmem:[#allocation4 + $0x24] sm:$0xff]
  %v9143 = vld [vmem:[#allocation4 + $0x2c] sm:$0xf]
  %v9144 = vld [vmem:[#allocation4 + $0x30] sm:$0xff]
  %v9145 = vld [vmem:[#allocation4 + $0x38] sm:$0xf]
  %v9146 = vld [vmem:[#allocation4 + $0x3c] sm:$0xff]
  %v9147 = vld [vmem:[#allocation4 + $0x44] sm:$0xf]
  %v9148 = vld [vmem:[#allocation4 + $0x48] sm:$0xff]
  %v9149 = vld [vmem:[#allocation4 + $0x50] sm:$0xf]
  %v9150 = vld [vmem:[#allocation4 + $0x54] sm:$0xff]
  %v9151 = vld [vmem:[#allocation4 + $0x5c] sm:$0xf]
  %v9152 = vld [vmem:[#allocation4 + $0x60] sm:$0xff]
  %v9153 = vld [vmem:[#allocation4 + $0x68] sm:$0xf]
  %v9154 = vld [vmem:[#allocation4 + $0x6c] sm:$0xff]
  %v9155 = vld [vmem:[#allocation4 + $0x74] sm:$0xf]
  %v9156 = vld [vmem:[#allocation4 + $0x78] sm:$0xff]
  %v9157 = vld [vmem:[#allocation4 + $0x80] sm:$0xf]
  %v9158 = vld [vmem:[#allocation4 + $0x84] sm:$0xff]
  %v9159 = vld [vmem:[#allocation4 + $0x8c] sm:$0xf]
  %v9160 = vld [vmem:[#allocation4 + $0x90] sm:$0xff]
  %v9161 = vld [vmem:[#allocation4 + $0x98] sm:$0xf]
  %v9162 = vld [vmem:[#allocation4 + $0x9c] sm:$0xff]
  %v9163 = vld [vmem:[#allocation4 + $0xa4] sm:$0xf]
  %v9164 = vld [vmem:[#allocation4 + $0xa8] sm:$0xff]
  %v9165 = vld [vmem:[#allocation4 + $0xb0] sm:$0xf]
  %v9166 = vld [vmem:[#allocation4 + $0xb4] sm:$0xff]
  %v9167 = vld [vmem:[#allocation4 + $0xbc] sm:$0xf]
  %v9168 = vld [vmem:[#allocation4 + $0xc0] sm:$0xff]
  %v9169 = vld [vmem:[#allocation4 + $0xc8] sm:$0xf]
  %v9170 = vld [vmem:[#allocation4 + $0xcc] sm:$0xff]
  %v9171 = vld [vmem:[#allocation4 + $0xd4] sm:$0xf]
  %v9172 = vld [vmem:[#allocation4 + $0xd8] sm:$0xff]
  %v9173 = vld [vmem:[#allocation4 + $0xe0] sm:$0xf]
  %v9174 = vld [vmem:[#allocation4 + $0xe4] sm:$0xff]
  %v9175 = vld [vmem:[#allocation4 + $0xec] sm:$0xf]
  %v9176 = vld [vmem:[#allocation4 + $0xf0] sm:$0xff]
  %v9177 = vld [vmem:[#allocation4 + $0xf8] sm:$0xf]
  %v9178 = vld [vmem:[#allocation4 + $0xfc] sm:$0xff]
  %v9179 = vld [vmem:[#allocation4 + $0x104] sm:$0xf]
  %v9180 = vld [vmem:[#allocation4 + $0x108] sm:$0xff]
  %v9181 = vld [vmem:[#allocation4 + $0x110] sm:$0xf]
  %v9182 = vld [vmem:[#allocation4 + $0x114] sm:$0xff]
  %v9183 = vld [vmem:[#allocation4 + $0x11c] sm:$0xf]
  %v9184 = vld [vmem:[#allocation4 + $0x120] sm:$0xff]
  %v9185 = vld [vmem:[#allocation4 + $0x128] sm:$0xf]
  %v9186 = vld [vmem:[#allocation4 + $0x12c] sm:$0xff]
  %v9187 = vld [vmem:[#allocation4 + $0x134] sm:$0xf]
  %v9188 = vld [vmem:[#allocation4 + $0x138] sm:$0xff]
  %v9189 = vld [vmem:[#allocation4 + $0x140] sm:$0xf]
  %v9190 = vld [vmem:[#allocation4 + $0x144] sm:$0xff]
  %v9191 = vld [vmem:[#allocation4 + $0x14c] sm:$0xf]
  %v9192 = vld [vmem:[#allocation4 + $0x150] sm:$0xff]
  %v9193 = vld [vmem:[#allocation4 + $0x158] sm:$0xf]
  %v9194 = vld [vmem:[#allocation4 + $0x15c] sm:$0xff]
  %v9195 = vld [vmem:[#allocation4 + $0x164] sm:$0xf]
  %v9196 = vld [vmem:[#allocation4 + $0x168] sm:$0xff]
  %v9197 = vld [vmem:[#allocation4 + $0x170] sm:$0xf]
  %v9198 = vld [vmem:[#allocation4 + $0x174] sm:$0xff]
  %v9199 = vld [vmem:[#allocation4 + $0x17c] sm:$0xf]
  %v9200 = vld [vmem:[#allocation4 + $0x180] sm:$0xff]
  %v9201 = vld [vmem:[#allocation4 + $0x188] sm:$0xf]
  %v9202 = vld [vmem:[#allocation4 + $0x18c] sm:$0xff]
  %v9203 = vld [vmem:[#allocation4 + $0x194] sm:$0xf]
  %v9204 = vld [vmem:[#allocation4 + $0x198] sm:$0xff]
  %v9205 = vld [vmem:[#allocation4 + $0x1a0] sm:$0xf]
  %v9206 = vld [vmem:[#allocation4 + $0x1a4] sm:$0xff]
  %v9207 = vld [vmem:[#allocation4 + $0x1ac] sm:$0xf]
  %v9208 = vld [vmem:[#allocation4 + $0x1b0] sm:$0xff]
  %v9209 = vld [vmem:[#allocation4 + $0x1b8] sm:$0xf]
  %v9210 = vld [vmem:[#allocation4 + $0x1bc] sm:$0xff]
  %v9211 = vld [vmem:[#allocation4 + $0x1c4] sm:$0xf]
  %v9212 = vld [vmem:[#allocation4 + $0x1c8] sm:$0xff]
  %v9213 = vld [vmem:[#allocation4 + $0x1d0] sm:$0xf]
  %v9214 = vld [vmem:[#allocation4 + $0x1d4] sm:$0xff]
  %v9215 = vld [vmem:[#allocation4 + $0x1dc] sm:$0xf]
  %v9216 = vld [vmem:[#allocation4 + $0x1e0] sm:$0xff]
  %v9217 = vld [vmem:[#allocation4 + $0x1e8] sm:$0xf]
  %v9218 = vld [vmem:[#allocation4 + $0x1ec] sm:$0xff]
  %v9219 = vld [vmem:[#allocation4 + $0x1f4] sm:$0xf]
  %v9220 = vld [vmem:[#allocation4 + $0x1f8] sm:$0xff]
  %v9221 = vld [vmem:[#allocation4 + $0x200] sm:$0xf]
  %v9222 = vld [vmem:[#allocation4 + $0x204] sm:$0xff]
  %v9223 = vld [vmem:[#allocation4 + $0x20c] sm:$0xf]
  %v9224 = vld [vmem:[#allocation4 + $0x210] sm:$0xff]
  %v9225 = vld [vmem:[#allocation4 + $0x218] sm:$0xf]
  %v9226 = vld [vmem:[#allocation4 + $0x21c] sm:$0xff]
  %v9227 = vld [vmem:[#allocation4 + $0x224] sm:$0xf]
  %v9228 = vld [vmem:[#allocation4 + $0x228] sm:$0xff]
  %v9229 = vld [vmem:[#allocation4 + $0x230] sm:$0xf]
  %v9230 = vld [vmem:[#allocation4 + $0x234] sm:$0xff]
  %v9231 = vld [vmem:[#allocation4 + $0x23c] sm:$0xf]
  %v9232 = vld [vmem:[#allocation4 + $0x240] sm:$0xff]
  %v9233 = vld [vmem:[#allocation4 + $0x248] sm:$0xf]
  %v9234 = vld [vmem:[#allocation4 + $0x24c] sm:$0xff]
  %v9235 = vld [vmem:[#allocation4 + $0x254] sm:$0xf]
  %v9236 = vld [vmem:[#allocation4 + $0x258] sm:$0xff]
  %v9237 = vld [vmem:[#allocation4 + $0x260] sm:$0xf]
  %v9238 = vld [vmem:[#allocation4 + $0x264] sm:$0xff]
  %v9239 = vld [vmem:[#allocation4 + $0x26c] sm:$0xf]
  %v9240 = vld [vmem:[#allocation4 + $0x270] sm:$0xff]
  %v9241 = vld [vmem:[#allocation4 + $0x278] sm:$0xf]
  %v9242 = vld [vmem:[#allocation4 + $0x27c] sm:$0xff]
  %v9243 = vld [vmem:[#allocation4 + $0x284] sm:$0xf]
  %v9244 = vld [vmem:[#allocation4 + $0x288] sm:$0xff]
  %v9245 = vld [vmem:[#allocation4 + $0x290] sm:$0xf]
  %v9246 = vld [vmem:[#allocation4 + $0x294] sm:$0xff]
  %v9247 = vld [vmem:[#allocation4 + $0x29c] sm:$0xf]
  %v9248 = vld [vmem:[%s3] sm:$0xf]
  %v9249 = vld [vmem:[%s3 + $0x4] sm:$0xf]
  %v9250 = vld [vmem:[%s3 + $0x8] sm:$0xf]
  %v9251 = vld [vmem:[%s3 + $0xc] sm:$0xf]
  %v9252 = vld [vmem:[%s3 + $0x10] sm:$0xf]
  %v9253 = vld [vmem:[%s3 + $0x14] sm:$0xf]
  %v9254 = vld [vmem:[%s3 + $0x18] sm:$0xf]
  %v9255 = vld [vmem:[%s3 + $0x1c] sm:$0xf]
  %v9256 = vld [vmem:[%s3 + $0x20] sm:$0xf]
  %v9257 = vld [vmem:[%s3 + $0x24] sm:$0xf]
  %v9258 = vld [vmem:[%s3 + $0x28] sm:$0xf]
  %v9259 = vld [vmem:[%s3 + $0x2c] sm:$0xf]
  %v9260 = vld [vmem:[%s3 + $0x30] sm:$0xf]
  %v9261 = vld [vmem:[%s3 + $0x34] sm:$0xf]
  %v9262 = vld [vmem:[%s3 + $0x38] sm:$0xf]
  %v9263 = vld [vmem:[%s3 + $0x3c] sm:$0xf]
  %v9264 = vld [vmem:[%s3 + $0x40] sm:$0xf]
  %v9265 = vld [vmem:[%s3 + $0x44] sm:$0xf]
  %v9266 = vld [vmem:[%s3 + $0x48] sm:$0xf]
  %v9267 = vld [vmem:[%s3 + $0x4c] sm:$0xf]
  %v9268 = vld [vmem:[%s3 + $0x50] sm:$0xf]
  %v9269 = vld [vmem:[%s3 + $0x54] sm:$0xf]
  %v9270 = vld [vmem:[%s3 + $0x58] sm:$0xf]
  %v9271 = vld [vmem:[%s3 + $0x5c] sm:$0xf]
  %v9272 = vld [vmem:[%s3 + $0x60] sm:$0xf]
  %v9273 = vld [vmem:[%s3 + $0x64] sm:$0xf]
  %v9274 = vld [vmem:[%s3 + $0x68] sm:$0xf]
  %v9275 = vld [vmem:[%s3 + $0x6c] sm:$0xf]
  %v9276 = vld [vmem:[%s3 + $0x70] sm:$0xf]
  %v9277 = vld [vmem:[%s3 + $0x74] sm:$0xf]
  %v9278 = vld [vmem:[%s3 + $0x78] sm:$0xf]
  %v9279 = vld [vmem:[%s3 + $0x7c] sm:$0xf]
  %v9280 = vld [vmem:[%s3 + $0x80] sm:$0xf]
  %v9281 = vld [vmem:[%s3 + $0x84] sm:$0xf]
  %v9282 = vld [vmem:[%s3 + $0x88] sm:$0xf]
  %v9283 = vld [vmem:[%s3 + $0x8c] sm:$0xf]
  %v9284 = vld [vmem:[%s4] sm:$0x1]
  %v9286 = vlaneseq
  %v9287 = vshrl.u32 %v9286, 7
  %v9288 = vsub.s32 0, %v9287
  %v9289 = vrot.slane %v9284, %v9288
  %v9403 = vunpack.c.l.b16 %v9136
  %v9404 = vunpack.c.h.b16 %v9136
  %v9405 = vunpack.c.l.b16 %v9137
  %v9406 = vunpack.c.l.b16 %v9138
  %v9407 = vunpack.c.h.b16 %v9138
  %v9408 = vunpack.c.l.b16 %v9139
  %v9409 = vunpack.c.l.b16 %v9140
  %v9410 = vunpack.c.h.b16 %v9140
  %v9411 = vunpack.c.l.b16 %v9141
  %v9412 = vunpack.c.l.b16 %v9142
  %v9413 = vunpack.c.h.b16 %v9142
  %v9414 = vunpack.c.l.b16 %v9143
  %v9415 = vunpack.c.l.b16 %v9144
  %v9416 = vunpack.c.h.b16 %v9144
  %v9417 = vunpack.c.l.b16 %v9145
  %v9418 = vunpack.c.l.b16 %v9146
  %v9419 = vunpack.c.h.b16 %v9146
  %v9420 = vunpack.c.l.b16 %v9147
  %v9421 = vunpack.c.l.b16 %v9148
  %v9422 = vunpack.c.h.b16 %v9148
  %v9423 = vunpack.c.l.b16 %v9149
  %v9424 = vunpack.c.l.b16 %v9150
  %v9425 = vunpack.c.h.b16 %v9150
  %v9426 = vunpack.c.l.b16 %v9151
  %v9427 = vunpack.c.l.b16 %v9152
  %v9428 = vunpack.c.h.b16 %v9152
  %v9429 = vunpack.c.l.b16 %v9153
  %v9430 = vunpack.c.l.b16 %v9154
  %v9431 = vunpack.c.h.b16 %v9154
  %v9432 = vunpack.c.l.b16 %v9155
  %v9433 = vunpack.c.l.b16 %v9156
  %v9434 = vunpack.c.h.b16 %v9156
  %v9435 = vunpack.c.l.b16 %v9157
  %v9436 = vunpack.c.l.b16 %v9158
  %v9437 = vunpack.c.h.b16 %v9158
  %v9438 = vunpack.c.l.b16 %v9159
  %v9439 = vunpack.c.l.b16 %v9160
  %v9440 = vunpack.c.h.b16 %v9160
  %v9441 = vunpack.c.l.b16 %v9161
  %v9442 = vunpack.c.l.b16 %v9162
  %v9443 = vunpack.c.h.b16 %v9162
  %v9444 = vunpack.c.l.b16 %v9163
  %v9445 = vunpack.c.l.b16 %v9164
  %v9446 = vunpack.c.h.b16 %v9164
  %v9447 = vunpack.c.l.b16 %v9165
  %v9448 = vunpack.c.l.b16 %v9166
  %v9449 = vunpack.c.h.b16 %v9166
  %v9450 = vunpack.c.l.b16 %v9167
  %v9451 = vunpack.c.l.b16 %v9168
  %v9452 = vunpack.c.h.b16 %v9168
  %v9453 = vunpack.c.l.b16 %v9169
  %v9454 = vunpack.c.l.b16 %v9170
  %v9455 = vunpack.c.h.b16 %v9170
  %v9456 = vunpack.c.l.b16 %v9171
  %v9457 = vunpack.c.l.b16 %v9172
  %v9458 = vunpack.c.h.b16 %v9172
  %v9459 = vunpack.c.l.b16 %v9173
  %v9460 = vunpack.c.l.b16 %v9174
  %v9461 = vunpack.c.h.b16 %v9174
  %v9462 = vunpack.c.l.b16 %v9175
  %v9463 = vunpack.c.l.b16 %v9176
  %v9464 = vunpack.c.h.b16 %v9176
  %v9465 = vunpack.c.l.b16 %v9177
  %v9466 = vunpack.c.l.b16 %v9178
  %v9467 = vunpack.c.h.b16 %v9178
  %v9468 = vunpack.c.l.b16 %v9179
  %v9469 = vunpack.c.l.b16 %v9180
  %v9470 = vunpack.c.h.b16 %v9180
  %v9471 = vunpack.c.l.b16 %v9181
  %v9472 = vunpack.c.l.b16 %v9182
  %v9473 = vunpack.c.h.b16 %v9182
  %v9474 = vunpack.c.l.b16 %v9183
  %v9475 = vunpack.c.l.b16 %v9184
  %v9476 = vunpack.c.h.b16 %v9184
  %v9477 = vunpack.c.l.b16 %v9185
  %v9478 = vunpack.c.l.b16 %v9186
  %v9479 = vunpack.c.h.b16 %v9186
  %v9480 = vunpack.c.l.b16 %v9187
  %v9481 = vunpack.c.l.b16 %v9188
  %v9482 = vunpack.c.h.b16 %v9188
  %v9483 = vunpack.c.l.b16 %v9189
  %v9484 = vunpack.c.l.b16 %v9190
  %v9485 = vunpack.c.h.b16 %v9190
  %v9486 = vunpack.c.l.b16 %v9191
  %v9487 = vunpack.c.l.b16 %v9192
  %v9488 = vunpack.c.h.b16 %v9192
  %v9489 = vunpack.c.l.b16 %v9193
  %v9490 = vunpack.c.l.b16 %v9194
  %v9491 = vunpack.c.h.b16 %v9194
  %v9492 = vunpack.c.l.b16 %v9195
  %v9493 = vunpack.c.l.b16 %v9196
  %v9494 = vunpack.c.h.b16 %v9196
  %v9495 = vunpack.c.l.b16 %v9197
  %v9496 = vunpack.c.l.b16 %v9198
  %v9497 = vunpack.c.h.b16 %v9198
  %v9498 = vunpack.c.l.b16 %v9199
  %v9499 = vunpack.c.l.b16 %v9200
  %v9500 = vunpack.c.h.b16 %v9200
  %v9501 = vunpack.c.l.b16 %v9201
  %v9502 = vunpack.c.l.b16 %v9202
  %v9503 = vunpack.c.h.b16 %v9202
  %v9504 = vunpack.c.l.b16 %v9203
  %v9505 = vunpack.c.l.b16 %v9204
  %v9506 = vunpack.c.h.b16 %v9204
  %v9507 = vunpack.c.l.b16 %v9205
  %v9508 = vunpack.c.l.b16 %v9206
  %v9509 = vunpack.c.h.b16 %v9206
  %v9510 = vunpack.c.l.b16 %v9207
  %v9511 = vunpack.c.l.b16 %v9208
  %v9512 = vunpack.c.h.b16 %v9208
  %v9513 = vunpack.c.l.b16 %v9209
  %v9514 = vunpack.c.l.b16 %v9210
  %v9515 = vunpack.c.h.b16 %v9210
  %v9516 = vunpack.c.l.b16 %v9211
  %v9517 = vunpack.c.l.b16 %v9212
  %v9518 = vunpack.c.h.b16 %v9212
  %v9519 = vunpack.c.l.b16 %v9213
  %v9520 = vunpack.c.l.b16 %v9214
  %v9521 = vunpack.c.h.b16 %v9214
  %v9522 = vunpack.c.l.b16 %v9215
  %v9523 = vunpack.c.l.b16 %v9216
  %v9524 = vunpack.c.h.b16 %v9216
  %v9525 = vunpack.c.l.b16 %v9217
  %v9526 = vunpack.c.l.b16 %v9218
  %v9527 = vunpack.c.h.b16 %v9218
  %v9528 = vunpack.c.l.b16 %v9219
  %v9529 = vunpack.c.l.b16 %v9220
  %v9530 = vunpack.c.h.b16 %v9220
  %v9531 = vunpack.c.l.b16 %v9221
  %v9532 = vunpack.c.l.b16 %v9222
  %v9533 = vunpack.c.h.b16 %v9222
  %v9534 = vunpack.c.l.b16 %v9223
  %v9535 = vunpack.c.l.b16 %v9224
  %v9536 = vunpack.c.h.b16 %v9224
  %v9537 = vunpack.c.l.b16 %v9225
  %v9538 = vunpack.c.l.b16 %v9226
  %v9539 = vunpack.c.h.b16 %v9226
  %v9540 = vunpack.c.l.b16 %v9227
  %v9541 = vunpack.c.l.b16 %v9228
  %v9542 = vunpack.c.h.b16 %v9228
  %v9543 = vunpack.c.l.b16 %v9229
  %v9544 = vunpack.c.l.b16 %v9230
  %v9545 = vunpack.c.h.b16 %v9230
  %v9546 = vunpack.c.l.b16 %v9231
  %v9547 = vunpack.c.l.b16 %v9232
  %v9548 = vunpack.c.h.b16 %v9232
  %v9549 = vunpack.c.l.b16 %v9233
  %v9550 = vunpack.c.l.b16 %v9234
  %v9551 = vunpack.c.h.b16 %v9234
  %v9552 = vunpack.c.l.b16 %v9235
  %v9553 = vunpack.c.l.b16 %v9236
  %v9554 = vunpack.c.h.b16 %v9236
  %v9555 = vunpack.c.l.b16 %v9237
  %v9556 = vunpack.c.l.b16 %v9238
  %v9557 = vunpack.c.h.b16 %v9238
  %v9558 = vunpack.c.l.b16 %v9239
  %v9559 = vunpack.c.l.b16 %v9240
  %v9560 = vunpack.c.h.b16 %v9240
  %v9561 = vunpack.c.l.b16 %v9241
  %v9562 = vunpack.c.l.b16 %v9242
  %v9563 = vunpack.c.h.b16 %v9242
  %v9564 = vunpack.c.l.b16 %v9243
  %v9565 = vunpack.c.l.b16 %v9244
  %v9566 = vunpack.c.h.b16 %v9244
  %v9567 = vunpack.c.l.b16 %v9245
  %v9568 = vunpack.c.l.b16 %v9246
  %v9569 = vunpack.c.h.b16 %v9246
  %v9570 = vunpack.c.l.b16 %v9247
  %v9571 = vpack.c.b16 %v9406, %v9403
  %v9572 = vpack.c.b16 %v9407, %v9404
  %v9573 = vpack.c.b16 %v9408, %v9405
  %v9574 = vpack.c.b16 %v9412, %v9409
  %v9575 = vpack.c.b16 %v9413, %v9410
  %v9576 = vpack.c.b16 %v9414, %v9411
  %v9577 = vpack.c.b16 %v9418, %v9415
  %v9578 = vpack.c.b16 %v9419, %v9416
  %v9579 = vpack.c.b16 %v9420, %v9417
  %v9580 = vpack.c.b16 %v9424, %v9421
  %v9581 = vpack.c.b16 %v9425, %v9422
  %v9582 = vpack.c.b16 %v9426, %v9423
  %v9583 = vpack.c.b16 %v9430, %v9427
  %v9584 = vpack.c.b16 %v9431, %v9428
  %v9585 = vpack.c.b16 %v9432, %v9429
  %v9586 = vpack.c.b16 %v9436, %v9433
  %v9587 = vpack.c.b16 %v9437, %v9434
  %v9588 = vpack.c.b16 %v9438, %v9435
  %v9589 = vpack.c.b16 %v9442, %v9439
  %v9590 = vpack.c.b16 %v9443, %v9440
  %v9591 = vpack.c.b16 %v9444, %v9441
  %v9592 = vpack.c.b16 %v9448, %v9445
  %v9593 = vpack.c.b16 %v9449, %v9446
  %v9594 = vpack.c.b16 %v9450, %v9447
  %v9595 = vpack.c.b16 %v9454, %v9451
  %v9596 = vpack.c.b16 %v9455, %v9452
  %v9597 = vpack.c.b16 %v9456, %v9453
  %v9598 = vpack.c.b16 %v9460, %v9457
  %v9599 = vpack.c.b16 %v9461, %v9458
  %v9600 = vpack.c.b16 %v9462, %v9459
  %v9601 = vpack.c.b16 %v9466, %v9463
  %v9602 = vpack.c.b16 %v9467, %v9464
  %v9603 = vpack.c.b16 %v9468, %v9465
  %v9604 = vpack.c.b16 %v9472, %v9469
  %v9605 = vpack.c.b16 %v9473, %v9470
  %v9606 = vpack.c.b16 %v9474, %v9471
  %v9607 = vpack.c.b16 %v9478, %v9475
  %v9608 = vpack.c.b16 %v9479, %v9476
  %v9609 = vpack.c.b16 %v9480, %v9477
  %v9610 = vpack.c.b16 %v9484, %v9481
  %v9611 = vpack.c.b16 %v9485, %v9482
  %v9612 = vpack.c.b16 %v9486, %v9483
  %v9613 = vpack.c.b16 %v9490, %v9487
  %v9614 = vpack.c.b16 %v9491, %v9488
  %v9615 = vpack.c.b16 %v9492, %v9489
  %v9616 = vpack.c.b16 %v9496, %v9493
  %v9617 = vpack.c.b16 %v9497, %v9494
  %v9618 = vpack.c.b16 %v9498, %v9495
  %v9619 = vpack.c.b16 %v9502, %v9499
  %v9620 = vpack.c.b16 %v9503, %v9500
  %v9621 = vpack.c.b16 %v9504, %v9501
  %v9622 = vpack.c.b16 %v9508, %v9505
  %v9623 = vpack.c.b16 %v9509, %v9506
  %v9624 = vpack.c.b16 %v9510, %v9507
  %v9625 = vpack.c.b16 %v9514, %v9511
  %v9626 = vpack.c.b16 %v9515, %v9512
  %v9627 = vpack.c.b16 %v9516, %v9513
  %v9628 = vpack.c.b16 %v9520, %v9517
  %v9629 = vpack.c.b16 %v9521, %v9518
  %v9630 = vpack.c.b16 %v9522, %v9519
  %v9631 = vpack.c.b16 %v9526, %v9523
  %v9632 = vpack.c.b16 %v9527, %v9524
  %v9633 = vpack.c.b16 %v9528, %v9525
  %v9634 = vpack.c.b16 %v9532, %v9529
  %v9635 = vpack.c.b16 %v9533, %v9530
  %v9636 = vpack.c.b16 %v9534, %v9531
  %v9637 = vpack.c.b16 %v9538, %v9535
  %v9638 = vpack.c.b16 %v9539, %v9536
  %v9639 = vpack.c.b16 %v9540, %v9537
  %v9640 = vpack.c.b16 %v9544, %v9541
  %v9641 = vpack.c.b16 %v9545, %v9542
  %v9642 = vpack.c.b16 %v9546, %v9543
  %v9643 = vpack.c.b16 %v9550, %v9547
  %v9644 = vpack.c.b16 %v9551, %v9548
  %v9645 = vpack.c.b16 %v9552, %v9549
  %v9646 = vpack.c.b16 %v9556, %v9553
  %v9647 = vpack.c.b16 %v9557, %v9554
  %v9648 = vpack.c.b16 %v9558, %v9555
  %v9649 = vpack.c.b16 %v9562, %v9559
  %v9650 = vpack.c.b16 %v9563, %v9560
  %v9651 = vpack.c.b16 %v9564, %v9561
  %v9652 = vpack.c.b16 %v9568, %v9565
  %v9653 = vpack.c.b16 %v9569, %v9566
  %v9654 = vpack.c.b16 %v9570, %v9567
  %v9747 = vunpack.c.l.b16 %v9248
  %v9748 = vunpack.c.l.b16 %v9249
  %v9749 = vunpack.c.l.b16 %v9250
  %v9750 = vunpack.c.l.b16 %v9251
  %v9751 = vunpack.c.l.b16 %v9252
  %v9752 = vunpack.c.l.b16 %v9253
  %v9753 = vunpack.c.l.b16 %v9254
  %v9754 = vunpack.c.l.b16 %v9255
  %v9755 = vunpack.c.l.b16 %v9256
  %v9756 = vunpack.c.l.b16 %v9257
  %v9757 = vunpack.c.l.b16 %v9258
  %v9758 = vunpack.c.l.b16 %v9259
  %v9759 = vunpack.c.l.b16 %v9260
  %v9760 = vunpack.c.l.b16 %v9261
  %v9761 = vunpack.c.l.b16 %v9262
  %v9762 = vunpack.c.l.b16 %v9263
  %v9763 = vunpack.c.l.b16 %v9264
  %v9764 = vunpack.c.l.b16 %v9265
  %v9765 = vunpack.c.l.b16 %v9266
  %v9766 = vunpack.c.l.b16 %v9267
  %v9767 = vunpack.c.l.b16 %v9268
  %v9768 = vunpack.c.l.b16 %v9269
  %v9769 = vunpack.c.l.b16 %v9270
  %v9770 = vunpack.c.l.b16 %v9271
  %v9771 = vunpack.c.l.b16 %v9272
  %v9772 = vunpack.c.l.b16 %v9273
  %v9773 = vunpack.c.l.b16 %v9274
  %v9774 = vunpack.c.l.b16 %v9275
  %v9775 = vunpack.c.l.b16 %v9276
  %v9776 = vunpack.c.l.b16 %v9277
  %v9777 = vunpack.c.l.b16 %v9278
  %v9778 = vunpack.c.l.b16 %v9279
  %v9779 = vunpack.c.l.b16 %v9280
  %v9780 = vunpack.c.l.b16 %v9281
  %v9781 = vunpack.c.l.b16 %v9282
  %v9782 = vunpack.c.l.b16 %v9283
  %v9783 = vpack.c.b16 %v9748, %v9747
  %v9784 = vpack.c.b16 %v9750, %v9749
  %v9785 = vpack.c.b16 %v9752, %v9751
  %v9786 = vpack.c.b16 %v9754, %v9753
  %v9787 = vpack.c.b16 %v9756, %v9755
  %v9788 = vpack.c.b16 %v9758, %v9757
  %v9789 = vpack.c.b16 %v9760, %v9759
  %v9790 = vpack.c.b16 %v9762, %v9761
  %v9791 = vpack.c.b16 %v9764, %v9763
  %v9792 = vpack.c.b16 %v9766, %v9765
  %v9793 = vpack.c.b16 %v9768, %v9767
  %v9794 = vpack.c.b16 %v9770, %v9769
  %v9795 = vpack.c.b16 %v9772, %v9771
  %v9796 = vpack.c.b16 %v9774, %v9773
  %v9797 = vpack.c.b16 %v9776, %v9775
  %v9798 = vpack.c.b16 %v9778, %v9777
  %v9799 = vpack.c.b16 %v9780, %v9779
  %v9800 = vpack.c.b16 %v9782, %v9781
  %v9820 = vsel %vm2036, %v9573, 0
  %v9823 = vsel %vm2036, %v9576, 0
  %v9826 = vsel %vm2036, %v9579, 0
  %v9829 = vsel %vm2036, %v9582, 0
  %v9832 = vsel %vm2036, %v9585, 0
  %v9835 = vsel %vm2036, %v9588, 0
  %v9838 = vsel %vm2036, %v9591, 0
  %v9841 = vsel %vm2036, %v9594, 0
  %v9844 = vsel %vm2036, %v9597, 0
  %v9847 = vsel %vm2036, %v9600, 0
  %v9850 = vsel %vm2036, %v9603, 0
  %v9853 = vsel %vm2036, %v9606, 0
  %v9856 = vsel %vm2036, %v9609, 0
  %v9859 = vsel %vm2036, %v9612, 0
  %v9862 = vsel %vm2036, %v9615, 0
  %v9865 = vsel %vm2036, %v9618, 0
  %v9868 = vsel %vm2036, %v9621, 0
  %v9871 = vsel %vm2036, %v9624, 0
  %v9874 = vsel %vm2036, %v9627, 0
  %v9877 = vsel %vm2036, %v9630, 0
  %v9880 = vsel %vm2036, %v9633, 0
  %v9883 = vsel %vm2036, %v9636, 0
  %v9886 = vsel %vm2036, %v9639, 0
  %v9889 = vsel %vm2036, %v9642, 0
  %v9892 = vsel %vm2036, %v9645, 0
  %v9895 = vsel %vm2036, %v9648, 0
  %v9898 = vsel %vm2036, %v9651, 0
  %v9901 = vsel %vm2036, %v9654, 0
  %9903 = vmatprep.subr.bf16.mxu0 0
  %9904 = vmatpush1.bf16.msra.mxu0 %v9790
  %9905 = vmatprep.subr.bf16.mxu0 0
  %9906 = vmatpush1.bf16.msra.mxu0 %v9789
  %9907 = vmatprep.subr.bf16.mxu0 0
  %9908 = vmatpush1.bf16.msra.mxu0 %v9788
  %9909 = vmatprep.subr.bf16.mxu0 0
  %9910 = vmatpush1.bf16.msra.mxu0 %v9787
  %9911 = vmatprep.subr.bf16.mxu0 0
  %9912 = vmatpush1.bf16.msra.mxu0 %v9786
  %9913 = vmatprep.subr.bf16.mxu0 0
  %9914 = vmatpush1.bf16.msra.mxu0 %v9785
  %9915 = vmatprep.subr.bf16.mxu0 0
  %9916 = vmatpush1.bf16.msra.mxu0 %v9784
  %9917 = vmatprep.subr.bf16.mxu0 0
  %9918 = vmatpush1.bf16.msra.mxu0 %v9783
  %9919 = vmatprep.subr.bf16.mxu0 0
  %9920 = vmatpush2.bf16.msra.mxu0 %v9798
  %9921 = vmatprep.subr.bf16.mxu0 0
  %9922 = vmatpush2.bf16.msra.mxu0 %v9797
  %9923 = vmatprep.subr.bf16.mxu0 0
  %9924 = vmatpush2.bf16.msra.mxu0 %v9796
  %9925 = vmatprep.subr.bf16.mxu0 0
  %9926 = vmatpush2.bf16.msra.mxu0 %v9795
  %9927 = vmatprep.subr.bf16.mxu0 0
  %9928 = vmatpush2.bf16.msra.mxu0 %v9794
  %9929 = vmatprep.subr.bf16.mxu0 0
  %9930 = vmatpush2.bf16.msra.mxu0 %v9793
  %9931 = vmatprep.subr.bf16.mxu0 0
  %9932 = vmatpush2.bf16.msra.mxu0 %v9792
  %9933 = vmatprep.subr.bf16.mxu0 0
  %9934 = vmatpush2.bf16.msra.mxu0 %v9791
  %9935 = vmatprep.mubr.bf16.mxu0 %v9572
  %9936 = vmatmul.mubr.bf16.gmra.mxu0 %v9571
  %v9937 = vpop.f32.mrf.mxu0
  %v9938 = vadd.f32 %v9289, %v9937
  %v9939 = vpop.f32.mrf.mxu0
  %v9940 = vpop.f32.mrf.mxu0
  %v9941 = vadd.f32 %v9289, %v9940
  %v9942 = vpop.f32.mrf.mxu0
  %9943 = vmatprep.mubr.bf16.mxu0 %v9575
  %9944 = vmatmul.mubr.bf16.gmra.mxu0 %v9574
  %v9945 = vpop.f32.mrf.mxu0
  %v9946 = vadd.f32 %v9289, %v9945
  %v9947 = vpop.f32.mrf.mxu0
  %v9948 = vpop.f32.mrf.mxu0
  %v9949 = vadd.f32 %v9289, %v9948
  %v9950 = vpop.f32.mrf.mxu0
  %9951 = vmatprep.mubr.bf16.mxu0 %v9578
  %9952 = vmatmul.mubr.bf16.gmra.mxu0 %v9577
  %v9953 = vpop.f32.mrf.mxu0
  %v9954 = vadd.f32 %v9289, %v9953
  %v9955 = vpop.f32.mrf.mxu0
  %v9956 = vpop.f32.mrf.mxu0
  %v9957 = vadd.f32 %v9289, %v9956
  %v9958 = vpop.f32.mrf.mxu0
  %9959 = vmatprep.mubr.bf16.mxu0 %v9581
  %9960 = vmatmul.mubr.bf16.gmra.mxu0 %v9580
  %v9961 = vpop.f32.mrf.mxu0
  %v9962 = vadd.f32 %v9289, %v9961
  %v9963 = vpop.f32.mrf.mxu0
  %v9964 = vpop.f32.mrf.mxu0
  %v9965 = vadd.f32 %v9289, %v9964
  %v9966 = vpop.f32.mrf.mxu0
  %9967 = vmatprep.mubr.bf16.mxu0 %v9584
  %9968 = vmatmul.mubr.bf16.gmra.mxu0 %v9583
  %v9969 = vpop.f32.mrf.mxu0
  %v9970 = vadd.f32 %v9289, %v9969
  %v9971 = vpop.f32.mrf.mxu0
  %v9972 = vpop.f32.mrf.mxu0
  %v9973 = vadd.f32 %v9289, %v9972
  %v9974 = vpop.f32.mrf.mxu0
  %9975 = vmatprep.mubr.bf16.mxu0 %v9587
  %9976 = vmatmul.mubr.bf16.gmra.mxu0 %v9586
  %v9977 = vpop.f32.mrf.mxu0
  %v9978 = vadd.f32 %v9289, %v9977
  %v9979 = vpop.f32.mrf.mxu0
  %v9980 = vpop.f32.mrf.mxu0
  %v9981 = vadd.f32 %v9289, %v9980
  %v9982 = vpop.f32.mrf.mxu0
  %9983 = vmatprep.mubr.bf16.mxu0 %v9590
  %9984 = vmatmul.mubr.bf16.gmra.mxu0 %v9589
  %v9985 = vpop.f32.mrf.mxu0
  %v9986 = vadd.f32 %v9289, %v9985
  %v9987 = vpop.f32.mrf.mxu0
  %v9988 = vpop.f32.mrf.mxu0
  %v9989 = vadd.f32 %v9289, %v9988
  %v9990 = vpop.f32.mrf.mxu0
  %9991 = vmatprep.mubr.bf16.mxu0 %v9593
  %9992 = vmatmul.mubr.bf16.gmra.mxu0 %v9592
  %v9993 = vpop.f32.mrf.mxu0
  %v9994 = vadd.f32 %v9289, %v9993
  %v9995 = vpop.f32.mrf.mxu0
  %v9996 = vpop.f32.mrf.mxu0
  %v9997 = vadd.f32 %v9289, %v9996
  %v9998 = vpop.f32.mrf.mxu0
  %9999 = vmatprep.mubr.bf16.mxu0 %v9596
  %10000 = vmatmul.mubr.bf16.gmra.mxu0 %v9595
  %v10001 = vpop.f32.mrf.mxu0
  %v10002 = vadd.f32 %v9289, %v10001
  %v10003 = vpop.f32.mrf.mxu0
  %v10004 = vpop.f32.mrf.mxu0
  %v10005 = vadd.f32 %v9289, %v10004
  %v10006 = vpop.f32.mrf.mxu0
  %10007 = vmatprep.mubr.bf16.mxu0 %v9599
  %10008 = vmatmul.mubr.bf16.gmra.mxu0 %v9598
  %v10009 = vpop.f32.mrf.mxu0
  %v10010 = vadd.f32 %v9289, %v10009
  %v10011 = vpop.f32.mrf.mxu0
  %v10012 = vpop.f32.mrf.mxu0
  %v10013 = vadd.f32 %v9289, %v10012
  %v10014 = vpop.f32.mrf.mxu0
  %10015 = vmatprep.mubr.bf16.mxu0 %v9602
  %10016 = vmatmul.mubr.bf16.gmra.mxu0 %v9601
  %v10017 = vpop.f32.mrf.mxu0
  %v10018 = vadd.f32 %v9289, %v10017
  %v10019 = vpop.f32.mrf.mxu0
  %v10020 = vpop.f32.mrf.mxu0
  %v10021 = vadd.f32 %v9289, %v10020
  %v10022 = vpop.f32.mrf.mxu0
  %10023 = vmatprep.mubr.bf16.mxu0 %v9605
  %10024 = vmatmul.mubr.bf16.gmra.mxu0 %v9604
  %v10025 = vpop.f32.mrf.mxu0
  %v10026 = vadd.f32 %v9289, %v10025
  %v10027 = vpop.f32.mrf.mxu0
  %v10028 = vpop.f32.mrf.mxu0
  %v10029 = vadd.f32 %v9289, %v10028
  %v10030 = vpop.f32.mrf.mxu0
  %10031 = vmatprep.mubr.bf16.mxu0 %v9608
  %10032 = vmatmul.mubr.bf16.gmra.mxu0 %v9607
  %v10033 = vpop.f32.mrf.mxu0
  %v10034 = vadd.f32 %v9289, %v10033
  %v10035 = vpop.f32.mrf.mxu0
  %v10036 = vpop.f32.mrf.mxu0
  %v10037 = vadd.f32 %v9289, %v10036
  %v10038 = vpop.f32.mrf.mxu0
  %10039 = vmatprep.mubr.bf16.mxu0 %v9611
  %10040 = vmatmul.mubr.bf16.gmra.mxu0 %v9610
  %v10041 = vpop.f32.mrf.mxu0
  %v10042 = vadd.f32 %v9289, %v10041
  %v10043 = vpop.f32.mrf.mxu0
  %v10044 = vpop.f32.mrf.mxu0
  %v10045 = vadd.f32 %v9289, %v10044
  %v10046 = vpop.f32.mrf.mxu0
  %10047 = vmatprep.mubr.bf16.mxu0 %v9614
  %10048 = vmatmul.mubr.bf16.gmra.mxu0 %v9613
  %v10049 = vpop.f32.mrf.mxu0
  %v10050 = vadd.f32 %v9289, %v10049
  %v10051 = vpop.f32.mrf.mxu0
  %v10052 = vpop.f32.mrf.mxu0
  %v10053 = vadd.f32 %v9289, %v10052
  %v10054 = vpop.f32.mrf.mxu0
  %10055 = vmatprep.mubr.bf16.mxu0 %v9617
  %10056 = vmatmul.mubr.bf16.gmra.mxu0 %v9616
  %v10057 = vpop.f32.mrf.mxu0
  %v10058 = vadd.f32 %v9289, %v10057
  %v10059 = vpop.f32.mrf.mxu0
  %v10060 = vpop.f32.mrf.mxu0
  %v10061 = vadd.f32 %v9289, %v10060
  %v10062 = vpop.f32.mrf.mxu0
  %10063 = vmatprep.mubr.bf16.mxu0 %v9620
  %10064 = vmatmul.mubr.bf16.gmra.mxu0 %v9619
  %v10065 = vpop.f32.mrf.mxu0
  %v10066 = vadd.f32 %v9289, %v10065
  %v10067 = vpop.f32.mrf.mxu0
  %v10068 = vpop.f32.mrf.mxu0
  %v10069 = vadd.f32 %v9289, %v10068
  %v10070 = vpop.f32.mrf.mxu0
  %10071 = vmatprep.mubr.bf16.mxu0 %v9623
  %10072 = vmatmul.mubr.bf16.gmra.mxu0 %v9622
  %v10073 = vpop.f32.mrf.mxu0
  %v10074 = vadd.f32 %v9289, %v10073
  %v10075 = vpop.f32.mrf.mxu0
  %v10076 = vpop.f32.mrf.mxu0
  %v10077 = vadd.f32 %v9289, %v10076
  %v10078 = vpop.f32.mrf.mxu0
  %10079 = vmatprep.mubr.bf16.mxu0 %v9626
  %10080 = vmatmul.mubr.bf16.gmra.mxu0 %v9625
  %v10081 = vpop.f32.mrf.mxu0
  %v10082 = vadd.f32 %v9289, %v10081
  %v10083 = vpop.f32.mrf.mxu0
  %v10084 = vpop.f32.mrf.mxu0
  %v10085 = vadd.f32 %v9289, %v10084
  %v10086 = vpop.f32.mrf.mxu0
  %10087 = vmatprep.mubr.bf16.mxu0 %v9629
  %10088 = vmatmul.mubr.bf16.gmra.mxu0 %v9628
  %v10089 = vpop.f32.mrf.mxu0
  %v10090 = vadd.f32 %v9289, %v10089
  %v10091 = vpop.f32.mrf.mxu0
  %v10092 = vpop.f32.mrf.mxu0
  %v10093 = vadd.f32 %v9289, %v10092
  %v10094 = vpop.f32.mrf.mxu0
  %10095 = vmatprep.mubr.bf16.mxu0 %v9632
  %10096 = vmatmul.mubr.bf16.gmra.mxu0 %v9631
  %v10097 = vpop.f32.mrf.mxu0
  %v10098 = vadd.f32 %v9289, %v10097
  %v10099 = vpop.f32.mrf.mxu0
  %v10100 = vpop.f32.mrf.mxu0
  %v10101 = vadd.f32 %v9289, %v10100
  %v10102 = vpop.f32.mrf.mxu0
  %10103 = vmatprep.mubr.bf16.mxu0 %v9635
  %10104 = vmatmul.mubr.bf16.gmra.mxu0 %v9634
  %v10105 = vpop.f32.mrf.mxu0
  %v10106 = vadd.f32 %v9289, %v10105
  %v10107 = vpop.f32.mrf.mxu0
  %v10108 = vpop.f32.mrf.mxu0
  %v10109 = vadd.f32 %v9289, %v10108
  %v10110 = vpop.f32.mrf.mxu0
  %10111 = vmatprep.mubr.bf16.mxu0 %v9638
  %10112 = vmatmul.mubr.bf16.gmra.mxu0 %v9637
  %v10113 = vpop.f32.mrf.mxu0
  %v10114 = vadd.f32 %v9289, %v10113
  %v10115 = vpop.f32.mrf.mxu0
  %v10116 = vpop.f32.mrf.mxu0
  %v10117 = vadd.f32 %v9289, %v10116
  %v10118 = vpop.f32.mrf.mxu0
  %10119 = vmatprep.mubr.bf16.mxu0 %v9641
  %10120 = vmatmul.mubr.bf16.gmra.mxu0 %v9640
  %v10121 = vpop.f32.mrf.mxu0
  %v10122 = vadd.f32 %v9289, %v10121
  %v10123 = vpop.f32.mrf.mxu0
  %v10124 = vpop.f32.mrf.mxu0
  %v10125 = vadd.f32 %v9289, %v10124
  %v10126 = vpop.f32.mrf.mxu0
  %10127 = vmatprep.mubr.bf16.mxu0 %v9644
  %10128 = vmatmul.mubr.bf16.gmra.mxu0 %v9643
  %v10129 = vpop.f32.mrf.mxu0
  %v10130 = vadd.f32 %v9289, %v10129
  %v10131 = vpop.f32.mrf.mxu0
  %v10132 = vpop.f32.mrf.mxu0
  %v10133 = vadd.f32 %v9289, %v10132
  %v10134 = vpop.f32.mrf.mxu0
  %10135 = vmatprep.mubr.bf16.mxu0 %v9647
  %10136 = vmatmul.mubr.bf16.gmra.mxu0 %v9646
  %v10137 = vpop.f32.mrf.mxu0
  %v10138 = vadd.f32 %v9289, %v10137
  %v10139 = vpop.f32.mrf.mxu0
  %v10140 = vpop.f32.mrf.mxu0
  %v10141 = vadd.f32 %v9289, %v10140
  %v10142 = vpop.f32.mrf.mxu0
  %10143 = vmatprep.mubr.bf16.mxu0 %v9650
  %10144 = vmatmul.mubr.bf16.gmra.mxu0 %v9649
  %v10145 = vpop.f32.mrf.mxu0
  %v10146 = vadd.f32 %v9289, %v10145
  %v10147 = vpop.f32.mrf.mxu0
  %v10148 = vpop.f32.mrf.mxu0
  %v10149 = vadd.f32 %v9289, %v10148
  %v10150 = vpop.f32.mrf.mxu0
  %10151 = vmatprep.mubr.bf16.mxu0 %v9653
  %10152 = vmatmul.mubr.bf16.gmra.mxu0 %v9652
  %v10153 = vpop.f32.mrf.mxu0
  %v10154 = vadd.f32 %v9289, %v10153
  %v10155 = vpop.f32.mrf.mxu0
  %v10156 = vpop.f32.mrf.mxu0
  %v10157 = vadd.f32 %v9289, %v10156
  %v10158 = vpop.f32.mrf.mxu0
  %10159 = vdwg.mxu0
  %10160 = vmatprep.subr.bf16.mxu0 0
  %10161 = vmatpush1.bf16.msra.mxu0 0
  %10162 = vmatprep.subr.bf16.mxu0 0
  %10163 = vmatpush1.bf16.msra.mxu0 0
  %10164 = vmatprep.subr.bf16.mxu0 0
  %10165 = vmatpush1.bf16.msra.mxu0 0
  %10166 = vmatprep.subr.bf16.mxu0 0
  %10167 = vmatpush1.bf16.msra.mxu0 0
  %10168 = vmatprep.subr.bf16.mxu0 0
  %10169 = vmatpush1.bf16.msra.mxu0 0
  %10170 = vmatprep.subr.bf16.mxu0 0
  %10171 = vmatpush1.bf16.msra.mxu0 0
  %10172 = vmatprep.subr.bf16.mxu0 0
  %10173 = vmatpush1.bf16.msra.mxu0 %v9800
  %10174 = vmatprep.subr.bf16.mxu0 0
  %10175 = vmatpush1.bf16.msra.mxu0 %v9799
  %10176 = vmatprep.subr.bf16.mxu0 0
  %10177 = vmatpush2.bf16.msra.mxu0 0
  %10178 = vmatprep.subr.bf16.mxu0 0
  %10179 = vmatpush2.bf16.msra.mxu0 0
  %10180 = vmatprep.subr.bf16.mxu0 0
  %10181 = vmatpush2.bf16.msra.mxu0 0
  %10182 = vmatprep.subr.bf16.mxu0 0
  %10183 = vmatpush2.bf16.msra.mxu0 0
  %10184 = vmatprep.subr.bf16.mxu0 0
  %10185 = vmatpush2.bf16.msra.mxu0 0
  %10186 = vmatprep.subr.bf16.mxu0 0
  %10187 = vmatpush2.bf16.msra.mxu0 0
  %10188 = vmatprep.subr.bf16.mxu0 0
  %10189 = vmatpush2.bf16.msra.mxu0 0
  %10190 = vmatprep.subr.bf16.mxu0 0
  %10191 = vmatpush2.bf16.msra.mxu0 0
  %10192 = vmatprep.mubr.bf16.mxu0 0
  %10193 = vmatmul.mubr.bf16.gmra.mxu0 %v9820
  %v10194 = vpop.f32.mrf.mxu0
  %v10195 = vadd.f32 %v9938, %v10194
  %v10196 = vpop.f32.mrf.mxu0
  %v10197 = vpop.f32.mrf.mxu0
  %v10198 = vadd.f32 %v9941, %v10197
  %v10199 = vpop.f32.mrf.mxu0
  %10200 = vmatprep.mubr.bf16.mxu0 0
  %10201 = vmatmul.mubr.bf16.gmra.mxu0 %v9823
  %v10202 = vpop.f32.mrf.mxu0
  %v10203 = vadd.f32 %v9946, %v10202
  %v10204 = vpop.f32.mrf.mxu0
  %v10205 = vpop.f32.mrf.mxu0
  %v10206 = vadd.f32 %v9949, %v10205
  %v10207 = vpop.f32.mrf.mxu0
  %10208 = vmatprep.mubr.bf16.mxu0 0
  %10209 = vmatmul.mubr.bf16.gmra.mxu0 %v9826
  %v10210 = vpop.f32.mrf.mxu0
  %v10211 = vadd.f32 %v9954, %v10210
  %v10212 = vpop.f32.mrf.mxu0
  %v10213 = vpop.f32.mrf.mxu0
  %v10214 = vadd.f32 %v9957, %v10213
  %v10215 = vpop.f32.mrf.mxu0
  %10216 = vmatprep.mubr.bf16.mxu0 0
  %10217 = vmatmul.mubr.bf16.gmra.mxu0 %v9829
  %v10218 = vpop.f32.mrf.mxu0
  %v10219 = vadd.f32 %v9962, %v10218
  %v10220 = vpop.f32.mrf.mxu0
  %v10221 = vpop.f32.mrf.mxu0
  %v10222 = vadd.f32 %v9965, %v10221
  %v10223 = vpop.f32.mrf.mxu0
  %10224 = vmatprep.mubr.bf16.mxu0 0
  %10225 = vmatmul.mubr.bf16.gmra.mxu0 %v9832
  %v10226 = vpop.f32.mrf.mxu0
  %v10227 = vadd.f32 %v9970, %v10226
  %v10228 = vpop.f32.mrf.mxu0
  %v10229 = vpop.f32.mrf.mxu0
  %v10230 = vadd.f32 %v9973, %v10229
  %v10231 = vpop.f32.mrf.mxu0
  %10232 = vmatprep.mubr.bf16.mxu0 0
  %10233 = vmatmul.mubr.bf16.gmra.mxu0 %v9835
  %v10234 = vpop.f32.mrf.mxu0
  %v10235 = vadd.f32 %v9978, %v10234
  %v10236 = vpop.f32.mrf.mxu0
  %v10237 = vpop.f32.mrf.mxu0
  %v10238 = vadd.f32 %v9981, %v10237
  %v10239 = vpop.f32.mrf.mxu0
  %10240 = vmatprep.mubr.bf16.mxu0 0
  %10241 = vmatmul.mubr.bf16.gmra.mxu0 %v9838
  %v10242 = vpop.f32.mrf.mxu0
  %v10243 = vadd.f32 %v9986, %v10242
  %v10244 = vpop.f32.mrf.mxu0
  %v10245 = vpop.f32.mrf.mxu0
  %v10246 = vadd.f32 %v9989, %v10245
  %v10247 = vpop.f32.mrf.mxu0
  %10248 = vmatprep.mubr.bf16.mxu0 0
  %10249 = vmatmul.mubr.bf16.gmra.mxu0 %v9841
  %v10250 = vpop.f32.mrf.mxu0
  %v10251 = vadd.f32 %v9994, %v10250
  %v10252 = vpop.f32.mrf.mxu0
  %v10253 = vpop.f32.mrf.mxu0
  %v10254 = vadd.f32 %v9997, %v10253
  %v10255 = vpop.f32.mrf.mxu0
  %10256 = vmatprep.mubr.bf16.mxu0 0
  %10257 = vmatmul.mubr.bf16.gmra.mxu0 %v9844
  %v10258 = vpop.f32.mrf.mxu0
  %v10259 = vadd.f32 %v10002, %v10258
  %v10260 = vpop.f32.mrf.mxu0
  %v10261 = vpop.f32.mrf.mxu0
  %v10262 = vadd.f32 %v10005, %v10261
  %v10263 = vpop.f32.mrf.mxu0
  %10264 = vmatprep.mubr.bf16.mxu0 0
  %10265 = vmatmul.mubr.bf16.gmra.mxu0 %v9847
  %v10266 = vpop.f32.mrf.mxu0
  %v10267 = vadd.f32 %v10010, %v10266
  %v10268 = vpop.f32.mrf.mxu0
  %v10269 = vpop.f32.mrf.mxu0
  %v10270 = vadd.f32 %v10013, %v10269
  %v10271 = vpop.f32.mrf.mxu0
  %10272 = vmatprep.mubr.bf16.mxu0 0
  %10273 = vmatmul.mubr.bf16.gmra.mxu0 %v9850
  %v10274 = vpop.f32.mrf.mxu0
  %v10275 = vadd.f32 %v10018, %v10274
  %v10276 = vpop.f32.mrf.mxu0
  %v10277 = vpop.f32.mrf.mxu0
  %v10278 = vadd.f32 %v10021, %v10277
  %v10279 = vpop.f32.mrf.mxu0
  %10280 = vmatprep.mubr.bf16.mxu0 0
  %10281 = vmatmul.mubr.bf16.gmra.mxu0 %v9853
  %v10282 = vpop.f32.mrf.mxu0
  %v10283 = vadd.f32 %v10026, %v10282
  %v10284 = vpop.f32.mrf.mxu0
  %v10285 = vpop.f32.mrf.mxu0
  %v10286 = vadd.f32 %v10029, %v10285
  %v10287 = vpop.f32.mrf.mxu0
  %10288 = vmatprep.mubr.bf16.mxu0 0
  %10289 = vmatmul.mubr.bf16.gmra.mxu0 %v9856
  %v10290 = vpop.f32.mrf.mxu0
  %v10291 = vadd.f32 %v10034, %v10290
  %v10292 = vpop.f32.mrf.mxu0
  %v10293 = vpop.f32.mrf.mxu0
  %v10294 = vadd.f32 %v10037, %v10293
  %v10295 = vpop.f32.mrf.mxu0
  %10296 = vmatprep.mubr.bf16.mxu0 0
  %10297 = vmatmul.mubr.bf16.gmra.mxu0 %v9859
  %v10298 = vpop.f32.mrf.mxu0
  %v10299 = vadd.f32 %v10042, %v10298
  %v10300 = vpop.f32.mrf.mxu0
  %v10301 = vpop.f32.mrf.mxu0
  %v10302 = vadd.f32 %v10045, %v10301
  %v10303 = vpop.f32.mrf.mxu0
  %10304 = vmatprep.mubr.bf16.mxu0 0
  %10305 = vmatmul.mubr.bf16.gmra.mxu0 %v9862
  %v10306 = vpop.f32.mrf.mxu0
  %v10307 = vadd.f32 %v10050, %v10306
  %v10308 = vpop.f32.mrf.mxu0
  %v10309 = vpop.f32.mrf.mxu0
  %v10310 = vadd.f32 %v10053, %v10309
  %v10311 = vpop.f32.mrf.mxu0
  %10312 = vmatprep.mubr.bf16.mxu0 0
  %10313 = vmatmul.mubr.bf16.gmra.mxu0 %v9865
  %v10314 = vpop.f32.mrf.mxu0
  %v10315 = vadd.f32 %v10058, %v10314
  %v10316 = vpop.f32.mrf.mxu0
  %v10317 = vpop.f32.mrf.mxu0
  %v10318 = vadd.f32 %v10061, %v10317
  %v10319 = vpop.f32.mrf.mxu0
  %10320 = vmatprep.mubr.bf16.mxu0 0
  %10321 = vmatmul.mubr.bf16.gmra.mxu0 %v9868
  %v10322 = vpop.f32.mrf.mxu0
  %v10323 = vadd.f32 %v10066, %v10322
  %v10324 = vpop.f32.mrf.mxu0
  %v10325 = vpop.f32.mrf.mxu0
  %v10326 = vadd.f32 %v10069, %v10325
  %v10327 = vpop.f32.mrf.mxu0
  %10328 = vmatprep.mubr.bf16.mxu0 0
  %10329 = vmatmul.mubr.bf16.gmra.mxu0 %v9871
  %v10330 = vpop.f32.mrf.mxu0
  %v10331 = vadd.f32 %v10074, %v10330
  %v10332 = vpop.f32.mrf.mxu0
  %v10333 = vpop.f32.mrf.mxu0
  %v10334 = vadd.f32 %v10077, %v10333
  %v10335 = vpop.f32.mrf.mxu0
  %10336 = vmatprep.mubr.bf16.mxu0 0
  %10337 = vmatmul.mubr.bf16.gmra.mxu0 %v9874
  %v10338 = vpop.f32.mrf.mxu0
  %v10339 = vadd.f32 %v10082, %v10338
  %v10340 = vpop.f32.mrf.mxu0
  %v10341 = vpop.f32.mrf.mxu0
  %v10342 = vadd.f32 %v10085, %v10341
  %v10343 = vpop.f32.mrf.mxu0
  %10344 = vmatprep.mubr.bf16.mxu0 0
  %10345 = vmatmul.mubr.bf16.gmra.mxu0 %v9877
  %v10346 = vpop.f32.mrf.mxu0
  %v10347 = vadd.f32 %v10090, %v10346
  %v10348 = vpop.f32.mrf.mxu0
  %v10349 = vpop.f32.mrf.mxu0
  %v10350 = vadd.f32 %v10093, %v10349
  %v10351 = vpop.f32.mrf.mxu0
  %10352 = vmatprep.mubr.bf16.mxu0 0
  %10353 = vmatmul.mubr.bf16.gmra.mxu0 %v9880
  %v10354 = vpop.f32.mrf.mxu0
  %v10355 = vadd.f32 %v10098, %v10354
  %v10356 = vpop.f32.mrf.mxu0
  %v10357 = vpop.f32.mrf.mxu0
  %v10358 = vadd.f32 %v10101, %v10357
  %v10359 = vpop.f32.mrf.mxu0
  %10360 = vmatprep.mubr.bf16.mxu0 0
  %10361 = vmatmul.mubr.bf16.gmra.mxu0 %v9883
  %v10362 = vpop.f32.mrf.mxu0
  %v10363 = vadd.f32 %v10106, %v10362
  %v10364 = vpop.f32.mrf.mxu0
  %v10365 = vpop.f32.mrf.mxu0
  %v10366 = vadd.f32 %v10109, %v10365
  %v10367 = vpop.f32.mrf.mxu0
  %10368 = vmatprep.mubr.bf16.mxu0 0
  %10369 = vmatmul.mubr.bf16.gmra.mxu0 %v9886
  %v10370 = vpop.f32.mrf.mxu0
  %v10371 = vadd.f32 %v10114, %v10370
  %v10372 = vpop.f32.mrf.mxu0
  %v10373 = vpop.f32.mrf.mxu0
  %v10374 = vadd.f32 %v10117, %v10373
  %v10375 = vpop.f32.mrf.mxu0
  %10376 = vmatprep.mubr.bf16.mxu0 0
  %10377 = vmatmul.mubr.bf16.gmra.mxu0 %v9889
  %v10378 = vpop.f32.mrf.mxu0
  %v10379 = vadd.f32 %v10122, %v10378
  %v10380 = vpop.f32.mrf.mxu0
  %v10381 = vpop.f32.mrf.mxu0
  %v10382 = vadd.f32 %v10125, %v10381
  %v10383 = vpop.f32.mrf.mxu0
  %10384 = vmatprep.mubr.bf16.mxu0 0
  %10385 = vmatmul.mubr.bf16.gmra.mxu0 %v9892
  %v10386 = vpop.f32.mrf.mxu0
  %v10387 = vadd.f32 %v10130, %v10386
  %v10388 = vpop.f32.mrf.mxu0
  %v10389 = vpop.f32.mrf.mxu0
  %v10390 = vadd.f32 %v10133, %v10389
  %v10391 = vpop.f32.mrf.mxu0
  %10392 = vmatprep.mubr.bf16.mxu0 0
  %10393 = vmatmul.mubr.bf16.gmra.mxu0 %v9895
  %v10394 = vpop.f32.mrf.mxu0
  %v10395 = vadd.f32 %v10138, %v10394
  %v10396 = vpop.f32.mrf.mxu0
  %v10397 = vpop.f32.mrf.mxu0
  %v10398 = vadd.f32 %v10141, %v10397
  %v10399 = vpop.f32.mrf.mxu0
  %10400 = vmatprep.mubr.bf16.mxu0 0
  %10401 = vmatmul.mubr.bf16.gmra.mxu0 %v9898
  %v10402 = vpop.f32.mrf.mxu0
  %v10403 = vadd.f32 %v10146, %v10402
  %v10404 = vpop.f32.mrf.mxu0
  %v10405 = vpop.f32.mrf.mxu0
  %v10406 = vadd.f32 %v10149, %v10405
  %v10407 = vpop.f32.mrf.mxu0
  %10408 = vmatprep.mubr.bf16.mxu0 0
  %10409 = vmatmul.mubr.bf16.gmra.mxu0 %v9901
  %v10410 = vpop.f32.mrf.mxu0
  %v10411 = vadd.f32 %v10154, %v10410
  %v10412 = vpop.f32.mrf.mxu0
  %v10413 = vpop.f32.mrf.mxu0
  %v10414 = vadd.f32 %v10157, %v10413
  %v10415 = vpop.f32.mrf.mxu0
  %10416 = vdwg.mxu0
  %v10417 = vmax.f32 %v10195, 0.0
  %v10418 = vmax.f32 %v10198, 0.0
  %v10419 = vmax.f32 %v10203, 0.0
  %v10420 = vmax.f32 %v10206, 0.0
  %v10421 = vmax.f32 %v10211, 0.0
  %v10422 = vmax.f32 %v10214, 0.0
  %v10423 = vmax.f32 %v10219, 0.0
  %v10424 = vmax.f32 %v10222, 0.0
  %v10425 = vmax.f32 %v10227, 0.0
  %v10426 = vmax.f32 %v10230, 0.0
  %v10427 = vmax.f32 %v10235, 0.0
  %v10428 = vmax.f32 %v10238, 0.0
  %v10429 = vmax.f32 %v10243, 0.0
  %v10430 = vmax.f32 %v10246, 0.0
  %v10431 = vmax.f32 %v10251, 0.0
  %v10432 = vmax.f32 %v10254, 0.0
  %v10433 = vmax.f32 %v10259, 0.0
  %v10434 = vmax.f32 %v10262, 0.0
  %v10435 = vmax.f32 %v10267, 0.0
  %v10436 = vmax.f32 %v10270, 0.0
  %v10437 = vmax.f32 %v10275, 0.0
  %v10438 = vmax.f32 %v10278, 0.0
  %v10439 = vmax.f32 %v10283, 0.0
  %v10440 = vmax.f32 %v10286, 0.0
  %v10441 = vmax.f32 %v10291, 0.0
  %v10442 = vmax.f32 %v10294, 0.0
  %v10443 = vmax.f32 %v10299, 0.0
  %v10444 = vmax.f32 %v10302, 0.0
  %v10445 = vmax.f32 %v10307, 0.0
  %v10446 = vmax.f32 %v10310, 0.0
  %v10447 = vmax.f32 %v10315, 0.0
  %v10448 = vmax.f32 %v10318, 0.0
  %v10449 = vmax.f32 %v10323, 0.0
  %v10450 = vmax.f32 %v10326, 0.0
  %v10451 = vmax.f32 %v10331, 0.0
  %v10452 = vmax.f32 %v10334, 0.0
  %v10453 = vmax.f32 %v10339, 0.0
  %v10454 = vmax.f32 %v10342, 0.0
  %v10455 = vmax.f32 %v10347, 0.0
  %v10456 = vmax.f32 %v10350, 0.0
  %v10457 = vmax.f32 %v10355, 0.0
  %v10458 = vmax.f32 %v10358, 0.0
  %v10459 = vmax.f32 %v10363, 0.0
  %v10460 = vmax.f32 %v10366, 0.0
  %v10461 = vmax.f32 %v10371, 0.0
  %v10462 = vmax.f32 %v10374, 0.0
  %v10463 = vmax.f32 %v10379, 0.0
  %v10464 = vmax.f32 %v10382, 0.0
  %v10465 = vmax.f32 %v10387, 0.0
  %v10466 = vmax.f32 %v10390, 0.0
  %v10467 = vmax.f32 %v10395, 0.0
  %v10468 = vmax.f32 %v10398, 0.0
  %v10469 = vmax.f32 %v10403, 0.0
  %v10470 = vmax.f32 %v10406, 0.0
  %v10471 = vmax.f32 %v10411, 0.0
  %v10472 = vmax.f32 %v10414, 0.0
  %vm10473 = vcmask 523264
  %10474 = vst.msk [vmem:[#allocation5] sm:$0xff] %vm10473, %v10417
  %10475 = vst.msk [vmem:[#allocation5 + $0x8] sm:$0xff] %vm10473, %v10418
  %10476 = vst.msk [vmem:[#allocation5 + $0x10] sm:$0xff] %vm10473, %v10419
  %10477 = vst.msk [vmem:[#allocation5 + $0x18] sm:$0xff] %vm10473, %v10420
  %10478 = vst.msk [vmem:[#allocation5 + $0x20] sm:$0xff] %vm10473, %v10421
  %10479 = vst.msk [vmem:[#allocation5 + $0x28] sm:$0xff] %vm10473, %v10422
  %10480 = vst.msk [vmem:[#allocation5 + $0x30] sm:$0xff] %vm10473, %v10423
  %10481 = vst.msk [vmem:[#allocation5 + $0x38] sm:$0xff] %vm10473, %v10424
  %10482 = vst.msk [vmem:[#allocation5 + $0x40] sm:$0xff] %vm10473, %v10425
  %10483 = vst.msk [vmem:[#allocation5 + $0x48] sm:$0xff] %vm10473, %v10426
  %10484 = vst.msk [vmem:[#allocation5 + $0x50] sm:$0xff] %vm10473, %v10427
  %10485 = vst.msk [vmem:[#allocation5 + $0x58] sm:$0xff] %vm10473, %v10428
  %10486 = vst.msk [vmem:[#allocation5 + $0x60] sm:$0xff] %vm10473, %v10429
  %10487 = vst.msk [vmem:[#allocation5 + $0x68] sm:$0xff] %vm10473, %v10430
  %10488 = vst.msk [vmem:[#allocation5 + $0x70] sm:$0xff] %vm10473, %v10431
  %10489 = vst.msk [vmem:[#allocation5 + $0x78] sm:$0xff] %vm10473, %v10432
  %10490 = vst.msk [vmem:[#allocation5 + $0x80] sm:$0xff] %vm10473, %v10433
  %10491 = vst.msk [vmem:[#allocation5 + $0x88] sm:$0xff] %vm10473, %v10434
  %10492 = vst.msk [vmem:[#allocation5 + $0x90] sm:$0xff] %vm10473, %v10435
  %10493 = vst.msk [vmem:[#allocation5 + $0x98] sm:$0xff] %vm10473, %v10436
  %10494 = vst.msk [vmem:[#allocation5 + $0xa0] sm:$0xff] %vm10473, %v10437
  %10495 = vst.msk [vmem:[#allocation5 + $0xa8] sm:$0xff] %vm10473, %v10438
  %10496 = vst.msk [vmem:[#allocation5 + $0xb0] sm:$0xff] %vm10473, %v10439
  %10497 = vst.msk [vmem:[#allocation5 + $0xb8] sm:$0xff] %vm10473, %v10440
  %10498 = vst.msk [vmem:[#allocation5 + $0xc0] sm:$0xff] %vm10473, %v10441
  %10499 = vst.msk [vmem:[#allocation5 + $0xc8] sm:$0xff] %vm10473, %v10442
  %10500 = vst.msk [vmem:[#allocation5 + $0xd0] sm:$0xff] %vm10473, %v10443
  %10501 = vst.msk [vmem:[#allocation5 + $0xd8] sm:$0xff] %vm10473, %v10444
  %10502 = vst.msk [vmem:[#allocation5 + $0xe0] sm:$0xff] %vm10473, %v10445
  %10503 = vst.msk [vmem:[#allocation5 + $0xe8] sm:$0xff] %vm10473, %v10446
  %10504 = vst.msk [vmem:[#allocation5 + $0xf0] sm:$0xff] %vm10473, %v10447
  %10505 = vst.msk [vmem:[#allocation5 + $0xf8] sm:$0xff] %vm10473, %v10448
  %10506 = vst.msk [vmem:[#allocation5 + $0x100] sm:$0xff] %vm10473, %v10449
  %10507 = vst.msk [vmem:[#allocation5 + $0x108] sm:$0xff] %vm10473, %v10450
  %10508 = vst.msk [vmem:[#allocation5 + $0x110] sm:$0xff] %vm10473, %v10451
  %10509 = vst.msk [vmem:[#allocation5 + $0x118] sm:$0xff] %vm10473, %v10452
  %10510 = vst.msk [vmem:[#allocation5 + $0x120] sm:$0xff] %vm10473, %v10453
  %10511 = vst.msk [vmem:[#allocation5 + $0x128] sm:$0xff] %vm10473, %v10454
  %10512 = vst.msk [vmem:[#allocation5 + $0x130] sm:$0xff] %vm10473, %v10455
  %10513 = vst.msk [vmem:[#allocation5 + $0x138] sm:$0xff] %vm10473, %v10456
  %10514 = vst.msk [vmem:[#allocation5 + $0x140] sm:$0xff] %vm10473, %v10457
  %10515 = vst.msk [vmem:[#allocation5 + $0x148] sm:$0xff] %vm10473, %v10458
  %10516 = vst.msk [vmem:[#allocation5 + $0x150] sm:$0xff] %vm10473, %v10459
  %10517 = vst.msk [vmem:[#allocation5 + $0x158] sm:$0xff] %vm10473, %v10460
  %10518 = vst.msk [vmem:[#allocation5 + $0x160] sm:$0xff] %vm10473, %v10461
  %10519 = vst.msk [vmem:[#allocation5 + $0x168] sm:$0xff] %vm10473, %v10462
  %10520 = vst.msk [vmem:[#allocation5 + $0x170] sm:$0xff] %vm10473, %v10463
  %10521 = vst.msk [vmem:[#allocation5 + $0x178] sm:$0xff] %vm10473, %v10464
  %10522 = vst.msk [vmem:[#allocation5 + $0x180] sm:$0xff] %vm10473, %v10465
  %10523 = vst.msk [vmem:[#allocation5 + $0x188] sm:$0xff] %vm10473, %v10466
  %10524 = vst.msk [vmem:[#allocation5 + $0x190] sm:$0xff] %vm10473, %v10467
  %10525 = vst.msk [vmem:[#allocation5 + $0x198] sm:$0xff] %vm10473, %v10468
  %10526 = vst.msk [vmem:[#allocation5 + $0x1a0] sm:$0xff] %vm10473, %v10469
  %10527 = vst.msk [vmem:[#allocation5 + $0x1a8] sm:$0xff] %vm10473, %v10470
  %10528 = vst.msk [vmem:[#allocation5 + $0x1b0] sm:$0xff] %vm10473, %v10471
  %10529 = vst.msk [vmem:[#allocation5 + $0x1b8] sm:$0xff] %vm10473, %v10472
  %v10530 = vld [vmem:[#allocation5] ss:$2 sm:$0xff]
  %s10531 = scalar_lea.vmem [#allocation5], 16
  %v10532 = vld [vmem:[%s10531] ss:$2 sm:$0xff]
  %s10533 = scalar_lea.vmem [#allocation5], 32
  %v10534 = vld [vmem:[%s10533] ss:$2 sm:$0xff]
  %s10535 = scalar_lea.vmem [#allocation5], 48
  %v10536 = vld [vmem:[%s10535] ss:$2 sm:$0xff]
  %s10537 = scalar_lea.vmem [#allocation5], 64
  %v10538 = vld [vmem:[%s10537] ss:$2 sm:$0xff]
  %s10539 = scalar_lea.vmem [#allocation5], 80
  %v10540 = vld [vmem:[%s10539] ss:$2 sm:$0xff]
  %s10541 = scalar_lea.vmem [#allocation5], 96
  %v10542 = vld [vmem:[%s10541] ss:$2 sm:$0xff]
  %s10543 = scalar_lea.vmem [#allocation5], 112
  %v10544 = vld [vmem:[%s10543] ss:$2 sm:$0xff]
  %s10545 = scalar_lea.vmem [#allocation5], 128
  %v10546 = vld [vmem:[%s10545] ss:$2 sm:$0xff]
  %s10547 = scalar_lea.vmem [#allocation5], 144
  %v10548 = vld [vmem:[%s10547] ss:$2 sm:$0xff]
  %s10549 = scalar_lea.vmem [#allocation5], 160
  %v10550 = vld [vmem:[%s10549] ss:$2 sm:$0xff]
  %s10551 = scalar_lea.vmem [#allocation5], 176
  %v10552 = vld [vmem:[%s10551] ss:$2 sm:$0xff]
  %s10553 = scalar_lea.vmem [#allocation5], 192
  %v10554 = vld [vmem:[%s10553] ss:$2 sm:$0xff]
  %s10555 = scalar_lea.vmem [#allocation5], 208
  %v10556 = vld [vmem:[%s10555] ss:$2 sm:$0x7f]
  %s10557 = scalar_lea.vmem [#allocation5], 1
  %v10558 = vld [vmem:[%s10557] ss:$2 sm:$0xff]
  %s10559 = scalar_lea.vmem [#allocation5], 17
  %v10560 = vld [vmem:[%s10559] ss:$2 sm:$0xff]
  %s10561 = scalar_lea.vmem [#allocation5], 33
  %v10562 = vld [vmem:[%s10561] ss:$2 sm:$0xff]
  %s10563 = scalar_lea.vmem [#allocation5], 49
  %v10564 = vld [vmem:[%s10563] ss:$2 sm:$0xff]
  %s10565 = scalar_lea.vmem [#allocation5], 65
  %v10566 = vld [vmem:[%s10565] ss:$2 sm:$0xff]
  %s10567 = scalar_lea.vmem [#allocation5], 81
  %v10568 = vld [vmem:[%s10567] ss:$2 sm:$0xff]
  %s10569 = scalar_lea.vmem [#allocation5], 97
  %v10570 = vld [vmem:[%s10569] ss:$2 sm:$0xff]
  %s10571 = scalar_lea.vmem [#allocation5], 113
  %v10572 = vld [vmem:[%s10571] ss:$2 sm:$0xff]
  %s10573 = scalar_lea.vmem [#allocation5], 129
  %v10574 = vld [vmem:[%s10573] ss:$2 sm:$0xff]
  %s10575 = scalar_lea.vmem [#allocation5], 145
  %v10576 = vld [vmem:[%s10575] ss:$2 sm:$0xff]
  %s10577 = scalar_lea.vmem [#allocation5], 161
  %v10578 = vld [vmem:[%s10577] ss:$2 sm:$0xff]
  %s10579 = scalar_lea.vmem [#allocation5], 177
  %v10580 = vld [vmem:[%s10579] ss:$2 sm:$0xff]
  %s10581 = scalar_lea.vmem [#allocation5], 193
  %v10582 = vld [vmem:[%s10581] ss:$2 sm:$0xff]
  %s10583 = scalar_lea.vmem [#allocation5], 209
  %v10584 = vld [vmem:[%s10583] ss:$2 sm:$0x7f]
  %v10585 = vmax.f32 %v10530, %v10558
  %v10586 = vmax.f32 %v10532, %v10560
  %v10587 = vmax.f32 %v10534, %v10562
  %v10588 = vmax.f32 %v10536, %v10564
  %v10589 = vmax.f32 %v10538, %v10566
  %v10590 = vmax.f32 %v10540, %v10568
  %v10591 = vmax.f32 %v10542, %v10570
  %v10592 = vmax.f32 %v10544, %v10572
  %v10593 = vmax.f32 %v10546, %v10574
  %v10594 = vmax.f32 %v10548, %v10576
  %v10595 = vmax.f32 %v10550, %v10578
  %v10596 = vmax.f32 %v10552, %v10580
  %v10597 = vmax.f32 %v10554, %v10582
  %v10598 = vmax.f32 %v10556, %v10584
  %v10599 = vmax.f32 %v10585, %v10586
  %v10600 = vmax.f32 %v10587, %v10588
  %v10601 = vmax.f32 %v10589, %v10590
  %v10602 = vmax.f32 %v10591, %v10592
  %v10603 = vmax.f32 %v10593, %v10594
  %v10604 = vmax.f32 %v10595, %v10596
  %v10605 = vmax.f32 %v10597, %v10598
  %v10606 = vpack.c.bf16 %v10599, %v10599
  %vm10607 = vcmask 519168
  %vm10608 = vmand %vm10607, %vm4177
  %v10609 = vld [vmem:[%s5] sm:$0xf]
  %v10610 = vsel %vm10608, %v10606, %v10609
  %10611 = vst [vmem:[%s5] sm:$0xf] %v10610
  %v10612 = vpack.c.bf16 %v10600, %v10600
  %v10614 = vunpack.c.l.b16 %v10612
  %v10615 = vpack.c.b16 %v10614, %v10614
  %v10617 = vshll.u32 %v10615, 16
  %v10619 = vrot.slane %v10617, 5
  %v10620 = vshrl.u32 %v10615, 16
  %v10622 = vrot.slane %v10620, 4
  %v10623 = vor.u32 %v10622, %v10619
  %v10624 = vrot.slane %v10623, 4
  %vm10627 = vcmask 519171
  %vm10628 = vsmask.f32 7950
  %vm10629 = vmand %vm10627, %vm10628
  %v10630 = vld [vmem:[%s5] sm:$0x8]
  %v10631 = vsel %vm10629, %v10619, %v10630
  %10632 = vst [vmem:[%s5] sm:$0x8] %v10631
  %vm10633 = vcmask 518144
  %10634 = vst.msk [vmem:[%s5 + $0x4] sm:$0x7] %vm10633, %v10624
  %v10635 = vpack.c.bf16 %v10601, %v10601
  %v10637 = vunpack.c.l.b16 %v10635
  %v10638 = vpack.c.b16 %v10637, %v10637
  %v10639 = vrot.slane %v10638, 5
  %v10640 = vrot.slane %v10639, 4
  %vm10643 = vcmask 519171
  %10644 = vst.msk [vmem:[%s5 + $0x4] sm:$0x8] %vm10643, %v10639
  %vm10645 = vcmask 518144
  %vm10646 = vsmask.f32 2304
  %vm10647 = vmand %vm10645, %vm10646
  %v10648 = vld [vmem:[%s5 + $0x8] sm:$0x7]
  %v10649 = vsel %vm10647, %v10640, %v10648
  %10650 = vst [vmem:[%s5 + $0x8] sm:$0x7] %v10649
  %v10651 = vpack.c.bf16 %v10602, %v10602
  %v10653 = vunpack.c.l.b16 %v10651
  %v10654 = vpack.c.b16 %v10653, %v10653
  %v10656 = vshrl.u32 %v10654, 16
  %v10658 = vrot.slane %v10656, 5
  %v10659 = vshll.u32 %v10654, 16
  %v10661 = vrot.slane %v10659, 6
  %v10662 = vor.u32 %v10658, %v10661
  %v10663 = vrot.slane %v10662, 4
  %vm10666 = vcmask 519170
  %vm10667 = vsmask.f32 7946
  %vm10668 = vmand %vm10666, %vm10667
  %v10669 = vld [vmem:[%s5 + $0x8] sm:$0xc]
  %v10670 = vsel %vm10668, %v10662, %v10669
  %10671 = vst [vmem:[%s5 + $0x8] sm:$0xc] %v10670
  %vm10672 = vcmask 517120
  %10673 = vst.msk [vmem:[%s5 + $0xc] sm:$0x3] %vm10672, %v10663
  %v10674 = vpack.c.bf16 %v10603, %v10603
  %v10676 = vunpack.c.l.b16 %v10674
  %v10677 = vpack.c.b16 %v10676, %v10676
  %v10678 = vrot.slane %v10677, 6
  %v10679 = vrot.slane %v10678, 4
  %vm10682 = vcmask 519170
  %10683 = vst.msk [vmem:[%s5 + $0xc] sm:$0xc] %vm10682, %v10678
  %vm10684 = vcmask 517120
  %vm10685 = vsmask.f32 1280
  %vm10686 = vmand %vm10684, %vm10685
  %v10687 = vld [vmem:[%s5 + $0x10] sm:$0x3]
  %v10688 = vsel %vm10686, %v10679, %v10687
  %10689 = vst [vmem:[%s5 + $0x10] sm:$0x3] %v10688
  %v10690 = vpack.c.bf16 %v10604, %v10604
  %v10692 = vunpack.c.l.b16 %v10690
  %v10693 = vpack.c.b16 %v10692, %v10692
  %v10695 = vshrl.u32 %v10693, 16
  %v10697 = vrot.slane %v10695, 6
  %v10698 = vshll.u32 %v10693, 16
  %v10700 = vrot.slane %v10698, 7
  %v10701 = vor.u32 %v10697, %v10700
  %v10702 = vrot.slane %v10701, 4
  %vm10705 = vcmask 519169
  %vm10706 = vsmask.f32 7942
  %vm10707 = vmand %vm10705, %vm10706
  %v10708 = vld [vmem:[%s5 + $0x10] sm:$0xe]
  %v10709 = vsel %vm10707, %v10701, %v10708
  %10710 = vst [vmem:[%s5 + $0x10] sm:$0xe] %v10709
  %vm10711 = vcmask 516096
  %10712 = vst.msk [vmem:[%s5 + $0x14] sm:$0x1] %vm10711, %v10702
  %v10713 = vpack.c.bf16 %v10605, %v10605
  %v10715 = vunpack.c.l.b16 %v10713
  %v10716 = vpack.c.b16 %v10715, %v10715
  %v10717 = vrot.slane %v10716, 7
  %v10718 = vrot.slane %v10717, 4
  %vm10721 = vcmask 519169
  %10722 = vst.msk [vmem:[%s5 + $0x14] sm:$0xe] %vm10721, %v10717
  %vm10723 = vcmask 516096
  %vm10724 = vmand %vm10723, %vm3664
  %v10725 = vld [vmem:[%s5 + $0x18] sm:$0x1]
  %v10726 = vsel %vm10724, %v10718, %v10725
  %10727 = vst [vmem:[%s5 + $0x18] sm:$0x1] %v10726
  %s10728 = scalar_lea.vmem [#allocation5], 224
  %v10729 = vld [vmem:[%s10728] ss:$2 sm:$0xff]
  %s10730 = scalar_lea.vmem [#allocation5], 240
  %v10731 = vld [vmem:[%s10730] ss:$2 sm:$0xff]
  %s10732 = scalar_lea.vmem [#allocation5], 256
  %v10733 = vld [vmem:[%s10732] ss:$2 sm:$0xff]
  %s10734 = scalar_lea.vmem [#allocation5], 272
  %v10735 = vld [vmem:[%s10734] ss:$2 sm:$0xff]
  %s10736 = scalar_lea.vmem [#allocation5], 288
  %v10737 = vld [vmem:[%s10736] ss:$2 sm:$0xff]
  %s10738 = scalar_lea.vmem [#allocation5], 304
  %v10739 = vld [vmem:[%s10738] ss:$2 sm:$0xff]
  %s10740 = scalar_lea.vmem [#allocation5], 320
  %v10741 = vld [vmem:[%s10740] ss:$2 sm:$0xff]
  %s10742 = scalar_lea.vmem [#allocation5], 336
  %v10743 = vld [vmem:[%s10742] ss:$2 sm:$0xff]
  %s10744 = scalar_lea.vmem [#allocation5], 352
  %v10745 = vld [vmem:[%s10744] ss:$2 sm:$0xff]
  %s10746 = scalar_lea.vmem [#allocation5], 368
  %v10747 = vld [vmem:[%s10746] ss:$2 sm:$0xff]
  %s10748 = scalar_lea.vmem [#allocation5], 384
  %v10749 = vld [vmem:[%s10748] ss:$2 sm:$0xff]
  %s10750 = scalar_lea.vmem [#allocation5], 400
  %v10751 = vld [vmem:[%s10750] ss:$2 sm:$0xff]
  %s10752 = scalar_lea.vmem [#allocation5], 416
  %v10753 = vld [vmem:[%s10752] ss:$2 sm:$0xff]
  %s10754 = scalar_lea.vmem [#allocation5], 432
  %v10755 = vld [vmem:[%s10754] ss:$2 sm:$0x7f]
  %s10756 = scalar_lea.vmem [#allocation5], 225
  %v10757 = vld [vmem:[%s10756] ss:$2 sm:$0xff]
  %s10758 = scalar_lea.vmem [#allocation5], 241
  %v10759 = vld [vmem:[%s10758] ss:$2 sm:$0xff]
  %s10760 = scalar_lea.vmem [#allocation5], 257
  %v10761 = vld [vmem:[%s10760] ss:$2 sm:$0xff]
  %s10762 = scalar_lea.vmem [#allocation5], 273
  %v10763 = vld [vmem:[%s10762] ss:$2 sm:$0xff]
  %s10764 = scalar_lea.vmem [#allocation5], 289
  %v10765 = vld [vmem:[%s10764] ss:$2 sm:$0xff]
  %s10766 = scalar_lea.vmem [#allocation5], 305
  %v10767 = vld [vmem:[%s10766] ss:$2 sm:$0xff]
  %s10768 = scalar_lea.vmem [#allocation5], 321
  %v10769 = vld [vmem:[%s10768] ss:$2 sm:$0xff]
  %s10770 = scalar_lea.vmem [#allocation5], 337
  %v10771 = vld [vmem:[%s10770] ss:$2 sm:$0xff]
  %s10772 = scalar_lea.vmem [#allocation5], 353
  %v10773 = vld [vmem:[%s10772] ss:$2 sm:$0xff]
  %s10774 = scalar_lea.vmem [#allocation5], 369
  %v10775 = vld [vmem:[%s10774] ss:$2 sm:$0xff]
  %s10776 = scalar_lea.vmem [#allocation5], 385
  %v10777 = vld [vmem:[%s10776] ss:$2 sm:$0xff]
  %s10778 = scalar_lea.vmem [#allocation5], 401
  %v10779 = vld [vmem:[%s10778] ss:$2 sm:$0xff]
  %s10780 = scalar_lea.vmem [#allocation5], 417
  %v10781 = vld [vmem:[%s10780] ss:$2 sm:$0xff]
  %s10782 = scalar_lea.vmem [#allocation5], 433
  %v10783 = vld [vmem:[%s10782] ss:$2 sm:$0x7f]
  %v10784 = vmax.f32 %v10729, %v10757
  %v10785 = vmax.f32 %v10731, %v10759
  %v10786 = vmax.f32 %v10733, %v10761
  %v10787 = vmax.f32 %v10735, %v10763
  %v10788 = vmax.f32 %v10737, %v10765
  %v10789 = vmax.f32 %v10739, %v10767
  %v10790 = vmax.f32 %v10741, %v10769
  %v10791 = vmax.f32 %v10743, %v10771
  %v10792 = vmax.f32 %v10745, %v10773
  %v10793 = vmax.f32 %v10747, %v10775
  %v10794 = vmax.f32 %v10749, %v10777
  %v10795 = vmax.f32 %v10751, %v10779
  %v10796 = vmax.f32 %v10753, %v10781
  %v10797 = vmax.f32 %v10755, %v10783
  %v10798 = vmax.f32 %v10784, %v10785
  %v10799 = vmax.f32 %v10786, %v10787
  %v10800 = vmax.f32 %v10788, %v10789
  %v10801 = vmax.f32 %v10790, %v10791
  %v10802 = vmax.f32 %v10792, %v10793
  %v10803 = vmax.f32 %v10794, %v10795
  %v10804 = vmax.f32 %v10796, %v10797
  %v10805 = vpack.c.bf16 %v10798, %v10798
  %s10806 = scalar_lea.vmem %s5, 28
  %v10807 = vld [vmem:[%s10806] sm:$0xf]
  %v10808 = vsel %vm10608, %v10805, %v10807
  %10809 = vst [vmem:[%s10806] sm:$0xf] %v10808
  %v10810 = vpack.c.bf16 %v10799, %v10799
  %v10812 = vunpack.c.l.b16 %v10810
  %v10813 = vpack.c.b16 %v10812, %v10812
  %v10815 = vshll.u32 %v10813, 16
  %v10817 = vrot.slane %v10815, 5
  %v10818 = vshrl.u32 %v10813, 16
  %v10820 = vrot.slane %v10818, 4
  %v10821 = vor.u32 %v10820, %v10817
  %v10822 = vrot.slane %v10821, 4
  %v10825 = vld [vmem:[%s10806] sm:$0x8]
  %v10826 = vsel %vm10629, %v10817, %v10825
  %10827 = vst [vmem:[%s10806] sm:$0x8] %v10826
  %10828 = vst.msk [vmem:[%s10806 + $0x4] sm:$0x7] %vm10633, %v10822
  %v10829 = vpack.c.bf16 %v10800, %v10800
  %v10831 = vunpack.c.l.b16 %v10829
  %v10832 = vpack.c.b16 %v10831, %v10831
  %v10833 = vrot.slane %v10832, 5
  %v10834 = vrot.slane %v10833, 4
  %10837 = vst.msk [vmem:[%s10806 + $0x4] sm:$0x8] %vm10643, %v10833
  %v10838 = vld [vmem:[%s10806 + $0x8] sm:$0x7]
  %v10839 = vsel %vm10647, %v10834, %v10838
  %10840 = vst [vmem:[%s10806 + $0x8] sm:$0x7] %v10839
  %v10841 = vpack.c.bf16 %v10801, %v10801
  %v10843 = vunpack.c.l.b16 %v10841
  %v10844 = vpack.c.b16 %v10843, %v10843
  %v10846 = vshrl.u32 %v10844, 16
  %v10848 = vrot.slane %v10846, 5
  %v10849 = vshll.u32 %v10844, 16
  %v10851 = vrot.slane %v10849, 6
  %v10852 = vor.u32 %v10848, %v10851
  %v10853 = vrot.slane %v10852, 4
  %v10856 = vld [vmem:[%s10806 + $0x8] sm:$0xc]
  %v10857 = vsel %vm10668, %v10852, %v10856
  %10858 = vst [vmem:[%s10806 + $0x8] sm:$0xc] %v10857
  %10859 = vst.msk [vmem:[%s10806 + $0xc] sm:$0x3] %vm10672, %v10853
  %v10860 = vpack.c.bf16 %v10802, %v10802
  %v10862 = vunpack.c.l.b16 %v10860
  %v10863 = vpack.c.b16 %v10862, %v10862
  %v10864 = vrot.slane %v10863, 6
  %v10865 = vrot.slane %v10864, 4
  %10868 = vst.msk [vmem:[%s10806 + $0xc] sm:$0xc] %vm10682, %v10864
  %v10869 = vld [vmem:[%s10806 + $0x10] sm:$0x3]
  %v10870 = vsel %vm10686, %v10865, %v10869
  %10871 = vst [vmem:[%s10806 + $0x10] sm:$0x3] %v10870
  %v10872 = vpack.c.bf16 %v10803, %v10803
  %v10874 = vunpack.c.l.b16 %v10872
  %v10875 = vpack.c.b16 %v10874, %v10874
  %v10877 = vshrl.u32 %v10875, 16
  %v10879 = vrot.slane %v10877, 6
  %v10880 = vshll.u32 %v10875, 16
  %v10882 = vrot.slane %v10880, 7
  %v10883 = vor.u32 %v10879, %v10882
  %v10884 = vrot.slane %v10883, 4
  %v10887 = vld [vmem:[%s10806 + $0x10] sm:$0xe]
  %v10888 = vsel %vm10707, %v10883, %v10887
  %10889 = vst [vmem:[%s10806 + $0x10] sm:$0xe] %v10888
  %10890 = vst.msk [vmem:[%s10806 + $0x14] sm:$0x1] %vm10711, %v10884
  %v10891 = vpack.c.bf16 %v10804, %v10804
  %v10893 = vunpack.c.l.b16 %v10891
  %v10894 = vpack.c.b16 %v10893, %v10893
  %v10895 = vrot.slane %v10894, 7
  %v10896 = vrot.slane %v10895, 4
  %10899 = vst.msk [vmem:[%s10806 + $0x14] sm:$0xe] %vm10721, %v10895
  %v10900 = vld [vmem:[%s10806 + $0x18] sm:$0x1]
  %v10901 = vsel %vm10724, %v10896, %v10900
  %10902 = vst [vmem:[%s10806 + $0x18] sm:$0x1] %v10901
  // Predicated region
  $region22: #{cnn_forward.2} parent=0 // pred_check
    _
  $region23: #{cnn_forward.2} parent=0 // pred_check_branch
    %10904 = sbr.rel (0) target = $region25
  $region24: #{cnn_forward.2} parent=0 // pred_region
    _
  $region25: #{cnn_forward.2} parent=0 // pred_fallthru
    _
  // Predicated region
  $region26: #{cnn_forward.2} parent=0 // pred_check
    _
  $region27: #{cnn_forward.2} parent=0 // pred_check_branch
    %10906 = sbr.rel (0) target = $region29
  $region28: #{cnn_forward.2} parent=0 // pred_region
    _
  $region29: #{cnn_forward.2} parent=0 // pred_fallthru
    _

</llo_original>
